<compile_context>
chip_gen: v6e
topology: v6e:2x2x1
jax: 0.10.0
libtpu: 0.0.40
codegen_flags: <defaults>
</compile_context>

<pallas_src>
import functools

import numpy as np
import jax
import jax.numpy as jnp
from jax.experimental import pallas as pl
from jax.experimental.pallas import tpu as pltpu


B_TILE = 8          # images per grid step (batch folded into the matmul M dimension)
K = 5               # conv kernel size

# Static sizes (stage 1: 32x32x3 -> conv 28x28x6 -> pool 14x14x6,
#               stage 2: 14x14x6 -> conv 10x10x16 -> pool 5x5x16)
X_ROWS = B_TILE * 32            # 256 input rows per grid step (b*32 + h)
X_LANES = 32 * 3                # 96  input lanes (w*3 + c)
C1_M = X_ROWS - (K - 1)         # 252 conv1 M rows (b*32 + oh, oh<=27 valid)
C1_N = 28 * 6                   # 168 conv1 lanes (ow*6 + oc)
P1_ROWS = B_TILE * 16           # 128 stage-1 pooled rows (b*16 + r, r<=13 valid)
P1_N = 14 * 6                   # 84  stage-1 pooled lanes (pw*6 + oc)
C2_M = B_TILE * 16 - 6          # 122 conv2 M rows (b*16 + oh2, oh2<=9 valid)
C2_N = 10 * 16                  # 160 conv2 lanes (ow2*16 + oc2)
P2_ROWS = B_TILE * 8            # 64  stage-2 pooled rows (r2*B_TILE + b, r2<=4 valid)
P2_N = 5 * 16                   # 80  stage-2 pooled lanes (pw2*16 + oc2)
FC_PAD = 128                    # fc1/fc2/fc3 widths zero-padded to a full lane tile


# ---------------------------------------------------------------------------
# The fused single-kernel forward pass (conv1 -> pool -> conv2 -> pool -> fc1/fc2/fc3)
# ---------------------------------------------------------------------------
def _net_kernel(x_ref, band1_ref, p1_ref, s1_ref, b1_ref,
                band2_ref, p2_ref, s2_ref, b2_ref,
                w1_ref, b1f_ref, w2_ref, b2f_ref, w3_ref, b3f_ref,
                o_ref, h1_scr):
    dot = functools.partial(jnp.dot, preferred_element_type=jnp.float32)

    # ---- stage 1: conv1 as 5 banded matmuls over shifted contiguous row slabs ----
    y = dot(x_ref[pl.ds(0, C1_M), :], band1_ref[0])
    for kh in range(1, K):
        y = y + dot(x_ref[pl.ds(kh, C1_M), :], band1_ref[kh])          # (252, 168)
    # maxpool 2x2: H via row-selection matmuls, W via lane-selection matmuls,
    # then bias + ReLU (exact after the max).
    z = jnp.maximum(dot(p1_ref[0], y), dot(p1_ref[1], y))              # (128, 168)
    z = jnp.maximum(dot(z, s1_ref[0]), dot(z, s1_ref[1]))              # (128, 84)
    h1_scr[...] = jnp.maximum(z + b1_ref[...], 0.0)                    # stage-1 act in VMEM

    # ---- stage 2: conv2 on the VMEM-resident stage-1 activation ----
    y2 = dot(h1_scr[pl.ds(0, C2_M), :], band2_ref[0])
    for kh in range(1, K):
        y2 = y2 + dot(h1_scr[pl.ds(kh, C2_M), :], band2_ref[kh])       # (122, 160)
    z2 = jnp.maximum(dot(p2_ref[0], y2), dot(p2_ref[1], y2))           # (64, 160)
    z2 = jnp.maximum(dot(z2, s2_ref[0]), dot(z2, s2_ref[1]))           # (64, 80)
    feat = jnp.maximum(z2 + b2_ref[...], 0.0)                          # rows: ph*B_TILE + b

    # ---- fc1 + ReLU -> fc2 + ReLU -> fc3 (weights pre-laid-out, N padded to 128) ----
    acc = dot(feat[0:B_TILE, :], w1_ref[0])                            # flatten == sum over ph
    for ph in range(1, 5):
        acc = acc + dot(feat[ph * B_TILE:(ph + 1) * B_TILE, :], w1_ref[ph])
    h = jnp.maximum(acc + b1f_ref[...], 0.0)                           # (B_TILE, 128)
    h = jnp.maximum(dot(h, w2_ref[...]) + b2f_ref[...], 0.0)
    o_ref[...] = (dot(h, w3_ref[...]) + b3f_ref[...]).astype(o_ref.dtype)


def _forward_padded(kp, x2d, bp):
    def const(shape):
        return pl.BlockSpec(shape, lambda i, s=len(shape): (0,) * s)

    return pl.pallas_call(
        _net_kernel,
        out_shape=jax.ShapeDtypeStruct((bp, FC_PAD), jnp.float32),
        grid_spec=pltpu.PrefetchScalarGridSpec(
            num_scalar_prefetch=0,
            grid=(bp // B_TILE,),
            in_specs=[
                pl.BlockSpec((X_ROWS, X_LANES), lambda i: (i, 0)),   # input slab per step
                const((K, X_LANES, C1_N)),        # conv1 band weights
                const((2, P1_ROWS, C1_M)),        # stage-1 H-pool row selection
                const((2, C1_N, P1_N)),           # stage-1 W-pool lane selection
                const((1, P1_N)),                 # conv1 bias (tiled per pooled column)
                const((K, P1_N, C2_N)),           # conv2 band weights
                const((2, P2_ROWS, C2_M)),        # stage-2 H-pool row selection
                const((2, C2_N, P2_N)),           # stage-2 W-pool lane selection
                const((1, P2_N)),                 # conv2 bias
                const((5, P2_N, FC_PAD)),         # fc1 (split per pooled row, NCHW-permuted)
                const((1, FC_PAD)),               # fc1 bias (padded)
                const((FC_PAD, FC_PAD)),          # fc2 (padded)
                const((1, FC_PAD)),
                const((FC_PAD, FC_PAD)),          # fc3 (padded)
                const((1, FC_PAD)),
            ],
            out_specs=pl.BlockSpec((B_TILE, FC_PAD), lambda i: (i, 0)),
            scratch_shapes=[pltpu.VMEM((P1_ROWS, P1_N), jnp.float32)],  # stage-1 activation
        ),
        compiler_params=pltpu.CompilerParams(
            dimension_semantics=("parallel",),
            vmem_limit_bytes=32 * 1024 * 1024,
        ),
    )(x2d, kp["band1"], kp["p1"], kp["s1"], kp["b1"],
      kp["band2"], kp["p2"], kp["s2"], kp["b2"],
      kp["fc1_w"], kp["fc1_b"], kp["fc2_w"], kp["fc2_b"], kp["fc3_w"], kp["fc3_b"])


@jax.jit
def net_forward(kp, x):
    """x: (B, 3, 32, 32) NCHW float32 -> (B, 10) logits (matches PyTorch Net.forward)."""
    b = x.shape[0]
    bp = ((b + B_TILE - 1) // B_TILE) * B_TILE
    xh = jnp.transpose(x, (0, 2, 3, 1))                      # the only transpose (NCHW->NHWC)
    if bp != b:
        xh = jnp.pad(xh, ((0, bp - b), (0, 0), (0, 0), (0, 0)))
    x2d = xh.reshape(bp * 32, X_LANES)                       # free contiguous reshape
    out = _forward_padded(kp, x2d, bp)
    return out[:b, :10]


# ---------------------------------------------------------------------------
# One-time host-side constant / weight layout preparation
# ---------------------------------------------------------------------------
def _band_matrix(w_oihw, in_w):
    """band[kh, iw*CI+c, ow*OC+oc] = w[oc, c, kh, iw-ow] for 0 <= iw-ow < K, else 0."""
    w = np.asarray(w_oihw, np.float32)
    oc, ci, k, _ = w.shape
    out_w = in_w - k + 1
    band = np.zeros((k, in_w * ci, out_w * oc), np.float32)
    wt = np.transpose(w, (2, 3, 1, 0))                       # (kh, kw, ci, oc)
    for kh in range(k):
        for kw in range(k):
            for ow in range(out_w):
                iw = ow + kw
                band[kh, iw * ci:(iw + 1) * ci, ow * oc:(ow + 1) * oc] = wt[kh, kw]
    return band


def _hpool_rows_stage1(bt):
    """(2, bt*16, bt*32-4): pick conv1 rows 2r / 2r+1 of image b into pooled row b*16+r."""
    p = np.zeros((2, bt * 16, bt * 32 - (K - 1)), np.float32)
    for b in range(bt):
        for r in range(14):
            p[0, b * 16 + r, b * 32 + 2 * r] = 1.0
            p[1, b * 16 + r, b * 32 + 2 * r + 1] = 1.0
    return p


def _hpool_rows_stage2(bt):
    """(2, bt*8, bt*16-6): pick conv2 rows 2r / 2r+1 of image b into pooled row r*bt+b."""
    p = np.zeros((2, bt * 8, bt * 16 - 6), np.float32)
    for b in range(bt):
        for r in range(5):
            p[0, r * bt + b, b * 16 + 2 * r] = 1.0
            p[1, r * bt + b, b * 16 + 2 * r + 1] = 1.0
    return p


def _wpool_lanes(out_w, oc):
    """(2, 2*out_w*oc, out_w*oc): pick even / odd conv columns (lane groups of size oc)."""
    s = np.zeros((2, 2 * out_w * oc, out_w * oc), np.float32)
    for pw in range(out_w):
        for c in range(oc):
            s[0, (2 * pw) * oc + c, pw * oc + c] = 1.0
            s[1, (2 * pw + 1) * oc + c, pw * oc + c] = 1.0
    return s


def prepare_params(p):
    """One-time layout prep: banded conv weights, hoisted pooling selections, NCHW->NHWC
    fc1 column permutation, FC zero-padding to 128 lanes.  Nothing here runs per forward."""
    fc1_w = np.asarray(p["fc1_w"], np.float32)               # (120, 400); col = c*25 + h*5 + w
    w1k = np.zeros((5, P2_N, FC_PAD), np.float32)            # (ph, pw*16+oc, n)
    for ph in range(5):
        for pw in range(5):
            for oc in range(16):
                w1k[ph, pw * 16 + oc, :120] = fc1_w[:, oc * 25 + ph * 5 + pw]

    def pad2(w_t):
        out = np.zeros((FC_PAD, FC_PAD), np.float32)
        out[:w_t.shape[0], :w_t.shape[1]] = w_t
        return out

    def padb(b):
        out = np.zeros((1, FC_PAD), np.float32)
        bb = np.asarray(b, np.float32)
        out[0, :bb.shape[0]] = bb
        return out

    kp = {
        "band1": _band_matrix(p["conv1_w"], 32),                        # (5, 96, 168)
        "p1": _hpool_rows_stage1(B_TILE),                               # (2, 128, 252)
        "s1": _wpool_lanes(14, 6),                                      # (2, 168, 84)
        "b1": np.tile(np.asarray(p["conv1_b"], np.float32), 14)[None],  # (1, 84)
        "band2": _band_matrix(p["conv2_w"], 14),                        # (5, 84, 160)
        "p2": _hpool_rows_stage2(B_TILE),                               # (2, 64, 122)
        "s2": _wpool_lanes(5, 16),                                      # (2, 160, 80)
        "b2": np.tile(np.asarray(p["conv2_b"], np.float32), 5)[None],   # (1, 80)
        "fc1_w": w1k,                                                   # (5, 80, 128)
        "fc1_b": padb(p["fc1_b"]),
        "fc2_w": pad2(np.asarray(p["fc2_w"], np.float32).T),            # (128, 128)
        "fc2_b": padb(p["fc2_b"]),
        "fc3_w": pad2(np.asarray(p["fc3_w"], np.float32).T),            # (128, 128)
        "fc3_b": padb(p["fc3_b"]),
    }
    return {k: jnp.asarray(v) for k, v in kp.items()}


# ---------------------------------------------------------------------------
# PyTorch-layout parameter init + pure-JAX reference for the correctness check
# ---------------------------------------------------------------------------
def init_params(key):
    ks = jax.random.split(key, 10)

    def u(k, shape, fan_in):
        bound = 1.0 / float(fan_in) ** 0.5
        return jax.random.uniform(k, shape, jnp.float32, -bound, bound)

    return {
        "conv1_w": u(ks[0], (6, 3, 5, 5), 3 * 5 * 5),
        "conv1_b": u(ks[1], (6,), 3 * 5 * 5),
        "conv2_w": u(ks[2], (16, 6, 5, 5), 6 * 5 * 5),
        "conv2_b": u(ks[3], (16,), 6 * 5 * 5),
        "fc1_w": u(ks[4], (120, 400), 400),
        "fc1_b": u(ks[5], (120,), 400),
        "fc2_w": u(ks[6], (84, 120), 120),
        "fc2_b": u(ks[7], (84,), 120),
        "fc3_w": u(ks[8], (10, 84), 84),
        "fc3_b": u(ks[9], (10,), 84),
    }


@jax.jit
def reference_forward(params, x):
    def conv(h, w, b):
        y = jax.lax.conv_general_dilated(
            h, w, (1, 1), "VALID", dimension_numbers=("NCHW", "OIHW", "NCHW"))
        return y + b[None, :, None, None]

    def pool(h):
        return jax.lax.reduce_window(
            h, -jnp.inf, jax.lax.max, (1, 1, 2, 2), (1, 1, 2, 2), "VALID")

    h = pool(jax.nn.relu(conv(x, params["conv1_w"], params["conv1_b"])))
    h = pool(jax.nn.relu(conv(h, params["conv2_w"], params["conv2_b"])))
    h = h.reshape(h.shape[0], 16 * 5 * 5)
    h = jax.nn.relu(h @ params["fc1_w"].T + params["fc1_b"])
    h = jax.nn.relu(h @ params["fc2_w"].T + params["fc2_b"])
    return h @ params["fc3_w"].T + params["fc3_b"]


if __name__ == "__main__":
    key = jax.random.PRNGKey(0)
    pkey, xkey = jax.random.split(key)
    params = init_params(pkey)
    kparams = prepare_params(params)            # one-time weight/constant layout prep
    # CIFAR-style 32x32 RGB input; B=16 -> two grid steps (uses both v7x TensorCores).
    x = jax.random.normal(xkey, (16, 3, 32, 32), dtype=jnp.float32)

    out = jax.block_until_ready(net_forward(kparams, x))
    assert out.shape == (16, 10), out.shape
    assert bool(jnp.all(jnp.isfinite(out)))

    ref = jax.block_until_ready(reference_forward(params, x))
    assert bool(jnp.allclose(out, ref, rtol=2e-3, atol=2e-3)), \
        float(jnp.max(jnp.abs(out - ref)))

    print("KERNEL_OK")
</pallas_src>

<mosaic_0001>
module attributes {stable_mosaic.version = 11 : i64} {
  func.func @_net_kernel(%arg0: i32, %arg1: memref<256x96xf32, #tpu.memory_space<vmem>>, %arg2: memref<5x96x168xf32, #tpu.memory_space<vmem>>, %arg3: memref<2x128x252xf32, #tpu.memory_space<vmem>>, %arg4: memref<2x168x84xf32, #tpu.memory_space<vmem>>, %arg5: memref<1x84xf32, #tpu.memory_space<vmem>>, %arg6: memref<5x84x160xf32, #tpu.memory_space<vmem>>, %arg7: memref<2x64x122xf32, #tpu.memory_space<vmem>>, %arg8: memref<2x160x80xf32, #tpu.memory_space<vmem>>, %arg9: memref<1x80xf32, #tpu.memory_space<vmem>>, %arg10: memref<5x80x128xf32, #tpu.memory_space<vmem>>, %arg11: memref<1x128xf32, #tpu.memory_space<vmem>>, %arg12: memref<128x128xf32, #tpu.memory_space<vmem>>, %arg13: memref<1x128xf32, #tpu.memory_space<vmem>>, %arg14: memref<128x128xf32, #tpu.memory_space<vmem>>, %arg15: memref<1x128xf32, #tpu.memory_space<vmem>>, %arg16: memref<8x128xf32, #tpu.memory_space<vmem>>, %arg17: memref<128x84xf32, #tpu.memory_space<vmem>>) attributes {dimension_semantics = [#tpu.dimension_semantics<parallel>], iteration_bounds = array<i64: 2>, scalar_prefetch = 0 : i64, scratch_operands = 1 : i64, tpu.core_type = #tpu.core_type<tc>, window_params = [{transform_indices = @transform_0, window_bounds = array<i64: 256, 96>}, {pipeline_mode = #tpu.pipeline_mode<synchronous>, transform_indices = @transform_1, window_bounds = array<i64: 5, 96, 168>}, {pipeline_mode = #tpu.pipeline_mode<synchronous>, transform_indices = @transform_2, window_bounds = array<i64: 2, 128, 252>}, {pipeline_mode = #tpu.pipeline_mode<synchronous>, transform_indices = @transform_3, window_bounds = array<i64: 2, 168, 84>}, {pipeline_mode = #tpu.pipeline_mode<synchronous>, transform_indices = @transform_4, window_bounds = array<i64: 1, 84>}, {pipeline_mode = #tpu.pipeline_mode<synchronous>, transform_indices = @transform_5, window_bounds = array<i64: 5, 84, 160>}, {pipeline_mode = #tpu.pipeline_mode<synchronous>, transform_indices = @transform_6, window_bounds = array<i64: 2, 64, 122>}, {pipeline_mode = #tpu.pipeline_mode<synchronous>, transform_indices = @transform_7, window_bounds = array<i64: 2, 160, 80>}, {pipeline_mode = #tpu.pipeline_mode<synchronous>, transform_indices = @transform_8, window_bounds = array<i64: 1, 80>}, {pipeline_mode = #tpu.pipeline_mode<synchronous>, transform_indices = @transform_9, window_bounds = array<i64: 5, 80, 128>}, {pipeline_mode = #tpu.pipeline_mode<synchronous>, transform_indices = @transform_10, window_bounds = array<i64: 1, 128>}, {pipeline_mode = #tpu.pipeline_mode<synchronous>, transform_indices = @transform_11, window_bounds = array<i64: 128, 128>}, {pipeline_mode = #tpu.pipeline_mode<synchronous>, transform_indices = @transform_12, window_bounds = array<i64: 1, 128>}, {pipeline_mode = #tpu.pipeline_mode<synchronous>, transform_indices = @transform_13, window_bounds = array<i64: 128, 128>}, {pipeline_mode = #tpu.pipeline_mode<synchronous>, transform_indices = @transform_14, window_bounds = array<i64: 1, 128>}, {transform_indices = @transform_15, window_bounds = array<i64: 8, 128>}]} {
    %c0 = arith.constant 0 : index
    %c0_0 = arith.constant 0 : index
    %0 = vector.load %arg1[%c0, %c0_0] : memref<256x96xf32, #tpu.memory_space<vmem>>, vector<252x96xf32>
    %c0_1 = arith.constant 0 : index
    %c0_2 = arith.constant 0 : index
    %c0_3 = arith.constant 0 : index
    %1 = vector.load %arg2[%c0_1, %c0_2, %c0_3] : memref<5x96x168xf32, #tpu.memory_space<vmem>>, vector<1x96x168xf32>
    %2 = vector.shape_cast %1 : vector<1x96x168xf32> to vector<96x168xf32>
    %cst = arith.constant dense<0.000000e+00> : vector<252x168xf32>
    %3 = tpu.matmul %0, %2, %cst {dimension_numbers = #tpu.dot_dimension_numbers<[1], [0], [0], [1], [0, 0, 1, 1], [], []>} : vector<252x96xf32>, vector<96x168xf32>, vector<252x168xf32> -> vector<252x168xf32>
    %c1 = arith.constant 1 : index
    %c0_4 = arith.constant 0 : index
    %4 = vector.load %arg1[%c1, %c0_4] : memref<256x96xf32, #tpu.memory_space<vmem>>, vector<252x96xf32>
    %c1_5 = arith.constant 1 : index
    %c0_6 = arith.constant 0 : index
    %c0_7 = arith.constant 0 : index
    %5 = vector.load %arg2[%c1_5, %c0_6, %c0_7] : memref<5x96x168xf32, #tpu.memory_space<vmem>>, vector<1x96x168xf32>
    %6 = vector.shape_cast %5 : vector<1x96x168xf32> to vector<96x168xf32>
    %cst_8 = arith.constant dense<0.000000e+00> : vector<252x168xf32>
    %7 = tpu.matmul %4, %6, %cst_8 {dimension_numbers = #tpu.dot_dimension_numbers<[1], [0], [0], [1], [0, 0, 1, 1], [], []>} : vector<252x96xf32>, vector<96x168xf32>, vector<252x168xf32> -> vector<252x168xf32>
    %8 = arith.addf %3, %7 : vector<252x168xf32>
    %c2 = arith.constant 2 : index
    %c0_9 = arith.constant 0 : index
    %9 = vector.load %arg1[%c2, %c0_9] : memref<256x96xf32, #tpu.memory_space<vmem>>, vector<252x96xf32>
    %c2_10 = arith.constant 2 : index
    %c0_11 = arith.constant 0 : index
    %c0_12 = arith.constant 0 : index
    %10 = vector.load %arg2[%c2_10, %c0_11, %c0_12] : memref<5x96x168xf32, #tpu.memory_space<vmem>>, vector<1x96x168xf32>
    %11 = vector.shape_cast %10 : vector<1x96x168xf32> to vector<96x168xf32>
    %cst_13 = arith.constant dense<0.000000e+00> : vector<252x168xf32>
    %12 = tpu.matmul %9, %11, %cst_13 {dimension_numbers = #tpu.dot_dimension_numbers<[1], [0], [0], [1], [0, 0, 1, 1], [], []>} : vector<252x96xf32>, vector<96x168xf32>, vector<252x168xf32> -> vector<252x168xf32>
    %13 = arith.addf %8, %12 : vector<252x168xf32>
    %c3 = arith.constant 3 : index
    %c0_14 = arith.constant 0 : index
    %14 = vector.load %arg1[%c3, %c0_14] : memref<256x96xf32, #tpu.memory_space<vmem>>, vector<252x96xf32>
    %c3_15 = arith.constant 3 : index
    %c0_16 = arith.constant 0 : index
    %c0_17 = arith.constant 0 : index
    %15 = vector.load %arg2[%c3_15, %c0_16, %c0_17] : memref<5x96x168xf32, #tpu.memory_space<vmem>>, vector<1x96x168xf32>
    %16 = vector.shape_cast %15 : vector<1x96x168xf32> to vector<96x168xf32>
    %cst_18 = arith.constant dense<0.000000e+00> : vector<252x168xf32>
    %17 = tpu.matmul %14, %16, %cst_18 {dimension_numbers = #tpu.dot_dimension_numbers<[1], [0], [0], [1], [0, 0, 1, 1], [], []>} : vector<252x96xf32>, vector<96x168xf32>, vector<252x168xf32> -> vector<252x168xf32>
    %18 = arith.addf %13, %17 : vector<252x168xf32>
    %c4 = arith.constant 4 : index
    %c0_19 = arith.constant 0 : index
    %19 = vector.load %arg1[%c4, %c0_19] : memref<256x96xf32, #tpu.memory_space<vmem>>, vector<252x96xf32>
    %c4_20 = arith.constant 4 : index
    %c0_21 = arith.constant 0 : index
    %c0_22 = arith.constant 0 : index
    %20 = vector.load %arg2[%c4_20, %c0_21, %c0_22] : memref<5x96x168xf32, #tpu.memory_space<vmem>>, vector<1x96x168xf32>
    %21 = vector.shape_cast %20 : vector<1x96x168xf32> to vector<96x168xf32>
    %cst_23 = arith.constant dense<0.000000e+00> : vector<252x168xf32>
    %22 = tpu.matmul %19, %21, %cst_23 {dimension_numbers = #tpu.dot_dimension_numbers<[1], [0], [0], [1], [0, 0, 1, 1], [], []>} : vector<252x96xf32>, vector<96x168xf32>, vector<252x168xf32> -> vector<252x168xf32>
    %23 = arith.addf %18, %22 : vector<252x168xf32>
    %c0_24 = arith.constant 0 : index
    %c0_25 = arith.constant 0 : index
    %c0_26 = arith.constant 0 : index
    %24 = vector.load %arg3[%c0_24, %c0_25, %c0_26] : memref<2x128x252xf32, #tpu.memory_space<vmem>>, vector<1x128x252xf32>
    %25 = vector.shape_cast %24 : vector<1x128x252xf32> to vector<128x252xf32>
    %cst_27 = arith.constant dense<0.000000e+00> : vector<128x168xf32>
    %26 = tpu.matmul %25, %23, %cst_27 {dimension_numbers = #tpu.dot_dimension_numbers<[1], [0], [0], [1], [0, 0, 1, 1], [], []>} : vector<128x252xf32>, vector<252x168xf32>, vector<128x168xf32> -> vector<128x168xf32>
    %c1_28 = arith.constant 1 : index
    %c0_29 = arith.constant 0 : index
    %c0_30 = arith.constant 0 : index
    %27 = vector.load %arg3[%c1_28, %c0_29, %c0_30] : memref<2x128x252xf32, #tpu.memory_space<vmem>>, vector<1x128x252xf32>
    %28 = vector.shape_cast %27 : vector<1x128x252xf32> to vector<128x252xf32>
    %cst_31 = arith.constant dense<0.000000e+00> : vector<128x168xf32>
    %29 = tpu.matmul %28, %23, %cst_31 {dimension_numbers = #tpu.dot_dimension_numbers<[1], [0], [0], [1], [0, 0, 1, 1], [], []>} : vector<128x252xf32>, vector<252x168xf32>, vector<128x168xf32> -> vector<128x168xf32>
    %30 = arith.maximumf %26, %29 : vector<128x168xf32>
    %c0_32 = arith.constant 0 : index
    %c0_33 = arith.constant 0 : index
    %c0_34 = arith.constant 0 : index
    %31 = vector.load %arg4[%c0_32, %c0_33, %c0_34] : memref<2x168x84xf32, #tpu.memory_space<vmem>>, vector<1x168x84xf32>
    %32 = vector.shape_cast %31 : vector<1x168x84xf32> to vector<168x84xf32>
    %cst_35 = arith.constant dense<0.000000e+00> : vector<128x84xf32>
    %33 = tpu.matmul %30, %32, %cst_35 {dimension_numbers = #tpu.dot_dimension_numbers<[1], [0], [0], [1], [0, 0, 1, 1], [], []>} : vector<128x168xf32>, vector<168x84xf32>, vector<128x84xf32> -> vector<128x84xf32>
    %c1_36 = arith.constant 1 : index
    %c0_37 = arith.constant 0 : index
    %c0_38 = arith.constant 0 : index
    %34 = vector.load %arg4[%c1_36, %c0_37, %c0_38] : memref<2x168x84xf32, #tpu.memory_space<vmem>>, vector<1x168x84xf32>
    %35 = vector.shape_cast %34 : vector<1x168x84xf32> to vector<168x84xf32>
    %cst_39 = arith.constant dense<0.000000e+00> : vector<128x84xf32>
    %36 = tpu.matmul %30, %35, %cst_39 {dimension_numbers = #tpu.dot_dimension_numbers<[1], [0], [0], [1], [0, 0, 1, 1], [], []>} : vector<128x168xf32>, vector<168x84xf32>, vector<128x84xf32> -> vector<128x84xf32>
    %37 = arith.maximumf %33, %36 : vector<128x84xf32>
    %c0_40 = arith.constant 0 : index
    %c0_41 = arith.constant 0 : index
    %38 = vector.load %arg5[%c0_40, %c0_41] : memref<1x84xf32, #tpu.memory_space<vmem>>, vector<1x84xf32>
    %39 = vector.broadcast %38 : vector<1x84xf32> to vector<128x84xf32>
    %40 = arith.addf %37, %39 : vector<128x84xf32>
    %cst_42 = arith.constant 0.000000e+00 : f32
    %41 = vector.broadcast %cst_42 : f32 to vector<128x84xf32>
    %42 = arith.maximumf %40, %41 : vector<128x84xf32>
    %c0_43 = arith.constant 0 : index
    %c0_44 = arith.constant 0 : index
    %43 = vector.load %arg17[%c0_43, %c0_44] : memref<128x84xf32, #tpu.memory_space<vmem>>, vector<128x84xf32>
    tpu.vector_store %arg17[%c0_43, %c0_44], %42 {strides = array<i32>} : memref<128x84xf32, #tpu.memory_space<vmem>>, vector<128x84xf32>,
    %c0_45 = arith.constant 0 : index
    %c0_46 = arith.constant 0 : index
    %44 = vector.load %arg17[%c0_45, %c0_46] : memref<128x84xf32, #tpu.memory_space<vmem>>, vector<122x84xf32>
    %c0_47 = arith.constant 0 : index
    %c0_48 = arith.constant 0 : index
    %c0_49 = arith.constant 0 : index
    %45 = vector.load %arg6[%c0_47, %c0_48, %c0_49] : memref<5x84x160xf32, #tpu.memory_space<vmem>>, vector<1x84x160xf32>
    %46 = vector.shape_cast %45 : vector<1x84x160xf32> to vector<84x160xf32>
    %cst_50 = arith.constant dense<0.000000e+00> : vector<122x160xf32>
    %47 = tpu.matmul %44, %46, %cst_50 {dimension_numbers = #tpu.dot_dimension_numbers<[1], [0], [0], [1], [0, 0, 1, 1], [], []>} : vector<122x84xf32>, vector<84x160xf32>, vector<122x160xf32> -> vector<122x160xf32>
    %c1_51 = arith.constant 1 : index
    %c0_52 = arith.constant 0 : index
    %48 = vector.load %arg17[%c1_51, %c0_52] : memref<128x84xf32, #tpu.memory_space<vmem>>, vector<122x84xf32>
    %c1_53 = arith.constant 1 : index
    %c0_54 = arith.constant 0 : index
    %c0_55 = arith.constant 0 : index
    %49 = vector.load %arg6[%c1_53, %c0_54, %c0_55] : memref<5x84x160xf32, #tpu.memory_space<vmem>>, vector<1x84x160xf32>
    %50 = vector.shape_cast %49 : vector<1x84x160xf32> to vector<84x160xf32>
    %cst_56 = arith.constant dense<0.000000e+00> : vector<122x160xf32>
    %51 = tpu.matmul %48, %50, %cst_56 {dimension_numbers = #tpu.dot_dimension_numbers<[1], [0], [0], [1], [0, 0, 1, 1], [], []>} : vector<122x84xf32>, vector<84x160xf32>, vector<122x160xf32> -> vector<122x160xf32>
    %52 = arith.addf %47, %51 : vector<122x160xf32>
    %c2_57 = arith.constant 2 : index
    %c0_58 = arith.constant 0 : index
    %53 = vector.load %arg17[%c2_57, %c0_58] : memref<128x84xf32, #tpu.memory_space<vmem>>, vector<122x84xf32>
    %c2_59 = arith.constant 2 : index
    %c0_60 = arith.constant 0 : index
    %c0_61 = arith.constant 0 : index
    %54 = vector.load %arg6[%c2_59, %c0_60, %c0_61] : memref<5x84x160xf32, #tpu.memory_space<vmem>>, vector<1x84x160xf32>
    %55 = vector.shape_cast %54 : vector<1x84x160xf32> to vector<84x160xf32>
    %cst_62 = arith.constant dense<0.000000e+00> : vector<122x160xf32>
    %56 = tpu.matmul %53, %55, %cst_62 {dimension_numbers = #tpu.dot_dimension_numbers<[1], [0], [0], [1], [0, 0, 1, 1], [], []>} : vector<122x84xf32>, vector<84x160xf32>, vector<122x160xf32> -> vector<122x160xf32>
    %57 = arith.addf %52, %56 : vector<122x160xf32>
    %c3_63 = arith.constant 3 : index
    %c0_64 = arith.constant 0 : index
    %58 = vector.load %arg17[%c3_63, %c0_64] : memref<128x84xf32, #tpu.memory_space<vmem>>, vector<122x84xf32>
    %c3_65 = arith.constant 3 : index
    %c0_66 = arith.constant 0 : index
    %c0_67 = arith.constant 0 : index
    %59 = vector.load %arg6[%c3_65, %c0_66, %c0_67] : memref<5x84x160xf32, #tpu.memory_space<vmem>>, vector<1x84x160xf32>
    %60 = vector.shape_cast %59 : vector<1x84x160xf32> to vector<84x160xf32>
    %cst_68 = arith.constant dense<0.000000e+00> : vector<122x160xf32>
    %61 = tpu.matmul %58, %60, %cst_68 {dimension_numbers = #tpu.dot_dimension_numbers<[1], [0], [0], [1], [0, 0, 1, 1], [], []>} : vector<122x84xf32>, vector<84x160xf32>, vector<122x160xf32> -> vector<122x160xf32>
    %62 = arith.addf %57, %61 : vector<122x160xf32>
    %c4_69 = arith.constant 4 : index
    %c0_70 = arith.constant 0 : index
    %63 = vector.load %arg17[%c4_69, %c0_70] : memref<128x84xf32, #tpu.memory_space<vmem>>, vector<122x84xf32>
    %c4_71 = arith.constant 4 : index
    %c0_72 = arith.constant 0 : index
    %c0_73 = arith.constant 0 : index
    %64 = vector.load %arg6[%c4_71, %c0_72, %c0_73] : memref<5x84x160xf32, #tpu.memory_space<vmem>>, vector<1x84x160xf32>
    %65 = vector.shape_cast %64 : vector<1x84x160xf32> to vector<84x160xf32>
    %cst_74 = arith.constant dense<0.000000e+00> : vector<122x160xf32>
    %66 = tpu.matmul %63, %65, %cst_74 {dimension_numbers = #tpu.dot_dimension_numbers<[1], [0], [0], [1], [0, 0, 1, 1], [], []>} : vector<122x84xf32>, vector<84x160xf32>, vector<122x160xf32> -> vector<122x160xf32>
    %67 = arith.addf %62, %66 : vector<122x160xf32>
    %c0_75 = arith.constant 0 : index
    %c0_76 = arith.constant 0 : index
    %c0_77 = arith.constant 0 : index
    %68 = vector.load %arg7[%c0_75, %c0_76, %c0_77] : memref<2x64x122xf32, #tpu.memory_space<vmem>>, vector<1x64x122xf32>
    %69 = vector.shape_cast %68 : vector<1x64x122xf32> to vector<64x122xf32>
    %cst_78 = arith.constant dense<0.000000e+00> : vector<64x160xf32>
    %70 = tpu.matmul %69, %67, %cst_78 {dimension_numbers = #tpu.dot_dimension_numbers<[1], [0], [0], [1], [0, 0, 1, 1], [], []>} : vector<64x122xf32>, vector<122x160xf32>, vector<64x160xf32> -> vector<64x160xf32>
    %c1_79 = arith.constant 1 : index
    %c0_80 = arith.constant 0 : index
    %c0_81 = arith.constant 0 : index
    %71 = vector.load %arg7[%c1_79, %c0_80, %c0_81] : memref<2x64x122xf32, #tpu.memory_space<vmem>>, vector<1x64x122xf32>
    %72 = vector.shape_cast %71 : vector<1x64x122xf32> to vector<64x122xf32>
    %cst_82 = arith.constant dense<0.000000e+00> : vector<64x160xf32>
    %73 = tpu.matmul %72, %67, %cst_82 {dimension_numbers = #tpu.dot_dimension_numbers<[1], [0], [0], [1], [0, 0, 1, 1], [], []>} : vector<64x122xf32>, vector<122x160xf32>, vector<64x160xf32> -> vector<64x160xf32>
    %74 = arith.maximumf %70, %73 : vector<64x160xf32>
    %c0_83 = arith.constant 0 : index
    %c0_84 = arith.constant 0 : index
    %c0_85 = arith.constant 0 : index
    %75 = vector.load %arg8[%c0_83, %c0_84, %c0_85] : memref<2x160x80xf32, #tpu.memory_space<vmem>>, vector<1x160x80xf32>
    %76 = vector.shape_cast %75 : vector<1x160x80xf32> to vector<160x80xf32>
    %cst_86 = arith.constant dense<0.000000e+00> : vector<64x80xf32>
    %77 = tpu.matmul %74, %76, %cst_86 {dimension_numbers = #tpu.dot_dimension_numbers<[1], [0], [0], [1], [0, 0, 1, 1], [], []>} : vector<64x160xf32>, vector<160x80xf32>, vector<64x80xf32> -> vector<64x80xf32>
    %c1_87 = arith.constant 1 : index
    %c0_88 = arith.constant 0 : index
    %c0_89 = arith.constant 0 : index
    %78 = vector.load %arg8[%c1_87, %c0_88, %c0_89] : memref<2x160x80xf32, #tpu.memory_space<vmem>>, vector<1x160x80xf32>
    %79 = vector.shape_cast %78 : vector<1x160x80xf32> to vector<160x80xf32>
    %cst_90 = arith.constant dense<0.000000e+00> : vector<64x80xf32>
    %80 = tpu.matmul %74, %79, %cst_90 {dimension_numbers = #tpu.dot_dimension_numbers<[1], [0], [0], [1], [0, 0, 1, 1], [], []>} : vector<64x160xf32>, vector<160x80xf32>, vector<64x80xf32> -> vector<64x80xf32>
    %81 = arith.maximumf %77, %80 : vector<64x80xf32>
    %c0_91 = arith.constant 0 : index
    %c0_92 = arith.constant 0 : index
    %82 = vector.load %arg9[%c0_91, %c0_92] : memref<1x80xf32, #tpu.memory_space<vmem>>, vector<1x80xf32>
    %83 = vector.broadcast %82 : vector<1x80xf32> to vector<64x80xf32>
    %84 = arith.addf %81, %83 : vector<64x80xf32>
    %cst_93 = arith.constant 0.000000e+00 : f32
    %85 = vector.broadcast %cst_93 : f32 to vector<64x80xf32>
    %86 = arith.maximumf %84, %85 : vector<64x80xf32>
    %87 = vector.extract_strided_slice %86 {offsets = [0, 0], sizes = [8, 80], strides = [1, 1]} : vector<64x80xf32> to vector<8x80xf32>
    %c0_94 = arith.constant 0 : index
    %c0_95 = arith.constant 0 : index
    %c0_96 = arith.constant 0 : index
    %88 = vector.load %arg10[%c0_94, %c0_95, %c0_96] : memref<5x80x128xf32, #tpu.memory_space<vmem>>, vector<1x80x128xf32>
    %89 = vector.shape_cast %88 : vector<1x80x128xf32> to vector<80x128xf32>
    %cst_97 = arith.constant dense<0.000000e+00> : vector<8x128xf32>
    %90 = tpu.matmul %87, %89, %cst_97 {dimension_numbers = #tpu.dot_dimension_numbers<[1], [0], [0], [1], [0, 0, 1, 1], [], []>} : vector<8x80xf32>, vector<80x128xf32>, vector<8x128xf32> -> vector<8x128xf32>
    %91 = vector.extract_strided_slice %86 {offsets = [8, 0], sizes = [8, 80], strides = [1, 1]} : vector<64x80xf32> to vector<8x80xf32>
    %c1_98 = arith.constant 1 : index
    %c0_99 = arith.constant 0 : index
    %c0_100 = arith.constant 0 : index
    %92 = vector.load %arg10[%c1_98, %c0_99, %c0_100] : memref<5x80x128xf32, #tpu.memory_space<vmem>>, vector<1x80x128xf32>
    %93 = vector.shape_cast %92 : vector<1x80x128xf32> to vector<80x128xf32>
    %cst_101 = arith.constant dense<0.000000e+00> : vector<8x128xf32>
    %94 = tpu.matmul %91, %93, %cst_101 {dimension_numbers = #tpu.dot_dimension_numbers<[1], [0], [0], [1], [0, 0, 1, 1], [], []>} : vector<8x80xf32>, vector<80x128xf32>, vector<8x128xf32> -> vector<8x128xf32>
    %95 = arith.addf %90, %94 : vector<8x128xf32>
    %96 = vector.extract_strided_slice %86 {offsets = [16, 0], sizes = [8, 80], strides = [1, 1]} : vector<64x80xf32> to vector<8x80xf32>
    %c2_102 = arith.constant 2 : index
    %c0_103 = arith.constant 0 : index
    %c0_104 = arith.constant 0 : index
    %97 = vector.load %arg10[%c2_102, %c0_103, %c0_104] : memref<5x80x128xf32, #tpu.memory_space<vmem>>, vector<1x80x128xf32>
    %98 = vector.shape_cast %97 : vector<1x80x128xf32> to vector<80x128xf32>
    %cst_105 = arith.constant dense<0.000000e+00> : vector<8x128xf32>
    %99 = tpu.matmul %96, %98, %cst_105 {dimension_numbers = #tpu.dot_dimension_numbers<[1], [0], [0], [1], [0, 0, 1, 1], [], []>} : vector<8x80xf32>, vector<80x128xf32>, vector<8x128xf32> -> vector<8x128xf32>
    %100 = arith.addf %95, %99 : vector<8x128xf32>
    %101 = vector.extract_strided_slice %86 {offsets = [24, 0], sizes = [8, 80], strides = [1, 1]} : vector<64x80xf32> to vector<8x80xf32>
    %c3_106 = arith.constant 3 : index
    %c0_107 = arith.constant 0 : index
    %c0_108 = arith.constant 0 : index
    %102 = vector.load %arg10[%c3_106, %c0_107, %c0_108] : memref<5x80x128xf32, #tpu.memory_space<vmem>>, vector<1x80x128xf32>
    %103 = vector.shape_cast %102 : vector<1x80x128xf32> to vector<80x128xf32>
    %cst_109 = arith.constant dense<0.000000e+00> : vector<8x128xf32>
    %104 = tpu.matmul %101, %103, %cst_109 {dimension_numbers = #tpu.dot_dimension_numbers<[1], [0], [0], [1], [0, 0, 1, 1], [], []>} : vector<8x80xf32>, vector<80x128xf32>, vector<8x128xf32> -> vector<8x128xf32>
    %105 = arith.addf %100, %104 : vector<8x128xf32>
    %106 = vector.extract_strided_slice %86 {offsets = [32, 0], sizes = [8, 80], strides = [1, 1]} : vector<64x80xf32> to vector<8x80xf32>
    %c4_110 = arith.constant 4 : index
    %c0_111 = arith.constant 0 : index
    %c0_112 = arith.constant 0 : index
    %107 = vector.load %arg10[%c4_110, %c0_111, %c0_112] : memref<5x80x128xf32, #tpu.memory_space<vmem>>, vector<1x80x128xf32>
    %108 = vector.shape_cast %107 : vector<1x80x128xf32> to vector<80x128xf32>
    %cst_113 = arith.constant dense<0.000000e+00> : vector<8x128xf32>
    %109 = tpu.matmul %106, %108, %cst_113 {dimension_numbers = #tpu.dot_dimension_numbers<[1], [0], [0], [1], [0, 0, 1, 1], [], []>} : vector<8x80xf32>, vector<80x128xf32>, vector<8x128xf32> -> vector<8x128xf32>
    %110 = arith.addf %105, %109 : vector<8x128xf32>
    %c0_114 = arith.constant 0 : index
    %c0_115 = arith.constant 0 : index
    %111 = vector.load %arg11[%c0_114, %c0_115] : memref<1x128xf32, #tpu.memory_space<vmem>>, vector<1x128xf32>
    %112 = vector.broadcast %111 : vector<1x128xf32> to vector<8x128xf32>
    %113 = arith.addf %110, %112 : vector<8x128xf32>
    %cst_116 = arith.constant 0.000000e+00 : f32
    %114 = vector.broadcast %cst_116 : f32 to vector<8x128xf32>
    %115 = arith.maximumf %113, %114 : vector<8x128xf32>
    %c0_117 = arith.constant 0 : index
    %c0_118 = arith.constant 0 : index
    %116 = vector.load %arg12[%c0_117, %c0_118] : memref<128x128xf32, #tpu.memory_space<vmem>>, vector<128x128xf32>
    %cst_119 = arith.constant dense<0.000000e+00> : vector<8x128xf32>
    %117 = tpu.matmul %115, %116, %cst_119 {dimension_numbers = #tpu.dot_dimension_numbers<[1], [0], [0], [1], [0, 0, 1, 1], [], []>} : vector<8x128xf32>, vector<128x128xf32>, vector<8x128xf32> -> vector<8x128xf32>
    %c0_120 = arith.constant 0 : index
    %c0_121 = arith.constant 0 : index
    %118 = vector.load %arg13[%c0_120, %c0_121] : memref<1x128xf32, #tpu.memory_space<vmem>>, vector<1x128xf32>
    %119 = vector.broadcast %118 : vector<1x128xf32> to vector<8x128xf32>
    %120 = arith.addf %117, %119 : vector<8x128xf32>
    %cst_122 = arith.constant 0.000000e+00 : f32
    %121 = vector.broadcast %cst_122 : f32 to vector<8x128xf32>
    %122 = arith.maximumf %120, %121 : vector<8x128xf32>
    %c0_123 = arith.constant 0 : index
    %c0_124 = arith.constant 0 : index
    %123 = vector.load %arg14[%c0_123, %c0_124] : memref<128x128xf32, #tpu.memory_space<vmem>>, vector<128x128xf32>
    %cst_125 = arith.constant dense<0.000000e+00> : vector<8x128xf32>
    %124 = tpu.matmul %122, %123, %cst_125 {dimension_numbers = #tpu.dot_dimension_numbers<[1], [0], [0], [1], [0, 0, 1, 1], [], []>} : vector<8x128xf32>, vector<128x128xf32>, vector<8x128xf32> -> vector<8x128xf32>
    %c0_126 = arith.constant 0 : index
    %c0_127 = arith.constant 0 : index
    %125 = vector.load %arg15[%c0_126, %c0_127] : memref<1x128xf32, #tpu.memory_space<vmem>>, vector<1x128xf32>
    %126 = vector.broadcast %125 : vector<1x128xf32> to vector<8x128xf32>
    %127 = arith.addf %124, %126 : vector<8x128xf32>
    %c0_128 = arith.constant 0 : index
    %c0_129 = arith.constant 0 : index
    %128 = vector.load %arg16[%c0_128, %c0_129] : memref<8x128xf32, #tpu.memory_space<vmem>>, vector<8x128xf32>
    tpu.vector_store %arg16[%c0_128, %c0_129], %127 {strides = array<i32>} : memref<8x128xf32, #tpu.memory_space<vmem>>, vector<8x128xf32>,
    return
  }
  func.func @transform_0(%arg0: i32) -> (i32, i32) {
    %c0_i32 = arith.constant 0 : i32
    %c0_i32_0 = arith.constant 0 : i32
    return %arg0, %c0_i32 : i32, i32
  }
  func.func @transform_1(%arg0: i32) -> (i32, i32, i32) {
    %c0_i32 = arith.constant 0 : i32
    %c0_i32_0 = arith.constant 0 : i32
    %c0_i32_1 = arith.constant 0 : i32
    %c0_i32_2 = arith.constant 0 : i32
    return %c0_i32, %c0_i32_0, %c0_i32_1 : i32, i32, i32
  }
  func.func @transform_2(%arg0: i32) -> (i32, i32, i32) {
    %c0_i32 = arith.constant 0 : i32
    %c0_i32_0 = arith.constant 0 : i32
    %c0_i32_1 = arith.constant 0 : i32
    %c0_i32_2 = arith.constant 0 : i32
    return %c0_i32, %c0_i32_0, %c0_i32_1 : i32, i32, i32
  }
  func.func @transform_3(%arg0: i32) -> (i32, i32, i32) {
    %c0_i32 = arith.constant 0 : i32
    %c0_i32_0 = arith.constant 0 : i32
    %c0_i32_1 = arith.constant 0 : i32
    %c0_i32_2 = arith.constant 0 : i32
    return %c0_i32, %c0_i32_0, %c0_i32_1 : i32, i32, i32
  }
  func.func @transform_4(%arg0: i32) -> (i32, i32) {
    %c0_i32 = arith.constant 0 : i32
    %c0_i32_0 = arith.constant 0 : i32
    %c0_i32_1 = arith.constant 0 : i32
    return %c0_i32, %c0_i32_0 : i32, i32
  }
  func.func @transform_5(%arg0: i32) -> (i32, i32, i32) {
    %c0_i32 = arith.constant 0 : i32
    %c0_i32_0 = arith.constant 0 : i32
    %c0_i32_1 = arith.constant 0 : i32
    %c0_i32_2 = arith.constant 0 : i32
    return %c0_i32, %c0_i32_0, %c0_i32_1 : i32, i32, i32
  }
  func.func @transform_6(%arg0: i32) -> (i32, i32, i32) {
    %c0_i32 = arith.constant 0 : i32
    %c0_i32_0 = arith.constant 0 : i32
    %c0_i32_1 = arith.constant 0 : i32
    %c0_i32_2 = arith.constant 0 : i32
    return %c0_i32, %c0_i32_0, %c0_i32_1 : i32, i32, i32
  }
  func.func @transform_7(%arg0: i32) -> (i32, i32, i32) {
    %c0_i32 = arith.constant 0 : i32
    %c0_i32_0 = arith.constant 0 : i32
    %c0_i32_1 = arith.constant 0 : i32
    %c0_i32_2 = arith.constant 0 : i32
    return %c0_i32, %c0_i32_0, %c0_i32_1 : i32, i32, i32
  }
  func.func @transform_8(%arg0: i32) -> (i32, i32) {
    %c0_i32 = arith.constant 0 : i32
    %c0_i32_0 = arith.constant 0 : i32
    %c0_i32_1 = arith.constant 0 : i32
    return %c0_i32, %c0_i32_0 : i32, i32
  }
  func.func @transform_9(%arg0: i32) -> (i32, i32, i32) {
    %c0_i32 = arith.constant 0 : i32
    %c0_i32_0 = arith.constant 0 : i32
    %c0_i32_1 = arith.constant 0 : i32
    %c0_i32_2 = arith.constant 0 : i32
    return %c0_i32, %c0_i32_0, %c0_i32_1 : i32, i32, i32
  }
  func.func @transform_10(%arg0: i32) -> (i32, i32) {
    %c0_i32 = arith.constant 0 : i32
    %c0_i32_0 = arith.constant 0 : i32
    %c0_i32_1 = arith.constant 0 : i32
    return %c0_i32, %c0_i32_0 : i32, i32
  }
  func.func @transform_11(%arg0: i32) -> (i32, i32) {
    %c0_i32 = arith.constant 0 : i32
    %c0_i32_0 = arith.constant 0 : i32
    %c0_i32_1 = arith.constant 0 : i32
    return %c0_i32, %c0_i32_0 : i32, i32
  }
  func.func @transform_12(%arg0: i32) -> (i32, i32) {
    %c0_i32 = arith.constant 0 : i32
    %c0_i32_0 = arith.constant 0 : i32
    %c0_i32_1 = arith.constant 0 : i32
    return %c0_i32, %c0_i32_0 : i32, i32
  }
  func.func @transform_13(%arg0: i32) -> (i32, i32) {
    %c0_i32 = arith.constant 0 : i32
    %c0_i32_0 = arith.constant 0 : i32
    %c0_i32_1 = arith.constant 0 : i32
    return %c0_i32, %c0_i32_0 : i32, i32
  }
  func.func @transform_14(%arg0: i32) -> (i32, i32) {
    %c0_i32 = arith.constant 0 : i32
    %c0_i32_0 = arith.constant 0 : i32
    %c0_i32_1 = arith.constant 0 : i32
    return %c0_i32, %c0_i32_0 : i32, i32
  }
  func.func @transform_15(%arg0: i32) -> (i32, i32) {
    %c0_i32 = arith.constant 0 : i32
    %c0_i32_0 = arith.constant 0 : i32
    return %arg0, %c0_i32 : i32, i32
  }
}

</mosaic_0001>

<llo_original>
// kernel: net_forward.1
$region0: #{net_forward.1}
  #allocation0 [shape = 'u32[]', space=smem, size = 0x4, offset = 0x4, fixed_abs, tag = 'smem constant byte address 0x4 - core index']
  #allocation1 [shape = 'u32[144,128]{1,0:T(1,128)}', space=vmem, size = 0x12000, scoped, tag = 'internal scratch']
  #allocation2 [shape = 'f32[128,84]{1,0:T(8,128)}', space=vmem, size = 0x10000, scoped, tag = 'scratch operand']
  %s0 = inlined_call_operand.vmem [shape: f32[512,96], index: 0, kind: input, shape index: {}]
  %s1 = inlined_call_operand.vmem [shape: f32[5,96,168], index: 1, kind: input, shape index: {}]
  %s2 = inlined_call_operand.vmem [shape: f32[2,128,252], index: 2, kind: input, shape index: {}]
  %s3 = inlined_call_operand.vmem [shape: f32[2,168,84], index: 3, kind: input, shape index: {}]
  %s4 = inlined_call_operand.vmem [shape: f32[1,84], index: 4, kind: input, shape index: {}]
  %s5 = inlined_call_operand.vmem [shape: f32[5,84,160], index: 5, kind: input, shape index: {}]
  %s6 = inlined_call_operand.vmem [shape: f32[2,64,122], index: 6, kind: input, shape index: {}]
  %s7 = inlined_call_operand.vmem [shape: f32[2,160,80], index: 7, kind: input, shape index: {}]
  %s8 = inlined_call_operand.vmem [shape: f32[1,80], index: 8, kind: input, shape index: {}]
  %s9 = inlined_call_operand.vmem [shape: f32[5,80,128], index: 9, kind: input, shape index: {}]
  %s10 = inlined_call_operand.vmem [shape: f32[1,128], index: 10, kind: input, shape index: {}]
  %s11 = inlined_call_operand.vmem [shape: f32[128,128], index: 11, kind: input, shape index: {}]
  %s12 = inlined_call_operand.vmem [shape: f32[1,128], index: 12, kind: input, shape index: {}]
  %s13 = inlined_call_operand.vmem [shape: f32[128,128], index: 13, kind: input, shape index: {}]
  %s14 = inlined_call_operand.vmem [shape: f32[1,128], index: 14, kind: input, shape index: {}]
  %s15 = inlined_call_operand.hbm [shape: f32[16,128], index: 15, kind: output, shape index: {}]
  %s16 = sld [smem:[#allocation0]]
  $region93: #{net_forward.1} parent=0
    _
  %s18 = ssub.s32 1, %s16
  %s19 = scalar_select 0, %s18, %s16
  $region1: #{net_forward.1} parent=0
    #allocation3 [shape = 'u8[8192]{0}', space=vmem, size = 0x2000, scoped, tag = 'output window, operand 0']
    #allocation4 [shape = 's32[2]{0}', space=sflag, size = 0x8, scoped, tag = 'scoped memory for net_forward.1']
    %20 = vsyncpa [#allocation4], 0
    %s21 = scalar_lea.sflag [#allocation4], 1
    %22 = vsyncpa %s21, 0
    loop: start=0, step=1, limit=4
    $region2: #{net_forward.1} parent=1 // loop_pre_header
      _
    $region3: #{net_forward.1} parent=1 // loop_header
      %s24 = sphi 0, %s28
      %p25 = scmp.ge.s32.totalorder %s24, 4
      %s34 = sphi 0, %s36
      %s37 = sphi 0, %s34
      %s38 = sphi 0, %s37
      %s54 = sphi 0, %s38
      %s58 = sphi 0, %s58
      %s60 = sphi 0, %s58
      %s61 = sphi 0, %s60
      %s75 = sphi 0, %s61
      %s79 = sphi 0, %s79
      %s81 = sphi 0, %s79
      %s82 = sphi 0, %s81
      %s96 = sphi 0, %s82
      %s100 = sphi 0, %s100
      %s102 = sphi 0, %s100
      %s103 = sphi 0, %s102
      %s117 = sphi 0, %s103
      %s121 = sphi 0, %s121
      %s123 = sphi 0, %s121
      %s124 = sphi 0, %s123
      %s138 = sphi 0, %s124
      %s142 = sphi 0, %s142
      %s144 = sphi 0, %s142
      %s145 = sphi 0, %s144
      %s159 = sphi 0, %s145
      %s163 = sphi 0, %s163
      %s165 = sphi 0, %s163
      %s166 = sphi 0, %s165
      %s180 = sphi 0, %s166
      %s184 = sphi 0, %s184
      %s186 = sphi 0, %s184
      %s187 = sphi 0, %s186
      %s201 = sphi 0, %s187
      %s205 = sphi 0, %s205
      %s207 = sphi 0, %s205
      %s208 = sphi 0, %s207
      %s222 = sphi 0, %s208
      %s226 = sphi 0, %s226
      %s228 = sphi 0, %s226
      %s229 = sphi 0, %s228
      %s243 = sphi 0, %s229
      %s247 = sphi 0, %s247
      %s249 = sphi 0, %s247
      %s250 = sphi 0, %s249
      %s264 = sphi 0, %s250
      %s268 = sphi 0, %s268
      %s270 = sphi 0, %s268
      %s271 = sphi 0, %s270
      %s285 = sphi 0, %s271
      %s289 = sphi 0, %s289
      %s291 = sphi 0, %s289
      %s292 = sphi 0, %s291
      %s306 = sphi 0, %s292
      %s310 = sphi 0, %s310
      %s312 = sphi 0, %s310
      %s313 = sphi 0, %s312
      %s327 = sphi 0, %s313
      %s331 = sphi 0, %s331
      %s333 = sphi 0, %s331
      %s334 = sphi 0, %s333
      %s348 = sphi 0, %s334
      %s354 = sphi 0, %s356
      %s357 = sphi 0, %s354
      %s358 = sphi 0, %s357
      %s374 = sphi 0, %s358
    $region4: #{net_forward.1} parent=1 // loop_header_branch
      %27 = sbr.rel (%p25) target = $region8
    $region5: #{net_forward.1} parent=1 // loop_body
      %s29 = ssub.s32 %s24, 1
      %s30 = ssub.s32 %s24, 2
      %s31 = sadd.s32 %s24, 1
      %s32 = ssub.s32 %s24, %s31
      %p33 = scmp.eq.s32.totalorder %s32, 0
      %s35 = sadd.s32 %s34, 1
      %s36 = scalar_select %p33, %s34, %s35
      %p39 = pneg %p33
      %p40 = scmp.eq.s32.totalorder %s24, 1
      %p41 = por %p39, %p40
      %p42 = scmp.ne.s32.totalorder %s34, %s37
      %p43 = scmp.eq.s32.totalorder %s24, 0
      %p44 = por %p42, %p43
      %p45 = scmp.ne.s32.totalorder %s34, %s37
      %p46 = scmp.eq.s32.totalorder %s29, 1
      %p47 = por %p45, %p46
      %p48 = scmp.ne.s32.totalorder %s37, %s38
      %p49 = scmp.eq.s32.totalorder %s29, 0
      %p50 = por %p48, %p49
      %p51 = scmp.ne.s32.totalorder %s37, %s38
      %p52 = scmp.eq.s32.totalorder %s30, 1
      %p53 = por %p51, %p52
      %p55 = scmp.ne.s32.totalorder %s38, %s54
      %p56 = scmp.eq.s32.totalorder %s30, 0
      %p57 = por %p55, %p56
      %s59 = sadd.s32 %s58, 1
      %p62 = scmp.eq.s32.totalorder %s24, 1
      %p63 = scmp.ne.s32.totalorder %s58, %s60
      %p64 = scmp.eq.s32.totalorder %s24, 0
      %p65 = por %p63, %p64
      %p66 = scmp.ne.s32.totalorder %s58, %s60
      %p67 = scmp.eq.s32.totalorder %s29, 1
      %p68 = por %p66, %p67
      %p69 = scmp.ne.s32.totalorder %s60, %s61
      %p70 = scmp.eq.s32.totalorder %s29, 0
      %p71 = por %p69, %p70
      %p72 = scmp.ne.s32.totalorder %s60, %s61
      %p73 = scmp.eq.s32.totalorder %s30, 1
      %p74 = por %p72, %p73
      %p76 = scmp.ne.s32.totalorder %s61, %s75
      %p77 = scmp.eq.s32.totalorder %s30, 0
      %p78 = por %p76, %p77
      %s80 = sadd.s32 %s79, 1
      %p83 = scmp.eq.s32.totalorder %s24, 1
      %p84 = scmp.ne.s32.totalorder %s79, %s81
      %p85 = scmp.eq.s32.totalorder %s24, 0
      %p86 = por %p84, %p85
      %p87 = scmp.ne.s32.totalorder %s79, %s81
      %p88 = scmp.eq.s32.totalorder %s29, 1
      %p89 = por %p87, %p88
      %p90 = scmp.ne.s32.totalorder %s81, %s82
      %p91 = scmp.eq.s32.totalorder %s29, 0
      %p92 = por %p90, %p91
      %p93 = scmp.ne.s32.totalorder %s81, %s82
      %p94 = scmp.eq.s32.totalorder %s30, 1
      %p95 = por %p93, %p94
      %p97 = scmp.ne.s32.totalorder %s82, %s96
      %p98 = scmp.eq.s32.totalorder %s30, 0
      %p99 = por %p97, %p98
      %s101 = sadd.s32 %s100, 1
      %p104 = scmp.eq.s32.totalorder %s24, 1
      %p105 = scmp.ne.s32.totalorder %s100, %s102
      %p106 = scmp.eq.s32.totalorder %s24, 0
      %p107 = por %p105, %p106
      %p108 = scmp.ne.s32.totalorder %s100, %s102
      %p109 = scmp.eq.s32.totalorder %s29, 1
      %p110 = por %p108, %p109
      %p111 = scmp.ne.s32.totalorder %s102, %s103
      %p112 = scmp.eq.s32.totalorder %s29, 0
      %p113 = por %p111, %p112
      %p114 = scmp.ne.s32.totalorder %s102, %s103
      %p115 = scmp.eq.s32.totalorder %s30, 1
      %p116 = por %p114, %p115
      %p118 = scmp.ne.s32.totalorder %s103, %s117
      %p119 = scmp.eq.s32.totalorder %s30, 0
      %p120 = por %p118, %p119
      %s122 = sadd.s32 %s121, 1
      %p125 = scmp.eq.s32.totalorder %s24, 1
      %p126 = scmp.ne.s32.totalorder %s121, %s123
      %p127 = scmp.eq.s32.totalorder %s24, 0
      %p128 = por %p126, %p127
      %p129 = scmp.ne.s32.totalorder %s121, %s123
      %p130 = scmp.eq.s32.totalorder %s29, 1
      %p131 = por %p129, %p130
      %p132 = scmp.ne.s32.totalorder %s123, %s124
      %p133 = scmp.eq.s32.totalorder %s29, 0
      %p134 = por %p132, %p133
      %p135 = scmp.ne.s32.totalorder %s123, %s124
      %p136 = scmp.eq.s32.totalorder %s30, 1
      %p137 = por %p135, %p136
      %p139 = scmp.ne.s32.totalorder %s124, %s138
      %p140 = scmp.eq.s32.totalorder %s30, 0
      %p141 = por %p139, %p140
      %s143 = sadd.s32 %s142, 1
      %p146 = scmp.eq.s32.totalorder %s24, 1
      %p147 = scmp.ne.s32.totalorder %s142, %s144
      %p148 = scmp.eq.s32.totalorder %s24, 0
      %p149 = por %p147, %p148
      %p150 = scmp.ne.s32.totalorder %s142, %s144
      %p151 = scmp.eq.s32.totalorder %s29, 1
      %p152 = por %p150, %p151
      %p153 = scmp.ne.s32.totalorder %s144, %s145
      %p154 = scmp.eq.s32.totalorder %s29, 0
      %p155 = por %p153, %p154
      %p156 = scmp.ne.s32.totalorder %s144, %s145
      %p157 = scmp.eq.s32.totalorder %s30, 1
      %p158 = por %p156, %p157
      %p160 = scmp.ne.s32.totalorder %s145, %s159
      %p161 = scmp.eq.s32.totalorder %s30, 0
      %p162 = por %p160, %p161
      %s164 = sadd.s32 %s163, 1
      %p167 = scmp.eq.s32.totalorder %s24, 1
      %p168 = scmp.ne.s32.totalorder %s163, %s165
      %p169 = scmp.eq.s32.totalorder %s24, 0
      %p170 = por %p168, %p169
      %p171 = scmp.ne.s32.totalorder %s163, %s165
      %p172 = scmp.eq.s32.totalorder %s29, 1
      %p173 = por %p171, %p172
      %p174 = scmp.ne.s32.totalorder %s165, %s166
      %p175 = scmp.eq.s32.totalorder %s29, 0
      %p176 = por %p174, %p175
      %p177 = scmp.ne.s32.totalorder %s165, %s166
      %p178 = scmp.eq.s32.totalorder %s30, 1
      %p179 = por %p177, %p178
      %p181 = scmp.ne.s32.totalorder %s166, %s180
      %p182 = scmp.eq.s32.totalorder %s30, 0
      %p183 = por %p181, %p182
      %s185 = sadd.s32 %s184, 1
      %p188 = scmp.eq.s32.totalorder %s24, 1
      %p189 = scmp.ne.s32.totalorder %s184, %s186
      %p190 = scmp.eq.s32.totalorder %s24, 0
      %p191 = por %p189, %p190
      %p192 = scmp.ne.s32.totalorder %s184, %s186
      %p193 = scmp.eq.s32.totalorder %s29, 1
      %p194 = por %p192, %p193
      %p195 = scmp.ne.s32.totalorder %s186, %s187
      %p196 = scmp.eq.s32.totalorder %s29, 0
      %p197 = por %p195, %p196
      %p198 = scmp.ne.s32.totalorder %s186, %s187
      %p199 = scmp.eq.s32.totalorder %s30, 1
      %p200 = por %p198, %p199
      %p202 = scmp.ne.s32.totalorder %s187, %s201
      %p203 = scmp.eq.s32.totalorder %s30, 0
      %p204 = por %p202, %p203
      %s206 = sadd.s32 %s205, 1
      %p209 = scmp.eq.s32.totalorder %s24, 1
      %p210 = scmp.ne.s32.totalorder %s205, %s207
      %p211 = scmp.eq.s32.totalorder %s24, 0
      %p212 = por %p210, %p211
      %p213 = scmp.ne.s32.totalorder %s205, %s207
      %p214 = scmp.eq.s32.totalorder %s29, 1
      %p215 = por %p213, %p214
      %p216 = scmp.ne.s32.totalorder %s207, %s208
      %p217 = scmp.eq.s32.totalorder %s29, 0
      %p218 = por %p216, %p217
      %p219 = scmp.ne.s32.totalorder %s207, %s208
      %p220 = scmp.eq.s32.totalorder %s30, 1
      %p221 = por %p219, %p220
      %p223 = scmp.ne.s32.totalorder %s208, %s222
      %p224 = scmp.eq.s32.totalorder %s30, 0
      %p225 = por %p223, %p224
      %s227 = sadd.s32 %s226, 1
      %p230 = scmp.eq.s32.totalorder %s24, 1
      %p231 = scmp.ne.s32.totalorder %s226, %s228
      %p232 = scmp.eq.s32.totalorder %s24, 0
      %p233 = por %p231, %p232
      %p234 = scmp.ne.s32.totalorder %s226, %s228
      %p235 = scmp.eq.s32.totalorder %s29, 1
      %p236 = por %p234, %p235
      %p237 = scmp.ne.s32.totalorder %s228, %s229
      %p238 = scmp.eq.s32.totalorder %s29, 0
      %p239 = por %p237, %p238
      %p240 = scmp.ne.s32.totalorder %s228, %s229
      %p241 = scmp.eq.s32.totalorder %s30, 1
      %p242 = por %p240, %p241
      %p244 = scmp.ne.s32.totalorder %s229, %s243
      %p245 = scmp.eq.s32.totalorder %s30, 0
      %p246 = por %p244, %p245
      %s248 = sadd.s32 %s247, 1
      %p251 = scmp.eq.s32.totalorder %s24, 1
      %p252 = scmp.ne.s32.totalorder %s247, %s249
      %p253 = scmp.eq.s32.totalorder %s24, 0
      %p254 = por %p252, %p253
      %p255 = scmp.ne.s32.totalorder %s247, %s249
      %p256 = scmp.eq.s32.totalorder %s29, 1
      %p257 = por %p255, %p256
      %p258 = scmp.ne.s32.totalorder %s249, %s250
      %p259 = scmp.eq.s32.totalorder %s29, 0
      %p260 = por %p258, %p259
      %p261 = scmp.ne.s32.totalorder %s249, %s250
      %p262 = scmp.eq.s32.totalorder %s30, 1
      %p263 = por %p261, %p262
      %p265 = scmp.ne.s32.totalorder %s250, %s264
      %p266 = scmp.eq.s32.totalorder %s30, 0
      %p267 = por %p265, %p266
      %s269 = sadd.s32 %s268, 1
      %p272 = scmp.eq.s32.totalorder %s24, 1
      %p273 = scmp.ne.s32.totalorder %s268, %s270
      %p274 = scmp.eq.s32.totalorder %s24, 0
      %p275 = por %p273, %p274
      %p276 = scmp.ne.s32.totalorder %s268, %s270
      %p277 = scmp.eq.s32.totalorder %s29, 1
      %p278 = por %p276, %p277
      %p279 = scmp.ne.s32.totalorder %s270, %s271
      %p280 = scmp.eq.s32.totalorder %s29, 0
      %p281 = por %p279, %p280
      %p282 = scmp.ne.s32.totalorder %s270, %s271
      %p283 = scmp.eq.s32.totalorder %s30, 1
      %p284 = por %p282, %p283
      %p286 = scmp.ne.s32.totalorder %s271, %s285
      %p287 = scmp.eq.s32.totalorder %s30, 0
      %p288 = por %p286, %p287
      %s290 = sadd.s32 %s289, 1
      %p293 = scmp.eq.s32.totalorder %s24, 1
      %p294 = scmp.ne.s32.totalorder %s289, %s291
      %p295 = scmp.eq.s32.totalorder %s24, 0
      %p296 = por %p294, %p295
      %p297 = scmp.ne.s32.totalorder %s289, %s291
      %p298 = scmp.eq.s32.totalorder %s29, 1
      %p299 = por %p297, %p298
      %p300 = scmp.ne.s32.totalorder %s291, %s292
      %p301 = scmp.eq.s32.totalorder %s29, 0
      %p302 = por %p300, %p301
      %p303 = scmp.ne.s32.totalorder %s291, %s292
      %p304 = scmp.eq.s32.totalorder %s30, 1
      %p305 = por %p303, %p304
      %p307 = scmp.ne.s32.totalorder %s292, %s306
      %p308 = scmp.eq.s32.totalorder %s30, 0
      %p309 = por %p307, %p308
      %s311 = sadd.s32 %s310, 1
      %p314 = scmp.eq.s32.totalorder %s24, 1
      %p315 = scmp.ne.s32.totalorder %s310, %s312
      %p316 = scmp.eq.s32.totalorder %s24, 0
      %p317 = por %p315, %p316
      %p318 = scmp.ne.s32.totalorder %s310, %s312
      %p319 = scmp.eq.s32.totalorder %s29, 1
      %p320 = por %p318, %p319
      %p321 = scmp.ne.s32.totalorder %s312, %s313
      %p322 = scmp.eq.s32.totalorder %s29, 0
      %p323 = por %p321, %p322
      %p324 = scmp.ne.s32.totalorder %s312, %s313
      %p325 = scmp.eq.s32.totalorder %s30, 1
      %p326 = por %p324, %p325
      %p328 = scmp.ne.s32.totalorder %s313, %s327
      %p329 = scmp.eq.s32.totalorder %s30, 0
      %p330 = por %p328, %p329
      %s332 = sadd.s32 %s331, 1
      %p335 = scmp.eq.s32.totalorder %s24, 1
      %p336 = scmp.ne.s32.totalorder %s331, %s333
      %p337 = scmp.eq.s32.totalorder %s24, 0
      %p338 = por %p336, %p337
      %p339 = scmp.ne.s32.totalorder %s331, %s333
      %p340 = scmp.eq.s32.totalorder %s29, 1
      %p341 = por %p339, %p340
      %p342 = scmp.ne.s32.totalorder %s333, %s334
      %p343 = scmp.eq.s32.totalorder %s29, 0
      %p344 = por %p342, %p343
      %p345 = scmp.ne.s32.totalorder %s333, %s334
      %p346 = scmp.eq.s32.totalorder %s30, 1
      %p347 = por %p345, %p346
      %p349 = scmp.ne.s32.totalorder %s334, %s348
      %p350 = scmp.eq.s32.totalorder %s30, 0
      %p351 = por %p349, %p350
      %s352 = ssub.s32 %s24, %s31
      %p353 = scmp.eq.s32.totalorder %s352, 0
      %s355 = sadd.s32 %s354, 1
      %s356 = scalar_select %p353, %s354, %s355
      %p359 = pneg %p353
      %p360 = scmp.eq.s32.totalorder %s24, 1
      %p361 = por %p359, %p360
      %p362 = scmp.ne.s32.totalorder %s354, %s357
      %p363 = scmp.eq.s32.totalorder %s24, 0
      %p364 = por %p362, %p363
      %p365 = scmp.ne.s32.totalorder %s354, %s357
      %p366 = scmp.eq.s32.totalorder %s29, 1
      %p367 = por %p365, %p366
      %p368 = scmp.ne.s32.totalorder %s357, %s358
      %p369 = scmp.eq.s32.totalorder %s29, 0
      %p370 = por %p368, %p369
      %p371 = scmp.ne.s32.totalorder %s357, %s358
      %p372 = scmp.eq.s32.totalorder %s30, 1
      %p373 = por %p371, %p372
      %p375 = scmp.ne.s32.totalorder %s358, %s374
      %p376 = scmp.eq.s32.totalorder %s30, 0
      %p377 = por %p375, %p376
      %p378 = scmp.le.s32.totalorder 1, %s24
      %p379 = scmp.lt.s32.totalorder %s24, 3
      %p380 = pnand %p378, %p379
      %p381 = pneg %p380
      // Predicated region
      $region9: #{net_forward.1} parent=5 // pred_check
        _
      $region10: #{net_forward.1} parent=5 // pred_check_branch
        %383 = sbr.rel (%p380) target = $region12
      $region11: #{net_forward.1} parent=5 // pred_region
        %s384 = ssub.s32 %s24, 1
        // Predicated region
        $region13: #{net_forward.1} parent=11 // pred_check
          %p385 = pneg %p71
        $region14: #{net_forward.1} parent=11 // pred_check_branch
          %387 = sbr.rel (%p385) target = $region16
        $region15: #{net_forward.1} parent=11 // pred_region
          _
        $region16: #{net_forward.1} parent=11 // pred_fallthru
          _
        // Predicated region
        $region17: #{net_forward.1} parent=11 // pred_check
          %p388 = pneg %p92
        $region18: #{net_forward.1} parent=11 // pred_check_branch
          %390 = sbr.rel (%p388) target = $region20
        $region19: #{net_forward.1} parent=11 // pred_region
          _
        $region20: #{net_forward.1} parent=11 // pred_fallthru
          _
        // Predicated region
        $region21: #{net_forward.1} parent=11 // pred_check
          %p391 = pneg %p113
        $region22: #{net_forward.1} parent=11 // pred_check_branch
          %393 = sbr.rel (%p391) target = $region24
        $region23: #{net_forward.1} parent=11 // pred_region
          _
        $region24: #{net_forward.1} parent=11 // pred_fallthru
          _
        // Predicated region
        $region25: #{net_forward.1} parent=11 // pred_check
          %p394 = pneg %p134
        $region26: #{net_forward.1} parent=11 // pred_check_branch
          %396 = sbr.rel (%p394) target = $region28
        $region27: #{net_forward.1} parent=11 // pred_region
          _
        $region28: #{net_forward.1} parent=11 // pred_fallthru
          _
        // Predicated region
        $region29: #{net_forward.1} parent=11 // pred_check
          %p397 = pneg %p155
        $region30: #{net_forward.1} parent=11 // pred_check_branch
          %399 = sbr.rel (%p397) target = $region32
        $region31: #{net_forward.1} parent=11 // pred_region
          _
        $region32: #{net_forward.1} parent=11 // pred_fallthru
          _
        // Predicated region
        $region33: #{net_forward.1} parent=11 // pred_check
          %p400 = pneg %p176
        $region34: #{net_forward.1} parent=11 // pred_check_branch
          %402 = sbr.rel (%p400) target = $region36
        $region35: #{net_forward.1} parent=11 // pred_region
          _
        $region36: #{net_forward.1} parent=11 // pred_fallthru
          _
        // Predicated region
        $region37: #{net_forward.1} parent=11 // pred_check
          %p403 = pneg %p197
        $region38: #{net_forward.1} parent=11 // pred_check_branch
          %405 = sbr.rel (%p403) target = $region40
        $region39: #{net_forward.1} parent=11 // pred_region
          _
        $region40: #{net_forward.1} parent=11 // pred_fallthru
          _
        // Predicated region
        $region41: #{net_forward.1} parent=11 // pred_check
          %p406 = pneg %p218
        $region42: #{net_forward.1} parent=11 // pred_check_branch
          %408 = sbr.rel (%p406) target = $region44
        $region43: #{net_forward.1} parent=11 // pred_region
          _
        $region44: #{net_forward.1} parent=11 // pred_fallthru
          _
        // Predicated region
        $region45: #{net_forward.1} parent=11 // pred_check
          %p409 = pneg %p239
        $region46: #{net_forward.1} parent=11 // pred_check_branch
          %411 = sbr.rel (%p409) target = $region48
        $region47: #{net_forward.1} parent=11 // pred_region
          _
        $region48: #{net_forward.1} parent=11 // pred_fallthru
          _
        // Predicated region
        $region49: #{net_forward.1} parent=11 // pred_check
          %p412 = pneg %p260
        $region50: #{net_forward.1} parent=11 // pred_check_branch
          %414 = sbr.rel (%p412) target = $region52
        $region51: #{net_forward.1} parent=11 // pred_region
          _
        $region52: #{net_forward.1} parent=11 // pred_fallthru
          _
        // Predicated region
        $region53: #{net_forward.1} parent=11 // pred_check
          %p415 = pneg %p281
        $region54: #{net_forward.1} parent=11 // pred_check_branch
          %417 = sbr.rel (%p415) target = $region56
        $region55: #{net_forward.1} parent=11 // pred_region
          _
        $region56: #{net_forward.1} parent=11 // pred_fallthru
          _
        // Predicated region
        $region57: #{net_forward.1} parent=11 // pred_check
          %p418 = pneg %p302
        $region58: #{net_forward.1} parent=11 // pred_check_branch
          %420 = sbr.rel (%p418) target = $region60
        $region59: #{net_forward.1} parent=11 // pred_region
          _
        $region60: #{net_forward.1} parent=11 // pred_fallthru
          _
        // Predicated region
        $region61: #{net_forward.1} parent=11 // pred_check
          %p421 = pneg %p323
        $region62: #{net_forward.1} parent=11 // pred_check_branch
          %423 = sbr.rel (%p421) target = $region64
        $region63: #{net_forward.1} parent=11 // pred_region
          _
        $region64: #{net_forward.1} parent=11 // pred_fallthru
          _
        // Predicated region
        $region65: #{net_forward.1} parent=11 // pred_check
          %p424 = pneg %p344
        $region66: #{net_forward.1} parent=11 // pred_check_branch
          %426 = sbr.rel (%p424) target = $region68
        $region67: #{net_forward.1} parent=11 // pred_region
          _
        $region68: #{net_forward.1} parent=11 // pred_fallthru
          _
      $region12: #{net_forward.1} parent=5 // pred_fallthru
        _
      %p427 = scmp.lt.s32.totalorder %s24, 2
      // Predicated region
      $region69: #{net_forward.1} parent=5 // pred_check
        %p428 = pneg %p427
      $region70: #{net_forward.1} parent=5 // pred_check_branch
        %430 = sbr.rel (%p428) target = $region72
      $region71: #{net_forward.1} parent=5 // pred_region
        // Predicated region
        $region73: #{net_forward.1} parent=71 // pred_check
          %p431 = pneg %p44
        $region74: #{net_forward.1} parent=71 // pred_check_branch
          %433 = sbr.rel (%p431) target = $region76
        $region75: #{net_forward.1} parent=71 // pred_region
          %s434 = smul.u32 32, %s24
          %p435 = scmp.lt.s32.totalorder %s434, 63
          %s436 = scalar_select %p435, %s434, 63
          %s437 = smul.addr %s436, 8
          %s438 = scalar_lea.vmem %s0, %s437
          %s439 = smul.u32 32, %s24
        $region76: #{net_forward.1} parent=71 // pred_fallthru
          _
      $region72: #{net_forward.1} parent=5 // pred_fallthru
        _
      %p440 = scmp.le.s32.totalorder 1, %s24
      %p441 = scmp.lt.s32.totalorder %s24, 3
      %p442 = pnand %p440, %p441
      %p443 = pneg %p442
      // Predicated region
      $region77: #{net_forward.1} parent=5 // pred_check
        _
      $region78: #{net_forward.1} parent=5 // pred_check_branch
        %445 = sbr.rel (%p442) target = $region80
      $region79: #{net_forward.1} parent=5 // pred_region
        %s446 = ssub.s32 %s24, 1
        %s447 = smul.u32 32, %s29
        %p448 = scmp.lt.s32.totalorder %s447, 63
        %s449 = scalar_select %p448, %s447, 63
        %s450 = smul.addr %s449, 8
        %s451 = scalar_lea.vmem %s0, %s450
        %p452 = pneg %p50
        %p453 = pneg %p47
        %p454 = pneg %p71
        %p455 = pneg %p68
        %p456 = pneg %p92
        %p457 = pneg %p89
        %p458 = pneg %p113
        %p459 = pneg %p110
        %p460 = pneg %p134
        %p461 = pneg %p131
        %p462 = pneg %p155
        %p463 = pneg %p152
        %p464 = pneg %p176
        %p465 = pneg %p173
        %p466 = pneg %p197
        %p467 = pneg %p194
        %p468 = pneg %p218
        %p469 = pneg %p215
        %p470 = pneg %p239
        %p471 = pneg %p236
        %p472 = pneg %p260
        %p473 = pneg %p257
        %p474 = pneg %p281
        %p475 = pneg %p278
        %p476 = pneg %p302
        %p477 = pneg %p299
        %p478 = pneg %p323
        %p479 = pneg %p320
        %p480 = pneg %p344
        %p481 = pneg %p341
        %p482 = pneg %p370
        %p483 = pneg %p367
        %s484 = sand.u32 %s357, 1
        %s485 = scalar_lea.sflag [#allocation4], %s484
        %s486 = sand.u32 %s357, 1
        %s487 = smul.addr %s486, 8
        %s488 = scalar_lea.vmem [#allocation3], %s487
        %s489 = smul.u32 32, %s29
        %p490 = scmp.lt.s32.totalorder %s489, 63
        %s491 = scalar_select %p490, %s489, 63
        %s492 = smul.addr %s491, 8
        %s493 = scalar_lea.vmem %s0, %s492
        %s494 = smul.u32 32, %s29
        %v495 = vld [vmem:[%s493] sm:$0xff]
        %v496 = vld [vmem:[%s493 + $0x8] sm:$0xff]
        %v497 = vld [vmem:[%s493 + $0x10] sm:$0xff]
        %v498 = vld [vmem:[%s493 + $0x18] sm:$0xff]
        %v499 = vld [vmem:[%s493 + $0x20] sm:$0xff]
        %v500 = vld [vmem:[%s493 + $0x28] sm:$0xff]
        %v501 = vld [vmem:[%s493 + $0x30] sm:$0xff]
        %v502 = vld [vmem:[%s493 + $0x38] sm:$0xff]
        %v503 = vld [vmem:[%s493 + $0x40] sm:$0xff]
        %v504 = vld [vmem:[%s493 + $0x48] sm:$0xff]
        %v505 = vld [vmem:[%s493 + $0x50] sm:$0xff]
        %v506 = vld [vmem:[%s493 + $0x58] sm:$0xff]
        %v507 = vld [vmem:[%s493 + $0x60] sm:$0xff]
        %v508 = vld [vmem:[%s493 + $0x68] sm:$0xff]
        %v509 = vld [vmem:[%s493 + $0x70] sm:$0xff]
        %v510 = vld [vmem:[%s493 + $0x78] sm:$0xff]
        %v511 = vld [vmem:[%s493 + $0x80] sm:$0xff]
        %v512 = vld [vmem:[%s493 + $0x88] sm:$0xff]
        %v513 = vld [vmem:[%s493 + $0x90] sm:$0xff]
        %v514 = vld [vmem:[%s493 + $0x98] sm:$0xff]
        %v515 = vld [vmem:[%s493 + $0xa0] sm:$0xff]
        %v516 = vld [vmem:[%s493 + $0xa8] sm:$0xff]
        %v517 = vld [vmem:[%s493 + $0xb0] sm:$0xff]
        %v518 = vld [vmem:[%s493 + $0xb8] sm:$0xff]
        %v519 = vld [vmem:[%s493 + $0xc0] sm:$0xff]
        %v520 = vld [vmem:[%s493 + $0xc8] sm:$0xff]
        %v521 = vld [vmem:[%s493 + $0xd0] sm:$0xff]
        %v522 = vld [vmem:[%s493 + $0xd8] sm:$0xff]
        %v523 = vld [vmem:[%s493 + $0xe0] sm:$0xff]
        %v524 = vld [vmem:[%s493 + $0xe8] sm:$0xff]
        %v525 = vld [vmem:[%s493 + $0xf0] sm:$0xff]
        %v526 = vld [vmem:[%s493 + $0xf8] sm:$0xf]
        %v527 = vld [vmem:[%s1] sm:$0xff]
        %v528 = vld [vmem:[%s1 + $0x8] sm:$0xff]
        %v529 = vld [vmem:[%s1 + $0x10] sm:$0xff]
        %v530 = vld [vmem:[%s1 + $0x18] sm:$0xff]
        %v531 = vld [vmem:[%s1 + $0x20] sm:$0xff]
        %v532 = vld [vmem:[%s1 + $0x28] sm:$0xff]
        %v533 = vld [vmem:[%s1 + $0x30] sm:$0xff]
        %v534 = vld [vmem:[%s1 + $0x38] sm:$0xff]
        %v535 = vld [vmem:[%s1 + $0x40] sm:$0xff]
        %v536 = vld [vmem:[%s1 + $0x48] sm:$0xff]
        %v537 = vld [vmem:[%s1 + $0x50] sm:$0xff]
        %v538 = vld [vmem:[%s1 + $0x58] sm:$0xff]
        %v539 = vld [vmem:[%s1 + $0x60] sm:$0xff]
        %v540 = vld [vmem:[%s1 + $0x68] sm:$0xff]
        %v541 = vld [vmem:[%s1 + $0x70] sm:$0xff]
        %v542 = vld [vmem:[%s1 + $0x78] sm:$0xff]
        %v543 = vld [vmem:[%s1 + $0x80] sm:$0xff]
        %v544 = vld [vmem:[%s1 + $0x88] sm:$0xff]
        %v545 = vld [vmem:[%s1 + $0x90] sm:$0xff]
        %v546 = vld [vmem:[%s1 + $0x98] sm:$0xff]
        %v547 = vld [vmem:[%s1 + $0xa0] sm:$0xff]
        %v548 = vld [vmem:[%s1 + $0xa8] sm:$0xff]
        %v549 = vld [vmem:[%s1 + $0xb0] sm:$0xff]
        %v550 = vld [vmem:[%s1 + $0xb8] sm:$0xff]
        %v551 = vld [vmem:[%s493 + $0x1] sm:$0xff]
        %v552 = vld [vmem:[%s493 + $0x9] sm:$0xff]
        %v553 = vld [vmem:[%s493 + $0x11] sm:$0xff]
        %v554 = vld [vmem:[%s493 + $0x19] sm:$0xff]
        %v555 = vld [vmem:[%s493 + $0x21] sm:$0xff]
        %v556 = vld [vmem:[%s493 + $0x29] sm:$0xff]
        %v557 = vld [vmem:[%s493 + $0x31] sm:$0xff]
        %v558 = vld [vmem:[%s493 + $0x39] sm:$0xff]
        %v559 = vld [vmem:[%s493 + $0x41] sm:$0xff]
        %v560 = vld [vmem:[%s493 + $0x49] sm:$0xff]
        %v561 = vld [vmem:[%s493 + $0x51] sm:$0xff]
        %v562 = vld [vmem:[%s493 + $0x59] sm:$0xff]
        %v563 = vld [vmem:[%s493 + $0x61] sm:$0xff]
        %v564 = vld [vmem:[%s493 + $0x69] sm:$0xff]
        %v565 = vld [vmem:[%s493 + $0x71] sm:$0xff]
        %v566 = vld [vmem:[%s493 + $0x79] sm:$0xff]
        %v567 = vld [vmem:[%s493 + $0x81] sm:$0xff]
        %v568 = vld [vmem:[%s493 + $0x89] sm:$0xff]
        %v569 = vld [vmem:[%s493 + $0x91] sm:$0xff]
        %v570 = vld [vmem:[%s493 + $0x99] sm:$0xff]
        %v571 = vld [vmem:[%s493 + $0xa1] sm:$0xff]
        %v572 = vld [vmem:[%s493 + $0xa9] sm:$0xff]
        %v573 = vld [vmem:[%s493 + $0xb1] sm:$0xff]
        %v574 = vld [vmem:[%s493 + $0xb9] sm:$0xff]
        %v575 = vld [vmem:[%s493 + $0xc1] sm:$0xff]
        %v576 = vld [vmem:[%s493 + $0xc9] sm:$0xff]
        %v577 = vld [vmem:[%s493 + $0xd1] sm:$0xff]
        %v578 = vld [vmem:[%s493 + $0xd9] sm:$0xff]
        %v579 = vld [vmem:[%s493 + $0xe1] sm:$0xff]
        %v580 = vld [vmem:[%s493 + $0xe9] sm:$0xff]
        %v581 = vld [vmem:[%s493 + $0xf1] sm:$0xff]
        %v582 = vld [vmem:[%s493 + $0xf9] sm:$0xf]
        %s583 = scalar_lea.vmem %s1, 192
        %v584 = vld [vmem:[%s583] sm:$0xff]
        %v585 = vld [vmem:[%s583 + $0x8] sm:$0xff]
        %v586 = vld [vmem:[%s583 + $0x10] sm:$0xff]
        %v587 = vld [vmem:[%s583 + $0x18] sm:$0xff]
        %v588 = vld [vmem:[%s583 + $0x20] sm:$0xff]
        %v589 = vld [vmem:[%s583 + $0x28] sm:$0xff]
        %v590 = vld [vmem:[%s583 + $0x30] sm:$0xff]
        %v591 = vld [vmem:[%s583 + $0x38] sm:$0xff]
        %v592 = vld [vmem:[%s583 + $0x40] sm:$0xff]
        %v593 = vld [vmem:[%s583 + $0x48] sm:$0xff]
        %v594 = vld [vmem:[%s583 + $0x50] sm:$0xff]
        %v595 = vld [vmem:[%s583 + $0x58] sm:$0xff]
        %v596 = vld [vmem:[%s583 + $0x60] sm:$0xff]
        %v597 = vld [vmem:[%s583 + $0x68] sm:$0xff]
        %v598 = vld [vmem:[%s583 + $0x70] sm:$0xff]
        %v599 = vld [vmem:[%s583 + $0x78] sm:$0xff]
        %v600 = vld [vmem:[%s583 + $0x80] sm:$0xff]
        %v601 = vld [vmem:[%s583 + $0x88] sm:$0xff]
        %v602 = vld [vmem:[%s583 + $0x90] sm:$0xff]
        %v603 = vld [vmem:[%s583 + $0x98] sm:$0xff]
        %v604 = vld [vmem:[%s583 + $0xa0] sm:$0xff]
        %v605 = vld [vmem:[%s583 + $0xa8] sm:$0xff]
        %v606 = vld [vmem:[%s583 + $0xb0] sm:$0xff]
        %v607 = vld [vmem:[%s583 + $0xb8] sm:$0xff]
        %vm608 = vcmask 785408
        %v610 = vsel %vm608, %v551, 0
        %v613 = vsel %vm608, %v552, 0
        %v616 = vsel %vm608, %v553, 0
        %v619 = vsel %vm608, %v554, 0
        %v622 = vsel %vm608, %v555, 0
        %v625 = vsel %vm608, %v556, 0
        %v628 = vsel %vm608, %v557, 0
        %v631 = vsel %vm608, %v558, 0
        %v634 = vsel %vm608, %v559, 0
        %v637 = vsel %vm608, %v560, 0
        %v640 = vsel %vm608, %v561, 0
        %v643 = vsel %vm608, %v562, 0
        %v646 = vsel %vm608, %v563, 0
        %v649 = vsel %vm608, %v564, 0
        %v652 = vsel %vm608, %v565, 0
        %v655 = vsel %vm608, %v566, 0
        %v658 = vsel %vm608, %v567, 0
        %v661 = vsel %vm608, %v568, 0
        %v664 = vsel %vm608, %v569, 0
        %v667 = vsel %vm608, %v570, 0
        %v670 = vsel %vm608, %v571, 0
        %v673 = vsel %vm608, %v572, 0
        %v676 = vsel %vm608, %v573, 0
        %v679 = vsel %vm608, %v574, 0
        %v682 = vsel %vm608, %v575, 0
        %v685 = vsel %vm608, %v576, 0
        %v688 = vsel %vm608, %v577, 0
        %v691 = vsel %vm608, %v578, 0
        %v694 = vsel %vm608, %v579, 0
        %v697 = vsel %vm608, %v580, 0
        %v700 = vsel %vm608, %v581, 0
        %v703 = vsel %vm608, %v582, 0
        %705 = vmatprep.subr.mxu0 0.0
        %706 = vmatpush1.msra.mxu0 0.0
        %707 = vmatprep.subr.mxu0 0.0
        %708 = vmatpush1.msra.mxu0 0.0
        %709 = vmatprep.subr.mxu0 0.0
        %710 = vmatpush1.msra.mxu0 0.0
        %711 = vmatprep.subr.mxu0 0.0
        %712 = vmatpush1.msra.mxu0 0.0
        %713 = vmatprep.subr.mxu0 %v607
        %714 = vmatpush1.msra.mxu0 %v606
        %715 = vmatprep.subr.mxu0 %v605
        %716 = vmatpush1.msra.mxu0 %v604
        %717 = vmatprep.subr.mxu0 %v603
        %718 = vmatpush1.msra.mxu0 %v602
        %719 = vmatprep.subr.mxu0 %v601
        %720 = vmatpush1.msra.mxu0 %v600
        %721 = vmatprep.subr.mxu0 %v599
        %722 = vmatpush1.msra.mxu0 %v598
        %723 = vmatprep.subr.mxu0 %v597
        %724 = vmatpush1.msra.mxu0 %v596
        %725 = vmatprep.subr.mxu0 %v595
        %726 = vmatpush1.msra.mxu0 %v594
        %727 = vmatprep.subr.mxu0 %v593
        %728 = vmatpush1.msra.mxu0 %v592
        %729 = vmatprep.subr.mxu0 %v591
        %730 = vmatpush1.msra.mxu0 %v590
        %731 = vmatprep.subr.mxu0 %v589
        %732 = vmatpush1.msra.mxu0 %v588
        %733 = vmatprep.subr.mxu0 %v587
        %734 = vmatpush1.msra.mxu0 %v586
        %735 = vmatprep.subr.mxu0 %v585
        %736 = vmatpush1.msra.mxu0 %v584
        %737 = vmatprep.subr.mxu0 0.0
        %738 = vmatpush2.msra.mxu0 0.0
        %739 = vmatprep.subr.mxu0 0.0
        %740 = vmatpush2.msra.mxu0 0.0
        %741 = vmatprep.subr.mxu0 0.0
        %742 = vmatpush2.msra.mxu0 0.0
        %743 = vmatprep.subr.mxu0 0.0
        %744 = vmatpush2.msra.mxu0 0.0
        %745 = vmatprep.subr.mxu0 0.0
        %746 = vmatpush2.msra.mxu0 0.0
        %747 = vmatprep.subr.mxu0 0.0
        %748 = vmatpush2.msra.mxu0 0.0
        %749 = vmatprep.subr.mxu0 0.0
        %750 = vmatpush2.msra.mxu0 0.0
        %751 = vmatprep.subr.mxu0 0.0
        %752 = vmatpush2.msra.mxu0 0.0
        %753 = vmatprep.subr.mxu0 0.0
        %754 = vmatpush2.msra.mxu0 0.0
        %755 = vmatprep.subr.mxu0 0.0
        %756 = vmatpush2.msra.mxu0 0.0
        %757 = vmatprep.subr.mxu0 0.0
        %758 = vmatpush2.msra.mxu0 0.0
        %759 = vmatprep.subr.mxu0 0.0
        %760 = vmatpush2.msra.mxu0 0.0
        %761 = vmatprep.subr.mxu0 0.0
        %762 = vmatpush2.msra.mxu0 0.0
        %763 = vmatprep.subr.mxu0 0.0
        %764 = vmatpush2.msra.mxu0 0.0
        %765 = vmatprep.subr.mxu0 0.0
        %766 = vmatpush2.msra.mxu0 0.0
        %767 = vmatprep.subr.mxu0 0.0
        %768 = vmatpush2.msra.mxu0 0.0
        %769 = vmatprep.mubr.f32.mxu0 0.0
        %770 = vmatmul.mubr.f32.gmra.mxu0 %v610
        %v771 = vpop.f32.mrf.mxu0
        %v772 = vadd.f32 0.0, %v771
        %v773 = vpop.f32.mrf.mxu0
        %v774 = vadd.f32 0.0, %v773
        %775 = vmatprep.mubr.f32.mxu0 0.0
        %776 = vmatmul.mubr.f32.gmra.mxu0 %v613
        %v777 = vpop.f32.mrf.mxu0
        %v778 = vadd.f32 0.0, %v777
        %v779 = vpop.f32.mrf.mxu0
        %v780 = vadd.f32 0.0, %v779
        %781 = vmatprep.mubr.f32.mxu0 0.0
        %782 = vmatmul.mubr.f32.gmra.mxu0 %v616
        %v783 = vpop.f32.mrf.mxu0
        %v784 = vadd.f32 0.0, %v783
        %v785 = vpop.f32.mrf.mxu0
        %v786 = vadd.f32 0.0, %v785
        %787 = vmatprep.mubr.f32.mxu0 0.0
        %788 = vmatmul.mubr.f32.gmra.mxu0 %v619
        %v789 = vpop.f32.mrf.mxu0
        %v790 = vadd.f32 0.0, %v789
        %v791 = vpop.f32.mrf.mxu0
        %v792 = vadd.f32 0.0, %v791
        %793 = vmatprep.mubr.f32.mxu0 0.0
        %794 = vmatmul.mubr.f32.gmra.mxu0 %v622
        %v795 = vpop.f32.mrf.mxu0
        %v796 = vadd.f32 0.0, %v795
        %v797 = vpop.f32.mrf.mxu0
        %v798 = vadd.f32 0.0, %v797
        %799 = vmatprep.mubr.f32.mxu0 0.0
        %800 = vmatmul.mubr.f32.gmra.mxu0 %v625
        %v801 = vpop.f32.mrf.mxu0
        %v802 = vadd.f32 0.0, %v801
        %v803 = vpop.f32.mrf.mxu0
        %v804 = vadd.f32 0.0, %v803
        %805 = vmatprep.mubr.f32.mxu0 0.0
        %806 = vmatmul.mubr.f32.gmra.mxu0 %v628
        %v807 = vpop.f32.mrf.mxu0
        %v808 = vadd.f32 0.0, %v807
        %v809 = vpop.f32.mrf.mxu0
        %v810 = vadd.f32 0.0, %v809
        %811 = vmatprep.mubr.f32.mxu0 0.0
        %812 = vmatmul.mubr.f32.gmra.mxu0 %v631
        %v813 = vpop.f32.mrf.mxu0
        %v814 = vadd.f32 0.0, %v813
        %v815 = vpop.f32.mrf.mxu0
        %v816 = vadd.f32 0.0, %v815
        %817 = vmatprep.mubr.f32.mxu0 0.0
        %818 = vmatmul.mubr.f32.gmra.mxu0 %v634
        %v819 = vpop.f32.mrf.mxu0
        %v820 = vadd.f32 0.0, %v819
        %v821 = vpop.f32.mrf.mxu0
        %v822 = vadd.f32 0.0, %v821
        %823 = vmatprep.mubr.f32.mxu0 0.0
        %824 = vmatmul.mubr.f32.gmra.mxu0 %v637
        %v825 = vpop.f32.mrf.mxu0
        %v826 = vadd.f32 0.0, %v825
        %v827 = vpop.f32.mrf.mxu0
        %v828 = vadd.f32 0.0, %v827
        %829 = vmatprep.mubr.f32.mxu0 0.0
        %830 = vmatmul.mubr.f32.gmra.mxu0 %v640
        %v831 = vpop.f32.mrf.mxu0
        %v832 = vadd.f32 0.0, %v831
        %v833 = vpop.f32.mrf.mxu0
        %v834 = vadd.f32 0.0, %v833
        %835 = vmatprep.mubr.f32.mxu0 0.0
        %836 = vmatmul.mubr.f32.gmra.mxu0 %v643
        %v837 = vpop.f32.mrf.mxu0
        %v838 = vadd.f32 0.0, %v837
        %v839 = vpop.f32.mrf.mxu0
        %v840 = vadd.f32 0.0, %v839
        %841 = vmatprep.mubr.f32.mxu0 0.0
        %842 = vmatmul.mubr.f32.gmra.mxu0 %v646
        %v843 = vpop.f32.mrf.mxu0
        %v844 = vadd.f32 0.0, %v843
        %v845 = vpop.f32.mrf.mxu0
        %v846 = vadd.f32 0.0, %v845
        %847 = vmatprep.mubr.f32.mxu0 0.0
        %848 = vmatmul.mubr.f32.gmra.mxu0 %v649
        %v849 = vpop.f32.mrf.mxu0
        %v850 = vadd.f32 0.0, %v849
        %v851 = vpop.f32.mrf.mxu0
        %v852 = vadd.f32 0.0, %v851
        %853 = vmatprep.mubr.f32.mxu0 0.0
        %854 = vmatmul.mubr.f32.gmra.mxu0 %v652
        %v855 = vpop.f32.mrf.mxu0
        %v856 = vadd.f32 0.0, %v855
        %v857 = vpop.f32.mrf.mxu0
        %v858 = vadd.f32 0.0, %v857
        %859 = vmatprep.mubr.f32.mxu0 0.0
        %860 = vmatmul.mubr.f32.gmra.mxu0 %v655
        %v861 = vpop.f32.mrf.mxu0
        %v862 = vadd.f32 0.0, %v861
        %v863 = vpop.f32.mrf.mxu0
        %v864 = vadd.f32 0.0, %v863
        %865 = vmatprep.mubr.f32.mxu0 0.0
        %866 = vmatmul.mubr.f32.gmra.mxu0 %v658
        %v867 = vpop.f32.mrf.mxu0
        %v868 = vadd.f32 0.0, %v867
        %v869 = vpop.f32.mrf.mxu0
        %v870 = vadd.f32 0.0, %v869
        %871 = vmatprep.mubr.f32.mxu0 0.0
        %872 = vmatmul.mubr.f32.gmra.mxu0 %v661
        %v873 = vpop.f32.mrf.mxu0
        %v874 = vadd.f32 0.0, %v873
        %v875 = vpop.f32.mrf.mxu0
        %v876 = vadd.f32 0.0, %v875
        %877 = vmatprep.mubr.f32.mxu0 0.0
        %878 = vmatmul.mubr.f32.gmra.mxu0 %v664
        %v879 = vpop.f32.mrf.mxu0
        %v880 = vadd.f32 0.0, %v879
        %v881 = vpop.f32.mrf.mxu0
        %v882 = vadd.f32 0.0, %v881
        %883 = vmatprep.mubr.f32.mxu0 0.0
        %884 = vmatmul.mubr.f32.gmra.mxu0 %v667
        %v885 = vpop.f32.mrf.mxu0
        %v886 = vadd.f32 0.0, %v885
        %v887 = vpop.f32.mrf.mxu0
        %v888 = vadd.f32 0.0, %v887
        %889 = vmatprep.mubr.f32.mxu0 0.0
        %890 = vmatmul.mubr.f32.gmra.mxu0 %v670
        %v891 = vpop.f32.mrf.mxu0
        %v892 = vadd.f32 0.0, %v891
        %v893 = vpop.f32.mrf.mxu0
        %v894 = vadd.f32 0.0, %v893
        %895 = vmatprep.mubr.f32.mxu0 0.0
        %896 = vmatmul.mubr.f32.gmra.mxu0 %v673
        %v897 = vpop.f32.mrf.mxu0
        %v898 = vadd.f32 0.0, %v897
        %v899 = vpop.f32.mrf.mxu0
        %v900 = vadd.f32 0.0, %v899
        %901 = vmatprep.mubr.f32.mxu0 0.0
        %902 = vmatmul.mubr.f32.gmra.mxu0 %v676
        %v903 = vpop.f32.mrf.mxu0
        %v904 = vadd.f32 0.0, %v903
        %v905 = vpop.f32.mrf.mxu0
        %v906 = vadd.f32 0.0, %v905
        %907 = vmatprep.mubr.f32.mxu0 0.0
        %908 = vmatmul.mubr.f32.gmra.mxu0 %v679
        %v909 = vpop.f32.mrf.mxu0
        %v910 = vadd.f32 0.0, %v909
        %v911 = vpop.f32.mrf.mxu0
        %v912 = vadd.f32 0.0, %v911
        %913 = vmatprep.mubr.f32.mxu0 0.0
        %914 = vmatmul.mubr.f32.gmra.mxu0 %v682
        %v915 = vpop.f32.mrf.mxu0
        %v916 = vadd.f32 0.0, %v915
        %v917 = vpop.f32.mrf.mxu0
        %v918 = vadd.f32 0.0, %v917
        %919 = vmatprep.mubr.f32.mxu0 0.0
        %920 = vmatmul.mubr.f32.gmra.mxu0 %v685
        %v921 = vpop.f32.mrf.mxu0
        %v922 = vadd.f32 0.0, %v921
        %v923 = vpop.f32.mrf.mxu0
        %v924 = vadd.f32 0.0, %v923
        %925 = vmatprep.mubr.f32.mxu0 0.0
        %926 = vmatmul.mubr.f32.gmra.mxu0 %v688
        %v927 = vpop.f32.mrf.mxu0
        %v928 = vadd.f32 0.0, %v927
        %v929 = vpop.f32.mrf.mxu0
        %v930 = vadd.f32 0.0, %v929
        %931 = vmatprep.mubr.f32.mxu0 0.0
        %932 = vmatmul.mubr.f32.gmra.mxu0 %v691
        %v933 = vpop.f32.mrf.mxu0
        %v934 = vadd.f32 0.0, %v933
        %v935 = vpop.f32.mrf.mxu0
        %v936 = vadd.f32 0.0, %v935
        %937 = vmatprep.mubr.f32.mxu0 0.0
        %938 = vmatmul.mubr.f32.gmra.mxu0 %v694
        %v939 = vpop.f32.mrf.mxu0
        %v940 = vadd.f32 0.0, %v939
        %v941 = vpop.f32.mrf.mxu0
        %v942 = vadd.f32 0.0, %v941
        %943 = vmatprep.mubr.f32.mxu0 0.0
        %944 = vmatmul.mubr.f32.gmra.mxu0 %v697
        %v945 = vpop.f32.mrf.mxu0
        %v946 = vadd.f32 0.0, %v945
        %v947 = vpop.f32.mrf.mxu0
        %v948 = vadd.f32 0.0, %v947
        %949 = vmatprep.mubr.f32.mxu0 0.0
        %950 = vmatmul.mubr.f32.gmra.mxu0 %v700
        %v951 = vpop.f32.mrf.mxu0
        %v952 = vadd.f32 0.0, %v951
        %v953 = vpop.f32.mrf.mxu0
        %v954 = vadd.f32 0.0, %v953
        %955 = vmatprep.mubr.f32.mxu0 0.0
        %956 = vmatmul.mubr.f32.gmra.mxu0 %v703
        %v957 = vpop.f32.mrf.mxu0
        %v958 = vadd.f32 0.0, %v957
        %v959 = vpop.f32.mrf.mxu0
        %v960 = vadd.f32 0.0, %v959
        %961 = vdwg.mxu0
        %v963 = vsel %vm608, %v495, 0
        %v966 = vsel %vm608, %v496, 0
        %v969 = vsel %vm608, %v497, 0
        %v972 = vsel %vm608, %v498, 0
        %v975 = vsel %vm608, %v499, 0
        %v978 = vsel %vm608, %v500, 0
        %v981 = vsel %vm608, %v501, 0
        %v984 = vsel %vm608, %v502, 0
        %v987 = vsel %vm608, %v503, 0
        %v990 = vsel %vm608, %v504, 0
        %v993 = vsel %vm608, %v505, 0
        %v996 = vsel %vm608, %v506, 0
        %v999 = vsel %vm608, %v507, 0
        %v1002 = vsel %vm608, %v508, 0
        %v1005 = vsel %vm608, %v509, 0
        %v1008 = vsel %vm608, %v510, 0
        %v1011 = vsel %vm608, %v511, 0
        %v1014 = vsel %vm608, %v512, 0
        %v1017 = vsel %vm608, %v513, 0
        %v1020 = vsel %vm608, %v514, 0
        %v1023 = vsel %vm608, %v515, 0
        %v1026 = vsel %vm608, %v516, 0
        %v1029 = vsel %vm608, %v517, 0
        %v1032 = vsel %vm608, %v518, 0
        %v1035 = vsel %vm608, %v519, 0
        %v1038 = vsel %vm608, %v520, 0
        %v1041 = vsel %vm608, %v521, 0
        %v1044 = vsel %vm608, %v522, 0
        %v1047 = vsel %vm608, %v523, 0
        %v1050 = vsel %vm608, %v524, 0
        %v1053 = vsel %vm608, %v525, 0
        %v1056 = vsel %vm608, %v526, 0
        %1058 = vmatprep.subr.mxu0 0.0
        %1059 = vmatpush1.msra.mxu0 0.0
        %1060 = vmatprep.subr.mxu0 0.0
        %1061 = vmatpush1.msra.mxu0 0.0
        %1062 = vmatprep.subr.mxu0 0.0
        %1063 = vmatpush1.msra.mxu0 0.0
        %1064 = vmatprep.subr.mxu0 0.0
        %1065 = vmatpush1.msra.mxu0 0.0
        %1066 = vmatprep.subr.mxu0 %v550
        %1067 = vmatpush1.msra.mxu0 %v549
        %1068 = vmatprep.subr.mxu0 %v548
        %1069 = vmatpush1.msra.mxu0 %v547
        %1070 = vmatprep.subr.mxu0 %v546
        %1071 = vmatpush1.msra.mxu0 %v545
        %1072 = vmatprep.subr.mxu0 %v544
        %1073 = vmatpush1.msra.mxu0 %v543
        %1074 = vmatprep.subr.mxu0 %v542
        %1075 = vmatpush1.msra.mxu0 %v541
        %1076 = vmatprep.subr.mxu0 %v540
        %1077 = vmatpush1.msra.mxu0 %v539
        %1078 = vmatprep.subr.mxu0 %v538
        %1079 = vmatpush1.msra.mxu0 %v537
        %1080 = vmatprep.subr.mxu0 %v536
        %1081 = vmatpush1.msra.mxu0 %v535
        %1082 = vmatprep.subr.mxu0 %v534
        %1083 = vmatpush1.msra.mxu0 %v533
        %1084 = vmatprep.subr.mxu0 %v532
        %1085 = vmatpush1.msra.mxu0 %v531
        %1086 = vmatprep.subr.mxu0 %v530
        %1087 = vmatpush1.msra.mxu0 %v529
        %1088 = vmatprep.subr.mxu0 %v528
        %1089 = vmatpush1.msra.mxu0 %v527
        %1090 = vmatprep.subr.mxu0 0.0
        %1091 = vmatpush2.msra.mxu0 0.0
        %1092 = vmatprep.subr.mxu0 0.0
        %1093 = vmatpush2.msra.mxu0 0.0
        %1094 = vmatprep.subr.mxu0 0.0
        %1095 = vmatpush2.msra.mxu0 0.0
        %1096 = vmatprep.subr.mxu0 0.0
        %1097 = vmatpush2.msra.mxu0 0.0
        %1098 = vmatprep.subr.mxu0 0.0
        %1099 = vmatpush2.msra.mxu0 0.0
        %1100 = vmatprep.subr.mxu0 0.0
        %1101 = vmatpush2.msra.mxu0 0.0
        %1102 = vmatprep.subr.mxu0 0.0
        %1103 = vmatpush2.msra.mxu0 0.0
        %1104 = vmatprep.subr.mxu0 0.0
        %1105 = vmatpush2.msra.mxu0 0.0
        %1106 = vmatprep.subr.mxu0 0.0
        %1107 = vmatpush2.msra.mxu0 0.0
        %1108 = vmatprep.subr.mxu0 0.0
        %1109 = vmatpush2.msra.mxu0 0.0
        %1110 = vmatprep.subr.mxu0 0.0
        %1111 = vmatpush2.msra.mxu0 0.0
        %1112 = vmatprep.subr.mxu0 0.0
        %1113 = vmatpush2.msra.mxu0 0.0
        %1114 = vmatprep.subr.mxu0 0.0
        %1115 = vmatpush2.msra.mxu0 0.0
        %1116 = vmatprep.subr.mxu0 0.0
        %1117 = vmatpush2.msra.mxu0 0.0
        %1118 = vmatprep.subr.mxu0 0.0
        %1119 = vmatpush2.msra.mxu0 0.0
        %1120 = vmatprep.subr.mxu0 0.0
        %1121 = vmatpush2.msra.mxu0 0.0
        %1122 = vmatprep.mubr.f32.mxu0 0.0
        %1123 = vmatmul.mubr.f32.gmra.mxu0 %v963
        %v1124 = vpop.f32.mrf.mxu0
        %v1125 = vadd.f32 %v772, %v1124
        %v1126 = vpop.f32.mrf.mxu0
        %v1127 = vadd.f32 %v774, %v1126
        %1128 = vmatprep.mubr.f32.mxu0 0.0
        %1129 = vmatmul.mubr.f32.gmra.mxu0 %v966
        %v1130 = vpop.f32.mrf.mxu0
        %v1131 = vadd.f32 %v778, %v1130
        %v1132 = vpop.f32.mrf.mxu0
        %v1133 = vadd.f32 %v780, %v1132
        %1134 = vmatprep.mubr.f32.mxu0 0.0
        %1135 = vmatmul.mubr.f32.gmra.mxu0 %v969
        %v1136 = vpop.f32.mrf.mxu0
        %v1137 = vadd.f32 %v784, %v1136
        %v1138 = vpop.f32.mrf.mxu0
        %v1139 = vadd.f32 %v786, %v1138
        %1140 = vmatprep.mubr.f32.mxu0 0.0
        %1141 = vmatmul.mubr.f32.gmra.mxu0 %v972
        %v1142 = vpop.f32.mrf.mxu0
        %v1143 = vadd.f32 %v790, %v1142
        %v1144 = vpop.f32.mrf.mxu0
        %v1145 = vadd.f32 %v792, %v1144
        %1146 = vmatprep.mubr.f32.mxu0 0.0
        %1147 = vmatmul.mubr.f32.gmra.mxu0 %v975
        %v1148 = vpop.f32.mrf.mxu0
        %v1149 = vadd.f32 %v796, %v1148
        %v1150 = vpop.f32.mrf.mxu0
        %v1151 = vadd.f32 %v798, %v1150
        %1152 = vmatprep.mubr.f32.mxu0 0.0
        %1153 = vmatmul.mubr.f32.gmra.mxu0 %v978
        %v1154 = vpop.f32.mrf.mxu0
        %v1155 = vadd.f32 %v802, %v1154
        %v1156 = vpop.f32.mrf.mxu0
        %v1157 = vadd.f32 %v804, %v1156
        %1158 = vmatprep.mubr.f32.mxu0 0.0
        %1159 = vmatmul.mubr.f32.gmra.mxu0 %v981
        %v1160 = vpop.f32.mrf.mxu0
        %v1161 = vadd.f32 %v808, %v1160
        %v1162 = vpop.f32.mrf.mxu0
        %v1163 = vadd.f32 %v810, %v1162
        %1164 = vmatprep.mubr.f32.mxu0 0.0
        %1165 = vmatmul.mubr.f32.gmra.mxu0 %v984
        %v1166 = vpop.f32.mrf.mxu0
        %v1167 = vadd.f32 %v814, %v1166
        %v1168 = vpop.f32.mrf.mxu0
        %v1169 = vadd.f32 %v816, %v1168
        %1170 = vmatprep.mubr.f32.mxu0 0.0
        %1171 = vmatmul.mubr.f32.gmra.mxu0 %v987
        %v1172 = vpop.f32.mrf.mxu0
        %v1173 = vadd.f32 %v820, %v1172
        %v1174 = vpop.f32.mrf.mxu0
        %v1175 = vadd.f32 %v822, %v1174
        %1176 = vmatprep.mubr.f32.mxu0 0.0
        %1177 = vmatmul.mubr.f32.gmra.mxu0 %v990
        %v1178 = vpop.f32.mrf.mxu0
        %v1179 = vadd.f32 %v826, %v1178
        %v1180 = vpop.f32.mrf.mxu0
        %v1181 = vadd.f32 %v828, %v1180
        %1182 = vmatprep.mubr.f32.mxu0 0.0
        %1183 = vmatmul.mubr.f32.gmra.mxu0 %v993
        %v1184 = vpop.f32.mrf.mxu0
        %v1185 = vadd.f32 %v832, %v1184
        %v1186 = vpop.f32.mrf.mxu0
        %v1187 = vadd.f32 %v834, %v1186
        %1188 = vmatprep.mubr.f32.mxu0 0.0
        %1189 = vmatmul.mubr.f32.gmra.mxu0 %v996
        %v1190 = vpop.f32.mrf.mxu0
        %v1191 = vadd.f32 %v838, %v1190
        %v1192 = vpop.f32.mrf.mxu0
        %v1193 = vadd.f32 %v840, %v1192
        %1194 = vmatprep.mubr.f32.mxu0 0.0
        %1195 = vmatmul.mubr.f32.gmra.mxu0 %v999
        %v1196 = vpop.f32.mrf.mxu0
        %v1197 = vadd.f32 %v844, %v1196
        %v1198 = vpop.f32.mrf.mxu0
        %v1199 = vadd.f32 %v846, %v1198
        %1200 = vmatprep.mubr.f32.mxu0 0.0
        %1201 = vmatmul.mubr.f32.gmra.mxu0 %v1002
        %v1202 = vpop.f32.mrf.mxu0
        %v1203 = vadd.f32 %v850, %v1202
        %v1204 = vpop.f32.mrf.mxu0
        %v1205 = vadd.f32 %v852, %v1204
        %1206 = vmatprep.mubr.f32.mxu0 0.0
        %1207 = vmatmul.mubr.f32.gmra.mxu0 %v1005
        %v1208 = vpop.f32.mrf.mxu0
        %v1209 = vadd.f32 %v856, %v1208
        %v1210 = vpop.f32.mrf.mxu0
        %v1211 = vadd.f32 %v858, %v1210
        %1212 = vmatprep.mubr.f32.mxu0 0.0
        %1213 = vmatmul.mubr.f32.gmra.mxu0 %v1008
        %v1214 = vpop.f32.mrf.mxu0
        %v1215 = vadd.f32 %v862, %v1214
        %v1216 = vpop.f32.mrf.mxu0
        %v1217 = vadd.f32 %v864, %v1216
        %1218 = vmatprep.mubr.f32.mxu0 0.0
        %1219 = vmatmul.mubr.f32.gmra.mxu0 %v1011
        %v1220 = vpop.f32.mrf.mxu0
        %v1221 = vadd.f32 %v868, %v1220
        %v1222 = vpop.f32.mrf.mxu0
        %v1223 = vadd.f32 %v870, %v1222
        %1224 = vmatprep.mubr.f32.mxu0 0.0
        %1225 = vmatmul.mubr.f32.gmra.mxu0 %v1014
        %v1226 = vpop.f32.mrf.mxu0
        %v1227 = vadd.f32 %v874, %v1226
        %v1228 = vpop.f32.mrf.mxu0
        %v1229 = vadd.f32 %v876, %v1228
        %1230 = vmatprep.mubr.f32.mxu0 0.0
        %1231 = vmatmul.mubr.f32.gmra.mxu0 %v1017
        %v1232 = vpop.f32.mrf.mxu0
        %v1233 = vadd.f32 %v880, %v1232
        %v1234 = vpop.f32.mrf.mxu0
        %v1235 = vadd.f32 %v882, %v1234
        %1236 = vmatprep.mubr.f32.mxu0 0.0
        %1237 = vmatmul.mubr.f32.gmra.mxu0 %v1020
        %v1238 = vpop.f32.mrf.mxu0
        %v1239 = vadd.f32 %v886, %v1238
        %v1240 = vpop.f32.mrf.mxu0
        %v1241 = vadd.f32 %v888, %v1240
        %1242 = vmatprep.mubr.f32.mxu0 0.0
        %1243 = vmatmul.mubr.f32.gmra.mxu0 %v1023
        %v1244 = vpop.f32.mrf.mxu0
        %v1245 = vadd.f32 %v892, %v1244
        %v1246 = vpop.f32.mrf.mxu0
        %v1247 = vadd.f32 %v894, %v1246
        %1248 = vmatprep.mubr.f32.mxu0 0.0
        %1249 = vmatmul.mubr.f32.gmra.mxu0 %v1026
        %v1250 = vpop.f32.mrf.mxu0
        %v1251 = vadd.f32 %v898, %v1250
        %v1252 = vpop.f32.mrf.mxu0
        %v1253 = vadd.f32 %v900, %v1252
        %1254 = vmatprep.mubr.f32.mxu0 0.0
        %1255 = vmatmul.mubr.f32.gmra.mxu0 %v1029
        %v1256 = vpop.f32.mrf.mxu0
        %v1257 = vadd.f32 %v904, %v1256
        %v1258 = vpop.f32.mrf.mxu0
        %v1259 = vadd.f32 %v906, %v1258
        %1260 = vmatprep.mubr.f32.mxu0 0.0
        %1261 = vmatmul.mubr.f32.gmra.mxu0 %v1032
        %v1262 = vpop.f32.mrf.mxu0
        %v1263 = vadd.f32 %v910, %v1262
        %v1264 = vpop.f32.mrf.mxu0
        %v1265 = vadd.f32 %v912, %v1264
        %1266 = vmatprep.mubr.f32.mxu0 0.0
        %1267 = vmatmul.mubr.f32.gmra.mxu0 %v1035
        %v1268 = vpop.f32.mrf.mxu0
        %v1269 = vadd.f32 %v916, %v1268
        %v1270 = vpop.f32.mrf.mxu0
        %v1271 = vadd.f32 %v918, %v1270
        %1272 = vmatprep.mubr.f32.mxu0 0.0
        %1273 = vmatmul.mubr.f32.gmra.mxu0 %v1038
        %v1274 = vpop.f32.mrf.mxu0
        %v1275 = vadd.f32 %v922, %v1274
        %v1276 = vpop.f32.mrf.mxu0
        %v1277 = vadd.f32 %v924, %v1276
        %1278 = vmatprep.mubr.f32.mxu0 0.0
        %1279 = vmatmul.mubr.f32.gmra.mxu0 %v1041
        %v1280 = vpop.f32.mrf.mxu0
        %v1281 = vadd.f32 %v928, %v1280
        %v1282 = vpop.f32.mrf.mxu0
        %v1283 = vadd.f32 %v930, %v1282
        %1284 = vmatprep.mubr.f32.mxu0 0.0
        %1285 = vmatmul.mubr.f32.gmra.mxu0 %v1044
        %v1286 = vpop.f32.mrf.mxu0
        %v1287 = vadd.f32 %v934, %v1286
        %v1288 = vpop.f32.mrf.mxu0
        %v1289 = vadd.f32 %v936, %v1288
        %1290 = vmatprep.mubr.f32.mxu0 0.0
        %1291 = vmatmul.mubr.f32.gmra.mxu0 %v1047
        %v1292 = vpop.f32.mrf.mxu0
        %v1293 = vadd.f32 %v940, %v1292
        %v1294 = vpop.f32.mrf.mxu0
        %v1295 = vadd.f32 %v942, %v1294
        %1296 = vmatprep.mubr.f32.mxu0 0.0
        %1297 = vmatmul.mubr.f32.gmra.mxu0 %v1050
        %v1298 = vpop.f32.mrf.mxu0
        %v1299 = vadd.f32 %v946, %v1298
        %v1300 = vpop.f32.mrf.mxu0
        %v1301 = vadd.f32 %v948, %v1300
        %1302 = vmatprep.mubr.f32.mxu0 0.0
        %1303 = vmatmul.mubr.f32.gmra.mxu0 %v1053
        %v1304 = vpop.f32.mrf.mxu0
        %v1305 = vadd.f32 %v952, %v1304
        %v1306 = vpop.f32.mrf.mxu0
        %v1307 = vadd.f32 %v954, %v1306
        %1308 = vmatprep.mubr.f32.mxu0 0.0
        %1309 = vmatmul.mubr.f32.gmra.mxu0 %v1056
        %v1310 = vpop.f32.mrf.mxu0
        %v1311 = vadd.f32 %v958, %v1310
        %v1312 = vpop.f32.mrf.mxu0
        %v1313 = vadd.f32 %v960, %v1312
        %1314 = vdwg.mxu0
        %v1315 = vld [vmem:[%s493 + $0x2] sm:$0xff]
        %v1316 = vld [vmem:[%s493 + $0xa] sm:$0xff]
        %v1317 = vld [vmem:[%s493 + $0x12] sm:$0xff]
        %v1318 = vld [vmem:[%s493 + $0x1a] sm:$0xff]
        %v1319 = vld [vmem:[%s493 + $0x22] sm:$0xff]
        %v1320 = vld [vmem:[%s493 + $0x2a] sm:$0xff]
        %v1321 = vld [vmem:[%s493 + $0x32] sm:$0xff]
        %v1322 = vld [vmem:[%s493 + $0x3a] sm:$0xff]
        %v1323 = vld [vmem:[%s493 + $0x42] sm:$0xff]
        %v1324 = vld [vmem:[%s493 + $0x4a] sm:$0xff]
        %v1325 = vld [vmem:[%s493 + $0x52] sm:$0xff]
        %v1326 = vld [vmem:[%s493 + $0x5a] sm:$0xff]
        %v1327 = vld [vmem:[%s493 + $0x62] sm:$0xff]
        %v1328 = vld [vmem:[%s493 + $0x6a] sm:$0xff]
        %v1329 = vld [vmem:[%s493 + $0x72] sm:$0xff]
        %v1330 = vld [vmem:[%s493 + $0x7a] sm:$0xff]
        %v1331 = vld [vmem:[%s493 + $0x82] sm:$0xff]
        %v1332 = vld [vmem:[%s493 + $0x8a] sm:$0xff]
        %v1333 = vld [vmem:[%s493 + $0x92] sm:$0xff]
        %v1334 = vld [vmem:[%s493 + $0x9a] sm:$0xff]
        %v1335 = vld [vmem:[%s493 + $0xa2] sm:$0xff]
        %v1336 = vld [vmem:[%s493 + $0xaa] sm:$0xff]
        %v1337 = vld [vmem:[%s493 + $0xb2] sm:$0xff]
        %v1338 = vld [vmem:[%s493 + $0xba] sm:$0xff]
        %v1339 = vld [vmem:[%s493 + $0xc2] sm:$0xff]
        %v1340 = vld [vmem:[%s493 + $0xca] sm:$0xff]
        %v1341 = vld [vmem:[%s493 + $0xd2] sm:$0xff]
        %v1342 = vld [vmem:[%s493 + $0xda] sm:$0xff]
        %v1343 = vld [vmem:[%s493 + $0xe2] sm:$0xff]
        %v1344 = vld [vmem:[%s493 + $0xea] sm:$0xff]
        %v1345 = vld [vmem:[%s493 + $0xf2] sm:$0xff]
        %v1346 = vld [vmem:[%s493 + $0xfa] sm:$0xf]
        %s1347 = scalar_lea.vmem %s1, 384
        %v1348 = vld [vmem:[%s1347] sm:$0xff]
        %v1349 = vld [vmem:[%s1347 + $0x8] sm:$0xff]
        %v1350 = vld [vmem:[%s1347 + $0x10] sm:$0xff]
        %v1351 = vld [vmem:[%s1347 + $0x18] sm:$0xff]
        %v1352 = vld [vmem:[%s1347 + $0x20] sm:$0xff]
        %v1353 = vld [vmem:[%s1347 + $0x28] sm:$0xff]
        %v1354 = vld [vmem:[%s1347 + $0x30] sm:$0xff]
        %v1355 = vld [vmem:[%s1347 + $0x38] sm:$0xff]
        %v1356 = vld [vmem:[%s1347 + $0x40] sm:$0xff]
        %v1357 = vld [vmem:[%s1347 + $0x48] sm:$0xff]
        %v1358 = vld [vmem:[%s1347 + $0x50] sm:$0xff]
        %v1359 = vld [vmem:[%s1347 + $0x58] sm:$0xff]
        %v1360 = vld [vmem:[%s1347 + $0x60] sm:$0xff]
        %v1361 = vld [vmem:[%s1347 + $0x68] sm:$0xff]
        %v1362 = vld [vmem:[%s1347 + $0x70] sm:$0xff]
        %v1363 = vld [vmem:[%s1347 + $0x78] sm:$0xff]
        %v1364 = vld [vmem:[%s1347 + $0x80] sm:$0xff]
        %v1365 = vld [vmem:[%s1347 + $0x88] sm:$0xff]
        %v1366 = vld [vmem:[%s1347 + $0x90] sm:$0xff]
        %v1367 = vld [vmem:[%s1347 + $0x98] sm:$0xff]
        %v1368 = vld [vmem:[%s1347 + $0xa0] sm:$0xff]
        %v1369 = vld [vmem:[%s1347 + $0xa8] sm:$0xff]
        %v1370 = vld [vmem:[%s1347 + $0xb0] sm:$0xff]
        %v1371 = vld [vmem:[%s1347 + $0xb8] sm:$0xff]
        %v1373 = vsel %vm608, %v1315, 0
        %v1376 = vsel %vm608, %v1316, 0
        %v1379 = vsel %vm608, %v1317, 0
        %v1382 = vsel %vm608, %v1318, 0
        %v1385 = vsel %vm608, %v1319, 0
        %v1388 = vsel %vm608, %v1320, 0
        %v1391 = vsel %vm608, %v1321, 0
        %v1394 = vsel %vm608, %v1322, 0
        %v1397 = vsel %vm608, %v1323, 0
        %v1400 = vsel %vm608, %v1324, 0
        %v1403 = vsel %vm608, %v1325, 0
        %v1406 = vsel %vm608, %v1326, 0
        %v1409 = vsel %vm608, %v1327, 0
        %v1412 = vsel %vm608, %v1328, 0
        %v1415 = vsel %vm608, %v1329, 0
        %v1418 = vsel %vm608, %v1330, 0
        %v1421 = vsel %vm608, %v1331, 0
        %v1424 = vsel %vm608, %v1332, 0
        %v1427 = vsel %vm608, %v1333, 0
        %v1430 = vsel %vm608, %v1334, 0
        %v1433 = vsel %vm608, %v1335, 0
        %v1436 = vsel %vm608, %v1336, 0
        %v1439 = vsel %vm608, %v1337, 0
        %v1442 = vsel %vm608, %v1338, 0
        %v1445 = vsel %vm608, %v1339, 0
        %v1448 = vsel %vm608, %v1340, 0
        %v1451 = vsel %vm608, %v1341, 0
        %v1454 = vsel %vm608, %v1342, 0
        %v1457 = vsel %vm608, %v1343, 0
        %v1460 = vsel %vm608, %v1344, 0
        %v1463 = vsel %vm608, %v1345, 0
        %v1466 = vsel %vm608, %v1346, 0
        %1468 = vmatprep.subr.mxu0 0.0
        %1469 = vmatpush1.msra.mxu0 0.0
        %1470 = vmatprep.subr.mxu0 0.0
        %1471 = vmatpush1.msra.mxu0 0.0
        %1472 = vmatprep.subr.mxu0 0.0
        %1473 = vmatpush1.msra.mxu0 0.0
        %1474 = vmatprep.subr.mxu0 0.0
        %1475 = vmatpush1.msra.mxu0 0.0
        %1476 = vmatprep.subr.mxu0 %v1371
        %1477 = vmatpush1.msra.mxu0 %v1370
        %1478 = vmatprep.subr.mxu0 %v1369
        %1479 = vmatpush1.msra.mxu0 %v1368
        %1480 = vmatprep.subr.mxu0 %v1367
        %1481 = vmatpush1.msra.mxu0 %v1366
        %1482 = vmatprep.subr.mxu0 %v1365
        %1483 = vmatpush1.msra.mxu0 %v1364
        %1484 = vmatprep.subr.mxu0 %v1363
        %1485 = vmatpush1.msra.mxu0 %v1362
        %1486 = vmatprep.subr.mxu0 %v1361
        %1487 = vmatpush1.msra.mxu0 %v1360
        %1488 = vmatprep.subr.mxu0 %v1359
        %1489 = vmatpush1.msra.mxu0 %v1358
        %1490 = vmatprep.subr.mxu0 %v1357
        %1491 = vmatpush1.msra.mxu0 %v1356
        %1492 = vmatprep.subr.mxu0 %v1355
        %1493 = vmatpush1.msra.mxu0 %v1354
        %1494 = vmatprep.subr.mxu0 %v1353
        %1495 = vmatpush1.msra.mxu0 %v1352
        %1496 = vmatprep.subr.mxu0 %v1351
        %1497 = vmatpush1.msra.mxu0 %v1350
        %1498 = vmatprep.subr.mxu0 %v1349
        %1499 = vmatpush1.msra.mxu0 %v1348
        %1500 = vmatprep.subr.mxu0 0.0
        %1501 = vmatpush2.msra.mxu0 0.0
        %1502 = vmatprep.subr.mxu0 0.0
        %1503 = vmatpush2.msra.mxu0 0.0
        %1504 = vmatprep.subr.mxu0 0.0
        %1505 = vmatpush2.msra.mxu0 0.0
        %1506 = vmatprep.subr.mxu0 0.0
        %1507 = vmatpush2.msra.mxu0 0.0
        %1508 = vmatprep.subr.mxu0 0.0
        %1509 = vmatpush2.msra.mxu0 0.0
        %1510 = vmatprep.subr.mxu0 0.0
        %1511 = vmatpush2.msra.mxu0 0.0
        %1512 = vmatprep.subr.mxu0 0.0
        %1513 = vmatpush2.msra.mxu0 0.0
        %1514 = vmatprep.subr.mxu0 0.0
        %1515 = vmatpush2.msra.mxu0 0.0
        %1516 = vmatprep.subr.mxu0 0.0
        %1517 = vmatpush2.msra.mxu0 0.0
        %1518 = vmatprep.subr.mxu0 0.0
        %1519 = vmatpush2.msra.mxu0 0.0
        %1520 = vmatprep.subr.mxu0 0.0
        %1521 = vmatpush2.msra.mxu0 0.0
        %1522 = vmatprep.subr.mxu0 0.0
        %1523 = vmatpush2.msra.mxu0 0.0
        %1524 = vmatprep.subr.mxu0 0.0
        %1525 = vmatpush2.msra.mxu0 0.0
        %1526 = vmatprep.subr.mxu0 0.0
        %1527 = vmatpush2.msra.mxu0 0.0
        %1528 = vmatprep.subr.mxu0 0.0
        %1529 = vmatpush2.msra.mxu0 0.0
        %1530 = vmatprep.subr.mxu0 0.0
        %1531 = vmatpush2.msra.mxu0 0.0
        %1532 = vmatprep.mubr.f32.mxu0 0.0
        %1533 = vmatmul.mubr.f32.gmra.mxu0 %v1373
        %v1534 = vpop.f32.mrf.mxu0
        %v1535 = vadd.f32 0.0, %v1534
        %v1536 = vpop.f32.mrf.mxu0
        %v1537 = vadd.f32 0.0, %v1536
        %1538 = vmatprep.mubr.f32.mxu0 0.0
        %1539 = vmatmul.mubr.f32.gmra.mxu0 %v1376
        %v1540 = vpop.f32.mrf.mxu0
        %v1541 = vadd.f32 0.0, %v1540
        %v1542 = vpop.f32.mrf.mxu0
        %v1543 = vadd.f32 0.0, %v1542
        %1544 = vmatprep.mubr.f32.mxu0 0.0
        %1545 = vmatmul.mubr.f32.gmra.mxu0 %v1379
        %v1546 = vpop.f32.mrf.mxu0
        %v1547 = vadd.f32 0.0, %v1546
        %v1548 = vpop.f32.mrf.mxu0
        %v1549 = vadd.f32 0.0, %v1548
        %1550 = vmatprep.mubr.f32.mxu0 0.0
        %1551 = vmatmul.mubr.f32.gmra.mxu0 %v1382
        %v1552 = vpop.f32.mrf.mxu0
        %v1553 = vadd.f32 0.0, %v1552
        %v1554 = vpop.f32.mrf.mxu0
        %v1555 = vadd.f32 0.0, %v1554
        %1556 = vmatprep.mubr.f32.mxu0 0.0
        %1557 = vmatmul.mubr.f32.gmra.mxu0 %v1385
        %v1558 = vpop.f32.mrf.mxu0
        %v1559 = vadd.f32 0.0, %v1558
        %v1560 = vpop.f32.mrf.mxu0
        %v1561 = vadd.f32 0.0, %v1560
        %1562 = vmatprep.mubr.f32.mxu0 0.0
        %1563 = vmatmul.mubr.f32.gmra.mxu0 %v1388
        %v1564 = vpop.f32.mrf.mxu0
        %v1565 = vadd.f32 0.0, %v1564
        %v1566 = vpop.f32.mrf.mxu0
        %v1567 = vadd.f32 0.0, %v1566
        %1568 = vmatprep.mubr.f32.mxu0 0.0
        %1569 = vmatmul.mubr.f32.gmra.mxu0 %v1391
        %v1570 = vpop.f32.mrf.mxu0
        %v1571 = vadd.f32 0.0, %v1570
        %v1572 = vpop.f32.mrf.mxu0
        %v1573 = vadd.f32 0.0, %v1572
        %1574 = vmatprep.mubr.f32.mxu0 0.0
        %1575 = vmatmul.mubr.f32.gmra.mxu0 %v1394
        %v1576 = vpop.f32.mrf.mxu0
        %v1577 = vadd.f32 0.0, %v1576
        %v1578 = vpop.f32.mrf.mxu0
        %v1579 = vadd.f32 0.0, %v1578
        %1580 = vmatprep.mubr.f32.mxu0 0.0
        %1581 = vmatmul.mubr.f32.gmra.mxu0 %v1397
        %v1582 = vpop.f32.mrf.mxu0
        %v1583 = vadd.f32 0.0, %v1582
        %v1584 = vpop.f32.mrf.mxu0
        %v1585 = vadd.f32 0.0, %v1584
        %1586 = vmatprep.mubr.f32.mxu0 0.0
        %1587 = vmatmul.mubr.f32.gmra.mxu0 %v1400
        %v1588 = vpop.f32.mrf.mxu0
        %v1589 = vadd.f32 0.0, %v1588
        %v1590 = vpop.f32.mrf.mxu0
        %v1591 = vadd.f32 0.0, %v1590
        %1592 = vmatprep.mubr.f32.mxu0 0.0
        %1593 = vmatmul.mubr.f32.gmra.mxu0 %v1403
        %v1594 = vpop.f32.mrf.mxu0
        %v1595 = vadd.f32 0.0, %v1594
        %v1596 = vpop.f32.mrf.mxu0
        %v1597 = vadd.f32 0.0, %v1596
        %1598 = vmatprep.mubr.f32.mxu0 0.0
        %1599 = vmatmul.mubr.f32.gmra.mxu0 %v1406
        %v1600 = vpop.f32.mrf.mxu0
        %v1601 = vadd.f32 0.0, %v1600
        %v1602 = vpop.f32.mrf.mxu0
        %v1603 = vadd.f32 0.0, %v1602
        %1604 = vmatprep.mubr.f32.mxu0 0.0
        %1605 = vmatmul.mubr.f32.gmra.mxu0 %v1409
        %v1606 = vpop.f32.mrf.mxu0
        %v1607 = vadd.f32 0.0, %v1606
        %v1608 = vpop.f32.mrf.mxu0
        %v1609 = vadd.f32 0.0, %v1608
        %1610 = vmatprep.mubr.f32.mxu0 0.0
        %1611 = vmatmul.mubr.f32.gmra.mxu0 %v1412
        %v1612 = vpop.f32.mrf.mxu0
        %v1613 = vadd.f32 0.0, %v1612
        %v1614 = vpop.f32.mrf.mxu0
        %v1615 = vadd.f32 0.0, %v1614
        %1616 = vmatprep.mubr.f32.mxu0 0.0
        %1617 = vmatmul.mubr.f32.gmra.mxu0 %v1415
        %v1618 = vpop.f32.mrf.mxu0
        %v1619 = vadd.f32 0.0, %v1618
        %v1620 = vpop.f32.mrf.mxu0
        %v1621 = vadd.f32 0.0, %v1620
        %1622 = vmatprep.mubr.f32.mxu0 0.0
        %1623 = vmatmul.mubr.f32.gmra.mxu0 %v1418
        %v1624 = vpop.f32.mrf.mxu0
        %v1625 = vadd.f32 0.0, %v1624
        %v1626 = vpop.f32.mrf.mxu0
        %v1627 = vadd.f32 0.0, %v1626
        %1628 = vmatprep.mubr.f32.mxu0 0.0
        %1629 = vmatmul.mubr.f32.gmra.mxu0 %v1421
        %v1630 = vpop.f32.mrf.mxu0
        %v1631 = vadd.f32 0.0, %v1630
        %v1632 = vpop.f32.mrf.mxu0
        %v1633 = vadd.f32 0.0, %v1632
        %1634 = vmatprep.mubr.f32.mxu0 0.0
        %1635 = vmatmul.mubr.f32.gmra.mxu0 %v1424
        %v1636 = vpop.f32.mrf.mxu0
        %v1637 = vadd.f32 0.0, %v1636
        %v1638 = vpop.f32.mrf.mxu0
        %v1639 = vadd.f32 0.0, %v1638
        %1640 = vmatprep.mubr.f32.mxu0 0.0
        %1641 = vmatmul.mubr.f32.gmra.mxu0 %v1427
        %v1642 = vpop.f32.mrf.mxu0
        %v1643 = vadd.f32 0.0, %v1642
        %v1644 = vpop.f32.mrf.mxu0
        %v1645 = vadd.f32 0.0, %v1644
        %1646 = vmatprep.mubr.f32.mxu0 0.0
        %1647 = vmatmul.mubr.f32.gmra.mxu0 %v1430
        %v1648 = vpop.f32.mrf.mxu0
        %v1649 = vadd.f32 0.0, %v1648
        %v1650 = vpop.f32.mrf.mxu0
        %v1651 = vadd.f32 0.0, %v1650
        %1652 = vmatprep.mubr.f32.mxu0 0.0
        %1653 = vmatmul.mubr.f32.gmra.mxu0 %v1433
        %v1654 = vpop.f32.mrf.mxu0
        %v1655 = vadd.f32 0.0, %v1654
        %v1656 = vpop.f32.mrf.mxu0
        %v1657 = vadd.f32 0.0, %v1656
        %1658 = vmatprep.mubr.f32.mxu0 0.0
        %1659 = vmatmul.mubr.f32.gmra.mxu0 %v1436
        %v1660 = vpop.f32.mrf.mxu0
        %v1661 = vadd.f32 0.0, %v1660
        %v1662 = vpop.f32.mrf.mxu0
        %v1663 = vadd.f32 0.0, %v1662
        %1664 = vmatprep.mubr.f32.mxu0 0.0
        %1665 = vmatmul.mubr.f32.gmra.mxu0 %v1439
        %v1666 = vpop.f32.mrf.mxu0
        %v1667 = vadd.f32 0.0, %v1666
        %v1668 = vpop.f32.mrf.mxu0
        %v1669 = vadd.f32 0.0, %v1668
        %1670 = vmatprep.mubr.f32.mxu0 0.0
        %1671 = vmatmul.mubr.f32.gmra.mxu0 %v1442
        %v1672 = vpop.f32.mrf.mxu0
        %v1673 = vadd.f32 0.0, %v1672
        %v1674 = vpop.f32.mrf.mxu0
        %v1675 = vadd.f32 0.0, %v1674
        %1676 = vmatprep.mubr.f32.mxu0 0.0
        %1677 = vmatmul.mubr.f32.gmra.mxu0 %v1445
        %v1678 = vpop.f32.mrf.mxu0
        %v1679 = vadd.f32 0.0, %v1678
        %v1680 = vpop.f32.mrf.mxu0
        %v1681 = vadd.f32 0.0, %v1680
        %1682 = vmatprep.mubr.f32.mxu0 0.0
        %1683 = vmatmul.mubr.f32.gmra.mxu0 %v1448
        %v1684 = vpop.f32.mrf.mxu0
        %v1685 = vadd.f32 0.0, %v1684
        %v1686 = vpop.f32.mrf.mxu0
        %v1687 = vadd.f32 0.0, %v1686
        %1688 = vmatprep.mubr.f32.mxu0 0.0
        %1689 = vmatmul.mubr.f32.gmra.mxu0 %v1451
        %v1690 = vpop.f32.mrf.mxu0
        %v1691 = vadd.f32 0.0, %v1690
        %v1692 = vpop.f32.mrf.mxu0
        %v1693 = vadd.f32 0.0, %v1692
        %1694 = vmatprep.mubr.f32.mxu0 0.0
        %1695 = vmatmul.mubr.f32.gmra.mxu0 %v1454
        %v1696 = vpop.f32.mrf.mxu0
        %v1697 = vadd.f32 0.0, %v1696
        %v1698 = vpop.f32.mrf.mxu0
        %v1699 = vadd.f32 0.0, %v1698
        %1700 = vmatprep.mubr.f32.mxu0 0.0
        %1701 = vmatmul.mubr.f32.gmra.mxu0 %v1457
        %v1702 = vpop.f32.mrf.mxu0
        %v1703 = vadd.f32 0.0, %v1702
        %v1704 = vpop.f32.mrf.mxu0
        %v1705 = vadd.f32 0.0, %v1704
        %1706 = vmatprep.mubr.f32.mxu0 0.0
        %1707 = vmatmul.mubr.f32.gmra.mxu0 %v1460
        %v1708 = vpop.f32.mrf.mxu0
        %v1709 = vadd.f32 0.0, %v1708
        %v1710 = vpop.f32.mrf.mxu0
        %v1711 = vadd.f32 0.0, %v1710
        %1712 = vmatprep.mubr.f32.mxu0 0.0
        %1713 = vmatmul.mubr.f32.gmra.mxu0 %v1463
        %v1714 = vpop.f32.mrf.mxu0
        %v1715 = vadd.f32 0.0, %v1714
        %v1716 = vpop.f32.mrf.mxu0
        %v1717 = vadd.f32 0.0, %v1716
        %1718 = vmatprep.mubr.f32.mxu0 0.0
        %1719 = vmatmul.mubr.f32.gmra.mxu0 %v1466
        %v1720 = vpop.f32.mrf.mxu0
        %v1721 = vadd.f32 0.0, %v1720
        %v1722 = vpop.f32.mrf.mxu0
        %v1723 = vadd.f32 0.0, %v1722
        %1724 = vdwg.mxu0
        %v1725 = vadd.f32 %v1125, %v1535
        %v1726 = vadd.f32 %v1127, %v1537
        %v1727 = vadd.f32 %v1131, %v1541
        %v1728 = vadd.f32 %v1133, %v1543
        %v1729 = vadd.f32 %v1137, %v1547
        %v1730 = vadd.f32 %v1139, %v1549
        %v1731 = vadd.f32 %v1143, %v1553
        %v1732 = vadd.f32 %v1145, %v1555
        %v1733 = vadd.f32 %v1149, %v1559
        %v1734 = vadd.f32 %v1151, %v1561
        %v1735 = vadd.f32 %v1155, %v1565
        %v1736 = vadd.f32 %v1157, %v1567
        %v1737 = vadd.f32 %v1161, %v1571
        %v1738 = vadd.f32 %v1163, %v1573
        %v1739 = vadd.f32 %v1167, %v1577
        %v1740 = vadd.f32 %v1169, %v1579
        %v1741 = vadd.f32 %v1173, %v1583
        %v1742 = vadd.f32 %v1175, %v1585
        %v1743 = vadd.f32 %v1179, %v1589
        %v1744 = vadd.f32 %v1181, %v1591
        %v1745 = vadd.f32 %v1185, %v1595
        %v1746 = vadd.f32 %v1187, %v1597
        %v1747 = vadd.f32 %v1191, %v1601
        %v1748 = vadd.f32 %v1193, %v1603
        %v1749 = vadd.f32 %v1197, %v1607
        %v1750 = vadd.f32 %v1199, %v1609
        %v1751 = vadd.f32 %v1203, %v1613
        %v1752 = vadd.f32 %v1205, %v1615
        %v1753 = vadd.f32 %v1209, %v1619
        %v1754 = vadd.f32 %v1211, %v1621
        %v1755 = vadd.f32 %v1215, %v1625
        %v1756 = vadd.f32 %v1217, %v1627
        %v1757 = vadd.f32 %v1221, %v1631
        %v1758 = vadd.f32 %v1223, %v1633
        %v1759 = vadd.f32 %v1227, %v1637
        %v1760 = vadd.f32 %v1229, %v1639
        %v1761 = vadd.f32 %v1233, %v1643
        %v1762 = vadd.f32 %v1235, %v1645
        %v1763 = vadd.f32 %v1239, %v1649
        %v1764 = vadd.f32 %v1241, %v1651
        %v1765 = vadd.f32 %v1245, %v1655
        %v1766 = vadd.f32 %v1247, %v1657
        %v1767 = vadd.f32 %v1251, %v1661
        %v1768 = vadd.f32 %v1253, %v1663
        %v1769 = vadd.f32 %v1257, %v1667
        %v1770 = vadd.f32 %v1259, %v1669
        %v1771 = vadd.f32 %v1263, %v1673
        %v1772 = vadd.f32 %v1265, %v1675
        %v1773 = vadd.f32 %v1269, %v1679
        %v1774 = vadd.f32 %v1271, %v1681
        %v1775 = vadd.f32 %v1275, %v1685
        %v1776 = vadd.f32 %v1277, %v1687
        %v1777 = vadd.f32 %v1281, %v1691
        %v1778 = vadd.f32 %v1283, %v1693
        %v1779 = vadd.f32 %v1287, %v1697
        %v1780 = vadd.f32 %v1289, %v1699
        %v1781 = vadd.f32 %v1293, %v1703
        %v1782 = vadd.f32 %v1295, %v1705
        %v1783 = vadd.f32 %v1299, %v1709
        %v1784 = vadd.f32 %v1301, %v1711
        %v1785 = vadd.f32 %v1305, %v1715
        %v1786 = vadd.f32 %v1307, %v1717
        %v1787 = vadd.f32 %v1311, %v1721
        %v1788 = vadd.f32 %v1313, %v1723
        %v1789 = vld [vmem:[%s493 + $0x3] sm:$0xff]
        %v1790 = vld [vmem:[%s493 + $0xb] sm:$0xff]
        %v1791 = vld [vmem:[%s493 + $0x13] sm:$0xff]
        %v1792 = vld [vmem:[%s493 + $0x1b] sm:$0xff]
        %v1793 = vld [vmem:[%s493 + $0x23] sm:$0xff]
        %v1794 = vld [vmem:[%s493 + $0x2b] sm:$0xff]
        %v1795 = vld [vmem:[%s493 + $0x33] sm:$0xff]
        %v1796 = vld [vmem:[%s493 + $0x3b] sm:$0xff]
        %v1797 = vld [vmem:[%s493 + $0x43] sm:$0xff]
        %v1798 = vld [vmem:[%s493 + $0x4b] sm:$0xff]
        %v1799 = vld [vmem:[%s493 + $0x53] sm:$0xff]
        %v1800 = vld [vmem:[%s493 + $0x5b] sm:$0xff]
        %v1801 = vld [vmem:[%s493 + $0x63] sm:$0xff]
        %v1802 = vld [vmem:[%s493 + $0x6b] sm:$0xff]
        %v1803 = vld [vmem:[%s493 + $0x73] sm:$0xff]
        %v1804 = vld [vmem:[%s493 + $0x7b] sm:$0xff]
        %v1805 = vld [vmem:[%s493 + $0x83] sm:$0xff]
        %v1806 = vld [vmem:[%s493 + $0x8b] sm:$0xff]
        %v1807 = vld [vmem:[%s493 + $0x93] sm:$0xff]
        %v1808 = vld [vmem:[%s493 + $0x9b] sm:$0xff]
        %v1809 = vld [vmem:[%s493 + $0xa3] sm:$0xff]
        %v1810 = vld [vmem:[%s493 + $0xab] sm:$0xff]
        %v1811 = vld [vmem:[%s493 + $0xb3] sm:$0xff]
        %v1812 = vld [vmem:[%s493 + $0xbb] sm:$0xff]
        %v1813 = vld [vmem:[%s493 + $0xc3] sm:$0xff]
        %v1814 = vld [vmem:[%s493 + $0xcb] sm:$0xff]
        %v1815 = vld [vmem:[%s493 + $0xd3] sm:$0xff]
        %v1816 = vld [vmem:[%s493 + $0xdb] sm:$0xff]
        %v1817 = vld [vmem:[%s493 + $0xe3] sm:$0xff]
        %v1818 = vld [vmem:[%s493 + $0xeb] sm:$0xff]
        %v1819 = vld [vmem:[%s493 + $0xf3] sm:$0xff]
        %v1820 = vld [vmem:[%s493 + $0xfb] sm:$0xf]
        %s1821 = scalar_lea.vmem %s1, 576
        %v1822 = vld [vmem:[%s1821] sm:$0xff]
        %v1823 = vld [vmem:[%s1821 + $0x8] sm:$0xff]
        %v1824 = vld [vmem:[%s1821 + $0x10] sm:$0xff]
        %v1825 = vld [vmem:[%s1821 + $0x18] sm:$0xff]
        %v1826 = vld [vmem:[%s1821 + $0x20] sm:$0xff]
        %v1827 = vld [vmem:[%s1821 + $0x28] sm:$0xff]
        %v1828 = vld [vmem:[%s1821 + $0x30] sm:$0xff]
        %v1829 = vld [vmem:[%s1821 + $0x38] sm:$0xff]
        %v1830 = vld [vmem:[%s1821 + $0x40] sm:$0xff]
        %v1831 = vld [vmem:[%s1821 + $0x48] sm:$0xff]
        %v1832 = vld [vmem:[%s1821 + $0x50] sm:$0xff]
        %v1833 = vld [vmem:[%s1821 + $0x58] sm:$0xff]
        %v1834 = vld [vmem:[%s1821 + $0x60] sm:$0xff]
        %v1835 = vld [vmem:[%s1821 + $0x68] sm:$0xff]
        %v1836 = vld [vmem:[%s1821 + $0x70] sm:$0xff]
        %v1837 = vld [vmem:[%s1821 + $0x78] sm:$0xff]
        %v1838 = vld [vmem:[%s1821 + $0x80] sm:$0xff]
        %v1839 = vld [vmem:[%s1821 + $0x88] sm:$0xff]
        %v1840 = vld [vmem:[%s1821 + $0x90] sm:$0xff]
        %v1841 = vld [vmem:[%s1821 + $0x98] sm:$0xff]
        %v1842 = vld [vmem:[%s1821 + $0xa0] sm:$0xff]
        %v1843 = vld [vmem:[%s1821 + $0xa8] sm:$0xff]
        %v1844 = vld [vmem:[%s1821 + $0xb0] sm:$0xff]
        %v1845 = vld [vmem:[%s1821 + $0xb8] sm:$0xff]
        %v1847 = vsel %vm608, %v1789, 0
        %v1850 = vsel %vm608, %v1790, 0
        %v1853 = vsel %vm608, %v1791, 0
        %v1856 = vsel %vm608, %v1792, 0
        %v1859 = vsel %vm608, %v1793, 0
        %v1862 = vsel %vm608, %v1794, 0
        %v1865 = vsel %vm608, %v1795, 0
        %v1868 = vsel %vm608, %v1796, 0
        %v1871 = vsel %vm608, %v1797, 0
        %v1874 = vsel %vm608, %v1798, 0
        %v1877 = vsel %vm608, %v1799, 0
        %v1880 = vsel %vm608, %v1800, 0
        %v1883 = vsel %vm608, %v1801, 0
        %v1886 = vsel %vm608, %v1802, 0
        %v1889 = vsel %vm608, %v1803, 0
        %v1892 = vsel %vm608, %v1804, 0
        %v1895 = vsel %vm608, %v1805, 0
        %v1898 = vsel %vm608, %v1806, 0
        %v1901 = vsel %vm608, %v1807, 0
        %v1904 = vsel %vm608, %v1808, 0
        %v1907 = vsel %vm608, %v1809, 0
        %v1910 = vsel %vm608, %v1810, 0
        %v1913 = vsel %vm608, %v1811, 0
        %v1916 = vsel %vm608, %v1812, 0
        %v1919 = vsel %vm608, %v1813, 0
        %v1922 = vsel %vm608, %v1814, 0
        %v1925 = vsel %vm608, %v1815, 0
        %v1928 = vsel %vm608, %v1816, 0
        %v1931 = vsel %vm608, %v1817, 0
        %v1934 = vsel %vm608, %v1818, 0
        %v1937 = vsel %vm608, %v1819, 0
        %v1940 = vsel %vm608, %v1820, 0
        %1942 = vmatprep.subr.mxu0 0.0
        %1943 = vmatpush1.msra.mxu0 0.0
        %1944 = vmatprep.subr.mxu0 0.0
        %1945 = vmatpush1.msra.mxu0 0.0
        %1946 = vmatprep.subr.mxu0 0.0
        %1947 = vmatpush1.msra.mxu0 0.0
        %1948 = vmatprep.subr.mxu0 0.0
        %1949 = vmatpush1.msra.mxu0 0.0
        %1950 = vmatprep.subr.mxu0 %v1845
        %1951 = vmatpush1.msra.mxu0 %v1844
        %1952 = vmatprep.subr.mxu0 %v1843
        %1953 = vmatpush1.msra.mxu0 %v1842
        %1954 = vmatprep.subr.mxu0 %v1841
        %1955 = vmatpush1.msra.mxu0 %v1840
        %1956 = vmatprep.subr.mxu0 %v1839
        %1957 = vmatpush1.msra.mxu0 %v1838
        %1958 = vmatprep.subr.mxu0 %v1837
        %1959 = vmatpush1.msra.mxu0 %v1836
        %1960 = vmatprep.subr.mxu0 %v1835
        %1961 = vmatpush1.msra.mxu0 %v1834
        %1962 = vmatprep.subr.mxu0 %v1833
        %1963 = vmatpush1.msra.mxu0 %v1832
        %1964 = vmatprep.subr.mxu0 %v1831
        %1965 = vmatpush1.msra.mxu0 %v1830
        %1966 = vmatprep.subr.mxu0 %v1829
        %1967 = vmatpush1.msra.mxu0 %v1828
        %1968 = vmatprep.subr.mxu0 %v1827
        %1969 = vmatpush1.msra.mxu0 %v1826
        %1970 = vmatprep.subr.mxu0 %v1825
        %1971 = vmatpush1.msra.mxu0 %v1824
        %1972 = vmatprep.subr.mxu0 %v1823
        %1973 = vmatpush1.msra.mxu0 %v1822
        %1974 = vmatprep.subr.mxu0 0.0
        %1975 = vmatpush2.msra.mxu0 0.0
        %1976 = vmatprep.subr.mxu0 0.0
        %1977 = vmatpush2.msra.mxu0 0.0
        %1978 = vmatprep.subr.mxu0 0.0
        %1979 = vmatpush2.msra.mxu0 0.0
        %1980 = vmatprep.subr.mxu0 0.0
        %1981 = vmatpush2.msra.mxu0 0.0
        %1982 = vmatprep.subr.mxu0 0.0
        %1983 = vmatpush2.msra.mxu0 0.0
        %1984 = vmatprep.subr.mxu0 0.0
        %1985 = vmatpush2.msra.mxu0 0.0
        %1986 = vmatprep.subr.mxu0 0.0
        %1987 = vmatpush2.msra.mxu0 0.0
        %1988 = vmatprep.subr.mxu0 0.0
        %1989 = vmatpush2.msra.mxu0 0.0
        %1990 = vmatprep.subr.mxu0 0.0
        %1991 = vmatpush2.msra.mxu0 0.0
        %1992 = vmatprep.subr.mxu0 0.0
        %1993 = vmatpush2.msra.mxu0 0.0
        %1994 = vmatprep.subr.mxu0 0.0
        %1995 = vmatpush2.msra.mxu0 0.0
        %1996 = vmatprep.subr.mxu0 0.0
        %1997 = vmatpush2.msra.mxu0 0.0
        %1998 = vmatprep.subr.mxu0 0.0
        %1999 = vmatpush2.msra.mxu0 0.0
        %2000 = vmatprep.subr.mxu0 0.0
        %2001 = vmatpush2.msra.mxu0 0.0
        %2002 = vmatprep.subr.mxu0 0.0
        %2003 = vmatpush2.msra.mxu0 0.0
        %2004 = vmatprep.subr.mxu0 0.0
        %2005 = vmatpush2.msra.mxu0 0.0
        %2006 = vmatprep.mubr.f32.mxu0 0.0
        %2007 = vmatmul.mubr.f32.gmra.mxu0 %v1847
        %v2008 = vpop.f32.mrf.mxu0
        %v2009 = vadd.f32 0.0, %v2008
        %v2010 = vpop.f32.mrf.mxu0
        %v2011 = vadd.f32 0.0, %v2010
        %2012 = vmatprep.mubr.f32.mxu0 0.0
        %2013 = vmatmul.mubr.f32.gmra.mxu0 %v1850
        %v2014 = vpop.f32.mrf.mxu0
        %v2015 = vadd.f32 0.0, %v2014
        %v2016 = vpop.f32.mrf.mxu0
        %v2017 = vadd.f32 0.0, %v2016
        %2018 = vmatprep.mubr.f32.mxu0 0.0
        %2019 = vmatmul.mubr.f32.gmra.mxu0 %v1853
        %v2020 = vpop.f32.mrf.mxu0
        %v2021 = vadd.f32 0.0, %v2020
        %v2022 = vpop.f32.mrf.mxu0
        %v2023 = vadd.f32 0.0, %v2022
        %2024 = vmatprep.mubr.f32.mxu0 0.0
        %2025 = vmatmul.mubr.f32.gmra.mxu0 %v1856
        %v2026 = vpop.f32.mrf.mxu0
        %v2027 = vadd.f32 0.0, %v2026
        %v2028 = vpop.f32.mrf.mxu0
        %v2029 = vadd.f32 0.0, %v2028
        %2030 = vmatprep.mubr.f32.mxu0 0.0
        %2031 = vmatmul.mubr.f32.gmra.mxu0 %v1859
        %v2032 = vpop.f32.mrf.mxu0
        %v2033 = vadd.f32 0.0, %v2032
        %v2034 = vpop.f32.mrf.mxu0
        %v2035 = vadd.f32 0.0, %v2034
        %2036 = vmatprep.mubr.f32.mxu0 0.0
        %2037 = vmatmul.mubr.f32.gmra.mxu0 %v1862
        %v2038 = vpop.f32.mrf.mxu0
        %v2039 = vadd.f32 0.0, %v2038
        %v2040 = vpop.f32.mrf.mxu0
        %v2041 = vadd.f32 0.0, %v2040
        %2042 = vmatprep.mubr.f32.mxu0 0.0
        %2043 = vmatmul.mubr.f32.gmra.mxu0 %v1865
        %v2044 = vpop.f32.mrf.mxu0
        %v2045 = vadd.f32 0.0, %v2044
        %v2046 = vpop.f32.mrf.mxu0
        %v2047 = vadd.f32 0.0, %v2046
        %2048 = vmatprep.mubr.f32.mxu0 0.0
        %2049 = vmatmul.mubr.f32.gmra.mxu0 %v1868
        %v2050 = vpop.f32.mrf.mxu0
        %v2051 = vadd.f32 0.0, %v2050
        %v2052 = vpop.f32.mrf.mxu0
        %v2053 = vadd.f32 0.0, %v2052
        %2054 = vmatprep.mubr.f32.mxu0 0.0
        %2055 = vmatmul.mubr.f32.gmra.mxu0 %v1871
        %v2056 = vpop.f32.mrf.mxu0
        %v2057 = vadd.f32 0.0, %v2056
        %v2058 = vpop.f32.mrf.mxu0
        %v2059 = vadd.f32 0.0, %v2058
        %2060 = vmatprep.mubr.f32.mxu0 0.0
        %2061 = vmatmul.mubr.f32.gmra.mxu0 %v1874
        %v2062 = vpop.f32.mrf.mxu0
        %v2063 = vadd.f32 0.0, %v2062
        %v2064 = vpop.f32.mrf.mxu0
        %v2065 = vadd.f32 0.0, %v2064
        %2066 = vmatprep.mubr.f32.mxu0 0.0
        %2067 = vmatmul.mubr.f32.gmra.mxu0 %v1877
        %v2068 = vpop.f32.mrf.mxu0
        %v2069 = vadd.f32 0.0, %v2068
        %v2070 = vpop.f32.mrf.mxu0
        %v2071 = vadd.f32 0.0, %v2070
        %2072 = vmatprep.mubr.f32.mxu0 0.0
        %2073 = vmatmul.mubr.f32.gmra.mxu0 %v1880
        %v2074 = vpop.f32.mrf.mxu0
        %v2075 = vadd.f32 0.0, %v2074
        %v2076 = vpop.f32.mrf.mxu0
        %v2077 = vadd.f32 0.0, %v2076
        %2078 = vmatprep.mubr.f32.mxu0 0.0
        %2079 = vmatmul.mubr.f32.gmra.mxu0 %v1883
        %v2080 = vpop.f32.mrf.mxu0
        %v2081 = vadd.f32 0.0, %v2080
        %v2082 = vpop.f32.mrf.mxu0
        %v2083 = vadd.f32 0.0, %v2082
        %2084 = vmatprep.mubr.f32.mxu0 0.0
        %2085 = vmatmul.mubr.f32.gmra.mxu0 %v1886
        %v2086 = vpop.f32.mrf.mxu0
        %v2087 = vadd.f32 0.0, %v2086
        %v2088 = vpop.f32.mrf.mxu0
        %v2089 = vadd.f32 0.0, %v2088
        %2090 = vmatprep.mubr.f32.mxu0 0.0
        %2091 = vmatmul.mubr.f32.gmra.mxu0 %v1889
        %v2092 = vpop.f32.mrf.mxu0
        %v2093 = vadd.f32 0.0, %v2092
        %v2094 = vpop.f32.mrf.mxu0
        %v2095 = vadd.f32 0.0, %v2094
        %2096 = vmatprep.mubr.f32.mxu0 0.0
        %2097 = vmatmul.mubr.f32.gmra.mxu0 %v1892
        %v2098 = vpop.f32.mrf.mxu0
        %v2099 = vadd.f32 0.0, %v2098
        %v2100 = vpop.f32.mrf.mxu0
        %v2101 = vadd.f32 0.0, %v2100
        %2102 = vmatprep.mubr.f32.mxu0 0.0
        %2103 = vmatmul.mubr.f32.gmra.mxu0 %v1895
        %v2104 = vpop.f32.mrf.mxu0
        %v2105 = vadd.f32 0.0, %v2104
        %v2106 = vpop.f32.mrf.mxu0
        %v2107 = vadd.f32 0.0, %v2106
        %2108 = vmatprep.mubr.f32.mxu0 0.0
        %2109 = vmatmul.mubr.f32.gmra.mxu0 %v1898
        %v2110 = vpop.f32.mrf.mxu0
        %v2111 = vadd.f32 0.0, %v2110
        %v2112 = vpop.f32.mrf.mxu0
        %v2113 = vadd.f32 0.0, %v2112
        %2114 = vmatprep.mubr.f32.mxu0 0.0
        %2115 = vmatmul.mubr.f32.gmra.mxu0 %v1901
        %v2116 = vpop.f32.mrf.mxu0
        %v2117 = vadd.f32 0.0, %v2116
        %v2118 = vpop.f32.mrf.mxu0
        %v2119 = vadd.f32 0.0, %v2118
        %2120 = vmatprep.mubr.f32.mxu0 0.0
        %2121 = vmatmul.mubr.f32.gmra.mxu0 %v1904
        %v2122 = vpop.f32.mrf.mxu0
        %v2123 = vadd.f32 0.0, %v2122
        %v2124 = vpop.f32.mrf.mxu0
        %v2125 = vadd.f32 0.0, %v2124
        %2126 = vmatprep.mubr.f32.mxu0 0.0
        %2127 = vmatmul.mubr.f32.gmra.mxu0 %v1907
        %v2128 = vpop.f32.mrf.mxu0
        %v2129 = vadd.f32 0.0, %v2128
        %v2130 = vpop.f32.mrf.mxu0
        %v2131 = vadd.f32 0.0, %v2130
        %2132 = vmatprep.mubr.f32.mxu0 0.0
        %2133 = vmatmul.mubr.f32.gmra.mxu0 %v1910
        %v2134 = vpop.f32.mrf.mxu0
        %v2135 = vadd.f32 0.0, %v2134
        %v2136 = vpop.f32.mrf.mxu0
        %v2137 = vadd.f32 0.0, %v2136
        %2138 = vmatprep.mubr.f32.mxu0 0.0
        %2139 = vmatmul.mubr.f32.gmra.mxu0 %v1913
        %v2140 = vpop.f32.mrf.mxu0
        %v2141 = vadd.f32 0.0, %v2140
        %v2142 = vpop.f32.mrf.mxu0
        %v2143 = vadd.f32 0.0, %v2142
        %2144 = vmatprep.mubr.f32.mxu0 0.0
        %2145 = vmatmul.mubr.f32.gmra.mxu0 %v1916
        %v2146 = vpop.f32.mrf.mxu0
        %v2147 = vadd.f32 0.0, %v2146
        %v2148 = vpop.f32.mrf.mxu0
        %v2149 = vadd.f32 0.0, %v2148
        %2150 = vmatprep.mubr.f32.mxu0 0.0
        %2151 = vmatmul.mubr.f32.gmra.mxu0 %v1919
        %v2152 = vpop.f32.mrf.mxu0
        %v2153 = vadd.f32 0.0, %v2152
        %v2154 = vpop.f32.mrf.mxu0
        %v2155 = vadd.f32 0.0, %v2154
        %2156 = vmatprep.mubr.f32.mxu0 0.0
        %2157 = vmatmul.mubr.f32.gmra.mxu0 %v1922
        %v2158 = vpop.f32.mrf.mxu0
        %v2159 = vadd.f32 0.0, %v2158
        %v2160 = vpop.f32.mrf.mxu0
        %v2161 = vadd.f32 0.0, %v2160
        %2162 = vmatprep.mubr.f32.mxu0 0.0
        %2163 = vmatmul.mubr.f32.gmra.mxu0 %v1925
        %v2164 = vpop.f32.mrf.mxu0
        %v2165 = vadd.f32 0.0, %v2164
        %v2166 = vpop.f32.mrf.mxu0
        %v2167 = vadd.f32 0.0, %v2166
        %2168 = vmatprep.mubr.f32.mxu0 0.0
        %2169 = vmatmul.mubr.f32.gmra.mxu0 %v1928
        %v2170 = vpop.f32.mrf.mxu0
        %v2171 = vadd.f32 0.0, %v2170
        %v2172 = vpop.f32.mrf.mxu0
        %v2173 = vadd.f32 0.0, %v2172
        %2174 = vmatprep.mubr.f32.mxu0 0.0
        %2175 = vmatmul.mubr.f32.gmra.mxu0 %v1931
        %v2176 = vpop.f32.mrf.mxu0
        %v2177 = vadd.f32 0.0, %v2176
        %v2178 = vpop.f32.mrf.mxu0
        %v2179 = vadd.f32 0.0, %v2178
        %2180 = vmatprep.mubr.f32.mxu0 0.0
        %2181 = vmatmul.mubr.f32.gmra.mxu0 %v1934
        %v2182 = vpop.f32.mrf.mxu0
        %v2183 = vadd.f32 0.0, %v2182
        %v2184 = vpop.f32.mrf.mxu0
        %v2185 = vadd.f32 0.0, %v2184
        %2186 = vmatprep.mubr.f32.mxu0 0.0
        %2187 = vmatmul.mubr.f32.gmra.mxu0 %v1937
        %v2188 = vpop.f32.mrf.mxu0
        %v2189 = vadd.f32 0.0, %v2188
        %v2190 = vpop.f32.mrf.mxu0
        %v2191 = vadd.f32 0.0, %v2190
        %2192 = vmatprep.mubr.f32.mxu0 0.0
        %2193 = vmatmul.mubr.f32.gmra.mxu0 %v1940
        %v2194 = vpop.f32.mrf.mxu0
        %v2195 = vadd.f32 0.0, %v2194
        %v2196 = vpop.f32.mrf.mxu0
        %v2197 = vadd.f32 0.0, %v2196
        %2198 = vdwg.mxu0
        %v2199 = vadd.f32 %v1725, %v2009
        %v2200 = vadd.f32 %v1726, %v2011
        %v2201 = vadd.f32 %v1727, %v2015
        %v2202 = vadd.f32 %v1728, %v2017
        %v2203 = vadd.f32 %v1729, %v2021
        %v2204 = vadd.f32 %v1730, %v2023
        %v2205 = vadd.f32 %v1731, %v2027
        %v2206 = vadd.f32 %v1732, %v2029
        %v2207 = vadd.f32 %v1733, %v2033
        %v2208 = vadd.f32 %v1734, %v2035
        %v2209 = vadd.f32 %v1735, %v2039
        %v2210 = vadd.f32 %v1736, %v2041
        %v2211 = vadd.f32 %v1737, %v2045
        %v2212 = vadd.f32 %v1738, %v2047
        %v2213 = vadd.f32 %v1739, %v2051
        %v2214 = vadd.f32 %v1740, %v2053
        %v2215 = vadd.f32 %v1741, %v2057
        %v2216 = vadd.f32 %v1742, %v2059
        %v2217 = vadd.f32 %v1743, %v2063
        %v2218 = vadd.f32 %v1744, %v2065
        %v2219 = vadd.f32 %v1745, %v2069
        %v2220 = vadd.f32 %v1746, %v2071
        %v2221 = vadd.f32 %v1747, %v2075
        %v2222 = vadd.f32 %v1748, %v2077
        %v2223 = vadd.f32 %v1749, %v2081
        %v2224 = vadd.f32 %v1750, %v2083
        %v2225 = vadd.f32 %v1751, %v2087
        %v2226 = vadd.f32 %v1752, %v2089
        %v2227 = vadd.f32 %v1753, %v2093
        %v2228 = vadd.f32 %v1754, %v2095
        %v2229 = vadd.f32 %v1755, %v2099
        %v2230 = vadd.f32 %v1756, %v2101
        %v2231 = vadd.f32 %v1757, %v2105
        %v2232 = vadd.f32 %v1758, %v2107
        %v2233 = vadd.f32 %v1759, %v2111
        %v2234 = vadd.f32 %v1760, %v2113
        %v2235 = vadd.f32 %v1761, %v2117
        %v2236 = vadd.f32 %v1762, %v2119
        %v2237 = vadd.f32 %v1763, %v2123
        %v2238 = vadd.f32 %v1764, %v2125
        %v2239 = vadd.f32 %v1765, %v2129
        %v2240 = vadd.f32 %v1766, %v2131
        %v2241 = vadd.f32 %v1767, %v2135
        %v2242 = vadd.f32 %v1768, %v2137
        %v2243 = vadd.f32 %v1769, %v2141
        %v2244 = vadd.f32 %v1770, %v2143
        %v2245 = vadd.f32 %v1771, %v2147
        %v2246 = vadd.f32 %v1772, %v2149
        %v2247 = vadd.f32 %v1773, %v2153
        %v2248 = vadd.f32 %v1774, %v2155
        %v2249 = vadd.f32 %v1775, %v2159
        %v2250 = vadd.f32 %v1776, %v2161
        %v2251 = vadd.f32 %v1777, %v2165
        %v2252 = vadd.f32 %v1778, %v2167
        %v2253 = vadd.f32 %v1779, %v2171
        %v2254 = vadd.f32 %v1780, %v2173
        %v2255 = vadd.f32 %v1781, %v2177
        %v2256 = vadd.f32 %v1782, %v2179
        %v2257 = vadd.f32 %v1783, %v2183
        %v2258 = vadd.f32 %v1784, %v2185
        %v2259 = vadd.f32 %v1785, %v2189
        %v2260 = vadd.f32 %v1786, %v2191
        %v2261 = vadd.f32 %v1787, %v2195
        %v2262 = vadd.f32 %v1788, %v2197
        %v2263 = vld [vmem:[%s493 + $0x4] sm:$0xff]
        %v2264 = vld [vmem:[%s493 + $0xc] sm:$0xff]
        %v2265 = vld [vmem:[%s493 + $0x14] sm:$0xff]
        %v2266 = vld [vmem:[%s493 + $0x1c] sm:$0xff]
        %v2267 = vld [vmem:[%s493 + $0x24] sm:$0xff]
        %v2268 = vld [vmem:[%s493 + $0x2c] sm:$0xff]
        %v2269 = vld [vmem:[%s493 + $0x34] sm:$0xff]
        %v2270 = vld [vmem:[%s493 + $0x3c] sm:$0xff]
        %v2271 = vld [vmem:[%s493 + $0x44] sm:$0xff]
        %v2272 = vld [vmem:[%s493 + $0x4c] sm:$0xff]
        %v2273 = vld [vmem:[%s493 + $0x54] sm:$0xff]
        %v2274 = vld [vmem:[%s493 + $0x5c] sm:$0xff]
        %v2275 = vld [vmem:[%s493 + $0x64] sm:$0xff]
        %v2276 = vld [vmem:[%s493 + $0x6c] sm:$0xff]
        %v2277 = vld [vmem:[%s493 + $0x74] sm:$0xff]
        %v2278 = vld [vmem:[%s493 + $0x7c] sm:$0xff]
        %v2279 = vld [vmem:[%s493 + $0x84] sm:$0xff]
        %v2280 = vld [vmem:[%s493 + $0x8c] sm:$0xff]
        %v2281 = vld [vmem:[%s493 + $0x94] sm:$0xff]
        %v2282 = vld [vmem:[%s493 + $0x9c] sm:$0xff]
        %v2283 = vld [vmem:[%s493 + $0xa4] sm:$0xff]
        %v2284 = vld [vmem:[%s493 + $0xac] sm:$0xff]
        %v2285 = vld [vmem:[%s493 + $0xb4] sm:$0xff]
        %v2286 = vld [vmem:[%s493 + $0xbc] sm:$0xff]
        %v2287 = vld [vmem:[%s493 + $0xc4] sm:$0xff]
        %v2288 = vld [vmem:[%s493 + $0xcc] sm:$0xff]
        %v2289 = vld [vmem:[%s493 + $0xd4] sm:$0xff]
        %v2290 = vld [vmem:[%s493 + $0xdc] sm:$0xff]
        %v2291 = vld [vmem:[%s493 + $0xe4] sm:$0xff]
        %v2292 = vld [vmem:[%s493 + $0xec] sm:$0xff]
        %v2293 = vld [vmem:[%s493 + $0xf4] sm:$0xff]
        %v2294 = vld [vmem:[%s493 + $0xfc] sm:$0xf]
        %s2295 = scalar_lea.vmem %s1, 768
        %v2296 = vld [vmem:[%s2295] sm:$0xff]
        %v2297 = vld [vmem:[%s2295 + $0x8] sm:$0xff]
        %v2298 = vld [vmem:[%s2295 + $0x10] sm:$0xff]
        %v2299 = vld [vmem:[%s2295 + $0x18] sm:$0xff]
        %v2300 = vld [vmem:[%s2295 + $0x20] sm:$0xff]
        %v2301 = vld [vmem:[%s2295 + $0x28] sm:$0xff]
        %v2302 = vld [vmem:[%s2295 + $0x30] sm:$0xff]
        %v2303 = vld [vmem:[%s2295 + $0x38] sm:$0xff]
        %v2304 = vld [vmem:[%s2295 + $0x40] sm:$0xff]
        %v2305 = vld [vmem:[%s2295 + $0x48] sm:$0xff]
        %v2306 = vld [vmem:[%s2295 + $0x50] sm:$0xff]
        %v2307 = vld [vmem:[%s2295 + $0x58] sm:$0xff]
        %v2308 = vld [vmem:[%s2295 + $0x60] sm:$0xff]
        %v2309 = vld [vmem:[%s2295 + $0x68] sm:$0xff]
        %v2310 = vld [vmem:[%s2295 + $0x70] sm:$0xff]
        %v2311 = vld [vmem:[%s2295 + $0x78] sm:$0xff]
        %v2312 = vld [vmem:[%s2295 + $0x80] sm:$0xff]
        %v2313 = vld [vmem:[%s2295 + $0x88] sm:$0xff]
        %v2314 = vld [vmem:[%s2295 + $0x90] sm:$0xff]
        %v2315 = vld [vmem:[%s2295 + $0x98] sm:$0xff]
        %v2316 = vld [vmem:[%s2295 + $0xa0] sm:$0xff]
        %v2317 = vld [vmem:[%s2295 + $0xa8] sm:$0xff]
        %v2318 = vld [vmem:[%s2295 + $0xb0] sm:$0xff]
        %v2319 = vld [vmem:[%s2295 + $0xb8] sm:$0xff]
        %v2321 = vsel %vm608, %v2263, 0
        %v2324 = vsel %vm608, %v2264, 0
        %v2327 = vsel %vm608, %v2265, 0
        %v2330 = vsel %vm608, %v2266, 0
        %v2333 = vsel %vm608, %v2267, 0
        %v2336 = vsel %vm608, %v2268, 0
        %v2339 = vsel %vm608, %v2269, 0
        %v2342 = vsel %vm608, %v2270, 0
        %v2345 = vsel %vm608, %v2271, 0
        %v2348 = vsel %vm608, %v2272, 0
        %v2351 = vsel %vm608, %v2273, 0
        %v2354 = vsel %vm608, %v2274, 0
        %v2357 = vsel %vm608, %v2275, 0
        %v2360 = vsel %vm608, %v2276, 0
        %v2363 = vsel %vm608, %v2277, 0
        %v2366 = vsel %vm608, %v2278, 0
        %v2369 = vsel %vm608, %v2279, 0
        %v2372 = vsel %vm608, %v2280, 0
        %v2375 = vsel %vm608, %v2281, 0
        %v2378 = vsel %vm608, %v2282, 0
        %v2381 = vsel %vm608, %v2283, 0
        %v2384 = vsel %vm608, %v2284, 0
        %v2387 = vsel %vm608, %v2285, 0
        %v2390 = vsel %vm608, %v2286, 0
        %v2393 = vsel %vm608, %v2287, 0
        %v2396 = vsel %vm608, %v2288, 0
        %v2399 = vsel %vm608, %v2289, 0
        %v2402 = vsel %vm608, %v2290, 0
        %v2405 = vsel %vm608, %v2291, 0
        %v2408 = vsel %vm608, %v2292, 0
        %v2411 = vsel %vm608, %v2293, 0
        %v2414 = vsel %vm608, %v2294, 0
        %2416 = vmatprep.subr.mxu0 0.0
        %2417 = vmatpush1.msra.mxu0 0.0
        %2418 = vmatprep.subr.mxu0 0.0
        %2419 = vmatpush1.msra.mxu0 0.0
        %2420 = vmatprep.subr.mxu0 0.0
        %2421 = vmatpush1.msra.mxu0 0.0
        %2422 = vmatprep.subr.mxu0 0.0
        %2423 = vmatpush1.msra.mxu0 0.0
        %2424 = vmatprep.subr.mxu0 %v2319
        %2425 = vmatpush1.msra.mxu0 %v2318
        %2426 = vmatprep.subr.mxu0 %v2317
        %2427 = vmatpush1.msra.mxu0 %v2316
        %2428 = vmatprep.subr.mxu0 %v2315
        %2429 = vmatpush1.msra.mxu0 %v2314
        %2430 = vmatprep.subr.mxu0 %v2313
        %2431 = vmatpush1.msra.mxu0 %v2312
        %2432 = vmatprep.subr.mxu0 %v2311
        %2433 = vmatpush1.msra.mxu0 %v2310
        %2434 = vmatprep.subr.mxu0 %v2309
        %2435 = vmatpush1.msra.mxu0 %v2308
        %2436 = vmatprep.subr.mxu0 %v2307
        %2437 = vmatpush1.msra.mxu0 %v2306
        %2438 = vmatprep.subr.mxu0 %v2305
        %2439 = vmatpush1.msra.mxu0 %v2304
        %2440 = vmatprep.subr.mxu0 %v2303
        %2441 = vmatpush1.msra.mxu0 %v2302
        %2442 = vmatprep.subr.mxu0 %v2301
        %2443 = vmatpush1.msra.mxu0 %v2300
        %2444 = vmatprep.subr.mxu0 %v2299
        %2445 = vmatpush1.msra.mxu0 %v2298
        %2446 = vmatprep.subr.mxu0 %v2297
        %2447 = vmatpush1.msra.mxu0 %v2296
        %2448 = vmatprep.subr.mxu0 0.0
        %2449 = vmatpush2.msra.mxu0 0.0
        %2450 = vmatprep.subr.mxu0 0.0
        %2451 = vmatpush2.msra.mxu0 0.0
        %2452 = vmatprep.subr.mxu0 0.0
        %2453 = vmatpush2.msra.mxu0 0.0
        %2454 = vmatprep.subr.mxu0 0.0
        %2455 = vmatpush2.msra.mxu0 0.0
        %2456 = vmatprep.subr.mxu0 0.0
        %2457 = vmatpush2.msra.mxu0 0.0
        %2458 = vmatprep.subr.mxu0 0.0
        %2459 = vmatpush2.msra.mxu0 0.0
        %2460 = vmatprep.subr.mxu0 0.0
        %2461 = vmatpush2.msra.mxu0 0.0
        %2462 = vmatprep.subr.mxu0 0.0
        %2463 = vmatpush2.msra.mxu0 0.0
        %2464 = vmatprep.subr.mxu0 0.0
        %2465 = vmatpush2.msra.mxu0 0.0
        %2466 = vmatprep.subr.mxu0 0.0
        %2467 = vmatpush2.msra.mxu0 0.0
        %2468 = vmatprep.subr.mxu0 0.0
        %2469 = vmatpush2.msra.mxu0 0.0
        %2470 = vmatprep.subr.mxu0 0.0
        %2471 = vmatpush2.msra.mxu0 0.0
        %2472 = vmatprep.subr.mxu0 0.0
        %2473 = vmatpush2.msra.mxu0 0.0
        %2474 = vmatprep.subr.mxu0 0.0
        %2475 = vmatpush2.msra.mxu0 0.0
        %2476 = vmatprep.subr.mxu0 0.0
        %2477 = vmatpush2.msra.mxu0 0.0
        %2478 = vmatprep.subr.mxu0 0.0
        %2479 = vmatpush2.msra.mxu0 0.0
        %2480 = vmatprep.mubr.f32.mxu0 0.0
        %2481 = vmatmul.mubr.f32.gmra.mxu0 %v2321
        %v2482 = vpop.f32.mrf.mxu0
        %v2483 = vadd.f32 0.0, %v2482
        %v2484 = vpop.f32.mrf.mxu0
        %v2485 = vadd.f32 0.0, %v2484
        %2486 = vmatprep.mubr.f32.mxu0 0.0
        %2487 = vmatmul.mubr.f32.gmra.mxu0 %v2324
        %v2488 = vpop.f32.mrf.mxu0
        %v2489 = vadd.f32 0.0, %v2488
        %v2490 = vpop.f32.mrf.mxu0
        %v2491 = vadd.f32 0.0, %v2490
        %2492 = vmatprep.mubr.f32.mxu0 0.0
        %2493 = vmatmul.mubr.f32.gmra.mxu0 %v2327
        %v2494 = vpop.f32.mrf.mxu0
        %v2495 = vadd.f32 0.0, %v2494
        %v2496 = vpop.f32.mrf.mxu0
        %v2497 = vadd.f32 0.0, %v2496
        %2498 = vmatprep.mubr.f32.mxu0 0.0
        %2499 = vmatmul.mubr.f32.gmra.mxu0 %v2330
        %v2500 = vpop.f32.mrf.mxu0
        %v2501 = vadd.f32 0.0, %v2500
        %v2502 = vpop.f32.mrf.mxu0
        %v2503 = vadd.f32 0.0, %v2502
        %2504 = vmatprep.mubr.f32.mxu0 0.0
        %2505 = vmatmul.mubr.f32.gmra.mxu0 %v2333
        %v2506 = vpop.f32.mrf.mxu0
        %v2507 = vadd.f32 0.0, %v2506
        %v2508 = vpop.f32.mrf.mxu0
        %v2509 = vadd.f32 0.0, %v2508
        %2510 = vmatprep.mubr.f32.mxu0 0.0
        %2511 = vmatmul.mubr.f32.gmra.mxu0 %v2336
        %v2512 = vpop.f32.mrf.mxu0
        %v2513 = vadd.f32 0.0, %v2512
        %v2514 = vpop.f32.mrf.mxu0
        %v2515 = vadd.f32 0.0, %v2514
        %2516 = vmatprep.mubr.f32.mxu0 0.0
        %2517 = vmatmul.mubr.f32.gmra.mxu0 %v2339
        %v2518 = vpop.f32.mrf.mxu0
        %v2519 = vadd.f32 0.0, %v2518
        %v2520 = vpop.f32.mrf.mxu0
        %v2521 = vadd.f32 0.0, %v2520
        %2522 = vmatprep.mubr.f32.mxu0 0.0
        %2523 = vmatmul.mubr.f32.gmra.mxu0 %v2342
        %v2524 = vpop.f32.mrf.mxu0
        %v2525 = vadd.f32 0.0, %v2524
        %v2526 = vpop.f32.mrf.mxu0
        %v2527 = vadd.f32 0.0, %v2526
        %2528 = vmatprep.mubr.f32.mxu0 0.0
        %2529 = vmatmul.mubr.f32.gmra.mxu0 %v2345
        %v2530 = vpop.f32.mrf.mxu0
        %v2531 = vadd.f32 0.0, %v2530
        %v2532 = vpop.f32.mrf.mxu0
        %v2533 = vadd.f32 0.0, %v2532
        %2534 = vmatprep.mubr.f32.mxu0 0.0
        %2535 = vmatmul.mubr.f32.gmra.mxu0 %v2348
        %v2536 = vpop.f32.mrf.mxu0
        %v2537 = vadd.f32 0.0, %v2536
        %v2538 = vpop.f32.mrf.mxu0
        %v2539 = vadd.f32 0.0, %v2538
        %2540 = vmatprep.mubr.f32.mxu0 0.0
        %2541 = vmatmul.mubr.f32.gmra.mxu0 %v2351
        %v2542 = vpop.f32.mrf.mxu0
        %v2543 = vadd.f32 0.0, %v2542
        %v2544 = vpop.f32.mrf.mxu0
        %v2545 = vadd.f32 0.0, %v2544
        %2546 = vmatprep.mubr.f32.mxu0 0.0
        %2547 = vmatmul.mubr.f32.gmra.mxu0 %v2354
        %v2548 = vpop.f32.mrf.mxu0
        %v2549 = vadd.f32 0.0, %v2548
        %v2550 = vpop.f32.mrf.mxu0
        %v2551 = vadd.f32 0.0, %v2550
        %2552 = vmatprep.mubr.f32.mxu0 0.0
        %2553 = vmatmul.mubr.f32.gmra.mxu0 %v2357
        %v2554 = vpop.f32.mrf.mxu0
        %v2555 = vadd.f32 0.0, %v2554
        %v2556 = vpop.f32.mrf.mxu0
        %v2557 = vadd.f32 0.0, %v2556
        %2558 = vmatprep.mubr.f32.mxu0 0.0
        %2559 = vmatmul.mubr.f32.gmra.mxu0 %v2360
        %v2560 = vpop.f32.mrf.mxu0
        %v2561 = vadd.f32 0.0, %v2560
        %v2562 = vpop.f32.mrf.mxu0
        %v2563 = vadd.f32 0.0, %v2562
        %2564 = vmatprep.mubr.f32.mxu0 0.0
        %2565 = vmatmul.mubr.f32.gmra.mxu0 %v2363
        %v2566 = vpop.f32.mrf.mxu0
        %v2567 = vadd.f32 0.0, %v2566
        %v2568 = vpop.f32.mrf.mxu0
        %v2569 = vadd.f32 0.0, %v2568
        %2570 = vmatprep.mubr.f32.mxu0 0.0
        %2571 = vmatmul.mubr.f32.gmra.mxu0 %v2366
        %v2572 = vpop.f32.mrf.mxu0
        %v2573 = vadd.f32 0.0, %v2572
        %v2574 = vpop.f32.mrf.mxu0
        %v2575 = vadd.f32 0.0, %v2574
        %2576 = vmatprep.mubr.f32.mxu0 0.0
        %2577 = vmatmul.mubr.f32.gmra.mxu0 %v2369
        %v2578 = vpop.f32.mrf.mxu0
        %v2579 = vadd.f32 0.0, %v2578
        %v2580 = vpop.f32.mrf.mxu0
        %v2581 = vadd.f32 0.0, %v2580
        %2582 = vmatprep.mubr.f32.mxu0 0.0
        %2583 = vmatmul.mubr.f32.gmra.mxu0 %v2372
        %v2584 = vpop.f32.mrf.mxu0
        %v2585 = vadd.f32 0.0, %v2584
        %v2586 = vpop.f32.mrf.mxu0
        %v2587 = vadd.f32 0.0, %v2586
        %2588 = vmatprep.mubr.f32.mxu0 0.0
        %2589 = vmatmul.mubr.f32.gmra.mxu0 %v2375
        %v2590 = vpop.f32.mrf.mxu0
        %v2591 = vadd.f32 0.0, %v2590
        %v2592 = vpop.f32.mrf.mxu0
        %v2593 = vadd.f32 0.0, %v2592
        %2594 = vmatprep.mubr.f32.mxu0 0.0
        %2595 = vmatmul.mubr.f32.gmra.mxu0 %v2378
        %v2596 = vpop.f32.mrf.mxu0
        %v2597 = vadd.f32 0.0, %v2596
        %v2598 = vpop.f32.mrf.mxu0
        %v2599 = vadd.f32 0.0, %v2598
        %2600 = vmatprep.mubr.f32.mxu0 0.0
        %2601 = vmatmul.mubr.f32.gmra.mxu0 %v2381
        %v2602 = vpop.f32.mrf.mxu0
        %v2603 = vadd.f32 0.0, %v2602
        %v2604 = vpop.f32.mrf.mxu0
        %v2605 = vadd.f32 0.0, %v2604
        %2606 = vmatprep.mubr.f32.mxu0 0.0
        %2607 = vmatmul.mubr.f32.gmra.mxu0 %v2384
        %v2608 = vpop.f32.mrf.mxu0
        %v2609 = vadd.f32 0.0, %v2608
        %v2610 = vpop.f32.mrf.mxu0
        %v2611 = vadd.f32 0.0, %v2610
        %2612 = vmatprep.mubr.f32.mxu0 0.0
        %2613 = vmatmul.mubr.f32.gmra.mxu0 %v2387
        %v2614 = vpop.f32.mrf.mxu0
        %v2615 = vadd.f32 0.0, %v2614
        %v2616 = vpop.f32.mrf.mxu0
        %v2617 = vadd.f32 0.0, %v2616
        %2618 = vmatprep.mubr.f32.mxu0 0.0
        %2619 = vmatmul.mubr.f32.gmra.mxu0 %v2390
        %v2620 = vpop.f32.mrf.mxu0
        %v2621 = vadd.f32 0.0, %v2620
        %v2622 = vpop.f32.mrf.mxu0
        %v2623 = vadd.f32 0.0, %v2622
        %2624 = vmatprep.mubr.f32.mxu0 0.0
        %2625 = vmatmul.mubr.f32.gmra.mxu0 %v2393
        %v2626 = vpop.f32.mrf.mxu0
        %v2627 = vadd.f32 0.0, %v2626
        %v2628 = vpop.f32.mrf.mxu0
        %v2629 = vadd.f32 0.0, %v2628
        %2630 = vmatprep.mubr.f32.mxu0 0.0
        %2631 = vmatmul.mubr.f32.gmra.mxu0 %v2396
        %v2632 = vpop.f32.mrf.mxu0
        %v2633 = vadd.f32 0.0, %v2632
        %v2634 = vpop.f32.mrf.mxu0
        %v2635 = vadd.f32 0.0, %v2634
        %2636 = vmatprep.mubr.f32.mxu0 0.0
        %2637 = vmatmul.mubr.f32.gmra.mxu0 %v2399
        %v2638 = vpop.f32.mrf.mxu0
        %v2639 = vadd.f32 0.0, %v2638
        %v2640 = vpop.f32.mrf.mxu0
        %v2641 = vadd.f32 0.0, %v2640
        %2642 = vmatprep.mubr.f32.mxu0 0.0
        %2643 = vmatmul.mubr.f32.gmra.mxu0 %v2402
        %v2644 = vpop.f32.mrf.mxu0
        %v2645 = vadd.f32 0.0, %v2644
        %v2646 = vpop.f32.mrf.mxu0
        %v2647 = vadd.f32 0.0, %v2646
        %2648 = vmatprep.mubr.f32.mxu0 0.0
        %2649 = vmatmul.mubr.f32.gmra.mxu0 %v2405
        %v2650 = vpop.f32.mrf.mxu0
        %v2651 = vadd.f32 0.0, %v2650
        %v2652 = vpop.f32.mrf.mxu0
        %v2653 = vadd.f32 0.0, %v2652
        %2654 = vmatprep.mubr.f32.mxu0 0.0
        %2655 = vmatmul.mubr.f32.gmra.mxu0 %v2408
        %v2656 = vpop.f32.mrf.mxu0
        %v2657 = vadd.f32 0.0, %v2656
        %v2658 = vpop.f32.mrf.mxu0
        %v2659 = vadd.f32 0.0, %v2658
        %2660 = vmatprep.mubr.f32.mxu0 0.0
        %2661 = vmatmul.mubr.f32.gmra.mxu0 %v2411
        %v2662 = vpop.f32.mrf.mxu0
        %v2663 = vadd.f32 0.0, %v2662
        %v2664 = vpop.f32.mrf.mxu0
        %v2665 = vadd.f32 0.0, %v2664
        %2666 = vmatprep.mubr.f32.mxu0 0.0
        %2667 = vmatmul.mubr.f32.gmra.mxu0 %v2414
        %v2668 = vpop.f32.mrf.mxu0
        %v2669 = vadd.f32 0.0, %v2668
        %v2670 = vpop.f32.mrf.mxu0
        %v2671 = vadd.f32 0.0, %v2670
        %2672 = vdwg.mxu0
        %v2673 = vadd.f32 %v2199, %v2483
        %v2674 = vadd.f32 %v2200, %v2485
        %v2675 = vadd.f32 %v2201, %v2489
        %v2676 = vadd.f32 %v2202, %v2491
        %v2677 = vadd.f32 %v2203, %v2495
        %v2678 = vadd.f32 %v2204, %v2497
        %v2679 = vadd.f32 %v2205, %v2501
        %v2680 = vadd.f32 %v2206, %v2503
        %v2681 = vadd.f32 %v2207, %v2507
        %v2682 = vadd.f32 %v2208, %v2509
        %v2683 = vadd.f32 %v2209, %v2513
        %v2684 = vadd.f32 %v2210, %v2515
        %v2685 = vadd.f32 %v2211, %v2519
        %v2686 = vadd.f32 %v2212, %v2521
        %v2687 = vadd.f32 %v2213, %v2525
        %v2688 = vadd.f32 %v2214, %v2527
        %v2689 = vadd.f32 %v2215, %v2531
        %v2690 = vadd.f32 %v2216, %v2533
        %v2691 = vadd.f32 %v2217, %v2537
        %v2692 = vadd.f32 %v2218, %v2539
        %v2693 = vadd.f32 %v2219, %v2543
        %v2694 = vadd.f32 %v2220, %v2545
        %v2695 = vadd.f32 %v2221, %v2549
        %v2696 = vadd.f32 %v2222, %v2551
        %v2697 = vadd.f32 %v2223, %v2555
        %v2698 = vadd.f32 %v2224, %v2557
        %v2699 = vadd.f32 %v2225, %v2561
        %v2700 = vadd.f32 %v2226, %v2563
        %v2701 = vadd.f32 %v2227, %v2567
        %v2702 = vadd.f32 %v2228, %v2569
        %v2703 = vadd.f32 %v2229, %v2573
        %v2704 = vadd.f32 %v2230, %v2575
        %v2705 = vadd.f32 %v2231, %v2579
        %v2706 = vadd.f32 %v2232, %v2581
        %v2707 = vadd.f32 %v2233, %v2585
        %v2708 = vadd.f32 %v2234, %v2587
        %v2709 = vadd.f32 %v2235, %v2591
        %v2710 = vadd.f32 %v2236, %v2593
        %v2711 = vadd.f32 %v2237, %v2597
        %v2712 = vadd.f32 %v2238, %v2599
        %v2713 = vadd.f32 %v2239, %v2603
        %v2714 = vadd.f32 %v2240, %v2605
        %v2715 = vadd.f32 %v2241, %v2609
        %v2716 = vadd.f32 %v2242, %v2611
        %v2717 = vadd.f32 %v2243, %v2615
        %v2718 = vadd.f32 %v2244, %v2617
        %v2719 = vadd.f32 %v2245, %v2621
        %v2720 = vadd.f32 %v2246, %v2623
        %v2721 = vadd.f32 %v2247, %v2627
        %v2722 = vadd.f32 %v2248, %v2629
        %v2723 = vadd.f32 %v2249, %v2633
        %v2724 = vadd.f32 %v2250, %v2635
        %v2725 = vadd.f32 %v2251, %v2639
        %v2726 = vadd.f32 %v2252, %v2641
        %v2727 = vadd.f32 %v2253, %v2645
        %v2728 = vadd.f32 %v2254, %v2647
        %v2729 = vadd.f32 %v2255, %v2651
        %v2730 = vadd.f32 %v2256, %v2653
        %v2731 = vadd.f32 %v2257, %v2657
        %v2732 = vadd.f32 %v2258, %v2659
        %v2733 = vadd.f32 %v2259, %v2663
        %v2734 = vadd.f32 %v2260, %v2665
        %v2735 = vadd.f32 %v2261, %v2669
        %v2736 = vadd.f32 %v2262, %v2671
        %v2737 = vld [vmem:[%s2] sm:$0xff]
        %v2738 = vld [vmem:[%s2 + $0x8] sm:$0xff]
        %v2739 = vld [vmem:[%s2 + $0x10] sm:$0xff]
        %v2740 = vld [vmem:[%s2 + $0x18] sm:$0xff]
        %v2741 = vld [vmem:[%s2 + $0x20] sm:$0xff]
        %v2742 = vld [vmem:[%s2 + $0x28] sm:$0xff]
        %v2743 = vld [vmem:[%s2 + $0x30] sm:$0xff]
        %v2744 = vld [vmem:[%s2 + $0x38] sm:$0xff]
        %v2745 = vld [vmem:[%s2 + $0x40] sm:$0xff]
        %v2746 = vld [vmem:[%s2 + $0x48] sm:$0xff]
        %v2747 = vld [vmem:[%s2 + $0x50] sm:$0xff]
        %v2748 = vld [vmem:[%s2 + $0x58] sm:$0xff]
        %v2749 = vld [vmem:[%s2 + $0x60] sm:$0xff]
        %v2750 = vld [vmem:[%s2 + $0x68] sm:$0xff]
        %v2751 = vld [vmem:[%s2 + $0x70] sm:$0xff]
        %v2752 = vld [vmem:[%s2 + $0x78] sm:$0xff]
        %v2753 = vld [vmem:[%s2 + $0x80] sm:$0xff]
        %v2754 = vld [vmem:[%s2 + $0x88] sm:$0xff]
        %v2755 = vld [vmem:[%s2 + $0x90] sm:$0xff]
        %v2756 = vld [vmem:[%s2 + $0x98] sm:$0xff]
        %v2757 = vld [vmem:[%s2 + $0xa0] sm:$0xff]
        %v2758 = vld [vmem:[%s2 + $0xa8] sm:$0xff]
        %v2759 = vld [vmem:[%s2 + $0xb0] sm:$0xff]
        %v2760 = vld [vmem:[%s2 + $0xb8] sm:$0xff]
        %v2761 = vld [vmem:[%s2 + $0xc0] sm:$0xff]
        %v2762 = vld [vmem:[%s2 + $0xc8] sm:$0xff]
        %v2763 = vld [vmem:[%s2 + $0xd0] sm:$0xff]
        %v2764 = vld [vmem:[%s2 + $0xd8] sm:$0xff]
        %v2765 = vld [vmem:[%s2 + $0xe0] sm:$0xff]
        %v2766 = vld [vmem:[%s2 + $0xe8] sm:$0xff]
        %v2767 = vld [vmem:[%s2 + $0xf0] sm:$0xff]
        %v2768 = vld [vmem:[%s2 + $0xf8] sm:$0xff]
        %vm2769 = vcmask 1014784
        %v2771 = vsel %vm2769, %v2738, 0
        %v2774 = vsel %vm2769, %v2740, 0
        %v2777 = vsel %vm2769, %v2742, 0
        %v2780 = vsel %vm2769, %v2744, 0
        %v2783 = vsel %vm2769, %v2746, 0
        %v2786 = vsel %vm2769, %v2748, 0
        %v2789 = vsel %vm2769, %v2750, 0
        %v2792 = vsel %vm2769, %v2752, 0
        %v2795 = vsel %vm2769, %v2754, 0
        %v2798 = vsel %vm2769, %v2756, 0
        %v2801 = vsel %vm2769, %v2758, 0
        %v2804 = vsel %vm2769, %v2760, 0
        %v2807 = vsel %vm2769, %v2762, 0
        %v2810 = vsel %vm2769, %v2764, 0
        %v2813 = vsel %vm2769, %v2766, 0
        %v2816 = vsel %vm2769, %v2768, 0
        %vm2818 = vcmask 1043456
        %v2820 = vsel %vm2818, %v2735, 0
        %v2823 = vsel %vm2818, %v2736, 0
        %2825 = vmatprep.subr.mxu0 %v2704
        %2826 = vmatpush1.msra.mxu0 %v2703
        %2827 = vmatprep.subr.mxu0 %v2702
        %2828 = vmatpush1.msra.mxu0 %v2701
        %2829 = vmatprep.subr.mxu0 %v2700
        %2830 = vmatpush1.msra.mxu0 %v2699
        %2831 = vmatprep.subr.mxu0 %v2698
        %2832 = vmatpush1.msra.mxu0 %v2697
        %2833 = vmatprep.subr.mxu0 %v2696
        %2834 = vmatpush1.msra.mxu0 %v2695
        %2835 = vmatprep.subr.mxu0 %v2694
        %2836 = vmatpush1.msra.mxu0 %v2693
        %2837 = vmatprep.subr.mxu0 %v2692
        %2838 = vmatpush1.msra.mxu0 %v2691
        %2839 = vmatprep.subr.mxu0 %v2690
        %2840 = vmatpush1.msra.mxu0 %v2689
        %2841 = vmatprep.subr.mxu0 %v2688
        %2842 = vmatpush1.msra.mxu0 %v2687
        %2843 = vmatprep.subr.mxu0 %v2686
        %2844 = vmatpush1.msra.mxu0 %v2685
        %2845 = vmatprep.subr.mxu0 %v2684
        %2846 = vmatpush1.msra.mxu0 %v2683
        %2847 = vmatprep.subr.mxu0 %v2682
        %2848 = vmatpush1.msra.mxu0 %v2681
        %2849 = vmatprep.subr.mxu0 %v2680
        %2850 = vmatpush1.msra.mxu0 %v2679
        %2851 = vmatprep.subr.mxu0 %v2678
        %2852 = vmatpush1.msra.mxu0 %v2677
        %2853 = vmatprep.subr.mxu0 %v2676
        %2854 = vmatpush1.msra.mxu0 %v2675
        %2855 = vmatprep.subr.mxu0 %v2674
        %2856 = vmatpush1.msra.mxu0 %v2673
        %2857 = vmatprep.subr.mxu0 %v2823
        %2858 = vmatpush2.msra.mxu0 %v2820
        %2859 = vmatprep.subr.mxu0 %v2734
        %2860 = vmatpush2.msra.mxu0 %v2733
        %2861 = vmatprep.subr.mxu0 %v2732
        %2862 = vmatpush2.msra.mxu0 %v2731
        %2863 = vmatprep.subr.mxu0 %v2730
        %2864 = vmatpush2.msra.mxu0 %v2729
        %2865 = vmatprep.subr.mxu0 %v2728
        %2866 = vmatpush2.msra.mxu0 %v2727
        %2867 = vmatprep.subr.mxu0 %v2726
        %2868 = vmatpush2.msra.mxu0 %v2725
        %2869 = vmatprep.subr.mxu0 %v2724
        %2870 = vmatpush2.msra.mxu0 %v2723
        %2871 = vmatprep.subr.mxu0 %v2722
        %2872 = vmatpush2.msra.mxu0 %v2721
        %2873 = vmatprep.subr.mxu0 %v2720
        %2874 = vmatpush2.msra.mxu0 %v2719
        %2875 = vmatprep.subr.mxu0 %v2718
        %2876 = vmatpush2.msra.mxu0 %v2717
        %2877 = vmatprep.subr.mxu0 %v2716
        %2878 = vmatpush2.msra.mxu0 %v2715
        %2879 = vmatprep.subr.mxu0 %v2714
        %2880 = vmatpush2.msra.mxu0 %v2713
        %2881 = vmatprep.subr.mxu0 %v2712
        %2882 = vmatpush2.msra.mxu0 %v2711
        %2883 = vmatprep.subr.mxu0 %v2710
        %2884 = vmatpush2.msra.mxu0 %v2709
        %2885 = vmatprep.subr.mxu0 %v2708
        %2886 = vmatpush2.msra.mxu0 %v2707
        %2887 = vmatprep.subr.mxu0 %v2706
        %2888 = vmatpush2.msra.mxu0 %v2705
        %2889 = vmatprep.mubr.f32.mxu0 %v2771
        %2890 = vmatmul.mubr.f32.gmra.mxu0 %v2737
        %v2891 = vpop.f32.mrf.mxu0
        %v2892 = vadd.f32 0.0, %v2891
        %v2893 = vpop.f32.mrf.mxu0
        %v2894 = vadd.f32 0.0, %v2893
        %2895 = vmatprep.mubr.f32.mxu0 %v2774
        %2896 = vmatmul.mubr.f32.gmra.mxu0 %v2739
        %v2897 = vpop.f32.mrf.mxu0
        %v2898 = vadd.f32 0.0, %v2897
        %v2899 = vpop.f32.mrf.mxu0
        %v2900 = vadd.f32 0.0, %v2899
        %2901 = vmatprep.mubr.f32.mxu0 %v2777
        %2902 = vmatmul.mubr.f32.gmra.mxu0 %v2741
        %v2903 = vpop.f32.mrf.mxu0
        %v2904 = vadd.f32 0.0, %v2903
        %v2905 = vpop.f32.mrf.mxu0
        %v2906 = vadd.f32 0.0, %v2905
        %2907 = vmatprep.mubr.f32.mxu0 %v2780
        %2908 = vmatmul.mubr.f32.gmra.mxu0 %v2743
        %v2909 = vpop.f32.mrf.mxu0
        %v2910 = vadd.f32 0.0, %v2909
        %v2911 = vpop.f32.mrf.mxu0
        %v2912 = vadd.f32 0.0, %v2911
        %2913 = vmatprep.mubr.f32.mxu0 %v2783
        %2914 = vmatmul.mubr.f32.gmra.mxu0 %v2745
        %v2915 = vpop.f32.mrf.mxu0
        %v2916 = vadd.f32 0.0, %v2915
        %v2917 = vpop.f32.mrf.mxu0
        %v2918 = vadd.f32 0.0, %v2917
        %2919 = vmatprep.mubr.f32.mxu0 %v2786
        %2920 = vmatmul.mubr.f32.gmra.mxu0 %v2747
        %v2921 = vpop.f32.mrf.mxu0
        %v2922 = vadd.f32 0.0, %v2921
        %v2923 = vpop.f32.mrf.mxu0
        %v2924 = vadd.f32 0.0, %v2923
        %2925 = vmatprep.mubr.f32.mxu0 %v2789
        %2926 = vmatmul.mubr.f32.gmra.mxu0 %v2749
        %v2927 = vpop.f32.mrf.mxu0
        %v2928 = vadd.f32 0.0, %v2927
        %v2929 = vpop.f32.mrf.mxu0
        %v2930 = vadd.f32 0.0, %v2929
        %2931 = vmatprep.mubr.f32.mxu0 %v2792
        %2932 = vmatmul.mubr.f32.gmra.mxu0 %v2751
        %v2933 = vpop.f32.mrf.mxu0
        %v2934 = vadd.f32 0.0, %v2933
        %v2935 = vpop.f32.mrf.mxu0
        %v2936 = vadd.f32 0.0, %v2935
        %2937 = vmatprep.mubr.f32.mxu0 %v2795
        %2938 = vmatmul.mubr.f32.gmra.mxu0 %v2753
        %v2939 = vpop.f32.mrf.mxu0
        %v2940 = vadd.f32 0.0, %v2939
        %v2941 = vpop.f32.mrf.mxu0
        %v2942 = vadd.f32 0.0, %v2941
        %2943 = vmatprep.mubr.f32.mxu0 %v2798
        %2944 = vmatmul.mubr.f32.gmra.mxu0 %v2755
        %v2945 = vpop.f32.mrf.mxu0
        %v2946 = vadd.f32 0.0, %v2945
        %v2947 = vpop.f32.mrf.mxu0
        %v2948 = vadd.f32 0.0, %v2947
        %2949 = vmatprep.mubr.f32.mxu0 %v2801
        %2950 = vmatmul.mubr.f32.gmra.mxu0 %v2757
        %v2951 = vpop.f32.mrf.mxu0
        %v2952 = vadd.f32 0.0, %v2951
        %v2953 = vpop.f32.mrf.mxu0
        %v2954 = vadd.f32 0.0, %v2953
        %2955 = vmatprep.mubr.f32.mxu0 %v2804
        %2956 = vmatmul.mubr.f32.gmra.mxu0 %v2759
        %v2957 = vpop.f32.mrf.mxu0
        %v2958 = vadd.f32 0.0, %v2957
        %v2959 = vpop.f32.mrf.mxu0
        %v2960 = vadd.f32 0.0, %v2959
        %2961 = vmatprep.mubr.f32.mxu0 %v2807
        %2962 = vmatmul.mubr.f32.gmra.mxu0 %v2761
        %v2963 = vpop.f32.mrf.mxu0
        %v2964 = vadd.f32 0.0, %v2963
        %v2965 = vpop.f32.mrf.mxu0
        %v2966 = vadd.f32 0.0, %v2965
        %2967 = vmatprep.mubr.f32.mxu0 %v2810
        %2968 = vmatmul.mubr.f32.gmra.mxu0 %v2763
        %v2969 = vpop.f32.mrf.mxu0
        %v2970 = vadd.f32 0.0, %v2969
        %v2971 = vpop.f32.mrf.mxu0
        %v2972 = vadd.f32 0.0, %v2971
        %2973 = vmatprep.mubr.f32.mxu0 %v2813
        %2974 = vmatmul.mubr.f32.gmra.mxu0 %v2765
        %v2975 = vpop.f32.mrf.mxu0
        %v2976 = vadd.f32 0.0, %v2975
        %v2977 = vpop.f32.mrf.mxu0
        %v2978 = vadd.f32 0.0, %v2977
        %2979 = vmatprep.mubr.f32.mxu0 %v2816
        %2980 = vmatmul.mubr.f32.gmra.mxu0 %v2767
        %v2981 = vpop.f32.mrf.mxu0
        %v2982 = vadd.f32 0.0, %v2981
        %v2983 = vpop.f32.mrf.mxu0
        %v2984 = vadd.f32 0.0, %v2983
        %2985 = vdwg.mxu0
        %s2986 = scalar_lea.vmem %s2, 256
        %v2987 = vld [vmem:[%s2986] sm:$0xff]
        %v2988 = vld [vmem:[%s2986 + $0x8] sm:$0xff]
        %v2989 = vld [vmem:[%s2986 + $0x10] sm:$0xff]
        %v2990 = vld [vmem:[%s2986 + $0x18] sm:$0xff]
        %v2991 = vld [vmem:[%s2986 + $0x20] sm:$0xff]
        %v2992 = vld [vmem:[%s2986 + $0x28] sm:$0xff]
        %v2993 = vld [vmem:[%s2986 + $0x30] sm:$0xff]
        %v2994 = vld [vmem:[%s2986 + $0x38] sm:$0xff]
        %v2995 = vld [vmem:[%s2986 + $0x40] sm:$0xff]
        %v2996 = vld [vmem:[%s2986 + $0x48] sm:$0xff]
        %v2997 = vld [vmem:[%s2986 + $0x50] sm:$0xff]
        %v2998 = vld [vmem:[%s2986 + $0x58] sm:$0xff]
        %v2999 = vld [vmem:[%s2986 + $0x60] sm:$0xff]
        %v3000 = vld [vmem:[%s2986 + $0x68] sm:$0xff]
        %v3001 = vld [vmem:[%s2986 + $0x70] sm:$0xff]
        %v3002 = vld [vmem:[%s2986 + $0x78] sm:$0xff]
        %v3003 = vld [vmem:[%s2986 + $0x80] sm:$0xff]
        %v3004 = vld [vmem:[%s2986 + $0x88] sm:$0xff]
        %v3005 = vld [vmem:[%s2986 + $0x90] sm:$0xff]
        %v3006 = vld [vmem:[%s2986 + $0x98] sm:$0xff]
        %v3007 = vld [vmem:[%s2986 + $0xa0] sm:$0xff]
        %v3008 = vld [vmem:[%s2986 + $0xa8] sm:$0xff]
        %v3009 = vld [vmem:[%s2986 + $0xb0] sm:$0xff]
        %v3010 = vld [vmem:[%s2986 + $0xb8] sm:$0xff]
        %v3011 = vld [vmem:[%s2986 + $0xc0] sm:$0xff]
        %v3012 = vld [vmem:[%s2986 + $0xc8] sm:$0xff]
        %v3013 = vld [vmem:[%s2986 + $0xd0] sm:$0xff]
        %v3014 = vld [vmem:[%s2986 + $0xd8] sm:$0xff]
        %v3015 = vld [vmem:[%s2986 + $0xe0] sm:$0xff]
        %v3016 = vld [vmem:[%s2986 + $0xe8] sm:$0xff]
        %v3017 = vld [vmem:[%s2986 + $0xf0] sm:$0xff]
        %v3018 = vld [vmem:[%s2986 + $0xf8] sm:$0xff]
        %v3020 = vsel %vm2769, %v2988, 0
        %v3023 = vsel %vm2769, %v2990, 0
        %v3026 = vsel %vm2769, %v2992, 0
        %v3029 = vsel %vm2769, %v2994, 0
        %v3032 = vsel %vm2769, %v2996, 0
        %v3035 = vsel %vm2769, %v2998, 0
        %v3038 = vsel %vm2769, %v3000, 0
        %v3041 = vsel %vm2769, %v3002, 0
        %v3044 = vsel %vm2769, %v3004, 0
        %v3047 = vsel %vm2769, %v3006, 0
        %v3050 = vsel %vm2769, %v3008, 0
        %v3053 = vsel %vm2769, %v3010, 0
        %v3056 = vsel %vm2769, %v3012, 0
        %v3059 = vsel %vm2769, %v3014, 0
        %v3062 = vsel %vm2769, %v3016, 0
        %v3065 = vsel %vm2769, %v3018, 0
        %3067 = vmatprep.subr.mxu0 %v2704
        %3068 = vmatpush1.msra.mxu0 %v2703
        %3069 = vmatprep.subr.mxu0 %v2702
        %3070 = vmatpush1.msra.mxu0 %v2701
        %3071 = vmatprep.subr.mxu0 %v2700
        %3072 = vmatpush1.msra.mxu0 %v2699
        %3073 = vmatprep.subr.mxu0 %v2698
        %3074 = vmatpush1.msra.mxu0 %v2697
        %3075 = vmatprep.subr.mxu0 %v2696
        %3076 = vmatpush1.msra.mxu0 %v2695
        %3077 = vmatprep.subr.mxu0 %v2694
        %3078 = vmatpush1.msra.mxu0 %v2693
        %3079 = vmatprep.subr.mxu0 %v2692
        %3080 = vmatpush1.msra.mxu0 %v2691
        %3081 = vmatprep.subr.mxu0 %v2690
        %3082 = vmatpush1.msra.mxu0 %v2689
        %3083 = vmatprep.subr.mxu0 %v2688
        %3084 = vmatpush1.msra.mxu0 %v2687
        %3085 = vmatprep.subr.mxu0 %v2686
        %3086 = vmatpush1.msra.mxu0 %v2685
        %3087 = vmatprep.subr.mxu0 %v2684
        %3088 = vmatpush1.msra.mxu0 %v2683
        %3089 = vmatprep.subr.mxu0 %v2682
        %3090 = vmatpush1.msra.mxu0 %v2681
        %3091 = vmatprep.subr.mxu0 %v2680
        %3092 = vmatpush1.msra.mxu0 %v2679
        %3093 = vmatprep.subr.mxu0 %v2678
        %3094 = vmatpush1.msra.mxu0 %v2677
        %3095 = vmatprep.subr.mxu0 %v2676
        %3096 = vmatpush1.msra.mxu0 %v2675
        %3097 = vmatprep.subr.mxu0 %v2674
        %3098 = vmatpush1.msra.mxu0 %v2673
        %3099 = vmatprep.subr.mxu0 %v2823
        %3100 = vmatpush2.msra.mxu0 %v2820
        %3101 = vmatprep.subr.mxu0 %v2734
        %3102 = vmatpush2.msra.mxu0 %v2733
        %3103 = vmatprep.subr.mxu0 %v2732
        %3104 = vmatpush2.msra.mxu0 %v2731
        %3105 = vmatprep.subr.mxu0 %v2730
        %3106 = vmatpush2.msra.mxu0 %v2729
        %3107 = vmatprep.subr.mxu0 %v2728
        %3108 = vmatpush2.msra.mxu0 %v2727
        %3109 = vmatprep.subr.mxu0 %v2726
        %3110 = vmatpush2.msra.mxu0 %v2725
        %3111 = vmatprep.subr.mxu0 %v2724
        %3112 = vmatpush2.msra.mxu0 %v2723
        %3113 = vmatprep.subr.mxu0 %v2722
        %3114 = vmatpush2.msra.mxu0 %v2721
        %3115 = vmatprep.subr.mxu0 %v2720
        %3116 = vmatpush2.msra.mxu0 %v2719
        %3117 = vmatprep.subr.mxu0 %v2718
        %3118 = vmatpush2.msra.mxu0 %v2717
        %3119 = vmatprep.subr.mxu0 %v2716
        %3120 = vmatpush2.msra.mxu0 %v2715
        %3121 = vmatprep.subr.mxu0 %v2714
        %3122 = vmatpush2.msra.mxu0 %v2713
        %3123 = vmatprep.subr.mxu0 %v2712
        %3124 = vmatpush2.msra.mxu0 %v2711
        %3125 = vmatprep.subr.mxu0 %v2710
        %3126 = vmatpush2.msra.mxu0 %v2709
        %3127 = vmatprep.subr.mxu0 %v2708
        %3128 = vmatpush2.msra.mxu0 %v2707
        %3129 = vmatprep.subr.mxu0 %v2706
        %3130 = vmatpush2.msra.mxu0 %v2705
        %3131 = vmatprep.mubr.f32.mxu0 %v3020
        %3132 = vmatmul.mubr.f32.gmra.mxu0 %v2987
        %v3133 = vpop.f32.mrf.mxu0
        %v3134 = vadd.f32 0.0, %v3133
        %v3135 = vpop.f32.mrf.mxu0
        %v3136 = vadd.f32 0.0, %v3135
        %3137 = vmatprep.mubr.f32.mxu0 %v3023
        %3138 = vmatmul.mubr.f32.gmra.mxu0 %v2989
        %v3139 = vpop.f32.mrf.mxu0
        %v3140 = vadd.f32 0.0, %v3139
        %v3141 = vpop.f32.mrf.mxu0
        %v3142 = vadd.f32 0.0, %v3141
        %3143 = vmatprep.mubr.f32.mxu0 %v3026
        %3144 = vmatmul.mubr.f32.gmra.mxu0 %v2991
        %v3145 = vpop.f32.mrf.mxu0
        %v3146 = vadd.f32 0.0, %v3145
        %v3147 = vpop.f32.mrf.mxu0
        %v3148 = vadd.f32 0.0, %v3147
        %3149 = vmatprep.mubr.f32.mxu0 %v3029
        %3150 = vmatmul.mubr.f32.gmra.mxu0 %v2993
        %v3151 = vpop.f32.mrf.mxu0
        %v3152 = vadd.f32 0.0, %v3151
        %v3153 = vpop.f32.mrf.mxu0
        %v3154 = vadd.f32 0.0, %v3153
        %3155 = vmatprep.mubr.f32.mxu0 %v3032
        %3156 = vmatmul.mubr.f32.gmra.mxu0 %v2995
        %v3157 = vpop.f32.mrf.mxu0
        %v3158 = vadd.f32 0.0, %v3157
        %v3159 = vpop.f32.mrf.mxu0
        %v3160 = vadd.f32 0.0, %v3159
        %3161 = vmatprep.mubr.f32.mxu0 %v3035
        %3162 = vmatmul.mubr.f32.gmra.mxu0 %v2997
        %v3163 = vpop.f32.mrf.mxu0
        %v3164 = vadd.f32 0.0, %v3163
        %v3165 = vpop.f32.mrf.mxu0
        %v3166 = vadd.f32 0.0, %v3165
        %3167 = vmatprep.mubr.f32.mxu0 %v3038
        %3168 = vmatmul.mubr.f32.gmra.mxu0 %v2999
        %v3169 = vpop.f32.mrf.mxu0
        %v3170 = vadd.f32 0.0, %v3169
        %v3171 = vpop.f32.mrf.mxu0
        %v3172 = vadd.f32 0.0, %v3171
        %3173 = vmatprep.mubr.f32.mxu0 %v3041
        %3174 = vmatmul.mubr.f32.gmra.mxu0 %v3001
        %v3175 = vpop.f32.mrf.mxu0
        %v3176 = vadd.f32 0.0, %v3175
        %v3177 = vpop.f32.mrf.mxu0
        %v3178 = vadd.f32 0.0, %v3177
        %3179 = vmatprep.mubr.f32.mxu0 %v3044
        %3180 = vmatmul.mubr.f32.gmra.mxu0 %v3003
        %v3181 = vpop.f32.mrf.mxu0
        %v3182 = vadd.f32 0.0, %v3181
        %v3183 = vpop.f32.mrf.mxu0
        %v3184 = vadd.f32 0.0, %v3183
        %3185 = vmatprep.mubr.f32.mxu0 %v3047
        %3186 = vmatmul.mubr.f32.gmra.mxu0 %v3005
        %v3187 = vpop.f32.mrf.mxu0
        %v3188 = vadd.f32 0.0, %v3187
        %v3189 = vpop.f32.mrf.mxu0
        %v3190 = vadd.f32 0.0, %v3189
        %3191 = vmatprep.mubr.f32.mxu0 %v3050
        %3192 = vmatmul.mubr.f32.gmra.mxu0 %v3007
        %v3193 = vpop.f32.mrf.mxu0
        %v3194 = vadd.f32 0.0, %v3193
        %v3195 = vpop.f32.mrf.mxu0
        %v3196 = vadd.f32 0.0, %v3195
        %3197 = vmatprep.mubr.f32.mxu0 %v3053
        %3198 = vmatmul.mubr.f32.gmra.mxu0 %v3009
        %v3199 = vpop.f32.mrf.mxu0
        %v3200 = vadd.f32 0.0, %v3199
        %v3201 = vpop.f32.mrf.mxu0
        %v3202 = vadd.f32 0.0, %v3201
        %3203 = vmatprep.mubr.f32.mxu0 %v3056
        %3204 = vmatmul.mubr.f32.gmra.mxu0 %v3011
        %v3205 = vpop.f32.mrf.mxu0
        %v3206 = vadd.f32 0.0, %v3205
        %v3207 = vpop.f32.mrf.mxu0
        %v3208 = vadd.f32 0.0, %v3207
        %3209 = vmatprep.mubr.f32.mxu0 %v3059
        %3210 = vmatmul.mubr.f32.gmra.mxu0 %v3013
        %v3211 = vpop.f32.mrf.mxu0
        %v3212 = vadd.f32 0.0, %v3211
        %v3213 = vpop.f32.mrf.mxu0
        %v3214 = vadd.f32 0.0, %v3213
        %3215 = vmatprep.mubr.f32.mxu0 %v3062
        %3216 = vmatmul.mubr.f32.gmra.mxu0 %v3015
        %v3217 = vpop.f32.mrf.mxu0
        %v3218 = vadd.f32 0.0, %v3217
        %v3219 = vpop.f32.mrf.mxu0
        %v3220 = vadd.f32 0.0, %v3219
        %3221 = vmatprep.mubr.f32.mxu0 %v3065
        %3222 = vmatmul.mubr.f32.gmra.mxu0 %v3017
        %v3223 = vpop.f32.mrf.mxu0
        %v3224 = vadd.f32 0.0, %v3223
        %v3225 = vpop.f32.mrf.mxu0
        %v3226 = vadd.f32 0.0, %v3225
        %3227 = vdwg.mxu0
        %v3228 = vmax.f32 %v2892, %v3134
        %v3229 = vmax.f32 %v2894, %v3136
        %v3230 = vmax.f32 %v2898, %v3140
        %v3231 = vmax.f32 %v2900, %v3142
        %v3232 = vmax.f32 %v2904, %v3146
        %v3233 = vmax.f32 %v2906, %v3148
        %v3234 = vmax.f32 %v2910, %v3152
        %v3235 = vmax.f32 %v2912, %v3154
        %v3236 = vmax.f32 %v2916, %v3158
        %v3237 = vmax.f32 %v2918, %v3160
        %v3238 = vmax.f32 %v2922, %v3164
        %v3239 = vmax.f32 %v2924, %v3166
        %v3240 = vmax.f32 %v2928, %v3170
        %v3241 = vmax.f32 %v2930, %v3172
        %v3242 = vmax.f32 %v2934, %v3176
        %v3243 = vmax.f32 %v2936, %v3178
        %v3244 = vmax.f32 %v2940, %v3182
        %v3245 = vmax.f32 %v2942, %v3184
        %v3246 = vmax.f32 %v2946, %v3188
        %v3247 = vmax.f32 %v2948, %v3190
        %v3248 = vmax.f32 %v2952, %v3194
        %v3249 = vmax.f32 %v2954, %v3196
        %v3250 = vmax.f32 %v2958, %v3200
        %v3251 = vmax.f32 %v2960, %v3202
        %v3252 = vmax.f32 %v2964, %v3206
        %v3253 = vmax.f32 %v2966, %v3208
        %v3254 = vmax.f32 %v2970, %v3212
        %v3255 = vmax.f32 %v2972, %v3214
        %v3256 = vmax.f32 %v2976, %v3218
        %v3257 = vmax.f32 %v2978, %v3220
        %v3258 = vmax.f32 %v2982, %v3224
        %v3259 = vmax.f32 %v2984, %v3226
        %v3260 = vld [vmem:[%s3] sm:$0xff]
        %v3261 = vld [vmem:[%s3 + $0x8] sm:$0xff]
        %v3262 = vld [vmem:[%s3 + $0x10] sm:$0xff]
        %v3263 = vld [vmem:[%s3 + $0x18] sm:$0xff]
        %v3264 = vld [vmem:[%s3 + $0x20] sm:$0xff]
        %v3265 = vld [vmem:[%s3 + $0x28] sm:$0xff]
        %v3266 = vld [vmem:[%s3 + $0x30] sm:$0xff]
        %v3267 = vld [vmem:[%s3 + $0x38] sm:$0xff]
        %v3268 = vld [vmem:[%s3 + $0x40] sm:$0xff]
        %v3269 = vld [vmem:[%s3 + $0x48] sm:$0xff]
        %v3270 = vld [vmem:[%s3 + $0x50] sm:$0xff]
        %v3271 = vld [vmem:[%s3 + $0x58] sm:$0xff]
        %v3272 = vld [vmem:[%s3 + $0x60] sm:$0xff]
        %v3273 = vld [vmem:[%s3 + $0x68] sm:$0xff]
        %v3274 = vld [vmem:[%s3 + $0x70] sm:$0xff]
        %v3275 = vld [vmem:[%s3 + $0x78] sm:$0xff]
        %v3276 = vld [vmem:[%s3 + $0x80] sm:$0xff]
        %v3277 = vld [vmem:[%s3 + $0x88] sm:$0xff]
        %v3278 = vld [vmem:[%s3 + $0x90] sm:$0xff]
        %v3279 = vld [vmem:[%s3 + $0x98] sm:$0xff]
        %v3280 = vld [vmem:[%s3 + $0xa0] sm:$0xff]
        %vm3281 = vcmask 326656
        %v3283 = vsel %vm3281, %v3229, 0
        %v3286 = vsel %vm3281, %v3231, 0
        %v3289 = vsel %vm3281, %v3233, 0
        %v3292 = vsel %vm3281, %v3235, 0
        %v3295 = vsel %vm3281, %v3237, 0
        %v3298 = vsel %vm3281, %v3239, 0
        %v3301 = vsel %vm3281, %v3241, 0
        %v3304 = vsel %vm3281, %v3243, 0
        %v3307 = vsel %vm3281, %v3245, 0
        %v3310 = vsel %vm3281, %v3247, 0
        %v3313 = vsel %vm3281, %v3249, 0
        %v3316 = vsel %vm3281, %v3251, 0
        %v3319 = vsel %vm3281, %v3253, 0
        %v3322 = vsel %vm3281, %v3255, 0
        %v3325 = vsel %vm3281, %v3257, 0
        %v3328 = vsel %vm3281, %v3259, 0
        %3330 = vmatprep.subr.mxu0 0.0
        %3331 = vmatpush1.msra.mxu0 %v3275
        %3332 = vmatprep.subr.mxu0 0.0
        %3333 = vmatpush1.msra.mxu0 %v3274
        %3334 = vmatprep.subr.mxu0 0.0
        %3335 = vmatpush1.msra.mxu0 %v3273
        %3336 = vmatprep.subr.mxu0 0.0
        %3337 = vmatpush1.msra.mxu0 %v3272
        %3338 = vmatprep.subr.mxu0 0.0
        %3339 = vmatpush1.msra.mxu0 %v3271
        %3340 = vmatprep.subr.mxu0 0.0
        %3341 = vmatpush1.msra.mxu0 %v3270
        %3342 = vmatprep.subr.mxu0 0.0
        %3343 = vmatpush1.msra.mxu0 %v3269
        %3344 = vmatprep.subr.mxu0 0.0
        %3345 = vmatpush1.msra.mxu0 %v3268
        %3346 = vmatprep.subr.mxu0 0.0
        %3347 = vmatpush1.msra.mxu0 %v3267
        %3348 = vmatprep.subr.mxu0 0.0
        %3349 = vmatpush1.msra.mxu0 %v3266
        %3350 = vmatprep.subr.mxu0 0.0
        %3351 = vmatpush1.msra.mxu0 %v3265
        %3352 = vmatprep.subr.mxu0 0.0
        %3353 = vmatpush1.msra.mxu0 %v3264
        %3354 = vmatprep.subr.mxu0 0.0
        %3355 = vmatpush1.msra.mxu0 %v3263
        %3356 = vmatprep.subr.mxu0 0.0
        %3357 = vmatpush1.msra.mxu0 %v3262
        %3358 = vmatprep.subr.mxu0 0.0
        %3359 = vmatpush1.msra.mxu0 %v3261
        %3360 = vmatprep.subr.mxu0 0.0
        %3361 = vmatpush1.msra.mxu0 %v3260
        %3362 = vmatprep.subr.mxu0 0.0
        %3363 = vmatpush2.msra.mxu0 0.0
        %3364 = vmatprep.subr.mxu0 0.0
        %3365 = vmatpush2.msra.mxu0 0.0
        %3366 = vmatprep.subr.mxu0 0.0
        %3367 = vmatpush2.msra.mxu0 0.0
        %3368 = vmatprep.subr.mxu0 0.0
        %3369 = vmatpush2.msra.mxu0 0.0
        %3370 = vmatprep.subr.mxu0 0.0
        %3371 = vmatpush2.msra.mxu0 0.0
        %3372 = vmatprep.subr.mxu0 0.0
        %3373 = vmatpush2.msra.mxu0 0.0
        %3374 = vmatprep.subr.mxu0 0.0
        %3375 = vmatpush2.msra.mxu0 0.0
        %3376 = vmatprep.subr.mxu0 0.0
        %3377 = vmatpush2.msra.mxu0 0.0
        %3378 = vmatprep.subr.mxu0 0.0
        %3379 = vmatpush2.msra.mxu0 0.0
        %3380 = vmatprep.subr.mxu0 0.0
        %3381 = vmatpush2.msra.mxu0 0.0
        %3382 = vmatprep.subr.mxu0 0.0
        %3383 = vmatpush2.msra.mxu0 0.0
        %3384 = vmatprep.subr.mxu0 0.0
        %3385 = vmatpush2.msra.mxu0 %v3280
        %3386 = vmatprep.subr.mxu0 0.0
        %3387 = vmatpush2.msra.mxu0 %v3279
        %3388 = vmatprep.subr.mxu0 0.0
        %3389 = vmatpush2.msra.mxu0 %v3278
        %3390 = vmatprep.subr.mxu0 0.0
        %3391 = vmatpush2.msra.mxu0 %v3277
        %3392 = vmatprep.subr.mxu0 0.0
        %3393 = vmatpush2.msra.mxu0 %v3276
        %3394 = vmatprep.mubr.f32.mxu0 %v3283
        %3395 = vmatmul.mubr.f32.gmra.mxu0 %v3228
        %v3396 = vpop.f32.mrf.mxu0
        %v3397 = vadd.f32 0.0, %v3396
        %v3398 = vpop.f32.mrf.mxu0
        %3399 = vmatprep.mubr.f32.mxu0 %v3286
        %3400 = vmatmul.mubr.f32.gmra.mxu0 %v3230
        %v3401 = vpop.f32.mrf.mxu0
        %v3402 = vadd.f32 0.0, %v3401
        %v3403 = vpop.f32.mrf.mxu0
        %3404 = vmatprep.mubr.f32.mxu0 %v3289
        %3405 = vmatmul.mubr.f32.gmra.mxu0 %v3232
        %v3406 = vpop.f32.mrf.mxu0
        %v3407 = vadd.f32 0.0, %v3406
        %v3408 = vpop.f32.mrf.mxu0
        %3409 = vmatprep.mubr.f32.mxu0 %v3292
        %3410 = vmatmul.mubr.f32.gmra.mxu0 %v3234
        %v3411 = vpop.f32.mrf.mxu0
        %v3412 = vadd.f32 0.0, %v3411
        %v3413 = vpop.f32.mrf.mxu0
        %3414 = vmatprep.mubr.f32.mxu0 %v3295
        %3415 = vmatmul.mubr.f32.gmra.mxu0 %v3236
        %v3416 = vpop.f32.mrf.mxu0
        %v3417 = vadd.f32 0.0, %v3416
        %v3418 = vpop.f32.mrf.mxu0
        %3419 = vmatprep.mubr.f32.mxu0 %v3298
        %3420 = vmatmul.mubr.f32.gmra.mxu0 %v3238
        %v3421 = vpop.f32.mrf.mxu0
        %v3422 = vadd.f32 0.0, %v3421
        %v3423 = vpop.f32.mrf.mxu0
        %3424 = vmatprep.mubr.f32.mxu0 %v3301
        %3425 = vmatmul.mubr.f32.gmra.mxu0 %v3240
        %v3426 = vpop.f32.mrf.mxu0
        %v3427 = vadd.f32 0.0, %v3426
        %v3428 = vpop.f32.mrf.mxu0
        %3429 = vmatprep.mubr.f32.mxu0 %v3304
        %3430 = vmatmul.mubr.f32.gmra.mxu0 %v3242
        %v3431 = vpop.f32.mrf.mxu0
        %v3432 = vadd.f32 0.0, %v3431
        %v3433 = vpop.f32.mrf.mxu0
        %3434 = vmatprep.mubr.f32.mxu0 %v3307
        %3435 = vmatmul.mubr.f32.gmra.mxu0 %v3244
        %v3436 = vpop.f32.mrf.mxu0
        %v3437 = vadd.f32 0.0, %v3436
        %v3438 = vpop.f32.mrf.mxu0
        %3439 = vmatprep.mubr.f32.mxu0 %v3310
        %3440 = vmatmul.mubr.f32.gmra.mxu0 %v3246
        %v3441 = vpop.f32.mrf.mxu0
        %v3442 = vadd.f32 0.0, %v3441
        %v3443 = vpop.f32.mrf.mxu0
        %3444 = vmatprep.mubr.f32.mxu0 %v3313
        %3445 = vmatmul.mubr.f32.gmra.mxu0 %v3248
        %v3446 = vpop.f32.mrf.mxu0
        %v3447 = vadd.f32 0.0, %v3446
        %v3448 = vpop.f32.mrf.mxu0
        %3449 = vmatprep.mubr.f32.mxu0 %v3316
        %3450 = vmatmul.mubr.f32.gmra.mxu0 %v3250
        %v3451 = vpop.f32.mrf.mxu0
        %v3452 = vadd.f32 0.0, %v3451
        %v3453 = vpop.f32.mrf.mxu0
        %3454 = vmatprep.mubr.f32.mxu0 %v3319
        %3455 = vmatmul.mubr.f32.gmra.mxu0 %v3252
        %v3456 = vpop.f32.mrf.mxu0
        %v3457 = vadd.f32 0.0, %v3456
        %v3458 = vpop.f32.mrf.mxu0
        %3459 = vmatprep.mubr.f32.mxu0 %v3322
        %3460 = vmatmul.mubr.f32.gmra.mxu0 %v3254
        %v3461 = vpop.f32.mrf.mxu0
        %v3462 = vadd.f32 0.0, %v3461
        %v3463 = vpop.f32.mrf.mxu0
        %3464 = vmatprep.mubr.f32.mxu0 %v3325
        %3465 = vmatmul.mubr.f32.gmra.mxu0 %v3256
        %v3466 = vpop.f32.mrf.mxu0
        %v3467 = vadd.f32 0.0, %v3466
        %v3468 = vpop.f32.mrf.mxu0
        %3469 = vmatprep.mubr.f32.mxu0 %v3328
        %3470 = vmatmul.mubr.f32.gmra.mxu0 %v3258
        %v3471 = vpop.f32.mrf.mxu0
        %v3472 = vadd.f32 0.0, %v3471
        %v3473 = vpop.f32.mrf.mxu0
        %3474 = vdwg.mxu0
        %s3475 = scalar_lea.vmem %s3, 168
        %v3476 = vld [vmem:[%s3475] sm:$0xff]
        %v3477 = vld [vmem:[%s3475 + $0x8] sm:$0xff]
        %v3478 = vld [vmem:[%s3475 + $0x10] sm:$0xff]
        %v3479 = vld [vmem:[%s3475 + $0x18] sm:$0xff]
        %v3480 = vld [vmem:[%s3475 + $0x20] sm:$0xff]
        %v3481 = vld [vmem:[%s3475 + $0x28] sm:$0xff]
        %v3482 = vld [vmem:[%s3475 + $0x30] sm:$0xff]
        %v3483 = vld [vmem:[%s3475 + $0x38] sm:$0xff]
        %v3484 = vld [vmem:[%s3475 + $0x40] sm:$0xff]
        %v3485 = vld [vmem:[%s3475 + $0x48] sm:$0xff]
        %v3486 = vld [vmem:[%s3475 + $0x50] sm:$0xff]
        %v3487 = vld [vmem:[%s3475 + $0x58] sm:$0xff]
        %v3488 = vld [vmem:[%s3475 + $0x60] sm:$0xff]
        %v3489 = vld [vmem:[%s3475 + $0x68] sm:$0xff]
        %v3490 = vld [vmem:[%s3475 + $0x70] sm:$0xff]
        %v3491 = vld [vmem:[%s3475 + $0x78] sm:$0xff]
        %v3492 = vld [vmem:[%s3475 + $0x80] sm:$0xff]
        %v3493 = vld [vmem:[%s3475 + $0x88] sm:$0xff]
        %v3494 = vld [vmem:[%s3475 + $0x90] sm:$0xff]
        %v3495 = vld [vmem:[%s3475 + $0x98] sm:$0xff]
        %v3496 = vld [vmem:[%s3475 + $0xa0] sm:$0xff]
        %3497 = vmatprep.subr.mxu0 0.0
        %3498 = vmatpush1.msra.mxu0 %v3491
        %3499 = vmatprep.subr.mxu0 0.0
        %3500 = vmatpush1.msra.mxu0 %v3490
        %3501 = vmatprep.subr.mxu0 0.0
        %3502 = vmatpush1.msra.mxu0 %v3489
        %3503 = vmatprep.subr.mxu0 0.0
        %3504 = vmatpush1.msra.mxu0 %v3488
        %3505 = vmatprep.subr.mxu0 0.0
        %3506 = vmatpush1.msra.mxu0 %v3487
        %3507 = vmatprep.subr.mxu0 0.0
        %3508 = vmatpush1.msra.mxu0 %v3486
        %3509 = vmatprep.subr.mxu0 0.0
        %3510 = vmatpush1.msra.mxu0 %v3485
        %3511 = vmatprep.subr.mxu0 0.0
        %3512 = vmatpush1.msra.mxu0 %v3484
        %3513 = vmatprep.subr.mxu0 0.0
        %3514 = vmatpush1.msra.mxu0 %v3483
        %3515 = vmatprep.subr.mxu0 0.0
        %3516 = vmatpush1.msra.mxu0 %v3482
        %3517 = vmatprep.subr.mxu0 0.0
        %3518 = vmatpush1.msra.mxu0 %v3481
        %3519 = vmatprep.subr.mxu0 0.0
        %3520 = vmatpush1.msra.mxu0 %v3480
        %3521 = vmatprep.subr.mxu0 0.0
        %3522 = vmatpush1.msra.mxu0 %v3479
        %3523 = vmatprep.subr.mxu0 0.0
        %3524 = vmatpush1.msra.mxu0 %v3478
        %3525 = vmatprep.subr.mxu0 0.0
        %3526 = vmatpush1.msra.mxu0 %v3477
        %3527 = vmatprep.subr.mxu0 0.0
        %3528 = vmatpush1.msra.mxu0 %v3476
        %3529 = vmatprep.subr.mxu0 0.0
        %3530 = vmatpush2.msra.mxu0 0.0
        %3531 = vmatprep.subr.mxu0 0.0
        %3532 = vmatpush2.msra.mxu0 0.0
        %3533 = vmatprep.subr.mxu0 0.0
        %3534 = vmatpush2.msra.mxu0 0.0
        %3535 = vmatprep.subr.mxu0 0.0
        %3536 = vmatpush2.msra.mxu0 0.0
        %3537 = vmatprep.subr.mxu0 0.0
        %3538 = vmatpush2.msra.mxu0 0.0
        %3539 = vmatprep.subr.mxu0 0.0
        %3540 = vmatpush2.msra.mxu0 0.0
        %3541 = vmatprep.subr.mxu0 0.0
        %3542 = vmatpush2.msra.mxu0 0.0
        %3543 = vmatprep.subr.mxu0 0.0
        %3544 = vmatpush2.msra.mxu0 0.0
        %3545 = vmatprep.subr.mxu0 0.0
        %3546 = vmatpush2.msra.mxu0 0.0
        %3547 = vmatprep.subr.mxu0 0.0
        %3548 = vmatpush2.msra.mxu0 0.0
        %3549 = vmatprep.subr.mxu0 0.0
        %3550 = vmatpush2.msra.mxu0 0.0
        %3551 = vmatprep.subr.mxu0 0.0
        %3552 = vmatpush2.msra.mxu0 %v3496
        %3553 = vmatprep.subr.mxu0 0.0
        %3554 = vmatpush2.msra.mxu0 %v3495
        %3555 = vmatprep.subr.mxu0 0.0
        %3556 = vmatpush2.msra.mxu0 %v3494
        %3557 = vmatprep.subr.mxu0 0.0
        %3558 = vmatpush2.msra.mxu0 %v3493
        %3559 = vmatprep.subr.mxu0 0.0
        %3560 = vmatpush2.msra.mxu0 %v3492
        %3561 = vmatprep.mubr.f32.mxu0 %v3283
        %3562 = vmatmul.mubr.f32.gmra.mxu0 %v3228
        %v3563 = vpop.f32.mrf.mxu0
        %v3564 = vadd.f32 0.0, %v3563
        %v3565 = vpop.f32.mrf.mxu0
        %3566 = vmatprep.mubr.f32.mxu0 %v3286
        %3567 = vmatmul.mubr.f32.gmra.mxu0 %v3230
        %v3568 = vpop.f32.mrf.mxu0
        %v3569 = vadd.f32 0.0, %v3568
        %v3570 = vpop.f32.mrf.mxu0
        %3571 = vmatprep.mubr.f32.mxu0 %v3289
        %3572 = vmatmul.mubr.f32.gmra.mxu0 %v3232
        %v3573 = vpop.f32.mrf.mxu0
        %v3574 = vadd.f32 0.0, %v3573
        %v3575 = vpop.f32.mrf.mxu0
        %3576 = vmatprep.mubr.f32.mxu0 %v3292
        %3577 = vmatmul.mubr.f32.gmra.mxu0 %v3234
        %v3578 = vpop.f32.mrf.mxu0
        %v3579 = vadd.f32 0.0, %v3578
        %v3580 = vpop.f32.mrf.mxu0
        %3581 = vmatprep.mubr.f32.mxu0 %v3295
        %3582 = vmatmul.mubr.f32.gmra.mxu0 %v3236
        %v3583 = vpop.f32.mrf.mxu0
        %v3584 = vadd.f32 0.0, %v3583
        %v3585 = vpop.f32.mrf.mxu0
        %3586 = vmatprep.mubr.f32.mxu0 %v3298
        %3587 = vmatmul.mubr.f32.gmra.mxu0 %v3238
        %v3588 = vpop.f32.mrf.mxu0
        %v3589 = vadd.f32 0.0, %v3588
        %v3590 = vpop.f32.mrf.mxu0
        %3591 = vmatprep.mubr.f32.mxu0 %v3301
        %3592 = vmatmul.mubr.f32.gmra.mxu0 %v3240
        %v3593 = vpop.f32.mrf.mxu0
        %v3594 = vadd.f32 0.0, %v3593
        %v3595 = vpop.f32.mrf.mxu0
        %3596 = vmatprep.mubr.f32.mxu0 %v3304
        %3597 = vmatmul.mubr.f32.gmra.mxu0 %v3242
        %v3598 = vpop.f32.mrf.mxu0
        %v3599 = vadd.f32 0.0, %v3598
        %v3600 = vpop.f32.mrf.mxu0
        %3601 = vmatprep.mubr.f32.mxu0 %v3307
        %3602 = vmatmul.mubr.f32.gmra.mxu0 %v3244
        %v3603 = vpop.f32.mrf.mxu0
        %v3604 = vadd.f32 0.0, %v3603
        %v3605 = vpop.f32.mrf.mxu0
        %3606 = vmatprep.mubr.f32.mxu0 %v3310
        %3607 = vmatmul.mubr.f32.gmra.mxu0 %v3246
        %v3608 = vpop.f32.mrf.mxu0
        %v3609 = vadd.f32 0.0, %v3608
        %v3610 = vpop.f32.mrf.mxu0
        %3611 = vmatprep.mubr.f32.mxu0 %v3313
        %3612 = vmatmul.mubr.f32.gmra.mxu0 %v3248
        %v3613 = vpop.f32.mrf.mxu0
        %v3614 = vadd.f32 0.0, %v3613
        %v3615 = vpop.f32.mrf.mxu0
        %3616 = vmatprep.mubr.f32.mxu0 %v3316
        %3617 = vmatmul.mubr.f32.gmra.mxu0 %v3250
        %v3618 = vpop.f32.mrf.mxu0
        %v3619 = vadd.f32 0.0, %v3618
        %v3620 = vpop.f32.mrf.mxu0
        %3621 = vmatprep.mubr.f32.mxu0 %v3319
        %3622 = vmatmul.mubr.f32.gmra.mxu0 %v3252
        %v3623 = vpop.f32.mrf.mxu0
        %v3624 = vadd.f32 0.0, %v3623
        %v3625 = vpop.f32.mrf.mxu0
        %3626 = vmatprep.mubr.f32.mxu0 %v3322
        %3627 = vmatmul.mubr.f32.gmra.mxu0 %v3254
        %v3628 = vpop.f32.mrf.mxu0
        %v3629 = vadd.f32 0.0, %v3628
        %v3630 = vpop.f32.mrf.mxu0
        %3631 = vmatprep.mubr.f32.mxu0 %v3325
        %3632 = vmatmul.mubr.f32.gmra.mxu0 %v3256
        %v3633 = vpop.f32.mrf.mxu0
        %v3634 = vadd.f32 0.0, %v3633
        %v3635 = vpop.f32.mrf.mxu0
        %3636 = vmatprep.mubr.f32.mxu0 %v3328
        %3637 = vmatmul.mubr.f32.gmra.mxu0 %v3258
        %v3638 = vpop.f32.mrf.mxu0
        %v3639 = vadd.f32 0.0, %v3638
        %v3640 = vpop.f32.mrf.mxu0
        %3641 = vdwg.mxu0
        %v3642 = vmax.f32 %v3397, %v3564
        %v3643 = vmax.f32 %v3402, %v3569
        %v3644 = vmax.f32 %v3407, %v3574
        %v3645 = vmax.f32 %v3412, %v3579
        %v3646 = vmax.f32 %v3417, %v3584
        %v3647 = vmax.f32 %v3422, %v3589
        %v3648 = vmax.f32 %v3427, %v3594
        %v3649 = vmax.f32 %v3432, %v3599
        %v3650 = vmax.f32 %v3437, %v3604
        %v3651 = vmax.f32 %v3442, %v3609
        %v3652 = vmax.f32 %v3447, %v3614
        %v3653 = vmax.f32 %v3452, %v3619
        %v3654 = vmax.f32 %v3457, %v3624
        %v3655 = vmax.f32 %v3462, %v3629
        %v3656 = vmax.f32 %v3467, %v3634
        %v3657 = vmax.f32 %v3472, %v3639
        %v3658 = vld [vmem:[%s4] sm:$0x1]
        %v3660 = vlaneseq
        %v3661 = vshrl.u32 %v3660, 7
        %v3662 = vsub.s32 0, %v3661
        %v3663 = vrot.slane %v3658, %v3662
        %v3665 = vadd.f32 %v3642, %v3663
        %v3666 = vadd.f32 %v3643, %v3663
        %v3667 = vadd.f32 %v3644, %v3663
        %v3668 = vadd.f32 %v3645, %v3663
        %v3669 = vadd.f32 %v3646, %v3663
        %v3670 = vadd.f32 %v3647, %v3663
        %v3671 = vadd.f32 %v3648, %v3663
        %v3672 = vadd.f32 %v3649, %v3663
        %v3673 = vadd.f32 %v3650, %v3663
        %v3674 = vadd.f32 %v3651, %v3663
        %v3675 = vadd.f32 %v3652, %v3663
        %v3676 = vadd.f32 %v3653, %v3663
        %v3677 = vadd.f32 %v3654, %v3663
        %v3678 = vadd.f32 %v3655, %v3663
        %v3679 = vadd.f32 %v3656, %v3663
        %v3680 = vadd.f32 %v3657, %v3663
        %v3681 = vmax.f32 %v3665, 0.0
        %v3682 = vmax.f32 %v3666, 0.0
        %v3683 = vmax.f32 %v3667, 0.0
        %v3684 = vmax.f32 %v3668, 0.0
        %v3685 = vmax.f32 %v3669, 0.0
        %v3686 = vmax.f32 %v3670, 0.0
        %v3687 = vmax.f32 %v3671, 0.0
        %v3688 = vmax.f32 %v3672, 0.0
        %v3689 = vmax.f32 %v3673, 0.0
        %v3690 = vmax.f32 %v3674, 0.0
        %v3691 = vmax.f32 %v3675, 0.0
        %v3692 = vmax.f32 %v3676, 0.0
        %v3693 = vmax.f32 %v3677, 0.0
        %v3694 = vmax.f32 %v3678, 0.0
        %v3695 = vmax.f32 %v3679, 0.0
        %v3696 = vmax.f32 %v3680, 0.0
        %vm3697 = vcmask 687104
        %3698 = vst.msk [vmem:[#allocation2] sm:$0xff] %vm3697, %v3681
        %3699 = vst.msk [vmem:[#allocation2 + $0x8] sm:$0xff] %vm3697, %v3682
        %3700 = vst.msk [vmem:[#allocation2 + $0x10] sm:$0xff] %vm3697, %v3683
        %3701 = vst.msk [vmem:[#allocation2 + $0x18] sm:$0xff] %vm3697, %v3684
        %3702 = vst.msk [vmem:[#allocation2 + $0x20] sm:$0xff] %vm3697, %v3685
        %3703 = vst.msk [vmem:[#allocation2 + $0x28] sm:$0xff] %vm3697, %v3686
        %3704 = vst.msk [vmem:[#allocation2 + $0x30] sm:$0xff] %vm3697, %v3687
        %3705 = vst.msk [vmem:[#allocation2 + $0x38] sm:$0xff] %vm3697, %v3688
        %3706 = vst.msk [vmem:[#allocation2 + $0x40] sm:$0xff] %vm3697, %v3689
        %3707 = vst.msk [vmem:[#allocation2 + $0x48] sm:$0xff] %vm3697, %v3690
        %3708 = vst.msk [vmem:[#allocation2 + $0x50] sm:$0xff] %vm3697, %v3691
        %3709 = vst.msk [vmem:[#allocation2 + $0x58] sm:$0xff] %vm3697, %v3692
        %3710 = vst.msk [vmem:[#allocation2 + $0x60] sm:$0xff] %vm3697, %v3693
        %3711 = vst.msk [vmem:[#allocation2 + $0x68] sm:$0xff] %vm3697, %v3694
        %3712 = vst.msk [vmem:[#allocation2 + $0x70] sm:$0xff] %vm3697, %v3695
        %3713 = vst.msk [vmem:[#allocation2 + $0x78] sm:$0xff] %vm3697, %v3696
        %v3714 = vld [vmem:[#allocation2] sm:$0xff]
        %v3715 = vld [vmem:[#allocation2 + $0x8] sm:$0xff]
        %v3716 = vld [vmem:[#allocation2 + $0x10] sm:$0xff]
        %v3717 = vld [vmem:[#allocation2 + $0x18] sm:$0xff]
        %v3718 = vld [vmem:[#allocation2 + $0x20] sm:$0xff]
        %v3719 = vld [vmem:[#allocation2 + $0x28] sm:$0xff]
        %v3720 = vld [vmem:[#allocation2 + $0x30] sm:$0xff]
        %v3721 = vld [vmem:[#allocation2 + $0x38] sm:$0xff]
        %v3722 = vld [vmem:[#allocation2 + $0x40] sm:$0xff]
        %v3723 = vld [vmem:[#allocation2 + $0x48] sm:$0xff]
        %v3724 = vld [vmem:[#allocation2 + $0x50] sm:$0xff]
        %v3725 = vld [vmem:[#allocation2 + $0x58] sm:$0xff]
        %v3726 = vld [vmem:[#allocation2 + $0x60] sm:$0xff]
        %v3727 = vld [vmem:[#allocation2 + $0x68] sm:$0xff]
        %v3728 = vld [vmem:[#allocation2 + $0x70] sm:$0xff]
        %v3729 = vld [vmem:[#allocation2 + $0x78] sm:$0x3]
        %v3730 = vld [vmem:[%s5] sm:$0xff]
        %v3731 = vld [vmem:[%s5 + $0x8] sm:$0xff]
        %v3732 = vld [vmem:[%s5 + $0x10] sm:$0xff]
        %v3733 = vld [vmem:[%s5 + $0x18] sm:$0xff]
        %v3734 = vld [vmem:[%s5 + $0x20] sm:$0xff]
        %v3735 = vld [vmem:[%s5 + $0x28] sm:$0xff]
        %v3736 = vld [vmem:[%s5 + $0x30] sm:$0xff]
        %v3737 = vld [vmem:[%s5 + $0x38] sm:$0xff]
        %v3738 = vld [vmem:[%s5 + $0x40] sm:$0xff]
        %v3739 = vld [vmem:[%s5 + $0x48] sm:$0xff]
        %v3740 = vld [vmem:[%s5 + $0x50] sm:$0xff]
        %v3741 = vld [vmem:[%s5 + $0x58] sm:$0xff]
        %v3742 = vld [vmem:[%s5 + $0x60] sm:$0xff]
        %v3743 = vld [vmem:[%s5 + $0x68] sm:$0xff]
        %v3744 = vld [vmem:[%s5 + $0x70] sm:$0xff]
        %v3745 = vld [vmem:[%s5 + $0x78] sm:$0xff]
        %v3746 = vld [vmem:[%s5 + $0x80] sm:$0xff]
        %v3747 = vld [vmem:[%s5 + $0x88] sm:$0xff]
        %v3748 = vld [vmem:[%s5 + $0x90] sm:$0xff]
        %v3749 = vld [vmem:[%s5 + $0x98] sm:$0xff]
        %v3750 = vld [vmem:[%s5 + $0xa0] sm:$0xf]
        %v3751 = vld [vmem:[%s5 + $0xa8] sm:$0xf]
        %v3752 = vld [vmem:[#allocation2 + $0x1] sm:$0xff]
        %v3753 = vld [vmem:[#allocation2 + $0x9] sm:$0xff]
        %v3754 = vld [vmem:[#allocation2 + $0x11] sm:$0xff]
        %v3755 = vld [vmem:[#allocation2 + $0x19] sm:$0xff]
        %v3756 = vld [vmem:[#allocation2 + $0x21] sm:$0xff]
        %v3757 = vld [vmem:[#allocation2 + $0x29] sm:$0xff]
        %v3758 = vld [vmem:[#allocation2 + $0x31] sm:$0xff]
        %v3759 = vld [vmem:[#allocation2 + $0x39] sm:$0xff]
        %v3760 = vld [vmem:[#allocation2 + $0x41] sm:$0xff]
        %v3761 = vld [vmem:[#allocation2 + $0x49] sm:$0xff]
        %v3762 = vld [vmem:[#allocation2 + $0x51] sm:$0xff]
        %v3763 = vld [vmem:[#allocation2 + $0x59] sm:$0xff]
        %v3764 = vld [vmem:[#allocation2 + $0x61] sm:$0xff]
        %v3765 = vld [vmem:[#allocation2 + $0x69] sm:$0xff]
        %v3766 = vld [vmem:[#allocation2 + $0x71] sm:$0xff]
        %v3767 = vld [vmem:[#allocation2 + $0x79] sm:$0x3]
        %s3768 = scalar_lea.vmem %s5, 176
        %v3769 = vld [vmem:[%s3768] sm:$0xff]
        %v3770 = vld [vmem:[%s3768 + $0x8] sm:$0xff]
        %v3771 = vld [vmem:[%s3768 + $0x10] sm:$0xff]
        %v3772 = vld [vmem:[%s3768 + $0x18] sm:$0xff]
        %v3773 = vld [vmem:[%s3768 + $0x20] sm:$0xff]
        %v3774 = vld [vmem:[%s3768 + $0x28] sm:$0xff]
        %v3775 = vld [vmem:[%s3768 + $0x30] sm:$0xff]
        %v3776 = vld [vmem:[%s3768 + $0x38] sm:$0xff]
        %v3777 = vld [vmem:[%s3768 + $0x40] sm:$0xff]
        %v3778 = vld [vmem:[%s3768 + $0x48] sm:$0xff]
        %v3779 = vld [vmem:[%s3768 + $0x50] sm:$0xff]
        %v3780 = vld [vmem:[%s3768 + $0x58] sm:$0xff]
        %v3781 = vld [vmem:[%s3768 + $0x60] sm:$0xff]
        %v3782 = vld [vmem:[%s3768 + $0x68] sm:$0xff]
        %v3783 = vld [vmem:[%s3768 + $0x70] sm:$0xff]
        %v3784 = vld [vmem:[%s3768 + $0x78] sm:$0xff]
        %v3785 = vld [vmem:[%s3768 + $0x80] sm:$0xff]
        %v3786 = vld [vmem:[%s3768 + $0x88] sm:$0xff]
        %v3787 = vld [vmem:[%s3768 + $0x90] sm:$0xff]
        %v3788 = vld [vmem:[%s3768 + $0x98] sm:$0xff]
        %v3789 = vld [vmem:[%s3768 + $0xa0] sm:$0xf]
        %v3790 = vld [vmem:[%s3768 + $0xa8] sm:$0xf]
        %v3792 = vsel %vm3697, %v3752, 0
        %v3795 = vsel %vm3697, %v3753, 0
        %v3798 = vsel %vm3697, %v3754, 0
        %v3801 = vsel %vm3697, %v3755, 0
        %v3804 = vsel %vm3697, %v3756, 0
        %v3807 = vsel %vm3697, %v3757, 0
        %v3810 = vsel %vm3697, %v3758, 0
        %v3813 = vsel %vm3697, %v3759, 0
        %v3816 = vsel %vm3697, %v3760, 0
        %v3819 = vsel %vm3697, %v3761, 0
        %v3822 = vsel %vm3697, %v3762, 0
        %v3825 = vsel %vm3697, %v3763, 0
        %v3828 = vsel %vm3697, %v3764, 0
        %v3831 = vsel %vm3697, %v3765, 0
        %v3834 = vsel %vm3697, %v3766, 0
        %v3837 = vsel %vm3697, %v3767, 0
        %v3840 = vsel %vm2818, %v3789, 0
        %v3843 = vsel %vm2818, %v3790, 0
        %3845 = vmatprep.subr.mxu0 0.0
        %3846 = vmatpush1.msra.mxu0 0.0
        %3847 = vmatprep.subr.mxu0 0.0
        %3848 = vmatpush1.msra.mxu0 0.0
        %3849 = vmatprep.subr.mxu0 0.0
        %3850 = vmatpush1.msra.mxu0 0.0
        %3851 = vmatprep.subr.mxu0 0.0
        %3852 = vmatpush1.msra.mxu0 0.0
        %3853 = vmatprep.subr.mxu0 0.0
        %3854 = vmatpush1.msra.mxu0 0.0
        %3855 = vmatprep.subr.mxu0 %v3843
        %3856 = vmatpush1.msra.mxu0 %v3840
        %3857 = vmatprep.subr.mxu0 %v3788
        %3858 = vmatpush1.msra.mxu0 %v3787
        %3859 = vmatprep.subr.mxu0 %v3786
        %3860 = vmatpush1.msra.mxu0 %v3785
        %3861 = vmatprep.subr.mxu0 %v3784
        %3862 = vmatpush1.msra.mxu0 %v3783
        %3863 = vmatprep.subr.mxu0 %v3782
        %3864 = vmatpush1.msra.mxu0 %v3781
        %3865 = vmatprep.subr.mxu0 %v3780
        %3866 = vmatpush1.msra.mxu0 %v3779
        %3867 = vmatprep.subr.mxu0 %v3778
        %3868 = vmatpush1.msra.mxu0 %v3777
        %3869 = vmatprep.subr.mxu0 %v3776
        %3870 = vmatpush1.msra.mxu0 %v3775
        %3871 = vmatprep.subr.mxu0 %v3774
        %3872 = vmatpush1.msra.mxu0 %v3773
        %3873 = vmatprep.subr.mxu0 %v3772
        %3874 = vmatpush1.msra.mxu0 %v3771
        %3875 = vmatprep.subr.mxu0 %v3770
        %3876 = vmatpush1.msra.mxu0 %v3769
        %3877 = vmatprep.subr.mxu0 0.0
        %3878 = vmatpush2.msra.mxu0 0.0
        %3879 = vmatprep.subr.mxu0 0.0
        %3880 = vmatpush2.msra.mxu0 0.0
        %3881 = vmatprep.subr.mxu0 0.0
        %3882 = vmatpush2.msra.mxu0 0.0
        %3883 = vmatprep.subr.mxu0 0.0
        %3884 = vmatpush2.msra.mxu0 0.0
        %3885 = vmatprep.subr.mxu0 0.0
        %3886 = vmatpush2.msra.mxu0 0.0
        %3887 = vmatprep.subr.mxu0 0.0
        %3888 = vmatpush2.msra.mxu0 0.0
        %3889 = vmatprep.subr.mxu0 0.0
        %3890 = vmatpush2.msra.mxu0 0.0
        %3891 = vmatprep.subr.mxu0 0.0
        %3892 = vmatpush2.msra.mxu0 0.0
        %3893 = vmatprep.subr.mxu0 0.0
        %3894 = vmatpush2.msra.mxu0 0.0
        %3895 = vmatprep.subr.mxu0 0.0
        %3896 = vmatpush2.msra.mxu0 0.0
        %3897 = vmatprep.subr.mxu0 0.0
        %3898 = vmatpush2.msra.mxu0 0.0
        %3899 = vmatprep.subr.mxu0 0.0
        %3900 = vmatpush2.msra.mxu0 0.0
        %3901 = vmatprep.subr.mxu0 0.0
        %3902 = vmatpush2.msra.mxu0 0.0
        %3903 = vmatprep.subr.mxu0 0.0
        %3904 = vmatpush2.msra.mxu0 0.0
        %3905 = vmatprep.subr.mxu0 0.0
        %3906 = vmatpush2.msra.mxu0 0.0
        %3907 = vmatprep.subr.mxu0 0.0
        %3908 = vmatpush2.msra.mxu0 0.0
        %3909 = vmatprep.mubr.f32.mxu0 0.0
        %3910 = vmatmul.mubr.f32.gmra.mxu0 %v3792
        %v3911 = vpop.f32.mrf.mxu0
        %v3912 = vadd.f32 0.0, %v3911
        %v3913 = vpop.f32.mrf.mxu0
        %v3914 = vadd.f32 0.0, %v3913
        %3915 = vmatprep.mubr.f32.mxu0 0.0
        %3916 = vmatmul.mubr.f32.gmra.mxu0 %v3795
        %v3917 = vpop.f32.mrf.mxu0
        %v3918 = vadd.f32 0.0, %v3917
        %v3919 = vpop.f32.mrf.mxu0
        %v3920 = vadd.f32 0.0, %v3919
        %3921 = vmatprep.mubr.f32.mxu0 0.0
        %3922 = vmatmul.mubr.f32.gmra.mxu0 %v3798
        %v3923 = vpop.f32.mrf.mxu0
        %v3924 = vadd.f32 0.0, %v3923
        %v3925 = vpop.f32.mrf.mxu0
        %v3926 = vadd.f32 0.0, %v3925
        %3927 = vmatprep.mubr.f32.mxu0 0.0
        %3928 = vmatmul.mubr.f32.gmra.mxu0 %v3801
        %v3929 = vpop.f32.mrf.mxu0
        %v3930 = vadd.f32 0.0, %v3929
        %v3931 = vpop.f32.mrf.mxu0
        %v3932 = vadd.f32 0.0, %v3931
        %3933 = vmatprep.mubr.f32.mxu0 0.0
        %3934 = vmatmul.mubr.f32.gmra.mxu0 %v3804
        %v3935 = vpop.f32.mrf.mxu0
        %v3936 = vadd.f32 0.0, %v3935
        %v3937 = vpop.f32.mrf.mxu0
        %v3938 = vadd.f32 0.0, %v3937
        %3939 = vmatprep.mubr.f32.mxu0 0.0
        %3940 = vmatmul.mubr.f32.gmra.mxu0 %v3807
        %v3941 = vpop.f32.mrf.mxu0
        %v3942 = vadd.f32 0.0, %v3941
        %v3943 = vpop.f32.mrf.mxu0
        %v3944 = vadd.f32 0.0, %v3943
        %3945 = vmatprep.mubr.f32.mxu0 0.0
        %3946 = vmatmul.mubr.f32.gmra.mxu0 %v3810
        %v3947 = vpop.f32.mrf.mxu0
        %v3948 = vadd.f32 0.0, %v3947
        %v3949 = vpop.f32.mrf.mxu0
        %v3950 = vadd.f32 0.0, %v3949
        %3951 = vmatprep.mubr.f32.mxu0 0.0
        %3952 = vmatmul.mubr.f32.gmra.mxu0 %v3813
        %v3953 = vpop.f32.mrf.mxu0
        %v3954 = vadd.f32 0.0, %v3953
        %v3955 = vpop.f32.mrf.mxu0
        %v3956 = vadd.f32 0.0, %v3955
        %3957 = vmatprep.mubr.f32.mxu0 0.0
        %3958 = vmatmul.mubr.f32.gmra.mxu0 %v3816
        %v3959 = vpop.f32.mrf.mxu0
        %v3960 = vadd.f32 0.0, %v3959
        %v3961 = vpop.f32.mrf.mxu0
        %v3962 = vadd.f32 0.0, %v3961
        %3963 = vmatprep.mubr.f32.mxu0 0.0
        %3964 = vmatmul.mubr.f32.gmra.mxu0 %v3819
        %v3965 = vpop.f32.mrf.mxu0
        %v3966 = vadd.f32 0.0, %v3965
        %v3967 = vpop.f32.mrf.mxu0
        %v3968 = vadd.f32 0.0, %v3967
        %3969 = vmatprep.mubr.f32.mxu0 0.0
        %3970 = vmatmul.mubr.f32.gmra.mxu0 %v3822
        %v3971 = vpop.f32.mrf.mxu0
        %v3972 = vadd.f32 0.0, %v3971
        %v3973 = vpop.f32.mrf.mxu0
        %v3974 = vadd.f32 0.0, %v3973
        %3975 = vmatprep.mubr.f32.mxu0 0.0
        %3976 = vmatmul.mubr.f32.gmra.mxu0 %v3825
        %v3977 = vpop.f32.mrf.mxu0
        %v3978 = vadd.f32 0.0, %v3977
        %v3979 = vpop.f32.mrf.mxu0
        %v3980 = vadd.f32 0.0, %v3979
        %3981 = vmatprep.mubr.f32.mxu0 0.0
        %3982 = vmatmul.mubr.f32.gmra.mxu0 %v3828
        %v3983 = vpop.f32.mrf.mxu0
        %v3984 = vadd.f32 0.0, %v3983
        %v3985 = vpop.f32.mrf.mxu0
        %v3986 = vadd.f32 0.0, %v3985
        %3987 = vmatprep.mubr.f32.mxu0 0.0
        %3988 = vmatmul.mubr.f32.gmra.mxu0 %v3831
        %v3989 = vpop.f32.mrf.mxu0
        %v3990 = vadd.f32 0.0, %v3989
        %v3991 = vpop.f32.mrf.mxu0
        %v3992 = vadd.f32 0.0, %v3991
        %3993 = vmatprep.mubr.f32.mxu0 0.0
        %3994 = vmatmul.mubr.f32.gmra.mxu0 %v3834
        %v3995 = vpop.f32.mrf.mxu0
        %v3996 = vadd.f32 0.0, %v3995
        %v3997 = vpop.f32.mrf.mxu0
        %v3998 = vadd.f32 0.0, %v3997
        %3999 = vmatprep.mubr.f32.mxu0 0.0
        %4000 = vmatmul.mubr.f32.gmra.mxu0 %v3837
        %v4001 = vpop.f32.mrf.mxu0
        %v4002 = vadd.f32 0.0, %v4001
        %v4003 = vpop.f32.mrf.mxu0
        %v4004 = vadd.f32 0.0, %v4003
        %4005 = vdwg.mxu0
        %v4007 = vsel %vm3697, %v3714, 0
        %v4010 = vsel %vm3697, %v3715, 0
        %v4013 = vsel %vm3697, %v3716, 0
        %v4016 = vsel %vm3697, %v3717, 0
        %v4019 = vsel %vm3697, %v3718, 0
        %v4022 = vsel %vm3697, %v3719, 0
        %v4025 = vsel %vm3697, %v3720, 0
        %v4028 = vsel %vm3697, %v3721, 0
        %v4031 = vsel %vm3697, %v3722, 0
        %v4034 = vsel %vm3697, %v3723, 0
        %v4037 = vsel %vm3697, %v3724, 0
        %v4040 = vsel %vm3697, %v3725, 0
        %v4043 = vsel %vm3697, %v3726, 0
        %v4046 = vsel %vm3697, %v3727, 0
        %v4049 = vsel %vm3697, %v3728, 0
        %v4052 = vsel %vm3697, %v3729, 0
        %v4055 = vsel %vm2818, %v3750, 0
        %v4058 = vsel %vm2818, %v3751, 0
        %4060 = vmatprep.subr.mxu0 0.0
        %4061 = vmatpush1.msra.mxu0 0.0
        %4062 = vmatprep.subr.mxu0 0.0
        %4063 = vmatpush1.msra.mxu0 0.0
        %4064 = vmatprep.subr.mxu0 0.0
        %4065 = vmatpush1.msra.mxu0 0.0
        %4066 = vmatprep.subr.mxu0 0.0
        %4067 = vmatpush1.msra.mxu0 0.0
        %4068 = vmatprep.subr.mxu0 0.0
        %4069 = vmatpush1.msra.mxu0 0.0
        %4070 = vmatprep.subr.mxu0 %v4058
        %4071 = vmatpush1.msra.mxu0 %v4055
        %4072 = vmatprep.subr.mxu0 %v3749
        %4073 = vmatpush1.msra.mxu0 %v3748
        %4074 = vmatprep.subr.mxu0 %v3747
        %4075 = vmatpush1.msra.mxu0 %v3746
        %4076 = vmatprep.subr.mxu0 %v3745
        %4077 = vmatpush1.msra.mxu0 %v3744
        %4078 = vmatprep.subr.mxu0 %v3743
        %4079 = vmatpush1.msra.mxu0 %v3742
        %4080 = vmatprep.subr.mxu0 %v3741
        %4081 = vmatpush1.msra.mxu0 %v3740
        %4082 = vmatprep.subr.mxu0 %v3739
        %4083 = vmatpush1.msra.mxu0 %v3738
        %4084 = vmatprep.subr.mxu0 %v3737
        %4085 = vmatpush1.msra.mxu0 %v3736
        %4086 = vmatprep.subr.mxu0 %v3735
        %4087 = vmatpush1.msra.mxu0 %v3734
        %4088 = vmatprep.subr.mxu0 %v3733
        %4089 = vmatpush1.msra.mxu0 %v3732
        %4090 = vmatprep.subr.mxu0 %v3731
        %4091 = vmatpush1.msra.mxu0 %v3730
        %4092 = vmatprep.subr.mxu0 0.0
        %4093 = vmatpush2.msra.mxu0 0.0
        %4094 = vmatprep.subr.mxu0 0.0
        %4095 = vmatpush2.msra.mxu0 0.0
        %4096 = vmatprep.subr.mxu0 0.0
        %4097 = vmatpush2.msra.mxu0 0.0
        %4098 = vmatprep.subr.mxu0 0.0
        %4099 = vmatpush2.msra.mxu0 0.0
        %4100 = vmatprep.subr.mxu0 0.0
        %4101 = vmatpush2.msra.mxu0 0.0
        %4102 = vmatprep.subr.mxu0 0.0
        %4103 = vmatpush2.msra.mxu0 0.0
        %4104 = vmatprep.subr.mxu0 0.0
        %4105 = vmatpush2.msra.mxu0 0.0
        %4106 = vmatprep.subr.mxu0 0.0
        %4107 = vmatpush2.msra.mxu0 0.0
        %4108 = vmatprep.subr.mxu0 0.0
        %4109 = vmatpush2.msra.mxu0 0.0
        %4110 = vmatprep.subr.mxu0 0.0
        %4111 = vmatpush2.msra.mxu0 0.0
        %4112 = vmatprep.subr.mxu0 0.0
        %4113 = vmatpush2.msra.mxu0 0.0
        %4114 = vmatprep.subr.mxu0 0.0
        %4115 = vmatpush2.msra.mxu0 0.0
        %4116 = vmatprep.subr.mxu0 0.0
        %4117 = vmatpush2.msra.mxu0 0.0
        %4118 = vmatprep.subr.mxu0 0.0
        %4119 = vmatpush2.msra.mxu0 0.0
        %4120 = vmatprep.subr.mxu0 0.0
        %4121 = vmatpush2.msra.mxu0 0.0
        %4122 = vmatprep.subr.mxu0 0.0
        %4123 = vmatpush2.msra.mxu0 0.0
        %4124 = vmatprep.mubr.f32.mxu0 0.0
        %4125 = vmatmul.mubr.f32.gmra.mxu0 %v4007
        %v4126 = vpop.f32.mrf.mxu0
        %v4127 = vadd.f32 %v3912, %v4126
        %v4128 = vpop.f32.mrf.mxu0
        %v4129 = vadd.f32 %v3914, %v4128
        %4130 = vmatprep.mubr.f32.mxu0 0.0
        %4131 = vmatmul.mubr.f32.gmra.mxu0 %v4010
        %v4132 = vpop.f32.mrf.mxu0
        %v4133 = vadd.f32 %v3918, %v4132
        %v4134 = vpop.f32.mrf.mxu0
        %v4135 = vadd.f32 %v3920, %v4134
        %4136 = vmatprep.mubr.f32.mxu0 0.0
        %4137 = vmatmul.mubr.f32.gmra.mxu0 %v4013
        %v4138 = vpop.f32.mrf.mxu0
        %v4139 = vadd.f32 %v3924, %v4138
        %v4140 = vpop.f32.mrf.mxu0
        %v4141 = vadd.f32 %v3926, %v4140
        %4142 = vmatprep.mubr.f32.mxu0 0.0
        %4143 = vmatmul.mubr.f32.gmra.mxu0 %v4016
        %v4144 = vpop.f32.mrf.mxu0
        %v4145 = vadd.f32 %v3930, %v4144
        %v4146 = vpop.f32.mrf.mxu0
        %v4147 = vadd.f32 %v3932, %v4146
        %4148 = vmatprep.mubr.f32.mxu0 0.0
        %4149 = vmatmul.mubr.f32.gmra.mxu0 %v4019
        %v4150 = vpop.f32.mrf.mxu0
        %v4151 = vadd.f32 %v3936, %v4150
        %v4152 = vpop.f32.mrf.mxu0
        %v4153 = vadd.f32 %v3938, %v4152
        %4154 = vmatprep.mubr.f32.mxu0 0.0
        %4155 = vmatmul.mubr.f32.gmra.mxu0 %v4022
        %v4156 = vpop.f32.mrf.mxu0
        %v4157 = vadd.f32 %v3942, %v4156
        %v4158 = vpop.f32.mrf.mxu0
        %v4159 = vadd.f32 %v3944, %v4158
        %4160 = vmatprep.mubr.f32.mxu0 0.0
        %4161 = vmatmul.mubr.f32.gmra.mxu0 %v4025
        %v4162 = vpop.f32.mrf.mxu0
        %v4163 = vadd.f32 %v3948, %v4162
        %v4164 = vpop.f32.mrf.mxu0
        %v4165 = vadd.f32 %v3950, %v4164
        %4166 = vmatprep.mubr.f32.mxu0 0.0
        %4167 = vmatmul.mubr.f32.gmra.mxu0 %v4028
        %v4168 = vpop.f32.mrf.mxu0
        %v4169 = vadd.f32 %v3954, %v4168
        %v4170 = vpop.f32.mrf.mxu0
        %v4171 = vadd.f32 %v3956, %v4170
        %4172 = vmatprep.mubr.f32.mxu0 0.0
        %4173 = vmatmul.mubr.f32.gmra.mxu0 %v4031
        %v4174 = vpop.f32.mrf.mxu0
        %v4175 = vadd.f32 %v3960, %v4174
        %v4176 = vpop.f32.mrf.mxu0
        %v4177 = vadd.f32 %v3962, %v4176
        %4178 = vmatprep.mubr.f32.mxu0 0.0
        %4179 = vmatmul.mubr.f32.gmra.mxu0 %v4034
        %v4180 = vpop.f32.mrf.mxu0
        %v4181 = vadd.f32 %v3966, %v4180
        %v4182 = vpop.f32.mrf.mxu0
        %v4183 = vadd.f32 %v3968, %v4182
        %4184 = vmatprep.mubr.f32.mxu0 0.0
        %4185 = vmatmul.mubr.f32.gmra.mxu0 %v4037
        %v4186 = vpop.f32.mrf.mxu0
        %v4187 = vadd.f32 %v3972, %v4186
        %v4188 = vpop.f32.mrf.mxu0
        %v4189 = vadd.f32 %v3974, %v4188
        %4190 = vmatprep.mubr.f32.mxu0 0.0
        %4191 = vmatmul.mubr.f32.gmra.mxu0 %v4040
        %v4192 = vpop.f32.mrf.mxu0
        %v4193 = vadd.f32 %v3978, %v4192
        %v4194 = vpop.f32.mrf.mxu0
        %v4195 = vadd.f32 %v3980, %v4194
        %4196 = vmatprep.mubr.f32.mxu0 0.0
        %4197 = vmatmul.mubr.f32.gmra.mxu0 %v4043
        %v4198 = vpop.f32.mrf.mxu0
        %v4199 = vadd.f32 %v3984, %v4198
        %v4200 = vpop.f32.mrf.mxu0
        %v4201 = vadd.f32 %v3986, %v4200
        %4202 = vmatprep.mubr.f32.mxu0 0.0
        %4203 = vmatmul.mubr.f32.gmra.mxu0 %v4046
        %v4204 = vpop.f32.mrf.mxu0
        %v4205 = vadd.f32 %v3990, %v4204
        %v4206 = vpop.f32.mrf.mxu0
        %v4207 = vadd.f32 %v3992, %v4206
        %4208 = vmatprep.mubr.f32.mxu0 0.0
        %4209 = vmatmul.mubr.f32.gmra.mxu0 %v4049
        %v4210 = vpop.f32.mrf.mxu0
        %v4211 = vadd.f32 %v3996, %v4210
        %v4212 = vpop.f32.mrf.mxu0
        %v4213 = vadd.f32 %v3998, %v4212
        %4214 = vmatprep.mubr.f32.mxu0 0.0
        %4215 = vmatmul.mubr.f32.gmra.mxu0 %v4052
        %v4216 = vpop.f32.mrf.mxu0
        %v4217 = vadd.f32 %v4002, %v4216
        %v4218 = vpop.f32.mrf.mxu0
        %v4219 = vadd.f32 %v4004, %v4218
        %4220 = vdwg.mxu0
        %v4221 = vld [vmem:[#allocation2 + $0x2] sm:$0xff]
        %v4222 = vld [vmem:[#allocation2 + $0xa] sm:$0xff]
        %v4223 = vld [vmem:[#allocation2 + $0x12] sm:$0xff]
        %v4224 = vld [vmem:[#allocation2 + $0x1a] sm:$0xff]
        %v4225 = vld [vmem:[#allocation2 + $0x22] sm:$0xff]
        %v4226 = vld [vmem:[#allocation2 + $0x2a] sm:$0xff]
        %v4227 = vld [vmem:[#allocation2 + $0x32] sm:$0xff]
        %v4228 = vld [vmem:[#allocation2 + $0x3a] sm:$0xff]
        %v4229 = vld [vmem:[#allocation2 + $0x42] sm:$0xff]
        %v4230 = vld [vmem:[#allocation2 + $0x4a] sm:$0xff]
        %v4231 = vld [vmem:[#allocation2 + $0x52] sm:$0xff]
        %v4232 = vld [vmem:[#allocation2 + $0x5a] sm:$0xff]
        %v4233 = vld [vmem:[#allocation2 + $0x62] sm:$0xff]
        %v4234 = vld [vmem:[#allocation2 + $0x6a] sm:$0xff]
        %v4235 = vld [vmem:[#allocation2 + $0x72] sm:$0xff]
        %v4236 = vld [vmem:[#allocation2 + $0x7a] sm:$0x3]
        %s4237 = scalar_lea.vmem %s5, 352
        %v4238 = vld [vmem:[%s4237] sm:$0xff]
        %v4239 = vld [vmem:[%s4237 + $0x8] sm:$0xff]
        %v4240 = vld [vmem:[%s4237 + $0x10] sm:$0xff]
        %v4241 = vld [vmem:[%s4237 + $0x18] sm:$0xff]
        %v4242 = vld [vmem:[%s4237 + $0x20] sm:$0xff]
        %v4243 = vld [vmem:[%s4237 + $0x28] sm:$0xff]
        %v4244 = vld [vmem:[%s4237 + $0x30] sm:$0xff]
        %v4245 = vld [vmem:[%s4237 + $0x38] sm:$0xff]
        %v4246 = vld [vmem:[%s4237 + $0x40] sm:$0xff]
        %v4247 = vld [vmem:[%s4237 + $0x48] sm:$0xff]
        %v4248 = vld [vmem:[%s4237 + $0x50] sm:$0xff]
        %v4249 = vld [vmem:[%s4237 + $0x58] sm:$0xff]
        %v4250 = vld [vmem:[%s4237 + $0x60] sm:$0xff]
        %v4251 = vld [vmem:[%s4237 + $0x68] sm:$0xff]
        %v4252 = vld [vmem:[%s4237 + $0x70] sm:$0xff]
        %v4253 = vld [vmem:[%s4237 + $0x78] sm:$0xff]
        %v4254 = vld [vmem:[%s4237 + $0x80] sm:$0xff]
        %v4255 = vld [vmem:[%s4237 + $0x88] sm:$0xff]
        %v4256 = vld [vmem:[%s4237 + $0x90] sm:$0xff]
        %v4257 = vld [vmem:[%s4237 + $0x98] sm:$0xff]
        %v4258 = vld [vmem:[%s4237 + $0xa0] sm:$0xf]
        %v4259 = vld [vmem:[%s4237 + $0xa8] sm:$0xf]
        %v4261 = vsel %vm3697, %v4221, 0
        %v4264 = vsel %vm3697, %v4222, 0
        %v4267 = vsel %vm3697, %v4223, 0
        %v4270 = vsel %vm3697, %v4224, 0
        %v4273 = vsel %vm3697, %v4225, 0
        %v4276 = vsel %vm3697, %v4226, 0
        %v4279 = vsel %vm3697, %v4227, 0
        %v4282 = vsel %vm3697, %v4228, 0
        %v4285 = vsel %vm3697, %v4229, 0
        %v4288 = vsel %vm3697, %v4230, 0
        %v4291 = vsel %vm3697, %v4231, 0
        %v4294 = vsel %vm3697, %v4232, 0
        %v4297 = vsel %vm3697, %v4233, 0
        %v4300 = vsel %vm3697, %v4234, 0
        %v4303 = vsel %vm3697, %v4235, 0
        %v4306 = vsel %vm3697, %v4236, 0
        %v4309 = vsel %vm2818, %v4258, 0
        %v4312 = vsel %vm2818, %v4259, 0
        %4314 = vmatprep.subr.mxu0 0.0
        %4315 = vmatpush1.msra.mxu0 0.0
        %4316 = vmatprep.subr.mxu0 0.0
        %4317 = vmatpush1.msra.mxu0 0.0
        %4318 = vmatprep.subr.mxu0 0.0
        %4319 = vmatpush1.msra.mxu0 0.0
        %4320 = vmatprep.subr.mxu0 0.0
        %4321 = vmatpush1.msra.mxu0 0.0
        %4322 = vmatprep.subr.mxu0 0.0
        %4323 = vmatpush1.msra.mxu0 0.0
        %4324 = vmatprep.subr.mxu0 %v4312
        %4325 = vmatpush1.msra.mxu0 %v4309
        %4326 = vmatprep.subr.mxu0 %v4257
        %4327 = vmatpush1.msra.mxu0 %v4256
        %4328 = vmatprep.subr.mxu0 %v4255
        %4329 = vmatpush1.msra.mxu0 %v4254
        %4330 = vmatprep.subr.mxu0 %v4253
        %4331 = vmatpush1.msra.mxu0 %v4252
        %4332 = vmatprep.subr.mxu0 %v4251
        %4333 = vmatpush1.msra.mxu0 %v4250
        %4334 = vmatprep.subr.mxu0 %v4249
        %4335 = vmatpush1.msra.mxu0 %v4248
        %4336 = vmatprep.subr.mxu0 %v4247
        %4337 = vmatpush1.msra.mxu0 %v4246
        %4338 = vmatprep.subr.mxu0 %v4245
        %4339 = vmatpush1.msra.mxu0 %v4244
        %4340 = vmatprep.subr.mxu0 %v4243
        %4341 = vmatpush1.msra.mxu0 %v4242
        %4342 = vmatprep.subr.mxu0 %v4241
        %4343 = vmatpush1.msra.mxu0 %v4240
        %4344 = vmatprep.subr.mxu0 %v4239
        %4345 = vmatpush1.msra.mxu0 %v4238
        %4346 = vmatprep.subr.mxu0 0.0
        %4347 = vmatpush2.msra.mxu0 0.0
        %4348 = vmatprep.subr.mxu0 0.0
        %4349 = vmatpush2.msra.mxu0 0.0
        %4350 = vmatprep.subr.mxu0 0.0
        %4351 = vmatpush2.msra.mxu0 0.0
        %4352 = vmatprep.subr.mxu0 0.0
        %4353 = vmatpush2.msra.mxu0 0.0
        %4354 = vmatprep.subr.mxu0 0.0
        %4355 = vmatpush2.msra.mxu0 0.0
        %4356 = vmatprep.subr.mxu0 0.0
        %4357 = vmatpush2.msra.mxu0 0.0
        %4358 = vmatprep.subr.mxu0 0.0
        %4359 = vmatpush2.msra.mxu0 0.0
        %4360 = vmatprep.subr.mxu0 0.0
        %4361 = vmatpush2.msra.mxu0 0.0
        %4362 = vmatprep.subr.mxu0 0.0
        %4363 = vmatpush2.msra.mxu0 0.0
        %4364 = vmatprep.subr.mxu0 0.0
        %4365 = vmatpush2.msra.mxu0 0.0
        %4366 = vmatprep.subr.mxu0 0.0
        %4367 = vmatpush2.msra.mxu0 0.0
        %4368 = vmatprep.subr.mxu0 0.0
        %4369 = vmatpush2.msra.mxu0 0.0
        %4370 = vmatprep.subr.mxu0 0.0
        %4371 = vmatpush2.msra.mxu0 0.0
        %4372 = vmatprep.subr.mxu0 0.0
        %4373 = vmatpush2.msra.mxu0 0.0
        %4374 = vmatprep.subr.mxu0 0.0
        %4375 = vmatpush2.msra.mxu0 0.0
        %4376 = vmatprep.subr.mxu0 0.0
        %4377 = vmatpush2.msra.mxu0 0.0
        %4378 = vmatprep.mubr.f32.mxu0 0.0
        %4379 = vmatmul.mubr.f32.gmra.mxu0 %v4261
        %v4380 = vpop.f32.mrf.mxu0
        %v4381 = vadd.f32 0.0, %v4380
        %v4382 = vpop.f32.mrf.mxu0
        %v4383 = vadd.f32 0.0, %v4382
        %4384 = vmatprep.mubr.f32.mxu0 0.0
        %4385 = vmatmul.mubr.f32.gmra.mxu0 %v4264
        %v4386 = vpop.f32.mrf.mxu0
        %v4387 = vadd.f32 0.0, %v4386
        %v4388 = vpop.f32.mrf.mxu0
        %v4389 = vadd.f32 0.0, %v4388
        %4390 = vmatprep.mubr.f32.mxu0 0.0
        %4391 = vmatmul.mubr.f32.gmra.mxu0 %v4267
        %v4392 = vpop.f32.mrf.mxu0
        %v4393 = vadd.f32 0.0, %v4392
        %v4394 = vpop.f32.mrf.mxu0
        %v4395 = vadd.f32 0.0, %v4394
        %4396 = vmatprep.mubr.f32.mxu0 0.0
        %4397 = vmatmul.mubr.f32.gmra.mxu0 %v4270
        %v4398 = vpop.f32.mrf.mxu0
        %v4399 = vadd.f32 0.0, %v4398
        %v4400 = vpop.f32.mrf.mxu0
        %v4401 = vadd.f32 0.0, %v4400
        %4402 = vmatprep.mubr.f32.mxu0 0.0
        %4403 = vmatmul.mubr.f32.gmra.mxu0 %v4273
        %v4404 = vpop.f32.mrf.mxu0
        %v4405 = vadd.f32 0.0, %v4404
        %v4406 = vpop.f32.mrf.mxu0
        %v4407 = vadd.f32 0.0, %v4406
        %4408 = vmatprep.mubr.f32.mxu0 0.0
        %4409 = vmatmul.mubr.f32.gmra.mxu0 %v4276
        %v4410 = vpop.f32.mrf.mxu0
        %v4411 = vadd.f32 0.0, %v4410
        %v4412 = vpop.f32.mrf.mxu0
        %v4413 = vadd.f32 0.0, %v4412
        %4414 = vmatprep.mubr.f32.mxu0 0.0
        %4415 = vmatmul.mubr.f32.gmra.mxu0 %v4279
        %v4416 = vpop.f32.mrf.mxu0
        %v4417 = vadd.f32 0.0, %v4416
        %v4418 = vpop.f32.mrf.mxu0
        %v4419 = vadd.f32 0.0, %v4418
        %4420 = vmatprep.mubr.f32.mxu0 0.0
        %4421 = vmatmul.mubr.f32.gmra.mxu0 %v4282
        %v4422 = vpop.f32.mrf.mxu0
        %v4423 = vadd.f32 0.0, %v4422
        %v4424 = vpop.f32.mrf.mxu0
        %v4425 = vadd.f32 0.0, %v4424
        %4426 = vmatprep.mubr.f32.mxu0 0.0
        %4427 = vmatmul.mubr.f32.gmra.mxu0 %v4285
        %v4428 = vpop.f32.mrf.mxu0
        %v4429 = vadd.f32 0.0, %v4428
        %v4430 = vpop.f32.mrf.mxu0
        %v4431 = vadd.f32 0.0, %v4430
        %4432 = vmatprep.mubr.f32.mxu0 0.0
        %4433 = vmatmul.mubr.f32.gmra.mxu0 %v4288
        %v4434 = vpop.f32.mrf.mxu0
        %v4435 = vadd.f32 0.0, %v4434
        %v4436 = vpop.f32.mrf.mxu0
        %v4437 = vadd.f32 0.0, %v4436
        %4438 = vmatprep.mubr.f32.mxu0 0.0
        %4439 = vmatmul.mubr.f32.gmra.mxu0 %v4291
        %v4440 = vpop.f32.mrf.mxu0
        %v4441 = vadd.f32 0.0, %v4440
        %v4442 = vpop.f32.mrf.mxu0
        %v4443 = vadd.f32 0.0, %v4442
        %4444 = vmatprep.mubr.f32.mxu0 0.0
        %4445 = vmatmul.mubr.f32.gmra.mxu0 %v4294
        %v4446 = vpop.f32.mrf.mxu0
        %v4447 = vadd.f32 0.0, %v4446
        %v4448 = vpop.f32.mrf.mxu0
        %v4449 = vadd.f32 0.0, %v4448
        %4450 = vmatprep.mubr.f32.mxu0 0.0
        %4451 = vmatmul.mubr.f32.gmra.mxu0 %v4297
        %v4452 = vpop.f32.mrf.mxu0
        %v4453 = vadd.f32 0.0, %v4452
        %v4454 = vpop.f32.mrf.mxu0
        %v4455 = vadd.f32 0.0, %v4454
        %4456 = vmatprep.mubr.f32.mxu0 0.0
        %4457 = vmatmul.mubr.f32.gmra.mxu0 %v4300
        %v4458 = vpop.f32.mrf.mxu0
        %v4459 = vadd.f32 0.0, %v4458
        %v4460 = vpop.f32.mrf.mxu0
        %v4461 = vadd.f32 0.0, %v4460
        %4462 = vmatprep.mubr.f32.mxu0 0.0
        %4463 = vmatmul.mubr.f32.gmra.mxu0 %v4303
        %v4464 = vpop.f32.mrf.mxu0
        %v4465 = vadd.f32 0.0, %v4464
        %v4466 = vpop.f32.mrf.mxu0
        %v4467 = vadd.f32 0.0, %v4466
        %4468 = vmatprep.mubr.f32.mxu0 0.0
        %4469 = vmatmul.mubr.f32.gmra.mxu0 %v4306
        %v4470 = vpop.f32.mrf.mxu0
        %v4471 = vadd.f32 0.0, %v4470
        %v4472 = vpop.f32.mrf.mxu0
        %v4473 = vadd.f32 0.0, %v4472
        %4474 = vdwg.mxu0
        %v4475 = vadd.f32 %v4127, %v4381
        %v4476 = vadd.f32 %v4129, %v4383
        %v4477 = vadd.f32 %v4133, %v4387
        %v4478 = vadd.f32 %v4135, %v4389
        %v4479 = vadd.f32 %v4139, %v4393
        %v4480 = vadd.f32 %v4141, %v4395
        %v4481 = vadd.f32 %v4145, %v4399
        %v4482 = vadd.f32 %v4147, %v4401
        %v4483 = vadd.f32 %v4151, %v4405
        %v4484 = vadd.f32 %v4153, %v4407
        %v4485 = vadd.f32 %v4157, %v4411
        %v4486 = vadd.f32 %v4159, %v4413
        %v4487 = vadd.f32 %v4163, %v4417
        %v4488 = vadd.f32 %v4165, %v4419
        %v4489 = vadd.f32 %v4169, %v4423
        %v4490 = vadd.f32 %v4171, %v4425
        %v4491 = vadd.f32 %v4175, %v4429
        %v4492 = vadd.f32 %v4177, %v4431
        %v4493 = vadd.f32 %v4181, %v4435
        %v4494 = vadd.f32 %v4183, %v4437
        %v4495 = vadd.f32 %v4187, %v4441
        %v4496 = vadd.f32 %v4189, %v4443
        %v4497 = vadd.f32 %v4193, %v4447
        %v4498 = vadd.f32 %v4195, %v4449
        %v4499 = vadd.f32 %v4199, %v4453
        %v4500 = vadd.f32 %v4201, %v4455
        %v4501 = vadd.f32 %v4205, %v4459
        %v4502 = vadd.f32 %v4207, %v4461
        %v4503 = vadd.f32 %v4211, %v4465
        %v4504 = vadd.f32 %v4213, %v4467
        %v4505 = vadd.f32 %v4217, %v4471
        %v4506 = vadd.f32 %v4219, %v4473
        %v4507 = vld [vmem:[#allocation2 + $0x3] sm:$0xff]
        %v4508 = vld [vmem:[#allocation2 + $0xb] sm:$0xff]
        %v4509 = vld [vmem:[#allocation2 + $0x13] sm:$0xff]
        %v4510 = vld [vmem:[#allocation2 + $0x1b] sm:$0xff]
        %v4511 = vld [vmem:[#allocation2 + $0x23] sm:$0xff]
        %v4512 = vld [vmem:[#allocation2 + $0x2b] sm:$0xff]
        %v4513 = vld [vmem:[#allocation2 + $0x33] sm:$0xff]
        %v4514 = vld [vmem:[#allocation2 + $0x3b] sm:$0xff]
        %v4515 = vld [vmem:[#allocation2 + $0x43] sm:$0xff]
        %v4516 = vld [vmem:[#allocation2 + $0x4b] sm:$0xff]
        %v4517 = vld [vmem:[#allocation2 + $0x53] sm:$0xff]
        %v4518 = vld [vmem:[#allocation2 + $0x5b] sm:$0xff]
        %v4519 = vld [vmem:[#allocation2 + $0x63] sm:$0xff]
        %v4520 = vld [vmem:[#allocation2 + $0x6b] sm:$0xff]
        %v4521 = vld [vmem:[#allocation2 + $0x73] sm:$0xff]
        %v4522 = vld [vmem:[#allocation2 + $0x7b] sm:$0x3]
        %s4523 = scalar_lea.vmem %s5, 528
        %v4524 = vld [vmem:[%s4523] sm:$0xff]
        %v4525 = vld [vmem:[%s4523 + $0x8] sm:$0xff]
        %v4526 = vld [vmem:[%s4523 + $0x10] sm:$0xff]
        %v4527 = vld [vmem:[%s4523 + $0x18] sm:$0xff]
        %v4528 = vld [vmem:[%s4523 + $0x20] sm:$0xff]
        %v4529 = vld [vmem:[%s4523 + $0x28] sm:$0xff]
        %v4530 = vld [vmem:[%s4523 + $0x30] sm:$0xff]
        %v4531 = vld [vmem:[%s4523 + $0x38] sm:$0xff]
        %v4532 = vld [vmem:[%s4523 + $0x40] sm:$0xff]
        %v4533 = vld [vmem:[%s4523 + $0x48] sm:$0xff]
        %v4534 = vld [vmem:[%s4523 + $0x50] sm:$0xff]
        %v4535 = vld [vmem:[%s4523 + $0x58] sm:$0xff]
        %v4536 = vld [vmem:[%s4523 + $0x60] sm:$0xff]
        %v4537 = vld [vmem:[%s4523 + $0x68] sm:$0xff]
        %v4538 = vld [vmem:[%s4523 + $0x70] sm:$0xff]
        %v4539 = vld [vmem:[%s4523 + $0x78] sm:$0xff]
        %v4540 = vld [vmem:[%s4523 + $0x80] sm:$0xff]
        %v4541 = vld [vmem:[%s4523 + $0x88] sm:$0xff]
        %v4542 = vld [vmem:[%s4523 + $0x90] sm:$0xff]
        %v4543 = vld [vmem:[%s4523 + $0x98] sm:$0xff]
        %v4544 = vld [vmem:[%s4523 + $0xa0] sm:$0xf]
        %v4545 = vld [vmem:[%s4523 + $0xa8] sm:$0xf]
        %v4547 = vsel %vm3697, %v4507, 0
        %v4550 = vsel %vm3697, %v4508, 0
        %v4553 = vsel %vm3697, %v4509, 0
        %v4556 = vsel %vm3697, %v4510, 0
        %v4559 = vsel %vm3697, %v4511, 0
        %v4562 = vsel %vm3697, %v4512, 0
        %v4565 = vsel %vm3697, %v4513, 0
        %v4568 = vsel %vm3697, %v4514, 0
        %v4571 = vsel %vm3697, %v4515, 0
        %v4574 = vsel %vm3697, %v4516, 0
        %v4577 = vsel %vm3697, %v4517, 0
        %v4580 = vsel %vm3697, %v4518, 0
        %v4583 = vsel %vm3697, %v4519, 0
        %v4586 = vsel %vm3697, %v4520, 0
        %v4589 = vsel %vm3697, %v4521, 0
        %v4592 = vsel %vm3697, %v4522, 0
        %v4595 = vsel %vm2818, %v4544, 0
        %v4598 = vsel %vm2818, %v4545, 0
        %4600 = vmatprep.subr.mxu0 0.0
        %4601 = vmatpush1.msra.mxu0 0.0
        %4602 = vmatprep.subr.mxu0 0.0
        %4603 = vmatpush1.msra.mxu0 0.0
        %4604 = vmatprep.subr.mxu0 0.0
        %4605 = vmatpush1.msra.mxu0 0.0
        %4606 = vmatprep.subr.mxu0 0.0
        %4607 = vmatpush1.msra.mxu0 0.0
        %4608 = vmatprep.subr.mxu0 0.0
        %4609 = vmatpush1.msra.mxu0 0.0
        %4610 = vmatprep.subr.mxu0 %v4598
        %4611 = vmatpush1.msra.mxu0 %v4595
        %4612 = vmatprep.subr.mxu0 %v4543
        %4613 = vmatpush1.msra.mxu0 %v4542
        %4614 = vmatprep.subr.mxu0 %v4541
        %4615 = vmatpush1.msra.mxu0 %v4540
        %4616 = vmatprep.subr.mxu0 %v4539
        %4617 = vmatpush1.msra.mxu0 %v4538
        %4618 = vmatprep.subr.mxu0 %v4537
        %4619 = vmatpush1.msra.mxu0 %v4536
        %4620 = vmatprep.subr.mxu0 %v4535
        %4621 = vmatpush1.msra.mxu0 %v4534
        %4622 = vmatprep.subr.mxu0 %v4533
        %4623 = vmatpush1.msra.mxu0 %v4532
        %4624 = vmatprep.subr.mxu0 %v4531
        %4625 = vmatpush1.msra.mxu0 %v4530
        %4626 = vmatprep.subr.mxu0 %v4529
        %4627 = vmatpush1.msra.mxu0 %v4528
        %4628 = vmatprep.subr.mxu0 %v4527
        %4629 = vmatpush1.msra.mxu0 %v4526
        %4630 = vmatprep.subr.mxu0 %v4525
        %4631 = vmatpush1.msra.mxu0 %v4524
        %4632 = vmatprep.subr.mxu0 0.0
        %4633 = vmatpush2.msra.mxu0 0.0
        %4634 = vmatprep.subr.mxu0 0.0
        %4635 = vmatpush2.msra.mxu0 0.0
        %4636 = vmatprep.subr.mxu0 0.0
        %4637 = vmatpush2.msra.mxu0 0.0
        %4638 = vmatprep.subr.mxu0 0.0
        %4639 = vmatpush2.msra.mxu0 0.0
        %4640 = vmatprep.subr.mxu0 0.0
        %4641 = vmatpush2.msra.mxu0 0.0
        %4642 = vmatprep.subr.mxu0 0.0
        %4643 = vmatpush2.msra.mxu0 0.0
        %4644 = vmatprep.subr.mxu0 0.0
        %4645 = vmatpush2.msra.mxu0 0.0
        %4646 = vmatprep.subr.mxu0 0.0
        %4647 = vmatpush2.msra.mxu0 0.0
        %4648 = vmatprep.subr.mxu0 0.0
        %4649 = vmatpush2.msra.mxu0 0.0
        %4650 = vmatprep.subr.mxu0 0.0
        %4651 = vmatpush2.msra.mxu0 0.0
        %4652 = vmatprep.subr.mxu0 0.0
        %4653 = vmatpush2.msra.mxu0 0.0
        %4654 = vmatprep.subr.mxu0 0.0
        %4655 = vmatpush2.msra.mxu0 0.0
        %4656 = vmatprep.subr.mxu0 0.0
        %4657 = vmatpush2.msra.mxu0 0.0
        %4658 = vmatprep.subr.mxu0 0.0
        %4659 = vmatpush2.msra.mxu0 0.0
        %4660 = vmatprep.subr.mxu0 0.0
        %4661 = vmatpush2.msra.mxu0 0.0
        %4662 = vmatprep.subr.mxu0 0.0
        %4663 = vmatpush2.msra.mxu0 0.0
        %4664 = vmatprep.mubr.f32.mxu0 0.0
        %4665 = vmatmul.mubr.f32.gmra.mxu0 %v4547
        %v4666 = vpop.f32.mrf.mxu0
        %v4667 = vadd.f32 0.0, %v4666
        %v4668 = vpop.f32.mrf.mxu0
        %v4669 = vadd.f32 0.0, %v4668
        %4670 = vmatprep.mubr.f32.mxu0 0.0
        %4671 = vmatmul.mubr.f32.gmra.mxu0 %v4550
        %v4672 = vpop.f32.mrf.mxu0
        %v4673 = vadd.f32 0.0, %v4672
        %v4674 = vpop.f32.mrf.mxu0
        %v4675 = vadd.f32 0.0, %v4674
        %4676 = vmatprep.mubr.f32.mxu0 0.0
        %4677 = vmatmul.mubr.f32.gmra.mxu0 %v4553
        %v4678 = vpop.f32.mrf.mxu0
        %v4679 = vadd.f32 0.0, %v4678
        %v4680 = vpop.f32.mrf.mxu0
        %v4681 = vadd.f32 0.0, %v4680
        %4682 = vmatprep.mubr.f32.mxu0 0.0
        %4683 = vmatmul.mubr.f32.gmra.mxu0 %v4556
        %v4684 = vpop.f32.mrf.mxu0
        %v4685 = vadd.f32 0.0, %v4684
        %v4686 = vpop.f32.mrf.mxu0
        %v4687 = vadd.f32 0.0, %v4686
        %4688 = vmatprep.mubr.f32.mxu0 0.0
        %4689 = vmatmul.mubr.f32.gmra.mxu0 %v4559
        %v4690 = vpop.f32.mrf.mxu0
        %v4691 = vadd.f32 0.0, %v4690
        %v4692 = vpop.f32.mrf.mxu0
        %v4693 = vadd.f32 0.0, %v4692
        %4694 = vmatprep.mubr.f32.mxu0 0.0
        %4695 = vmatmul.mubr.f32.gmra.mxu0 %v4562
        %v4696 = vpop.f32.mrf.mxu0
        %v4697 = vadd.f32 0.0, %v4696
        %v4698 = vpop.f32.mrf.mxu0
        %v4699 = vadd.f32 0.0, %v4698
        %4700 = vmatprep.mubr.f32.mxu0 0.0
        %4701 = vmatmul.mubr.f32.gmra.mxu0 %v4565
        %v4702 = vpop.f32.mrf.mxu0
        %v4703 = vadd.f32 0.0, %v4702
        %v4704 = vpop.f32.mrf.mxu0
        %v4705 = vadd.f32 0.0, %v4704
        %4706 = vmatprep.mubr.f32.mxu0 0.0
        %4707 = vmatmul.mubr.f32.gmra.mxu0 %v4568
        %v4708 = vpop.f32.mrf.mxu0
        %v4709 = vadd.f32 0.0, %v4708
        %v4710 = vpop.f32.mrf.mxu0
        %v4711 = vadd.f32 0.0, %v4710
        %4712 = vmatprep.mubr.f32.mxu0 0.0
        %4713 = vmatmul.mubr.f32.gmra.mxu0 %v4571
        %v4714 = vpop.f32.mrf.mxu0
        %v4715 = vadd.f32 0.0, %v4714
        %v4716 = vpop.f32.mrf.mxu0
        %v4717 = vadd.f32 0.0, %v4716
        %4718 = vmatprep.mubr.f32.mxu0 0.0
        %4719 = vmatmul.mubr.f32.gmra.mxu0 %v4574
        %v4720 = vpop.f32.mrf.mxu0
        %v4721 = vadd.f32 0.0, %v4720
        %v4722 = vpop.f32.mrf.mxu0
        %v4723 = vadd.f32 0.0, %v4722
        %4724 = vmatprep.mubr.f32.mxu0 0.0
        %4725 = vmatmul.mubr.f32.gmra.mxu0 %v4577
        %v4726 = vpop.f32.mrf.mxu0
        %v4727 = vadd.f32 0.0, %v4726
        %v4728 = vpop.f32.mrf.mxu0
        %v4729 = vadd.f32 0.0, %v4728
        %4730 = vmatprep.mubr.f32.mxu0 0.0
        %4731 = vmatmul.mubr.f32.gmra.mxu0 %v4580
        %v4732 = vpop.f32.mrf.mxu0
        %v4733 = vadd.f32 0.0, %v4732
        %v4734 = vpop.f32.mrf.mxu0
        %v4735 = vadd.f32 0.0, %v4734
        %4736 = vmatprep.mubr.f32.mxu0 0.0
        %4737 = vmatmul.mubr.f32.gmra.mxu0 %v4583
        %v4738 = vpop.f32.mrf.mxu0
        %v4739 = vadd.f32 0.0, %v4738
        %v4740 = vpop.f32.mrf.mxu0
        %v4741 = vadd.f32 0.0, %v4740
        %4742 = vmatprep.mubr.f32.mxu0 0.0
        %4743 = vmatmul.mubr.f32.gmra.mxu0 %v4586
        %v4744 = vpop.f32.mrf.mxu0
        %v4745 = vadd.f32 0.0, %v4744
        %v4746 = vpop.f32.mrf.mxu0
        %v4747 = vadd.f32 0.0, %v4746
        %4748 = vmatprep.mubr.f32.mxu0 0.0
        %4749 = vmatmul.mubr.f32.gmra.mxu0 %v4589
        %v4750 = vpop.f32.mrf.mxu0
        %v4751 = vadd.f32 0.0, %v4750
        %v4752 = vpop.f32.mrf.mxu0
        %v4753 = vadd.f32 0.0, %v4752
        %4754 = vmatprep.mubr.f32.mxu0 0.0
        %4755 = vmatmul.mubr.f32.gmra.mxu0 %v4592
        %v4756 = vpop.f32.mrf.mxu0
        %v4757 = vadd.f32 0.0, %v4756
        %v4758 = vpop.f32.mrf.mxu0
        %v4759 = vadd.f32 0.0, %v4758
        %4760 = vdwg.mxu0
        %v4761 = vadd.f32 %v4475, %v4667
        %v4762 = vadd.f32 %v4476, %v4669
        %v4763 = vadd.f32 %v4477, %v4673
        %v4764 = vadd.f32 %v4478, %v4675
        %v4765 = vadd.f32 %v4479, %v4679
        %v4766 = vadd.f32 %v4480, %v4681
        %v4767 = vadd.f32 %v4481, %v4685
        %v4768 = vadd.f32 %v4482, %v4687
        %v4769 = vadd.f32 %v4483, %v4691
        %v4770 = vadd.f32 %v4484, %v4693
        %v4771 = vadd.f32 %v4485, %v4697
        %v4772 = vadd.f32 %v4486, %v4699
        %v4773 = vadd.f32 %v4487, %v4703
        %v4774 = vadd.f32 %v4488, %v4705
        %v4775 = vadd.f32 %v4489, %v4709
        %v4776 = vadd.f32 %v4490, %v4711
        %v4777 = vadd.f32 %v4491, %v4715
        %v4778 = vadd.f32 %v4492, %v4717
        %v4779 = vadd.f32 %v4493, %v4721
        %v4780 = vadd.f32 %v4494, %v4723
        %v4781 = vadd.f32 %v4495, %v4727
        %v4782 = vadd.f32 %v4496, %v4729
        %v4783 = vadd.f32 %v4497, %v4733
        %v4784 = vadd.f32 %v4498, %v4735
        %v4785 = vadd.f32 %v4499, %v4739
        %v4786 = vadd.f32 %v4500, %v4741
        %v4787 = vadd.f32 %v4501, %v4745
        %v4788 = vadd.f32 %v4502, %v4747
        %v4789 = vadd.f32 %v4503, %v4751
        %v4790 = vadd.f32 %v4504, %v4753
        %v4791 = vadd.f32 %v4505, %v4757
        %v4792 = vadd.f32 %v4506, %v4759
        %v4793 = vld [vmem:[#allocation2 + $0x4] sm:$0xff]
        %v4794 = vld [vmem:[#allocation2 + $0xc] sm:$0xff]
        %v4795 = vld [vmem:[#allocation2 + $0x14] sm:$0xff]
        %v4796 = vld [vmem:[#allocation2 + $0x1c] sm:$0xff]
        %v4797 = vld [vmem:[#allocation2 + $0x24] sm:$0xff]
        %v4798 = vld [vmem:[#allocation2 + $0x2c] sm:$0xff]
        %v4799 = vld [vmem:[#allocation2 + $0x34] sm:$0xff]
        %v4800 = vld [vmem:[#allocation2 + $0x3c] sm:$0xff]
        %v4801 = vld [vmem:[#allocation2 + $0x44] sm:$0xff]
        %v4802 = vld [vmem:[#allocation2 + $0x4c] sm:$0xff]
        %v4803 = vld [vmem:[#allocation2 + $0x54] sm:$0xff]
        %v4804 = vld [vmem:[#allocation2 + $0x5c] sm:$0xff]
        %v4805 = vld [vmem:[#allocation2 + $0x64] sm:$0xff]
        %v4806 = vld [vmem:[#allocation2 + $0x6c] sm:$0xff]
        %v4807 = vld [vmem:[#allocation2 + $0x74] sm:$0xff]
        %v4808 = vld [vmem:[#allocation2 + $0x7c] sm:$0x3]
        %s4809 = scalar_lea.vmem %s5, 704
        %v4810 = vld [vmem:[%s4809] sm:$0xff]
        %v4811 = vld [vmem:[%s4809 + $0x8] sm:$0xff]
        %v4812 = vld [vmem:[%s4809 + $0x10] sm:$0xff]
        %v4813 = vld [vmem:[%s4809 + $0x18] sm:$0xff]
        %v4814 = vld [vmem:[%s4809 + $0x20] sm:$0xff]
        %v4815 = vld [vmem:[%s4809 + $0x28] sm:$0xff]
        %v4816 = vld [vmem:[%s4809 + $0x30] sm:$0xff]
        %v4817 = vld [vmem:[%s4809 + $0x38] sm:$0xff]
        %v4818 = vld [vmem:[%s4809 + $0x40] sm:$0xff]
        %v4819 = vld [vmem:[%s4809 + $0x48] sm:$0xff]
        %v4820 = vld [vmem:[%s4809 + $0x50] sm:$0xff]
        %v4821 = vld [vmem:[%s4809 + $0x58] sm:$0xff]
        %v4822 = vld [vmem:[%s4809 + $0x60] sm:$0xff]
        %v4823 = vld [vmem:[%s4809 + $0x68] sm:$0xff]
        %v4824 = vld [vmem:[%s4809 + $0x70] sm:$0xff]
        %v4825 = vld [vmem:[%s4809 + $0x78] sm:$0xff]
        %v4826 = vld [vmem:[%s4809 + $0x80] sm:$0xff]
        %v4827 = vld [vmem:[%s4809 + $0x88] sm:$0xff]
        %v4828 = vld [vmem:[%s4809 + $0x90] sm:$0xff]
        %v4829 = vld [vmem:[%s4809 + $0x98] sm:$0xff]
        %v4830 = vld [vmem:[%s4809 + $0xa0] sm:$0xf]
        %v4831 = vld [vmem:[%s4809 + $0xa8] sm:$0xf]
        %v4833 = vsel %vm3697, %v4793, 0
        %v4836 = vsel %vm3697, %v4794, 0
        %v4839 = vsel %vm3697, %v4795, 0
        %v4842 = vsel %vm3697, %v4796, 0
        %v4845 = vsel %vm3697, %v4797, 0
        %v4848 = vsel %vm3697, %v4798, 0
        %v4851 = vsel %vm3697, %v4799, 0
        %v4854 = vsel %vm3697, %v4800, 0
        %v4857 = vsel %vm3697, %v4801, 0
        %v4860 = vsel %vm3697, %v4802, 0
        %v4863 = vsel %vm3697, %v4803, 0
        %v4866 = vsel %vm3697, %v4804, 0
        %v4869 = vsel %vm3697, %v4805, 0
        %v4872 = vsel %vm3697, %v4806, 0
        %v4875 = vsel %vm3697, %v4807, 0
        %v4878 = vsel %vm3697, %v4808, 0
        %v4881 = vsel %vm2818, %v4830, 0
        %v4884 = vsel %vm2818, %v4831, 0
        %4886 = vmatprep.subr.mxu0 0.0
        %4887 = vmatpush1.msra.mxu0 0.0
        %4888 = vmatprep.subr.mxu0 0.0
        %4889 = vmatpush1.msra.mxu0 0.0
        %4890 = vmatprep.subr.mxu0 0.0
        %4891 = vmatpush1.msra.mxu0 0.0
        %4892 = vmatprep.subr.mxu0 0.0
        %4893 = vmatpush1.msra.mxu0 0.0
        %4894 = vmatprep.subr.mxu0 0.0
        %4895 = vmatpush1.msra.mxu0 0.0
        %4896 = vmatprep.subr.mxu0 %v4884
        %4897 = vmatpush1.msra.mxu0 %v4881
        %4898 = vmatprep.subr.mxu0 %v4829
        %4899 = vmatpush1.msra.mxu0 %v4828
        %4900 = vmatprep.subr.mxu0 %v4827
        %4901 = vmatpush1.msra.mxu0 %v4826
        %4902 = vmatprep.subr.mxu0 %v4825
        %4903 = vmatpush1.msra.mxu0 %v4824
        %4904 = vmatprep.subr.mxu0 %v4823
        %4905 = vmatpush1.msra.mxu0 %v4822
        %4906 = vmatprep.subr.mxu0 %v4821
        %4907 = vmatpush1.msra.mxu0 %v4820
        %4908 = vmatprep.subr.mxu0 %v4819
        %4909 = vmatpush1.msra.mxu0 %v4818
        %4910 = vmatprep.subr.mxu0 %v4817
        %4911 = vmatpush1.msra.mxu0 %v4816
        %4912 = vmatprep.subr.mxu0 %v4815
        %4913 = vmatpush1.msra.mxu0 %v4814
        %4914 = vmatprep.subr.mxu0 %v4813
        %4915 = vmatpush1.msra.mxu0 %v4812
        %4916 = vmatprep.subr.mxu0 %v4811
        %4917 = vmatpush1.msra.mxu0 %v4810
        %4918 = vmatprep.subr.mxu0 0.0
        %4919 = vmatpush2.msra.mxu0 0.0
        %4920 = vmatprep.subr.mxu0 0.0
        %4921 = vmatpush2.msra.mxu0 0.0
        %4922 = vmatprep.subr.mxu0 0.0
        %4923 = vmatpush2.msra.mxu0 0.0
        %4924 = vmatprep.subr.mxu0 0.0
        %4925 = vmatpush2.msra.mxu0 0.0
        %4926 = vmatprep.subr.mxu0 0.0
        %4927 = vmatpush2.msra.mxu0 0.0
        %4928 = vmatprep.subr.mxu0 0.0
        %4929 = vmatpush2.msra.mxu0 0.0
        %4930 = vmatprep.subr.mxu0 0.0
        %4931 = vmatpush2.msra.mxu0 0.0
        %4932 = vmatprep.subr.mxu0 0.0
        %4933 = vmatpush2.msra.mxu0 0.0
        %4934 = vmatprep.subr.mxu0 0.0
        %4935 = vmatpush2.msra.mxu0 0.0
        %4936 = vmatprep.subr.mxu0 0.0
        %4937 = vmatpush2.msra.mxu0 0.0
        %4938 = vmatprep.subr.mxu0 0.0
        %4939 = vmatpush2.msra.mxu0 0.0
        %4940 = vmatprep.subr.mxu0 0.0
        %4941 = vmatpush2.msra.mxu0 0.0
        %4942 = vmatprep.subr.mxu0 0.0
        %4943 = vmatpush2.msra.mxu0 0.0
        %4944 = vmatprep.subr.mxu0 0.0
        %4945 = vmatpush2.msra.mxu0 0.0
        %4946 = vmatprep.subr.mxu0 0.0
        %4947 = vmatpush2.msra.mxu0 0.0
        %4948 = vmatprep.subr.mxu0 0.0
        %4949 = vmatpush2.msra.mxu0 0.0
        %4950 = vmatprep.mubr.f32.mxu0 0.0
        %4951 = vmatmul.mubr.f32.gmra.mxu0 %v4833
        %v4952 = vpop.f32.mrf.mxu0
        %v4953 = vadd.f32 0.0, %v4952
        %v4954 = vpop.f32.mrf.mxu0
        %v4955 = vadd.f32 0.0, %v4954
        %4956 = vmatprep.mubr.f32.mxu0 0.0
        %4957 = vmatmul.mubr.f32.gmra.mxu0 %v4836
        %v4958 = vpop.f32.mrf.mxu0
        %v4959 = vadd.f32 0.0, %v4958
        %v4960 = vpop.f32.mrf.mxu0
        %v4961 = vadd.f32 0.0, %v4960
        %4962 = vmatprep.mubr.f32.mxu0 0.0
        %4963 = vmatmul.mubr.f32.gmra.mxu0 %v4839
        %v4964 = vpop.f32.mrf.mxu0
        %v4965 = vadd.f32 0.0, %v4964
        %v4966 = vpop.f32.mrf.mxu0
        %v4967 = vadd.f32 0.0, %v4966
        %4968 = vmatprep.mubr.f32.mxu0 0.0
        %4969 = vmatmul.mubr.f32.gmra.mxu0 %v4842
        %v4970 = vpop.f32.mrf.mxu0
        %v4971 = vadd.f32 0.0, %v4970
        %v4972 = vpop.f32.mrf.mxu0
        %v4973 = vadd.f32 0.0, %v4972
        %4974 = vmatprep.mubr.f32.mxu0 0.0
        %4975 = vmatmul.mubr.f32.gmra.mxu0 %v4845
        %v4976 = vpop.f32.mrf.mxu0
        %v4977 = vadd.f32 0.0, %v4976
        %v4978 = vpop.f32.mrf.mxu0
        %v4979 = vadd.f32 0.0, %v4978
        %4980 = vmatprep.mubr.f32.mxu0 0.0
        %4981 = vmatmul.mubr.f32.gmra.mxu0 %v4848
        %v4982 = vpop.f32.mrf.mxu0
        %v4983 = vadd.f32 0.0, %v4982
        %v4984 = vpop.f32.mrf.mxu0
        %v4985 = vadd.f32 0.0, %v4984
        %4986 = vmatprep.mubr.f32.mxu0 0.0
        %4987 = vmatmul.mubr.f32.gmra.mxu0 %v4851
        %v4988 = vpop.f32.mrf.mxu0
        %v4989 = vadd.f32 0.0, %v4988
        %v4990 = vpop.f32.mrf.mxu0
        %v4991 = vadd.f32 0.0, %v4990
        %4992 = vmatprep.mubr.f32.mxu0 0.0
        %4993 = vmatmul.mubr.f32.gmra.mxu0 %v4854
        %v4994 = vpop.f32.mrf.mxu0
        %v4995 = vadd.f32 0.0, %v4994
        %v4996 = vpop.f32.mrf.mxu0
        %v4997 = vadd.f32 0.0, %v4996
        %4998 = vmatprep.mubr.f32.mxu0 0.0
        %4999 = vmatmul.mubr.f32.gmra.mxu0 %v4857
        %v5000 = vpop.f32.mrf.mxu0
        %v5001 = vadd.f32 0.0, %v5000
        %v5002 = vpop.f32.mrf.mxu0
        %v5003 = vadd.f32 0.0, %v5002
        %5004 = vmatprep.mubr.f32.mxu0 0.0
        %5005 = vmatmul.mubr.f32.gmra.mxu0 %v4860
        %v5006 = vpop.f32.mrf.mxu0
        %v5007 = vadd.f32 0.0, %v5006
        %v5008 = vpop.f32.mrf.mxu0
        %v5009 = vadd.f32 0.0, %v5008
        %5010 = vmatprep.mubr.f32.mxu0 0.0
        %5011 = vmatmul.mubr.f32.gmra.mxu0 %v4863
        %v5012 = vpop.f32.mrf.mxu0
        %v5013 = vadd.f32 0.0, %v5012
        %v5014 = vpop.f32.mrf.mxu0
        %v5015 = vadd.f32 0.0, %v5014
        %5016 = vmatprep.mubr.f32.mxu0 0.0
        %5017 = vmatmul.mubr.f32.gmra.mxu0 %v4866
        %v5018 = vpop.f32.mrf.mxu0
        %v5019 = vadd.f32 0.0, %v5018
        %v5020 = vpop.f32.mrf.mxu0
        %v5021 = vadd.f32 0.0, %v5020
        %5022 = vmatprep.mubr.f32.mxu0 0.0
        %5023 = vmatmul.mubr.f32.gmra.mxu0 %v4869
        %v5024 = vpop.f32.mrf.mxu0
        %v5025 = vadd.f32 0.0, %v5024
        %v5026 = vpop.f32.mrf.mxu0
        %v5027 = vadd.f32 0.0, %v5026
        %5028 = vmatprep.mubr.f32.mxu0 0.0
        %5029 = vmatmul.mubr.f32.gmra.mxu0 %v4872
        %v5030 = vpop.f32.mrf.mxu0
        %v5031 = vadd.f32 0.0, %v5030
        %v5032 = vpop.f32.mrf.mxu0
        %v5033 = vadd.f32 0.0, %v5032
        %5034 = vmatprep.mubr.f32.mxu0 0.0
        %5035 = vmatmul.mubr.f32.gmra.mxu0 %v4875
        %v5036 = vpop.f32.mrf.mxu0
        %v5037 = vadd.f32 0.0, %v5036
        %v5038 = vpop.f32.mrf.mxu0
        %v5039 = vadd.f32 0.0, %v5038
        %5040 = vmatprep.mubr.f32.mxu0 0.0
        %5041 = vmatmul.mubr.f32.gmra.mxu0 %v4878
        %v5042 = vpop.f32.mrf.mxu0
        %v5043 = vadd.f32 0.0, %v5042
        %v5044 = vpop.f32.mrf.mxu0
        %v5045 = vadd.f32 0.0, %v5044
        %5046 = vdwg.mxu0
        %v5047 = vadd.f32 %v4761, %v4953
        %v5048 = vadd.f32 %v4762, %v4955
        %v5049 = vadd.f32 %v4763, %v4959
        %v5050 = vadd.f32 %v4764, %v4961
        %v5051 = vadd.f32 %v4765, %v4965
        %v5052 = vadd.f32 %v4766, %v4967
        %v5053 = vadd.f32 %v4767, %v4971
        %v5054 = vadd.f32 %v4768, %v4973
        %v5055 = vadd.f32 %v4769, %v4977
        %v5056 = vadd.f32 %v4770, %v4979
        %v5057 = vadd.f32 %v4771, %v4983
        %v5058 = vadd.f32 %v4772, %v4985
        %v5059 = vadd.f32 %v4773, %v4989
        %v5060 = vadd.f32 %v4774, %v4991
        %v5061 = vadd.f32 %v4775, %v4995
        %v5062 = vadd.f32 %v4776, %v4997
        %v5063 = vadd.f32 %v4777, %v5001
        %v5064 = vadd.f32 %v4778, %v5003
        %v5065 = vadd.f32 %v4779, %v5007
        %v5066 = vadd.f32 %v4780, %v5009
        %v5067 = vadd.f32 %v4781, %v5013
        %v5068 = vadd.f32 %v4782, %v5015
        %v5069 = vadd.f32 %v4783, %v5019
        %v5070 = vadd.f32 %v4784, %v5021
        %v5071 = vadd.f32 %v4785, %v5025
        %v5072 = vadd.f32 %v4786, %v5027
        %v5073 = vadd.f32 %v4787, %v5031
        %v5074 = vadd.f32 %v4788, %v5033
        %v5075 = vadd.f32 %v4789, %v5037
        %v5076 = vadd.f32 %v4790, %v5039
        %v5077 = vadd.f32 %v4791, %v5043
        %v5078 = vadd.f32 %v4792, %v5045
        %v5079 = vld [vmem:[%s6] sm:$0xff]
        %v5080 = vld [vmem:[%s6 + $0x8] sm:$0xff]
        %v5081 = vld [vmem:[%s6 + $0x10] sm:$0xff]
        %v5082 = vld [vmem:[%s6 + $0x18] sm:$0xff]
        %v5083 = vld [vmem:[%s6 + $0x20] sm:$0xff]
        %v5084 = vld [vmem:[%s6 + $0x28] sm:$0xff]
        %v5085 = vld [vmem:[%s6 + $0x30] sm:$0xff]
        %v5086 = vld [vmem:[%s6 + $0x38] sm:$0xff]
        %vm5087 = vcmask 998400
        %v5089 = vsel %vm5087, %v5079, 0
        %v5092 = vsel %vm5087, %v5080, 0
        %v5095 = vsel %vm5087, %v5081, 0
        %v5098 = vsel %vm5087, %v5082, 0
        %v5101 = vsel %vm5087, %v5083, 0
        %v5104 = vsel %vm5087, %v5084, 0
        %v5107 = vsel %vm5087, %v5085, 0
        %v5110 = vsel %vm5087, %v5086, 0
        %vm5112 = vcmask 1041408
        %v5114 = vsel %vm5112, %v5077, 0
        %v5117 = vsel %vm5112, %v5078, 0
        %5119 = vmatprep.subr.mxu0 %v5117
        %5120 = vmatpush1.msra.mxu0 %v5114
        %5121 = vmatprep.subr.mxu0 %v5076
        %5122 = vmatpush1.msra.mxu0 %v5075
        %5123 = vmatprep.subr.mxu0 %v5074
        %5124 = vmatpush1.msra.mxu0 %v5073
        %5125 = vmatprep.subr.mxu0 %v5072
        %5126 = vmatpush1.msra.mxu0 %v5071
        %5127 = vmatprep.subr.mxu0 %v5070
        %5128 = vmatpush1.msra.mxu0 %v5069
        %5129 = vmatprep.subr.mxu0 %v5068
        %5130 = vmatpush1.msra.mxu0 %v5067
        %5131 = vmatprep.subr.mxu0 %v5066
        %5132 = vmatpush1.msra.mxu0 %v5065
        %5133 = vmatprep.subr.mxu0 %v5064
        %5134 = vmatpush1.msra.mxu0 %v5063
        %5135 = vmatprep.subr.mxu0 %v5062
        %5136 = vmatpush1.msra.mxu0 %v5061
        %5137 = vmatprep.subr.mxu0 %v5060
        %5138 = vmatpush1.msra.mxu0 %v5059
        %5139 = vmatprep.subr.mxu0 %v5058
        %5140 = vmatpush1.msra.mxu0 %v5057
        %5141 = vmatprep.subr.mxu0 %v5056
        %5142 = vmatpush1.msra.mxu0 %v5055
        %5143 = vmatprep.subr.mxu0 %v5054
        %5144 = vmatpush1.msra.mxu0 %v5053
        %5145 = vmatprep.subr.mxu0 %v5052
        %5146 = vmatpush1.msra.mxu0 %v5051
        %5147 = vmatprep.subr.mxu0 %v5050
        %5148 = vmatpush1.msra.mxu0 %v5049
        %5149 = vmatprep.subr.mxu0 %v5048
        %5150 = vmatpush1.msra.mxu0 %v5047
        %5151 = vmatprep.subr.mxu0 0.0
        %5152 = vmatpush2.msra.mxu0 0.0
        %5153 = vmatprep.subr.mxu0 0.0
        %5154 = vmatpush2.msra.mxu0 0.0
        %5155 = vmatprep.subr.mxu0 0.0
        %5156 = vmatpush2.msra.mxu0 0.0
        %5157 = vmatprep.subr.mxu0 0.0
        %5158 = vmatpush2.msra.mxu0 0.0
        %5159 = vmatprep.subr.mxu0 0.0
        %5160 = vmatpush2.msra.mxu0 0.0
        %5161 = vmatprep.subr.mxu0 0.0
        %5162 = vmatpush2.msra.mxu0 0.0
        %5163 = vmatprep.subr.mxu0 0.0
        %5164 = vmatpush2.msra.mxu0 0.0
        %5165 = vmatprep.subr.mxu0 0.0
        %5166 = vmatpush2.msra.mxu0 0.0
        %5167 = vmatprep.subr.mxu0 0.0
        %5168 = vmatpush2.msra.mxu0 0.0
        %5169 = vmatprep.subr.mxu0 0.0
        %5170 = vmatpush2.msra.mxu0 0.0
        %5171 = vmatprep.subr.mxu0 0.0
        %5172 = vmatpush2.msra.mxu0 0.0
        %5173 = vmatprep.subr.mxu0 0.0
        %5174 = vmatpush2.msra.mxu0 0.0
        %5175 = vmatprep.subr.mxu0 0.0
        %5176 = vmatpush2.msra.mxu0 0.0
        %5177 = vmatprep.subr.mxu0 0.0
        %5178 = vmatpush2.msra.mxu0 0.0
        %5179 = vmatprep.subr.mxu0 0.0
        %5180 = vmatpush2.msra.mxu0 0.0
        %5181 = vmatprep.subr.mxu0 0.0
        %5182 = vmatpush2.msra.mxu0 0.0
        %5183 = vmatprep.mubr.f32.mxu0 0.0
        %5184 = vmatmul.mubr.f32.gmra.mxu0 %v5089
        %v5185 = vpop.f32.mrf.mxu0
        %v5186 = vadd.f32 0.0, %v5185
        %v5187 = vpop.f32.mrf.mxu0
        %v5188 = vadd.f32 0.0, %v5187
        %5189 = vmatprep.mubr.f32.mxu0 0.0
        %5190 = vmatmul.mubr.f32.gmra.mxu0 %v5092
        %v5191 = vpop.f32.mrf.mxu0
        %v5192 = vadd.f32 0.0, %v5191
        %v5193 = vpop.f32.mrf.mxu0
        %v5194 = vadd.f32 0.0, %v5193
        %5195 = vmatprep.mubr.f32.mxu0 0.0
        %5196 = vmatmul.mubr.f32.gmra.mxu0 %v5095
        %v5197 = vpop.f32.mrf.mxu0
        %v5198 = vadd.f32 0.0, %v5197
        %v5199 = vpop.f32.mrf.mxu0
        %v5200 = vadd.f32 0.0, %v5199
        %5201 = vmatprep.mubr.f32.mxu0 0.0
        %5202 = vmatmul.mubr.f32.gmra.mxu0 %v5098
        %v5203 = vpop.f32.mrf.mxu0
        %v5204 = vadd.f32 0.0, %v5203
        %v5205 = vpop.f32.mrf.mxu0
        %v5206 = vadd.f32 0.0, %v5205
        %5207 = vmatprep.mubr.f32.mxu0 0.0
        %5208 = vmatmul.mubr.f32.gmra.mxu0 %v5101
        %v5209 = vpop.f32.mrf.mxu0
        %v5210 = vadd.f32 0.0, %v5209
        %v5211 = vpop.f32.mrf.mxu0
        %v5212 = vadd.f32 0.0, %v5211
        %5213 = vmatprep.mubr.f32.mxu0 0.0
        %5214 = vmatmul.mubr.f32.gmra.mxu0 %v5104
        %v5215 = vpop.f32.mrf.mxu0
        %v5216 = vadd.f32 0.0, %v5215
        %v5217 = vpop.f32.mrf.mxu0
        %v5218 = vadd.f32 0.0, %v5217
        %5219 = vmatprep.mubr.f32.mxu0 0.0
        %5220 = vmatmul.mubr.f32.gmra.mxu0 %v5107
        %v5221 = vpop.f32.mrf.mxu0
        %v5222 = vadd.f32 0.0, %v5221
        %v5223 = vpop.f32.mrf.mxu0
        %v5224 = vadd.f32 0.0, %v5223
        %5225 = vmatprep.mubr.f32.mxu0 0.0
        %5226 = vmatmul.mubr.f32.gmra.mxu0 %v5110
        %v5227 = vpop.f32.mrf.mxu0
        %v5228 = vadd.f32 0.0, %v5227
        %v5229 = vpop.f32.mrf.mxu0
        %v5230 = vadd.f32 0.0, %v5229
        %5231 = vdwg.mxu0
        %s5232 = scalar_lea.vmem %s6, 64
        %v5233 = vld [vmem:[%s5232] sm:$0xff]
        %v5234 = vld [vmem:[%s5232 + $0x8] sm:$0xff]
        %v5235 = vld [vmem:[%s5232 + $0x10] sm:$0xff]
        %v5236 = vld [vmem:[%s5232 + $0x18] sm:$0xff]
        %v5237 = vld [vmem:[%s5232 + $0x20] sm:$0xff]
        %v5238 = vld [vmem:[%s5232 + $0x28] sm:$0xff]
        %v5239 = vld [vmem:[%s5232 + $0x30] sm:$0xff]
        %v5240 = vld [vmem:[%s5232 + $0x38] sm:$0xff]
        %v5242 = vsel %vm5087, %v5233, 0
        %v5245 = vsel %vm5087, %v5234, 0
        %v5248 = vsel %vm5087, %v5235, 0
        %v5251 = vsel %vm5087, %v5236, 0
        %v5254 = vsel %vm5087, %v5237, 0
        %v5257 = vsel %vm5087, %v5238, 0
        %v5260 = vsel %vm5087, %v5239, 0
        %v5263 = vsel %vm5087, %v5240, 0
        %5265 = vmatprep.subr.mxu0 %v5117
        %5266 = vmatpush1.msra.mxu0 %v5114
        %5267 = vmatprep.subr.mxu0 %v5076
        %5268 = vmatpush1.msra.mxu0 %v5075
        %5269 = vmatprep.subr.mxu0 %v5074
        %5270 = vmatpush1.msra.mxu0 %v5073
        %5271 = vmatprep.subr.mxu0 %v5072
        %5272 = vmatpush1.msra.mxu0 %v5071
        %5273 = vmatprep.subr.mxu0 %v5070
        %5274 = vmatpush1.msra.mxu0 %v5069
        %5275 = vmatprep.subr.mxu0 %v5068
        %5276 = vmatpush1.msra.mxu0 %v5067
        %5277 = vmatprep.subr.mxu0 %v5066
        %5278 = vmatpush1.msra.mxu0 %v5065
        %5279 = vmatprep.subr.mxu0 %v5064
        %5280 = vmatpush1.msra.mxu0 %v5063
        %5281 = vmatprep.subr.mxu0 %v5062
        %5282 = vmatpush1.msra.mxu0 %v5061
        %5283 = vmatprep.subr.mxu0 %v5060
        %5284 = vmatpush1.msra.mxu0 %v5059
        %5285 = vmatprep.subr.mxu0 %v5058
        %5286 = vmatpush1.msra.mxu0 %v5057
        %5287 = vmatprep.subr.mxu0 %v5056
        %5288 = vmatpush1.msra.mxu0 %v5055
        %5289 = vmatprep.subr.mxu0 %v5054
        %5290 = vmatpush1.msra.mxu0 %v5053
        %5291 = vmatprep.subr.mxu0 %v5052
        %5292 = vmatpush1.msra.mxu0 %v5051
        %5293 = vmatprep.subr.mxu0 %v5050
        %5294 = vmatpush1.msra.mxu0 %v5049
        %5295 = vmatprep.subr.mxu0 %v5048
        %5296 = vmatpush1.msra.mxu0 %v5047
        %5297 = vmatprep.subr.mxu0 0.0
        %5298 = vmatpush2.msra.mxu0 0.0
        %5299 = vmatprep.subr.mxu0 0.0
        %5300 = vmatpush2.msra.mxu0 0.0
        %5301 = vmatprep.subr.mxu0 0.0
        %5302 = vmatpush2.msra.mxu0 0.0
        %5303 = vmatprep.subr.mxu0 0.0
        %5304 = vmatpush2.msra.mxu0 0.0
        %5305 = vmatprep.subr.mxu0 0.0
        %5306 = vmatpush2.msra.mxu0 0.0
        %5307 = vmatprep.subr.mxu0 0.0
        %5308 = vmatpush2.msra.mxu0 0.0
        %5309 = vmatprep.subr.mxu0 0.0
        %5310 = vmatpush2.msra.mxu0 0.0
        %5311 = vmatprep.subr.mxu0 0.0
        %5312 = vmatpush2.msra.mxu0 0.0
        %5313 = vmatprep.subr.mxu0 0.0
        %5314 = vmatpush2.msra.mxu0 0.0
        %5315 = vmatprep.subr.mxu0 0.0
        %5316 = vmatpush2.msra.mxu0 0.0
        %5317 = vmatprep.subr.mxu0 0.0
        %5318 = vmatpush2.msra.mxu0 0.0
        %5319 = vmatprep.subr.mxu0 0.0
        %5320 = vmatpush2.msra.mxu0 0.0
        %5321 = vmatprep.subr.mxu0 0.0
        %5322 = vmatpush2.msra.mxu0 0.0
        %5323 = vmatprep.subr.mxu0 0.0
        %5324 = vmatpush2.msra.mxu0 0.0
        %5325 = vmatprep.subr.mxu0 0.0
        %5326 = vmatpush2.msra.mxu0 0.0
        %5327 = vmatprep.subr.mxu0 0.0
        %5328 = vmatpush2.msra.mxu0 0.0
        %5329 = vmatprep.mubr.f32.mxu0 0.0
        %5330 = vmatmul.mubr.f32.gmra.mxu0 %v5242
        %v5331 = vpop.f32.mrf.mxu0
        %v5332 = vadd.f32 0.0, %v5331
        %v5333 = vpop.f32.mrf.mxu0
        %v5334 = vadd.f32 0.0, %v5333
        %5335 = vmatprep.mubr.f32.mxu0 0.0
        %5336 = vmatmul.mubr.f32.gmra.mxu0 %v5245
        %v5337 = vpop.f32.mrf.mxu0
        %v5338 = vadd.f32 0.0, %v5337
        %v5339 = vpop.f32.mrf.mxu0
        %v5340 = vadd.f32 0.0, %v5339
        %5341 = vmatprep.mubr.f32.mxu0 0.0
        %5342 = vmatmul.mubr.f32.gmra.mxu0 %v5248
        %v5343 = vpop.f32.mrf.mxu0
        %v5344 = vadd.f32 0.0, %v5343
        %v5345 = vpop.f32.mrf.mxu0
        %v5346 = vadd.f32 0.0, %v5345
        %5347 = vmatprep.mubr.f32.mxu0 0.0
        %5348 = vmatmul.mubr.f32.gmra.mxu0 %v5251
        %v5349 = vpop.f32.mrf.mxu0
        %v5350 = vadd.f32 0.0, %v5349
        %v5351 = vpop.f32.mrf.mxu0
        %v5352 = vadd.f32 0.0, %v5351
        %5353 = vmatprep.mubr.f32.mxu0 0.0
        %5354 = vmatmul.mubr.f32.gmra.mxu0 %v5254
        %v5355 = vpop.f32.mrf.mxu0
        %v5356 = vadd.f32 0.0, %v5355
        %v5357 = vpop.f32.mrf.mxu0
        %v5358 = vadd.f32 0.0, %v5357
        %5359 = vmatprep.mubr.f32.mxu0 0.0
        %5360 = vmatmul.mubr.f32.gmra.mxu0 %v5257
        %v5361 = vpop.f32.mrf.mxu0
        %v5362 = vadd.f32 0.0, %v5361
        %v5363 = vpop.f32.mrf.mxu0
        %v5364 = vadd.f32 0.0, %v5363
        %5365 = vmatprep.mubr.f32.mxu0 0.0
        %5366 = vmatmul.mubr.f32.gmra.mxu0 %v5260
        %v5367 = vpop.f32.mrf.mxu0
        %v5368 = vadd.f32 0.0, %v5367
        %v5369 = vpop.f32.mrf.mxu0
        %v5370 = vadd.f32 0.0, %v5369
        %5371 = vmatprep.mubr.f32.mxu0 0.0
        %5372 = vmatmul.mubr.f32.gmra.mxu0 %v5263
        %v5373 = vpop.f32.mrf.mxu0
        %v5374 = vadd.f32 0.0, %v5373
        %v5375 = vpop.f32.mrf.mxu0
        %v5376 = vadd.f32 0.0, %v5375
        %5377 = vdwg.mxu0
        %v5378 = vmax.f32 %v5186, %v5332
        %v5379 = vmax.f32 %v5188, %v5334
        %v5380 = vmax.f32 %v5192, %v5338
        %v5381 = vmax.f32 %v5194, %v5340
        %v5382 = vmax.f32 %v5198, %v5344
        %v5383 = vmax.f32 %v5200, %v5346
        %v5384 = vmax.f32 %v5204, %v5350
        %v5385 = vmax.f32 %v5206, %v5352
        %v5386 = vmax.f32 %v5210, %v5356
        %v5387 = vmax.f32 %v5212, %v5358
        %v5388 = vmax.f32 %v5216, %v5362
        %v5389 = vmax.f32 %v5218, %v5364
        %v5390 = vmax.f32 %v5222, %v5368
        %v5391 = vmax.f32 %v5224, %v5370
        %v5392 = vmax.f32 %v5228, %v5374
        %v5393 = vmax.f32 %v5230, %v5376
        %v5394 = vld [vmem:[%s7] sm:$0xff]
        %v5395 = vld [vmem:[%s7 + $0x8] sm:$0xff]
        %v5396 = vld [vmem:[%s7 + $0x10] sm:$0xff]
        %v5397 = vld [vmem:[%s7 + $0x18] sm:$0xff]
        %v5398 = vld [vmem:[%s7 + $0x20] sm:$0xff]
        %v5399 = vld [vmem:[%s7 + $0x28] sm:$0xff]
        %v5400 = vld [vmem:[%s7 + $0x30] sm:$0xff]
        %v5401 = vld [vmem:[%s7 + $0x38] sm:$0xff]
        %v5402 = vld [vmem:[%s7 + $0x40] sm:$0xff]
        %v5403 = vld [vmem:[%s7 + $0x48] sm:$0xff]
        %v5404 = vld [vmem:[%s7 + $0x50] sm:$0xff]
        %v5405 = vld [vmem:[%s7 + $0x58] sm:$0xff]
        %v5406 = vld [vmem:[%s7 + $0x60] sm:$0xff]
        %v5407 = vld [vmem:[%s7 + $0x68] sm:$0xff]
        %v5408 = vld [vmem:[%s7 + $0x70] sm:$0xff]
        %v5409 = vld [vmem:[%s7 + $0x78] sm:$0xff]
        %v5410 = vld [vmem:[%s7 + $0x80] sm:$0xff]
        %v5411 = vld [vmem:[%s7 + $0x88] sm:$0xff]
        %v5412 = vld [vmem:[%s7 + $0x90] sm:$0xff]
        %v5413 = vld [vmem:[%s7 + $0x98] sm:$0xff]
        %vm5414 = vcmask 261120
        %v5416 = vsel %vm5414, %v5379, 0
        %v5419 = vsel %vm5414, %v5381, 0
        %v5422 = vsel %vm5414, %v5383, 0
        %v5425 = vsel %vm5414, %v5385, 0
        %v5428 = vsel %vm5414, %v5387, 0
        %v5431 = vsel %vm5414, %v5389, 0
        %v5434 = vsel %vm5414, %v5391, 0
        %v5437 = vsel %vm5414, %v5393, 0
        %5439 = vmatprep.subr.mxu0 0.0
        %5440 = vmatpush1.msra.mxu0 %v5409
        %5441 = vmatprep.subr.mxu0 0.0
        %5442 = vmatpush1.msra.mxu0 %v5408
        %5443 = vmatprep.subr.mxu0 0.0
        %5444 = vmatpush1.msra.mxu0 %v5407
        %5445 = vmatprep.subr.mxu0 0.0
        %5446 = vmatpush1.msra.mxu0 %v5406
        %5447 = vmatprep.subr.mxu0 0.0
        %5448 = vmatpush1.msra.mxu0 %v5405
        %5449 = vmatprep.subr.mxu0 0.0
        %5450 = vmatpush1.msra.mxu0 %v5404
        %5451 = vmatprep.subr.mxu0 0.0
        %5452 = vmatpush1.msra.mxu0 %v5403
        %5453 = vmatprep.subr.mxu0 0.0
        %5454 = vmatpush1.msra.mxu0 %v5402
        %5455 = vmatprep.subr.mxu0 0.0
        %5456 = vmatpush1.msra.mxu0 %v5401
        %5457 = vmatprep.subr.mxu0 0.0
        %5458 = vmatpush1.msra.mxu0 %v5400
        %5459 = vmatprep.subr.mxu0 0.0
        %5460 = vmatpush1.msra.mxu0 %v5399
        %5461 = vmatprep.subr.mxu0 0.0
        %5462 = vmatpush1.msra.mxu0 %v5398
        %5463 = vmatprep.subr.mxu0 0.0
        %5464 = vmatpush1.msra.mxu0 %v5397
        %5465 = vmatprep.subr.mxu0 0.0
        %5466 = vmatpush1.msra.mxu0 %v5396
        %5467 = vmatprep.subr.mxu0 0.0
        %5468 = vmatpush1.msra.mxu0 %v5395
        %5469 = vmatprep.subr.mxu0 0.0
        %5470 = vmatpush1.msra.mxu0 %v5394
        %5471 = vmatprep.subr.mxu0 0.0
        %5472 = vmatpush2.msra.mxu0 0.0
        %5473 = vmatprep.subr.mxu0 0.0
        %5474 = vmatpush2.msra.mxu0 0.0
        %5475 = vmatprep.subr.mxu0 0.0
        %5476 = vmatpush2.msra.mxu0 0.0
        %5477 = vmatprep.subr.mxu0 0.0
        %5478 = vmatpush2.msra.mxu0 0.0
        %5479 = vmatprep.subr.mxu0 0.0
        %5480 = vmatpush2.msra.mxu0 0.0
        %5481 = vmatprep.subr.mxu0 0.0
        %5482 = vmatpush2.msra.mxu0 0.0
        %5483 = vmatprep.subr.mxu0 0.0
        %5484 = vmatpush2.msra.mxu0 0.0
        %5485 = vmatprep.subr.mxu0 0.0
        %5486 = vmatpush2.msra.mxu0 0.0
        %5487 = vmatprep.subr.mxu0 0.0
        %5488 = vmatpush2.msra.mxu0 0.0
        %5489 = vmatprep.subr.mxu0 0.0
        %5490 = vmatpush2.msra.mxu0 0.0
        %5491 = vmatprep.subr.mxu0 0.0
        %5492 = vmatpush2.msra.mxu0 0.0
        %5493 = vmatprep.subr.mxu0 0.0
        %5494 = vmatpush2.msra.mxu0 0.0
        %5495 = vmatprep.subr.mxu0 0.0
        %5496 = vmatpush2.msra.mxu0 %v5413
        %5497 = vmatprep.subr.mxu0 0.0
        %5498 = vmatpush2.msra.mxu0 %v5412
        %5499 = vmatprep.subr.mxu0 0.0
        %5500 = vmatpush2.msra.mxu0 %v5411
        %5501 = vmatprep.subr.mxu0 0.0
        %5502 = vmatpush2.msra.mxu0 %v5410
        %5503 = vmatprep.mubr.f32.mxu0 %v5416
        %5504 = vmatmul.mubr.f32.gmra.mxu0 %v5378
        %v5505 = vpop.f32.mrf.mxu0
        %v5506 = vadd.f32 0.0, %v5505
        %v5507 = vpop.f32.mrf.mxu0
        %5508 = vmatprep.mubr.f32.mxu0 %v5419
        %5509 = vmatmul.mubr.f32.gmra.mxu0 %v5380
        %v5510 = vpop.f32.mrf.mxu0
        %v5511 = vadd.f32 0.0, %v5510
        %v5512 = vpop.f32.mrf.mxu0
        %5513 = vmatprep.mubr.f32.mxu0 %v5422
        %5514 = vmatmul.mubr.f32.gmra.mxu0 %v5382
        %v5515 = vpop.f32.mrf.mxu0
        %v5516 = vadd.f32 0.0, %v5515
        %v5517 = vpop.f32.mrf.mxu0
        %5518 = vmatprep.mubr.f32.mxu0 %v5425
        %5519 = vmatmul.mubr.f32.gmra.mxu0 %v5384
        %v5520 = vpop.f32.mrf.mxu0
        %v5521 = vadd.f32 0.0, %v5520
        %v5522 = vpop.f32.mrf.mxu0
        %5523 = vmatprep.mubr.f32.mxu0 %v5428
        %5524 = vmatmul.mubr.f32.gmra.mxu0 %v5386
        %v5525 = vpop.f32.mrf.mxu0
        %v5526 = vadd.f32 0.0, %v5525
        %v5527 = vpop.f32.mrf.mxu0
        %5528 = vmatprep.mubr.f32.mxu0 %v5431
        %5529 = vmatmul.mubr.f32.gmra.mxu0 %v5388
        %v5530 = vpop.f32.mrf.mxu0
        %v5531 = vpop.f32.mrf.mxu0
        %5532 = vmatprep.mubr.f32.mxu0 %v5434
        %5533 = vmatmul.mubr.f32.gmra.mxu0 %v5390
        %v5534 = vpop.f32.mrf.mxu0
        %v5535 = vpop.f32.mrf.mxu0
        %5536 = vmatprep.mubr.f32.mxu0 %v5437
        %5537 = vmatmul.mubr.f32.gmra.mxu0 %v5392
        %v5538 = vpop.f32.mrf.mxu0
        %v5539 = vpop.f32.mrf.mxu0
        %5540 = vdwg.mxu0
        %s5541 = scalar_lea.vmem %s7, 160
        %v5542 = vld [vmem:[%s5541] sm:$0xff]
        %v5543 = vld [vmem:[%s5541 + $0x8] sm:$0xff]
        %v5544 = vld [vmem:[%s5541 + $0x10] sm:$0xff]
        %v5545 = vld [vmem:[%s5541 + $0x18] sm:$0xff]
        %v5546 = vld [vmem:[%s5541 + $0x20] sm:$0xff]
        %v5547 = vld [vmem:[%s5541 + $0x28] sm:$0xff]
        %v5548 = vld [vmem:[%s5541 + $0x30] sm:$0xff]
        %v5549 = vld [vmem:[%s5541 + $0x38] sm:$0xff]
        %v5550 = vld [vmem:[%s5541 + $0x40] sm:$0xff]
        %v5551 = vld [vmem:[%s5541 + $0x48] sm:$0xff]
        %v5552 = vld [vmem:[%s5541 + $0x50] sm:$0xff]
        %v5553 = vld [vmem:[%s5541 + $0x58] sm:$0xff]
        %v5554 = vld [vmem:[%s5541 + $0x60] sm:$0xff]
        %v5555 = vld [vmem:[%s5541 + $0x68] sm:$0xff]
        %v5556 = vld [vmem:[%s5541 + $0x70] sm:$0xff]
        %v5557 = vld [vmem:[%s5541 + $0x78] sm:$0xff]
        %v5558 = vld [vmem:[%s5541 + $0x80] sm:$0xff]
        %v5559 = vld [vmem:[%s5541 + $0x88] sm:$0xff]
        %v5560 = vld [vmem:[%s5541 + $0x90] sm:$0xff]
        %v5561 = vld [vmem:[%s5541 + $0x98] sm:$0xff]
        %5562 = vmatprep.subr.mxu0 0.0
        %5563 = vmatpush1.msra.mxu0 %v5557
        %5564 = vmatprep.subr.mxu0 0.0
        %5565 = vmatpush1.msra.mxu0 %v5556
        %5566 = vmatprep.subr.mxu0 0.0
        %5567 = vmatpush1.msra.mxu0 %v5555
        %5568 = vmatprep.subr.mxu0 0.0
        %5569 = vmatpush1.msra.mxu0 %v5554
        %5570 = vmatprep.subr.mxu0 0.0
        %5571 = vmatpush1.msra.mxu0 %v5553
        %5572 = vmatprep.subr.mxu0 0.0
        %5573 = vmatpush1.msra.mxu0 %v5552
        %5574 = vmatprep.subr.mxu0 0.0
        %5575 = vmatpush1.msra.mxu0 %v5551
        %5576 = vmatprep.subr.mxu0 0.0
        %5577 = vmatpush1.msra.mxu0 %v5550
        %5578 = vmatprep.subr.mxu0 0.0
        %5579 = vmatpush1.msra.mxu0 %v5549
        %5580 = vmatprep.subr.mxu0 0.0
        %5581 = vmatpush1.msra.mxu0 %v5548
        %5582 = vmatprep.subr.mxu0 0.0
        %5583 = vmatpush1.msra.mxu0 %v5547
        %5584 = vmatprep.subr.mxu0 0.0
        %5585 = vmatpush1.msra.mxu0 %v5546
        %5586 = vmatprep.subr.mxu0 0.0
        %5587 = vmatpush1.msra.mxu0 %v5545
        %5588 = vmatprep.subr.mxu0 0.0
        %5589 = vmatpush1.msra.mxu0 %v5544
        %5590 = vmatprep.subr.mxu0 0.0
        %5591 = vmatpush1.msra.mxu0 %v5543
        %5592 = vmatprep.subr.mxu0 0.0
        %5593 = vmatpush1.msra.mxu0 %v5542
        %5594 = vmatprep.subr.mxu0 0.0
        %5595 = vmatpush2.msra.mxu0 0.0
        %5596 = vmatprep.subr.mxu0 0.0
        %5597 = vmatpush2.msra.mxu0 0.0
        %5598 = vmatprep.subr.mxu0 0.0
        %5599 = vmatpush2.msra.mxu0 0.0
        %5600 = vmatprep.subr.mxu0 0.0
        %5601 = vmatpush2.msra.mxu0 0.0
        %5602 = vmatprep.subr.mxu0 0.0
        %5603 = vmatpush2.msra.mxu0 0.0
        %5604 = vmatprep.subr.mxu0 0.0
        %5605 = vmatpush2.msra.mxu0 0.0
        %5606 = vmatprep.subr.mxu0 0.0
        %5607 = vmatpush2.msra.mxu0 0.0
        %5608 = vmatprep.subr.mxu0 0.0
        %5609 = vmatpush2.msra.mxu0 0.0
        %5610 = vmatprep.subr.mxu0 0.0
        %5611 = vmatpush2.msra.mxu0 0.0
        %5612 = vmatprep.subr.mxu0 0.0
        %5613 = vmatpush2.msra.mxu0 0.0
        %5614 = vmatprep.subr.mxu0 0.0
        %5615 = vmatpush2.msra.mxu0 0.0
        %5616 = vmatprep.subr.mxu0 0.0
        %5617 = vmatpush2.msra.mxu0 0.0
        %5618 = vmatprep.subr.mxu0 0.0
        %5619 = vmatpush2.msra.mxu0 %v5561
        %5620 = vmatprep.subr.mxu0 0.0
        %5621 = vmatpush2.msra.mxu0 %v5560
        %5622 = vmatprep.subr.mxu0 0.0
        %5623 = vmatpush2.msra.mxu0 %v5559
        %5624 = vmatprep.subr.mxu0 0.0
        %5625 = vmatpush2.msra.mxu0 %v5558
        %5626 = vmatprep.mubr.f32.mxu0 %v5416
        %5627 = vmatmul.mubr.f32.gmra.mxu0 %v5378
        %v5628 = vpop.f32.mrf.mxu0
        %v5629 = vadd.f32 0.0, %v5628
        %v5630 = vpop.f32.mrf.mxu0
        %5631 = vmatprep.mubr.f32.mxu0 %v5419
        %5632 = vmatmul.mubr.f32.gmra.mxu0 %v5380
        %v5633 = vpop.f32.mrf.mxu0
        %v5634 = vadd.f32 0.0, %v5633
        %v5635 = vpop.f32.mrf.mxu0
        %5636 = vmatprep.mubr.f32.mxu0 %v5422
        %5637 = vmatmul.mubr.f32.gmra.mxu0 %v5382
        %v5638 = vpop.f32.mrf.mxu0
        %v5639 = vadd.f32 0.0, %v5638
        %v5640 = vpop.f32.mrf.mxu0
        %5641 = vmatprep.mubr.f32.mxu0 %v5425
        %5642 = vmatmul.mubr.f32.gmra.mxu0 %v5384
        %v5643 = vpop.f32.mrf.mxu0
        %v5644 = vadd.f32 0.0, %v5643
        %v5645 = vpop.f32.mrf.mxu0
        %5646 = vmatprep.mubr.f32.mxu0 %v5428
        %5647 = vmatmul.mubr.f32.gmra.mxu0 %v5386
        %v5648 = vpop.f32.mrf.mxu0
        %v5649 = vadd.f32 0.0, %v5648
        %v5650 = vpop.f32.mrf.mxu0
        %5651 = vmatprep.mubr.f32.mxu0 %v5431
        %5652 = vmatmul.mubr.f32.gmra.mxu0 %v5388
        %v5653 = vpop.f32.mrf.mxu0
        %v5654 = vpop.f32.mrf.mxu0
        %5655 = vmatprep.mubr.f32.mxu0 %v5434
        %5656 = vmatmul.mubr.f32.gmra.mxu0 %v5390
        %v5657 = vpop.f32.mrf.mxu0
        %v5658 = vpop.f32.mrf.mxu0
        %5659 = vmatprep.mubr.f32.mxu0 %v5437
        %5660 = vmatmul.mubr.f32.gmra.mxu0 %v5392
        %v5661 = vpop.f32.mrf.mxu0
        %v5662 = vpop.f32.mrf.mxu0
        %5663 = vdwg.mxu0
        %v5664 = vmax.f32 %v5506, %v5629
        %v5665 = vmax.f32 %v5511, %v5634
        %v5666 = vmax.f32 %v5516, %v5639
        %v5667 = vmax.f32 %v5521, %v5644
        %v5668 = vmax.f32 %v5526, %v5649
        %v5669 = vld [vmem:[%s8] sm:$0x1]
        %v5671 = vlaneseq
        %v5672 = vshrl.u32 %v5671, 7
        %v5673 = vsub.s32 0, %v5672
        %v5674 = vrot.slane %v5669, %v5673
        %v5676 = vadd.f32 %v5664, %v5674
        %v5677 = vadd.f32 %v5665, %v5674
        %v5678 = vadd.f32 %v5666, %v5674
        %v5679 = vadd.f32 %v5667, %v5674
        %v5680 = vadd.f32 %v5668, %v5674
        %v5681 = vmax.f32 %v5676, 0.0
        %v5682 = vmax.f32 %v5677, 0.0
        %v5683 = vmax.f32 %v5678, 0.0
        %v5684 = vmax.f32 %v5679, 0.0
        %v5685 = vmax.f32 %v5680, 0.0
        %v5686 = vld [vmem:[%s9] sm:$0xff]
        %v5687 = vld [vmem:[%s9 + $0x8] sm:$0xff]
        %v5688 = vld [vmem:[%s9 + $0x10] sm:$0xff]
        %v5689 = vld [vmem:[%s9 + $0x18] sm:$0xff]
        %v5690 = vld [vmem:[%s9 + $0x20] sm:$0xff]
        %v5691 = vld [vmem:[%s9 + $0x28] sm:$0xff]
        %v5692 = vld [vmem:[%s9 + $0x30] sm:$0xff]
        %v5693 = vld [vmem:[%s9 + $0x38] sm:$0xff]
        %v5694 = vld [vmem:[%s9 + $0x40] sm:$0xff]
        %v5695 = vld [vmem:[%s9 + $0x48] sm:$0xff]
        %s5696 = scalar_lea.vmem %s9, 80
        %v5697 = vld [vmem:[%s5696] sm:$0xff]
        %v5698 = vld [vmem:[%s5696 + $0x8] sm:$0xff]
        %v5699 = vld [vmem:[%s5696 + $0x10] sm:$0xff]
        %v5700 = vld [vmem:[%s5696 + $0x18] sm:$0xff]
        %v5701 = vld [vmem:[%s5696 + $0x20] sm:$0xff]
        %v5702 = vld [vmem:[%s5696 + $0x28] sm:$0xff]
        %v5703 = vld [vmem:[%s5696 + $0x30] sm:$0xff]
        %v5704 = vld [vmem:[%s5696 + $0x38] sm:$0xff]
        %v5705 = vld [vmem:[%s5696 + $0x40] sm:$0xff]
        %v5706 = vld [vmem:[%s5696 + $0x48] sm:$0xff]
        %vm5707 = vcmask 654336
        %v5709 = vsel %vm5707, %v5682, 0
        %5711 = vmatprep.subr.mxu0 0.0
        %5712 = vmatpush1.msra.mxu0 0.0
        %5713 = vmatprep.subr.mxu0 0.0
        %5714 = vmatpush1.msra.mxu0 0.0
        %5715 = vmatprep.subr.mxu0 0.0
        %5716 = vmatpush1.msra.mxu0 0.0
        %5717 = vmatprep.subr.mxu0 0.0
        %5718 = vmatpush1.msra.mxu0 0.0
        %5719 = vmatprep.subr.mxu0 0.0
        %5720 = vmatpush1.msra.mxu0 0.0
        %5721 = vmatprep.subr.mxu0 0.0
        %5722 = vmatpush1.msra.mxu0 0.0
        %5723 = vmatprep.subr.mxu0 0.0
        %5724 = vmatpush1.msra.mxu0 %v5706
        %5725 = vmatprep.subr.mxu0 0.0
        %5726 = vmatpush1.msra.mxu0 %v5705
        %5727 = vmatprep.subr.mxu0 0.0
        %5728 = vmatpush1.msra.mxu0 %v5704
        %5729 = vmatprep.subr.mxu0 0.0
        %5730 = vmatpush1.msra.mxu0 %v5703
        %5731 = vmatprep.subr.mxu0 0.0
        %5732 = vmatpush1.msra.mxu0 %v5702
        %5733 = vmatprep.subr.mxu0 0.0
        %5734 = vmatpush1.msra.mxu0 %v5701
        %5735 = vmatprep.subr.mxu0 0.0
        %5736 = vmatpush1.msra.mxu0 %v5700
        %5737 = vmatprep.subr.mxu0 0.0
        %5738 = vmatpush1.msra.mxu0 %v5699
        %5739 = vmatprep.subr.mxu0 0.0
        %5740 = vmatpush1.msra.mxu0 %v5698
        %5741 = vmatprep.subr.mxu0 0.0
        %5742 = vmatpush1.msra.mxu0 %v5697
        %5743 = vmatprep.subr.mxu0 0.0
        %5744 = vmatpush2.msra.mxu0 0.0
        %5745 = vmatprep.subr.mxu0 0.0
        %5746 = vmatpush2.msra.mxu0 0.0
        %5747 = vmatprep.subr.mxu0 0.0
        %5748 = vmatpush2.msra.mxu0 0.0
        %5749 = vmatprep.subr.mxu0 0.0
        %5750 = vmatpush2.msra.mxu0 0.0
        %5751 = vmatprep.subr.mxu0 0.0
        %5752 = vmatpush2.msra.mxu0 0.0
        %5753 = vmatprep.subr.mxu0 0.0
        %5754 = vmatpush2.msra.mxu0 0.0
        %5755 = vmatprep.subr.mxu0 0.0
        %5756 = vmatpush2.msra.mxu0 0.0
        %5757 = vmatprep.subr.mxu0 0.0
        %5758 = vmatpush2.msra.mxu0 0.0
        %5759 = vmatprep.subr.mxu0 0.0
        %5760 = vmatpush2.msra.mxu0 0.0
        %5761 = vmatprep.subr.mxu0 0.0
        %5762 = vmatpush2.msra.mxu0 0.0
        %5763 = vmatprep.subr.mxu0 0.0
        %5764 = vmatpush2.msra.mxu0 0.0
        %5765 = vmatprep.subr.mxu0 0.0
        %5766 = vmatpush2.msra.mxu0 0.0
        %5767 = vmatprep.subr.mxu0 0.0
        %5768 = vmatpush2.msra.mxu0 0.0
        %5769 = vmatprep.subr.mxu0 0.0
        %5770 = vmatpush2.msra.mxu0 0.0
        %5771 = vmatprep.subr.mxu0 0.0
        %5772 = vmatpush2.msra.mxu0 0.0
        %5773 = vmatprep.subr.mxu0 0.0
        %5774 = vmatpush2.msra.mxu0 0.0
        %5775 = vmatprep.mubr.f32.mxu0 0.0
        %5776 = vmatmul.mubr.f32.gmra.mxu0 %v5709
        %v5777 = vpop.f32.mrf.mxu0
        %v5778 = vadd.f32 0.0, %v5777
        %v5779 = vpop.f32.mrf.mxu0
        %5780 = vdwg.mxu0
        %v5782 = vsel %vm5707, %v5681, 0
        %5784 = vmatprep.subr.mxu0 0.0
        %5785 = vmatpush1.msra.mxu0 0.0
        %5786 = vmatprep.subr.mxu0 0.0
        %5787 = vmatpush1.msra.mxu0 0.0
        %5788 = vmatprep.subr.mxu0 0.0
        %5789 = vmatpush1.msra.mxu0 0.0
        %5790 = vmatprep.subr.mxu0 0.0
        %5791 = vmatpush1.msra.mxu0 0.0
        %5792 = vmatprep.subr.mxu0 0.0
        %5793 = vmatpush1.msra.mxu0 0.0
        %5794 = vmatprep.subr.mxu0 0.0
        %5795 = vmatpush1.msra.mxu0 0.0
        %5796 = vmatprep.subr.mxu0 0.0
        %5797 = vmatpush1.msra.mxu0 %v5695
        %5798 = vmatprep.subr.mxu0 0.0
        %5799 = vmatpush1.msra.mxu0 %v5694
        %5800 = vmatprep.subr.mxu0 0.0
        %5801 = vmatpush1.msra.mxu0 %v5693
        %5802 = vmatprep.subr.mxu0 0.0
        %5803 = vmatpush1.msra.mxu0 %v5692
        %5804 = vmatprep.subr.mxu0 0.0
        %5805 = vmatpush1.msra.mxu0 %v5691
        %5806 = vmatprep.subr.mxu0 0.0
        %5807 = vmatpush1.msra.mxu0 %v5690
        %5808 = vmatprep.subr.mxu0 0.0
        %5809 = vmatpush1.msra.mxu0 %v5689
        %5810 = vmatprep.subr.mxu0 0.0
        %5811 = vmatpush1.msra.mxu0 %v5688
        %5812 = vmatprep.subr.mxu0 0.0
        %5813 = vmatpush1.msra.mxu0 %v5687
        %5814 = vmatprep.subr.mxu0 0.0
        %5815 = vmatpush1.msra.mxu0 %v5686
        %5816 = vmatprep.subr.mxu0 0.0
        %5817 = vmatpush2.msra.mxu0 0.0
        %5818 = vmatprep.subr.mxu0 0.0
        %5819 = vmatpush2.msra.mxu0 0.0
        %5820 = vmatprep.subr.mxu0 0.0
        %5821 = vmatpush2.msra.mxu0 0.0
        %5822 = vmatprep.subr.mxu0 0.0
        %5823 = vmatpush2.msra.mxu0 0.0
        %5824 = vmatprep.subr.mxu0 0.0
        %5825 = vmatpush2.msra.mxu0 0.0
        %5826 = vmatprep.subr.mxu0 0.0
        %5827 = vmatpush2.msra.mxu0 0.0
        %5828 = vmatprep.subr.mxu0 0.0
        %5829 = vmatpush2.msra.mxu0 0.0
        %5830 = vmatprep.subr.mxu0 0.0
        %5831 = vmatpush2.msra.mxu0 0.0
        %5832 = vmatprep.subr.mxu0 0.0
        %5833 = vmatpush2.msra.mxu0 0.0
        %5834 = vmatprep.subr.mxu0 0.0
        %5835 = vmatpush2.msra.mxu0 0.0
        %5836 = vmatprep.subr.mxu0 0.0
        %5837 = vmatpush2.msra.mxu0 0.0
        %5838 = vmatprep.subr.mxu0 0.0
        %5839 = vmatpush2.msra.mxu0 0.0
        %5840 = vmatprep.subr.mxu0 0.0
        %5841 = vmatpush2.msra.mxu0 0.0
        %5842 = vmatprep.subr.mxu0 0.0
        %5843 = vmatpush2.msra.mxu0 0.0
        %5844 = vmatprep.subr.mxu0 0.0
        %5845 = vmatpush2.msra.mxu0 0.0
        %5846 = vmatprep.subr.mxu0 0.0
        %5847 = vmatpush2.msra.mxu0 0.0
        %5848 = vmatprep.mubr.f32.mxu0 0.0
        %5849 = vmatmul.mubr.f32.gmra.mxu0 %v5782
        %v5850 = vpop.f32.mrf.mxu0
        %v5851 = vadd.f32 %v5778, %v5850
        %v5852 = vpop.f32.mrf.mxu0
        %5853 = vdwg.mxu0
        %s5854 = scalar_lea.vmem %s9, 160
        %v5855 = vld [vmem:[%s5854] sm:$0xff]
        %v5856 = vld [vmem:[%s5854 + $0x8] sm:$0xff]
        %v5857 = vld [vmem:[%s5854 + $0x10] sm:$0xff]
        %v5858 = vld [vmem:[%s5854 + $0x18] sm:$0xff]
        %v5859 = vld [vmem:[%s5854 + $0x20] sm:$0xff]
        %v5860 = vld [vmem:[%s5854 + $0x28] sm:$0xff]
        %v5861 = vld [vmem:[%s5854 + $0x30] sm:$0xff]
        %v5862 = vld [vmem:[%s5854 + $0x38] sm:$0xff]
        %v5863 = vld [vmem:[%s5854 + $0x40] sm:$0xff]
        %v5864 = vld [vmem:[%s5854 + $0x48] sm:$0xff]
        %v5866 = vsel %vm5707, %v5683, 0
        %5868 = vmatprep.subr.mxu0 0.0
        %5869 = vmatpush1.msra.mxu0 0.0
        %5870 = vmatprep.subr.mxu0 0.0
        %5871 = vmatpush1.msra.mxu0 0.0
        %5872 = vmatprep.subr.mxu0 0.0
        %5873 = vmatpush1.msra.mxu0 0.0
        %5874 = vmatprep.subr.mxu0 0.0
        %5875 = vmatpush1.msra.mxu0 0.0
        %5876 = vmatprep.subr.mxu0 0.0
        %5877 = vmatpush1.msra.mxu0 0.0
        %5878 = vmatprep.subr.mxu0 0.0
        %5879 = vmatpush1.msra.mxu0 0.0
        %5880 = vmatprep.subr.mxu0 0.0
        %5881 = vmatpush1.msra.mxu0 %v5864
        %5882 = vmatprep.subr.mxu0 0.0
        %5883 = vmatpush1.msra.mxu0 %v5863
        %5884 = vmatprep.subr.mxu0 0.0
        %5885 = vmatpush1.msra.mxu0 %v5862
        %5886 = vmatprep.subr.mxu0 0.0
        %5887 = vmatpush1.msra.mxu0 %v5861
        %5888 = vmatprep.subr.mxu0 0.0
        %5889 = vmatpush1.msra.mxu0 %v5860
        %5890 = vmatprep.subr.mxu0 0.0
        %5891 = vmatpush1.msra.mxu0 %v5859
        %5892 = vmatprep.subr.mxu0 0.0
        %5893 = vmatpush1.msra.mxu0 %v5858
        %5894 = vmatprep.subr.mxu0 0.0
        %5895 = vmatpush1.msra.mxu0 %v5857
        %5896 = vmatprep.subr.mxu0 0.0
        %5897 = vmatpush1.msra.mxu0 %v5856
        %5898 = vmatprep.subr.mxu0 0.0
        %5899 = vmatpush1.msra.mxu0 %v5855
        %5900 = vmatprep.subr.mxu0 0.0
        %5901 = vmatpush2.msra.mxu0 0.0
        %5902 = vmatprep.subr.mxu0 0.0
        %5903 = vmatpush2.msra.mxu0 0.0
        %5904 = vmatprep.subr.mxu0 0.0
        %5905 = vmatpush2.msra.mxu0 0.0
        %5906 = vmatprep.subr.mxu0 0.0
        %5907 = vmatpush2.msra.mxu0 0.0
        %5908 = vmatprep.subr.mxu0 0.0
        %5909 = vmatpush2.msra.mxu0 0.0
        %5910 = vmatprep.subr.mxu0 0.0
        %5911 = vmatpush2.msra.mxu0 0.0
        %5912 = vmatprep.subr.mxu0 0.0
        %5913 = vmatpush2.msra.mxu0 0.0
        %5914 = vmatprep.subr.mxu0 0.0
        %5915 = vmatpush2.msra.mxu0 0.0
        %5916 = vmatprep.subr.mxu0 0.0
        %5917 = vmatpush2.msra.mxu0 0.0
        %5918 = vmatprep.subr.mxu0 0.0
        %5919 = vmatpush2.msra.mxu0 0.0
        %5920 = vmatprep.subr.mxu0 0.0
        %5921 = vmatpush2.msra.mxu0 0.0
        %5922 = vmatprep.subr.mxu0 0.0
        %5923 = vmatpush2.msra.mxu0 0.0
        %5924 = vmatprep.subr.mxu0 0.0
        %5925 = vmatpush2.msra.mxu0 0.0
        %5926 = vmatprep.subr.mxu0 0.0
        %5927 = vmatpush2.msra.mxu0 0.0
        %5928 = vmatprep.subr.mxu0 0.0
        %5929 = vmatpush2.msra.mxu0 0.0
        %5930 = vmatprep.subr.mxu0 0.0
        %5931 = vmatpush2.msra.mxu0 0.0
        %5932 = vmatprep.mubr.f32.mxu0 0.0
        %5933 = vmatmul.mubr.f32.gmra.mxu0 %v5866
        %v5934 = vpop.f32.mrf.mxu0
        %v5935 = vadd.f32 0.0, %v5934
        %v5936 = vpop.f32.mrf.mxu0
        %5937 = vdwg.mxu0
        %v5938 = vadd.f32 %v5851, %v5935
        %s5939 = scalar_lea.vmem %s9, 240
        %v5940 = vld [vmem:[%s5939] sm:$0xff]
        %v5941 = vld [vmem:[%s5939 + $0x8] sm:$0xff]
        %v5942 = vld [vmem:[%s5939 + $0x10] sm:$0xff]
        %v5943 = vld [vmem:[%s5939 + $0x18] sm:$0xff]
        %v5944 = vld [vmem:[%s5939 + $0x20] sm:$0xff]
        %v5945 = vld [vmem:[%s5939 + $0x28] sm:$0xff]
        %v5946 = vld [vmem:[%s5939 + $0x30] sm:$0xff]
        %v5947 = vld [vmem:[%s5939 + $0x38] sm:$0xff]
        %v5948 = vld [vmem:[%s5939 + $0x40] sm:$0xff]
        %v5949 = vld [vmem:[%s5939 + $0x48] sm:$0xff]
        %v5951 = vsel %vm5707, %v5684, 0
        %5953 = vmatprep.subr.mxu0 0.0
        %5954 = vmatpush1.msra.mxu0 0.0
        %5955 = vmatprep.subr.mxu0 0.0
        %5956 = vmatpush1.msra.mxu0 0.0
        %5957 = vmatprep.subr.mxu0 0.0
        %5958 = vmatpush1.msra.mxu0 0.0
        %5959 = vmatprep.subr.mxu0 0.0
        %5960 = vmatpush1.msra.mxu0 0.0
        %5961 = vmatprep.subr.mxu0 0.0
        %5962 = vmatpush1.msra.mxu0 0.0
        %5963 = vmatprep.subr.mxu0 0.0
        %5964 = vmatpush1.msra.mxu0 0.0
        %5965 = vmatprep.subr.mxu0 0.0
        %5966 = vmatpush1.msra.mxu0 %v5949
        %5967 = vmatprep.subr.mxu0 0.0
        %5968 = vmatpush1.msra.mxu0 %v5948
        %5969 = vmatprep.subr.mxu0 0.0
        %5970 = vmatpush1.msra.mxu0 %v5947
        %5971 = vmatprep.subr.mxu0 0.0
        %5972 = vmatpush1.msra.mxu0 %v5946
        %5973 = vmatprep.subr.mxu0 0.0
        %5974 = vmatpush1.msra.mxu0 %v5945
        %5975 = vmatprep.subr.mxu0 0.0
        %5976 = vmatpush1.msra.mxu0 %v5944
        %5977 = vmatprep.subr.mxu0 0.0
        %5978 = vmatpush1.msra.mxu0 %v5943
        %5979 = vmatprep.subr.mxu0 0.0
        %5980 = vmatpush1.msra.mxu0 %v5942
        %5981 = vmatprep.subr.mxu0 0.0
        %5982 = vmatpush1.msra.mxu0 %v5941
        %5983 = vmatprep.subr.mxu0 0.0
        %5984 = vmatpush1.msra.mxu0 %v5940
        %5985 = vmatprep.subr.mxu0 0.0
        %5986 = vmatpush2.msra.mxu0 0.0
        %5987 = vmatprep.subr.mxu0 0.0
        %5988 = vmatpush2.msra.mxu0 0.0
        %5989 = vmatprep.subr.mxu0 0.0
        %5990 = vmatpush2.msra.mxu0 0.0
        %5991 = vmatprep.subr.mxu0 0.0
        %5992 = vmatpush2.msra.mxu0 0.0
        %5993 = vmatprep.subr.mxu0 0.0
        %5994 = vmatpush2.msra.mxu0 0.0
        %5995 = vmatprep.subr.mxu0 0.0
        %5996 = vmatpush2.msra.mxu0 0.0
        %5997 = vmatprep.subr.mxu0 0.0
        %5998 = vmatpush2.msra.mxu0 0.0
        %5999 = vmatprep.subr.mxu0 0.0
        %6000 = vmatpush2.msra.mxu0 0.0
        %6001 = vmatprep.subr.mxu0 0.0
        %6002 = vmatpush2.msra.mxu0 0.0
        %6003 = vmatprep.subr.mxu0 0.0
        %6004 = vmatpush2.msra.mxu0 0.0
        %6005 = vmatprep.subr.mxu0 0.0
        %6006 = vmatpush2.msra.mxu0 0.0
        %6007 = vmatprep.subr.mxu0 0.0
        %6008 = vmatpush2.msra.mxu0 0.0
        %6009 = vmatprep.subr.mxu0 0.0
        %6010 = vmatpush2.msra.mxu0 0.0
        %6011 = vmatprep.subr.mxu0 0.0
        %6012 = vmatpush2.msra.mxu0 0.0
        %6013 = vmatprep.subr.mxu0 0.0
        %6014 = vmatpush2.msra.mxu0 0.0
        %6015 = vmatprep.subr.mxu0 0.0
        %6016 = vmatpush2.msra.mxu0 0.0
        %6017 = vmatprep.mubr.f32.mxu0 0.0
        %6018 = vmatmul.mubr.f32.gmra.mxu0 %v5951
        %v6019 = vpop.f32.mrf.mxu0
        %v6020 = vadd.f32 0.0, %v6019
        %v6021 = vpop.f32.mrf.mxu0
        %6022 = vdwg.mxu0
        %v6023 = vadd.f32 %v5938, %v6020
        %s6024 = scalar_lea.vmem %s9, 320
        %v6025 = vld [vmem:[%s6024] sm:$0xff]
        %v6026 = vld [vmem:[%s6024 + $0x8] sm:$0xff]
        %v6027 = vld [vmem:[%s6024 + $0x10] sm:$0xff]
        %v6028 = vld [vmem:[%s6024 + $0x18] sm:$0xff]
        %v6029 = vld [vmem:[%s6024 + $0x20] sm:$0xff]
        %v6030 = vld [vmem:[%s6024 + $0x28] sm:$0xff]
        %v6031 = vld [vmem:[%s6024 + $0x30] sm:$0xff]
        %v6032 = vld [vmem:[%s6024 + $0x38] sm:$0xff]
        %v6033 = vld [vmem:[%s6024 + $0x40] sm:$0xff]
        %v6034 = vld [vmem:[%s6024 + $0x48] sm:$0xff]
        %v6036 = vsel %vm5707, %v5685, 0
        %6038 = vmatprep.subr.mxu0 0.0
        %6039 = vmatpush1.msra.mxu0 0.0
        %6040 = vmatprep.subr.mxu0 0.0
        %6041 = vmatpush1.msra.mxu0 0.0
        %6042 = vmatprep.subr.mxu0 0.0
        %6043 = vmatpush1.msra.mxu0 0.0
        %6044 = vmatprep.subr.mxu0 0.0
        %6045 = vmatpush1.msra.mxu0 0.0
        %6046 = vmatprep.subr.mxu0 0.0
        %6047 = vmatpush1.msra.mxu0 0.0
        %6048 = vmatprep.subr.mxu0 0.0
        %6049 = vmatpush1.msra.mxu0 0.0
        %6050 = vmatprep.subr.mxu0 0.0
        %6051 = vmatpush1.msra.mxu0 %v6034
        %6052 = vmatprep.subr.mxu0 0.0
        %6053 = vmatpush1.msra.mxu0 %v6033
        %6054 = vmatprep.subr.mxu0 0.0
        %6055 = vmatpush1.msra.mxu0 %v6032
        %6056 = vmatprep.subr.mxu0 0.0
        %6057 = vmatpush1.msra.mxu0 %v6031
        %6058 = vmatprep.subr.mxu0 0.0
        %6059 = vmatpush1.msra.mxu0 %v6030
        %6060 = vmatprep.subr.mxu0 0.0
        %6061 = vmatpush1.msra.mxu0 %v6029
        %6062 = vmatprep.subr.mxu0 0.0
        %6063 = vmatpush1.msra.mxu0 %v6028
        %6064 = vmatprep.subr.mxu0 0.0
        %6065 = vmatpush1.msra.mxu0 %v6027
        %6066 = vmatprep.subr.mxu0 0.0
        %6067 = vmatpush1.msra.mxu0 %v6026
        %6068 = vmatprep.subr.mxu0 0.0
        %6069 = vmatpush1.msra.mxu0 %v6025
        %6070 = vmatprep.subr.mxu0 0.0
        %6071 = vmatpush2.msra.mxu0 0.0
        %6072 = vmatprep.subr.mxu0 0.0
        %6073 = vmatpush2.msra.mxu0 0.0
        %6074 = vmatprep.subr.mxu0 0.0
        %6075 = vmatpush2.msra.mxu0 0.0
        %6076 = vmatprep.subr.mxu0 0.0
        %6077 = vmatpush2.msra.mxu0 0.0
        %6078 = vmatprep.subr.mxu0 0.0
        %6079 = vmatpush2.msra.mxu0 0.0
        %6080 = vmatprep.subr.mxu0 0.0
        %6081 = vmatpush2.msra.mxu0 0.0
        %6082 = vmatprep.subr.mxu0 0.0
        %6083 = vmatpush2.msra.mxu0 0.0
        %6084 = vmatprep.subr.mxu0 0.0
        %6085 = vmatpush2.msra.mxu0 0.0
        %6086 = vmatprep.subr.mxu0 0.0
        %6087 = vmatpush2.msra.mxu0 0.0
        %6088 = vmatprep.subr.mxu0 0.0
        %6089 = vmatpush2.msra.mxu0 0.0
        %6090 = vmatprep.subr.mxu0 0.0
        %6091 = vmatpush2.msra.mxu0 0.0
        %6092 = vmatprep.subr.mxu0 0.0
        %6093 = vmatpush2.msra.mxu0 0.0
        %6094 = vmatprep.subr.mxu0 0.0
        %6095 = vmatpush2.msra.mxu0 0.0
        %6096 = vmatprep.subr.mxu0 0.0
        %6097 = vmatpush2.msra.mxu0 0.0
        %6098 = vmatprep.subr.mxu0 0.0
        %6099 = vmatpush2.msra.mxu0 0.0
        %6100 = vmatprep.subr.mxu0 0.0
        %6101 = vmatpush2.msra.mxu0 0.0
        %6102 = vmatprep.mubr.f32.mxu0 0.0
        %6103 = vmatmul.mubr.f32.gmra.mxu0 %v6036
        %v6104 = vpop.f32.mrf.mxu0
        %v6105 = vadd.f32 0.0, %v6104
        %v6106 = vpop.f32.mrf.mxu0
        %6107 = vdwg.mxu0
        %v6108 = vadd.f32 %v6023, %v6105
        %v6109 = vld [vmem:[%s10] sm:$0x1]
        %v6111 = vlaneseq
        %v6112 = vshrl.u32 %v6111, 7
        %v6113 = vsub.s32 0, %v6112
        %v6114 = vrot.slane %v6109, %v6113
        %v6116 = vadd.f32 %v6108, %v6114
        %v6117 = vmax.f32 %v6116, 0.0
        %v6118 = vld [vmem:[%s11] sm:$0xff]
        %v6119 = vld [vmem:[%s11 + $0x8] sm:$0xff]
        %v6120 = vld [vmem:[%s11 + $0x10] sm:$0xff]
        %v6121 = vld [vmem:[%s11 + $0x18] sm:$0xff]
        %v6122 = vld [vmem:[%s11 + $0x20] sm:$0xff]
        %v6123 = vld [vmem:[%s11 + $0x28] sm:$0xff]
        %v6124 = vld [vmem:[%s11 + $0x30] sm:$0xff]
        %v6125 = vld [vmem:[%s11 + $0x38] sm:$0xff]
        %v6126 = vld [vmem:[%s11 + $0x40] sm:$0xff]
        %v6127 = vld [vmem:[%s11 + $0x48] sm:$0xff]
        %v6128 = vld [vmem:[%s11 + $0x50] sm:$0xff]
        %v6129 = vld [vmem:[%s11 + $0x58] sm:$0xff]
        %v6130 = vld [vmem:[%s11 + $0x60] sm:$0xff]
        %v6131 = vld [vmem:[%s11 + $0x68] sm:$0xff]
        %v6132 = vld [vmem:[%s11 + $0x70] sm:$0xff]
        %v6133 = vld [vmem:[%s11 + $0x78] sm:$0xff]
        %v6134 = vld [vmem:[%s12] sm:$0x1]
        %v6136 = vlaneseq
        %v6137 = vshrl.u32 %v6136, 7
        %v6138 = vsub.s32 0, %v6137
        %v6139 = vrot.slane %v6134, %v6138
        %6141 = vmatprep.subr.mxu0 0.0
        %6142 = vmatpush1.msra.mxu0 %v6133
        %6143 = vmatprep.subr.mxu0 0.0
        %6144 = vmatpush1.msra.mxu0 %v6132
        %6145 = vmatprep.subr.mxu0 0.0
        %6146 = vmatpush1.msra.mxu0 %v6131
        %6147 = vmatprep.subr.mxu0 0.0
        %6148 = vmatpush1.msra.mxu0 %v6130
        %6149 = vmatprep.subr.mxu0 0.0
        %6150 = vmatpush1.msra.mxu0 %v6129
        %6151 = vmatprep.subr.mxu0 0.0
        %6152 = vmatpush1.msra.mxu0 %v6128
        %6153 = vmatprep.subr.mxu0 0.0
        %6154 = vmatpush1.msra.mxu0 %v6127
        %6155 = vmatprep.subr.mxu0 0.0
        %6156 = vmatpush1.msra.mxu0 %v6126
        %6157 = vmatprep.subr.mxu0 0.0
        %6158 = vmatpush1.msra.mxu0 %v6125
        %6159 = vmatprep.subr.mxu0 0.0
        %6160 = vmatpush1.msra.mxu0 %v6124
        %6161 = vmatprep.subr.mxu0 0.0
        %6162 = vmatpush1.msra.mxu0 %v6123
        %6163 = vmatprep.subr.mxu0 0.0
        %6164 = vmatpush1.msra.mxu0 %v6122
        %6165 = vmatprep.subr.mxu0 0.0
        %6166 = vmatpush1.msra.mxu0 %v6121
        %6167 = vmatprep.subr.mxu0 0.0
        %6168 = vmatpush1.msra.mxu0 %v6120
        %6169 = vmatprep.subr.mxu0 0.0
        %6170 = vmatpush1.msra.mxu0 %v6119
        %6171 = vmatprep.subr.mxu0 0.0
        %6172 = vmatpush1.msra.mxu0 %v6118
        %6173 = vmatprep.subr.mxu0 0.0
        %6174 = vmatpush2.msra.mxu0 0.0
        %6175 = vmatprep.subr.mxu0 0.0
        %6176 = vmatpush2.msra.mxu0 0.0
        %6177 = vmatprep.subr.mxu0 0.0
        %6178 = vmatpush2.msra.mxu0 0.0
        %6179 = vmatprep.subr.mxu0 0.0
        %6180 = vmatpush2.msra.mxu0 0.0
        %6181 = vmatprep.subr.mxu0 0.0
        %6182 = vmatpush2.msra.mxu0 0.0
        %6183 = vmatprep.subr.mxu0 0.0
        %6184 = vmatpush2.msra.mxu0 0.0
        %6185 = vmatprep.subr.mxu0 0.0
        %6186 = vmatpush2.msra.mxu0 0.0
        %6187 = vmatprep.subr.mxu0 0.0
        %6188 = vmatpush2.msra.mxu0 0.0
        %6189 = vmatprep.subr.mxu0 0.0
        %6190 = vmatpush2.msra.mxu0 0.0
        %6191 = vmatprep.subr.mxu0 0.0
        %6192 = vmatpush2.msra.mxu0 0.0
        %6193 = vmatprep.subr.mxu0 0.0
        %6194 = vmatpush2.msra.mxu0 0.0
        %6195 = vmatprep.subr.mxu0 0.0
        %6196 = vmatpush2.msra.mxu0 0.0
        %6197 = vmatprep.subr.mxu0 0.0
        %6198 = vmatpush2.msra.mxu0 0.0
        %6199 = vmatprep.subr.mxu0 0.0
        %6200 = vmatpush2.msra.mxu0 0.0
        %6201 = vmatprep.subr.mxu0 0.0
        %6202 = vmatpush2.msra.mxu0 0.0
        %6203 = vmatprep.subr.mxu0 0.0
        %6204 = vmatpush2.msra.mxu0 0.0
        %6205 = vmatprep.mubr.f32.mxu0 0.0
        %6206 = vmatmul.mubr.f32.gmra.mxu0 %v6117
        %v6207 = vpop.f32.mrf.mxu0
        %v6208 = vadd.f32 %v6139, %v6207
        %v6209 = vpop.f32.mrf.mxu0
        %6210 = vdwg.mxu0
        %v6211 = vmax.f32 %v6208, 0.0
        %v6212 = vld [vmem:[%s13] sm:$0xff]
        %v6213 = vld [vmem:[%s13 + $0x8] sm:$0xff]
        %v6214 = vld [vmem:[%s13 + $0x10] sm:$0xff]
        %v6215 = vld [vmem:[%s13 + $0x18] sm:$0xff]
        %v6216 = vld [vmem:[%s13 + $0x20] sm:$0xff]
        %v6217 = vld [vmem:[%s13 + $0x28] sm:$0xff]
        %v6218 = vld [vmem:[%s13 + $0x30] sm:$0xff]
        %v6219 = vld [vmem:[%s13 + $0x38] sm:$0xff]
        %v6220 = vld [vmem:[%s13 + $0x40] sm:$0xff]
        %v6221 = vld [vmem:[%s13 + $0x48] sm:$0xff]
        %v6222 = vld [vmem:[%s13 + $0x50] sm:$0xff]
        %v6223 = vld [vmem:[%s13 + $0x58] sm:$0xff]
        %v6224 = vld [vmem:[%s13 + $0x60] sm:$0xff]
        %v6225 = vld [vmem:[%s13 + $0x68] sm:$0xff]
        %v6226 = vld [vmem:[%s13 + $0x70] sm:$0xff]
        %v6227 = vld [vmem:[%s13 + $0x78] sm:$0xff]
        %v6228 = vld [vmem:[%s14] sm:$0x1]
        %v6230 = vlaneseq
        %v6231 = vshrl.u32 %v6230, 7
        %v6232 = vsub.s32 0, %v6231
        %v6233 = vrot.slane %v6228, %v6232
        %6235 = vmatprep.subr.mxu0 0.0
        %6236 = vmatpush1.msra.mxu0 %v6227
        %6237 = vmatprep.subr.mxu0 0.0
        %6238 = vmatpush1.msra.mxu0 %v6226
        %6239 = vmatprep.subr.mxu0 0.0
        %6240 = vmatpush1.msra.mxu0 %v6225
        %6241 = vmatprep.subr.mxu0 0.0
        %6242 = vmatpush1.msra.mxu0 %v6224
        %6243 = vmatprep.subr.mxu0 0.0
        %6244 = vmatpush1.msra.mxu0 %v6223
        %6245 = vmatprep.subr.mxu0 0.0
        %6246 = vmatpush1.msra.mxu0 %v6222
        %6247 = vmatprep.subr.mxu0 0.0
        %6248 = vmatpush1.msra.mxu0 %v6221
        %6249 = vmatprep.subr.mxu0 0.0
        %6250 = vmatpush1.msra.mxu0 %v6220
        %6251 = vmatprep.subr.mxu0 0.0
        %6252 = vmatpush1.msra.mxu0 %v6219
        %6253 = vmatprep.subr.mxu0 0.0
        %6254 = vmatpush1.msra.mxu0 %v6218
        %6255 = vmatprep.subr.mxu0 0.0
        %6256 = vmatpush1.msra.mxu0 %v6217
        %6257 = vmatprep.subr.mxu0 0.0
        %6258 = vmatpush1.msra.mxu0 %v6216
        %6259 = vmatprep.subr.mxu0 0.0
        %6260 = vmatpush1.msra.mxu0 %v6215
        %6261 = vmatprep.subr.mxu0 0.0
        %6262 = vmatpush1.msra.mxu0 %v6214
        %6263 = vmatprep.subr.mxu0 0.0
        %6264 = vmatpush1.msra.mxu0 %v6213
        %6265 = vmatprep.subr.mxu0 0.0
        %6266 = vmatpush1.msra.mxu0 %v6212
        %6267 = vmatprep.subr.mxu0 0.0
        %6268 = vmatpush2.msra.mxu0 0.0
        %6269 = vmatprep.subr.mxu0 0.0
        %6270 = vmatpush2.msra.mxu0 0.0
        %6271 = vmatprep.subr.mxu0 0.0
        %6272 = vmatpush2.msra.mxu0 0.0
        %6273 = vmatprep.subr.mxu0 0.0
        %6274 = vmatpush2.msra.mxu0 0.0
        %6275 = vmatprep.subr.mxu0 0.0
        %6276 = vmatpush2.msra.mxu0 0.0
        %6277 = vmatprep.subr.mxu0 0.0
        %6278 = vmatpush2.msra.mxu0 0.0
        %6279 = vmatprep.subr.mxu0 0.0
        %6280 = vmatpush2.msra.mxu0 0.0
        %6281 = vmatprep.subr.mxu0 0.0
        %6282 = vmatpush2.msra.mxu0 0.0
        %6283 = vmatprep.subr.mxu0 0.0
        %6284 = vmatpush2.msra.mxu0 0.0
        %6285 = vmatprep.subr.mxu0 0.0
        %6286 = vmatpush2.msra.mxu0 0.0
        %6287 = vmatprep.subr.mxu0 0.0
        %6288 = vmatpush2.msra.mxu0 0.0
        %6289 = vmatprep.subr.mxu0 0.0
        %6290 = vmatpush2.msra.mxu0 0.0
        %6291 = vmatprep.subr.mxu0 0.0
        %6292 = vmatpush2.msra.mxu0 0.0
        %6293 = vmatprep.subr.mxu0 0.0
        %6294 = vmatpush2.msra.mxu0 0.0
        %6295 = vmatprep.subr.mxu0 0.0
        %6296 = vmatpush2.msra.mxu0 0.0
        %6297 = vmatprep.subr.mxu0 0.0
        %6298 = vmatpush2.msra.mxu0 0.0
        %6299 = vmatprep.mubr.f32.mxu0 0.0
        %6300 = vmatmul.mubr.f32.gmra.mxu0 %v6211
        %v6301 = vpop.f32.mrf.mxu0
        %v6302 = vadd.f32 %v6233, %v6301
        %v6303 = vpop.f32.mrf.mxu0
        %6304 = vdwg.mxu0
        %6305 = vst [vmem:[%s488] sm:$0xff] %v6302
        %s6306 = sand.u32 %s357, 1
        %s6307 = scalar_lea.sflag [#allocation4], %s6306
        %s6308 = sand.u32 %s357, 1
        %s6309 = smul.addr %s6308, 8
        %s6310 = scalar_lea.vmem [#allocation3], %s6309
        // Predicated region
        $region81: #{net_forward.1} parent=79 // pred_check
          %p6311 = pneg %p367
        $region82: #{net_forward.1} parent=79 // pred_check_branch
          %6313 = sbr.rel (%p6311) target = $region84
        $region83: #{net_forward.1} parent=79 // pred_region
          %s6315 = ssub.s32 128, 128
          %6316 = vsyncadd %s6307, %s6315
          %s6317 = smul.addr %s29, 128
          %s6318 = scalar_lea.hbm %s15, %s6317
          %s6320 = sshll.u32 %s6310, 4
          %s6321 = int_to_ptr.vmem [resolvable:$true] %s6320
          %6323 = dma.vmem_to_hbm [thread:$0]  %s6321, 128, %s6318, %s6307
        $region84: #{net_forward.1} parent=79 // pred_fallthru
          _
      $region80: #{net_forward.1} parent=5 // pred_fallthru
        _
      %p6324 = scmp.le.s32.totalorder 2, %s24
      // Predicated region
      $region85: #{net_forward.1} parent=5 // pred_check
        %p6325 = pneg %p6324
      $region86: #{net_forward.1} parent=5 // pred_check_branch
        %6327 = sbr.rel (%p6325) target = $region88
      $region87: #{net_forward.1} parent=5 // pred_region
        %s6328 = ssub.s32 %s24, 2
        // Predicated region
        $region89: #{net_forward.1} parent=87 // pred_check
          %p6329 = pneg %p373
        $region90: #{net_forward.1} parent=87 // pred_check_branch
          %6331 = sbr.rel (%p6329) target = $region92
        $region91: #{net_forward.1} parent=87 // pred_region
          %s6332 = sand.u32 %s358, 1
          %s6333 = scalar_lea.sflag [#allocation4], %s6332
          %s6334 = sand.u32 %s358, 1
          %s6335 = smul.addr %s6334, 8
          %s6336 = scalar_lea.vmem [#allocation3], %s6335
          %6337 = dma.done %s6333, 128
        $region92: #{net_forward.1} parent=87 // pred_fallthru
          _
      $region88: #{net_forward.1} parent=5 // pred_fallthru
        _
    $region6: #{net_forward.1} parent=1 // loop_footer
      %s28 = sadd.s32 1, %s24
    $region7: #{net_forward.1} parent=1 // loop_footer_branch
      %23 = sbr.rel target = $region3
    $region8: #{net_forward.1} parent=1 // loop_exit
      _
    %6338 = vsyncpa [#allocation4], 1
    %s6339 = scalar_lea.sflag [#allocation4], 1
    %6340 = vsyncpa %s6339, 1

</llo_original>
